<compile_context>
chip_gen: v7x
topology: tpu7x:2x2x1
jax: 0.10.0
libtpu: 0.0.40
codegen_flags: <defaults>
</compile_context>

<pallas_src>
import functools
import math

import numpy as np
import jax
import jax.numpy as jnp
from jax.experimental import pallas as pl
from jax.experimental.pallas import tpu as pltpu


# Lane padding on each side of the flattened (batch*spatial) axis; must be
# >= the largest |tap offset| = H*W + W + 1.
_PAD = 128


# ----------------------------------------------------------------------------
# Static helpers (tap offsets / validity masks / pooling matrix)
# ----------------------------------------------------------------------------
def _tap_offsets(D, H, W):
    """Flat-index offset of each 3x3x3 tap, enumerated (kd, kh, kw) row-major."""
    return tuple((kd - 1) * H * W + (kh - 1) * W + (kw - 1)
                 for kd in range(3) for kh in range(3) for kw in range(3))


def _tap_masks(B, D, H, W):
    """(27, B*D*H*W) f32 validity mask per tap for a pad-1 conv.

    A tap is valid at flat column c=(b,d,h,w) iff (d+dd, h+dh, w+dw) all lie
    inside the volume.  This mask also zeroes every position whose flat shift
    would wrap across a row / plane / batch boundary, so a plain 1-D shift of
    the flattened axis is exact.
    """
    S = D * H * W
    f = np.arange(B * S) % S
    d = f // (H * W)
    h = (f // W) % H
    w = f % W
    rows = []
    for kd in range(3):
        for kh in range(3):
            for kw in range(3):
                dd, dh, dw = kd - 1, kh - 1, kw - 1
                ok = ((d + dd >= 0) & (d + dd < D) &
                      (h + dh >= 0) & (h + dh < H) &
                      (w + dw >= 0) & (w + dw < W))
                rows.append(ok.astype(np.float32))
    return np.stack(rows, axis=0)


def _pool_matrix(B, S):
    """(B*S, B) matrix implementing per-batch global average pooling."""
    p = np.zeros((B * S, B), np.float32)
    for b in range(B):
        p[b * S:(b + 1) * S, b] = 1.0 / S
    return p


# ----------------------------------------------------------------------------
# The single fused Pallas kernel
# ----------------------------------------------------------------------------
def _fused_cnn_kernel(x_ref, mask_ref, pool_ref,
                      wc1_ref, bc1_ref, wc2_ref, bc2_ref,
                      g_ref, be_ref, wm1_ref, bm1_ref, wm2_ref, bm2_ref,
                      out_ref, *, n, offsets):
    """Full forward in VMEM.  Layout: channels-first (C, B*S), spatial on lanes."""
    mask = mask_ref[...]                                      # (27, n)

    def conv3x3x3_relu(xc, w_ref, b_ref):
        # xc: (Cin, n); w_ref: (Cout, 27*Cin); b_ref: (Cout, 1)
        cin = xc.shape[0]
        zpad = jnp.zeros((cin, _PAD), jnp.float32)
        xp = jnp.concatenate([zpad, xc, zpad], axis=1)        # (Cin, n + 2*_PAD)
        # im2col: 27 masked, lane-shifted tap views stacked on the sublane axis.
        cols = [xp[:, _PAD + off:_PAD + off + n] * mask[k:k + 1, :]
                for k, off in enumerate(offsets)]
        col = jnp.concatenate(cols, axis=0)                   # (27*Cin, n)
        y = jnp.dot(w_ref[...], col, preferred_element_type=jnp.float32)
        return jnp.maximum(y + b_ref[...], 0.0)               # bias + ReLU

    # --- Encoder: two Conv3d(k=3, s=1, p=1) + ReLU blocks ---------------------
    h1 = conv3x3x3_relu(x_ref[...], wc1_ref, bc1_ref)         # (C1, n)
    h2 = conv3x3x3_relu(h1, wc2_ref, bc2_ref)                 # (C2, n)

    # --- AdaptiveAvgPool3d(1): matmul against the (n, B) pooling matrix -------
    a0 = jnp.dot(h2, pool_ref[...], preferred_element_type=jnp.float32)  # (C2, B)

    # --- LayerNorm over channels (axis 0; batch sits on the lane axis) --------
    mu = jnp.mean(a0, axis=0, keepdims=True)
    var = jnp.mean((a0 - mu) ** 2, axis=0, keepdims=True)
    a = (a0 - mu) * jax.lax.rsqrt(var + 1e-5)
    a = a * g_ref[...] + be_ref[...]

    # --- MLP: Linear -> ReLU -> Linear (channels-first form) ------------------
    h = jnp.dot(wm1_ref[...], a, preferred_element_type=jnp.float32) + bm1_ref[...]
    h = jnp.maximum(h, 0.0)
    y = jnp.dot(wm2_ref[...], h, preferred_element_type=jnp.float32) + bm2_ref[...]
    out_ref[...] = y.astype(out_ref.dtype)                    # (Nout, B)


# ----------------------------------------------------------------------------
# Parameter init (deterministic, PyTorch-style layouts) and forward wrapper
# ----------------------------------------------------------------------------
def init_params(key, in_ch=4, enc_ch=(8, 16), mlp_hidden=32, out_ch=8):
    ks = jax.random.split(key, 4)
    c0, c1 = enc_ch

    def conv_init(k, cout, cin):
        fan_in = cin * 27
        s = 1.0 / math.sqrt(fan_in)
        return (jax.random.uniform(k, (cout, cin, 3, 3, 3), jnp.float32, -s, s),
                jnp.zeros((cout,), jnp.float32))

    def lin_init(k, cout, cin):
        s = 1.0 / math.sqrt(cin)
        return (jax.random.uniform(k, (cout, cin), jnp.float32, -s, s),
                jnp.zeros((cout,), jnp.float32))

    w_c1, b_c1 = conv_init(ks[0], c0, in_ch)
    w_c2, b_c2 = conv_init(ks[1], c1, c0)
    gamma = jnp.ones((c1,), jnp.float32)
    beta = jnp.zeros((c1,), jnp.float32)
    w1, b1 = lin_init(ks[2], mlp_hidden, c1)       # (Hid, C2), (Hid,)
    w2, b2 = lin_init(ks[3], out_ch, mlp_hidden)   # (Nout, Hid), (Nout,)
    return dict(w_c1=w_c1, b_c1=b_c1, w_c2=w_c2, b_c2=b_c2,
                gamma=gamma, beta=beta, w1=w1, b1=b1, w2=w2, b2=b2)


@jax.jit
def cnn_forward(params, x):
    B, Cin, D, H, W = x.shape
    S = D * H * W
    n = B * S
    assert H * W + W + 1 <= _PAD
    assert n % 128 == 0

    # One tiny (16 KB) layout change up front: channels-first, (batch, spatial)
    # flattened onto the lane axis.  Everything downstream stays in VMEM.
    x2d = jnp.transpose(x, (1, 0, 2, 3, 4)).reshape(Cin, n)

    # Compile-time constant helper tensors.
    mask = jnp.asarray(_tap_masks(B, D, H, W))               # (27, n)
    pool = jnp.asarray(_pool_matrix(B, S))                   # (n, B)
    offsets = _tap_offsets(D, H, W)

    # Repack conv weights as (Cout, 27*Cin), tap-major / channel-minor, to
    # match the in-kernel im2col row order (k outer, cin inner).
    c1 = params["w_c1"].shape[0]
    c2 = params["w_c2"].shape[0]
    wc1 = jnp.transpose(params["w_c1"], (0, 2, 3, 4, 1)).reshape(c1, 27 * Cin)
    wc2 = jnp.transpose(params["w_c2"], (0, 2, 3, 4, 1)).reshape(c2, 27 * c1)
    bc1 = params["b_c1"].reshape(c1, 1)
    bc2 = params["b_c2"].reshape(c2, 1)
    gamma = params["gamma"].reshape(c2, 1)
    beta = params["beta"].reshape(c2, 1)
    wm1 = params["w1"]                                        # (Hid, C2)
    bm1 = params["b1"].reshape(-1, 1)                         # (Hid, 1)
    wm2 = params["w2"]                                        # (Nout, Hid)
    bm2 = params["b2"].reshape(-1, 1)                         # (Nout, 1)
    n_out = wm2.shape[0]

    vmem = pl.BlockSpec(memory_space=pltpu.MemorySpace.VMEM)
    y_t = pl.pallas_call(
        functools.partial(_fused_cnn_kernel, n=n, offsets=offsets),
        out_shape=jax.ShapeDtypeStruct((n_out, B), jnp.float32),
        in_specs=[vmem] * 13,
        out_specs=vmem,
    )(x2d, mask, pool, wc1, bc1, wc2, bc2, gamma, beta, wm1, bm1, wm2, bm2)

    return y_t.T                                              # (B, Nout)


if __name__ == "__main__":
    key = jax.random.PRNGKey(0)
    pkey, xkey = jax.random.split(key)
    params = init_params(pkey)
    # small shapes: batch=2, input_channels=4, depth=height=width=8
    x = jax.random.normal(xkey, (2, 4, 8, 8, 8), dtype=jnp.float32)
    y = cnn_forward(params, x)
    jax.block_until_ready(y)
    assert y.shape == (2, 8) and y.dtype == jnp.float32
    assert bool(jnp.all(jnp.isfinite(y)))
    print("KERNEL_OK")
</pallas_src>

<mosaic_0001>
module attributes {stable_mosaic.version = 11 : i64} {
  func.func @_fused_cnn_kernel(%arg0: memref<4x1024xf32, #tpu.memory_space<vmem>>, %arg1: memref<27x1024xf32, #tpu.memory_space<vmem>>, %arg2: memref<1024x2xf32, #tpu.memory_space<vmem>>, %arg3: memref<8x108xf32, #tpu.memory_space<vmem>>, %arg4: memref<8x1xf32, #tpu.memory_space<vmem>>, %arg5: memref<16x216xf32, #tpu.memory_space<vmem>>, %arg6: memref<16x1xf32, #tpu.memory_space<vmem>>, %arg7: memref<16x1xf32, #tpu.memory_space<vmem>>, %arg8: memref<16x1xf32, #tpu.memory_space<vmem>>, %arg9: memref<32x16xf32, #tpu.memory_space<vmem>>, %arg10: memref<32x1xf32, #tpu.memory_space<vmem>>, %arg11: memref<8x32xf32, #tpu.memory_space<vmem>>, %arg12: memref<8x1xf32, #tpu.memory_space<vmem>>, %arg13: memref<8x2xf32, #tpu.memory_space<vmem>>) attributes {dimension_semantics = [], scalar_prefetch = 0 : i64, scratch_operands = 0 : i64, tpu.core_type = #tpu.core_type<tc>} {
    %c0 = arith.constant 0 : index
    %c0_0 = arith.constant 0 : index
    %0 = vector.load %arg1[%c0, %c0_0] : memref<27x1024xf32, #tpu.memory_space<vmem>>, vector<27x1024xf32>
    %c0_1 = arith.constant 0 : index
    %c0_2 = arith.constant 0 : index
    %1 = vector.load %arg0[%c0_1, %c0_2] : memref<4x1024xf32, #tpu.memory_space<vmem>>, vector<4x1024xf32>
    %cst = arith.constant 0.000000e+00 : f32
    %2 = vector.broadcast %cst : f32 to vector<4x128xf32>
    %3 = tpu.concatenate %2, %1, %2 in 1 : vector<4x128xf32>, vector<4x1024xf32>, vector<4x128xf32> -> vector<4x1280xf32>
    %4 = vector.extract_strided_slice %3 {offsets = [0, 55], sizes = [4, 1024], strides = [1, 1]} : vector<4x1280xf32> to vector<4x1024xf32>
    %5 = vector.extract_strided_slice %0 {offsets = [0, 0], sizes = [1, 1024], strides = [1, 1]} : vector<27x1024xf32> to vector<1x1024xf32>
    %6 = vector.broadcast %5 : vector<1x1024xf32> to vector<4x1024xf32>
    %7 = arith.mulf %4, %6 : vector<4x1024xf32>
    %8 = vector.extract_strided_slice %3 {offsets = [0, 56], sizes = [4, 1024], strides = [1, 1]} : vector<4x1280xf32> to vector<4x1024xf32>
    %9 = vector.extract_strided_slice %0 {offsets = [1, 0], sizes = [1, 1024], strides = [1, 1]} : vector<27x1024xf32> to vector<1x1024xf32>
    %10 = vector.broadcast %9 : vector<1x1024xf32> to vector<4x1024xf32>
    %11 = arith.mulf %8, %10 : vector<4x1024xf32>
    %12 = vector.extract_strided_slice %3 {offsets = [0, 57], sizes = [4, 1024], strides = [1, 1]} : vector<4x1280xf32> to vector<4x1024xf32>
    %13 = vector.extract_strided_slice %0 {offsets = [2, 0], sizes = [1, 1024], strides = [1, 1]} : vector<27x1024xf32> to vector<1x1024xf32>
    %14 = vector.broadcast %13 : vector<1x1024xf32> to vector<4x1024xf32>
    %15 = arith.mulf %12, %14 : vector<4x1024xf32>
    %16 = vector.extract_strided_slice %3 {offsets = [0, 63], sizes = [4, 1024], strides = [1, 1]} : vector<4x1280xf32> to vector<4x1024xf32>
    %17 = vector.extract_strided_slice %0 {offsets = [3, 0], sizes = [1, 1024], strides = [1, 1]} : vector<27x1024xf32> to vector<1x1024xf32>
    %18 = vector.broadcast %17 : vector<1x1024xf32> to vector<4x1024xf32>
    %19 = arith.mulf %16, %18 : vector<4x1024xf32>
    %20 = vector.extract_strided_slice %3 {offsets = [0, 64], sizes = [4, 1024], strides = [1, 1]} : vector<4x1280xf32> to vector<4x1024xf32>
    %21 = vector.extract_strided_slice %0 {offsets = [4, 0], sizes = [1, 1024], strides = [1, 1]} : vector<27x1024xf32> to vector<1x1024xf32>
    %22 = vector.broadcast %21 : vector<1x1024xf32> to vector<4x1024xf32>
    %23 = arith.mulf %20, %22 : vector<4x1024xf32>
    %24 = vector.extract_strided_slice %3 {offsets = [0, 65], sizes = [4, 1024], strides = [1, 1]} : vector<4x1280xf32> to vector<4x1024xf32>
    %25 = vector.extract_strided_slice %0 {offsets = [5, 0], sizes = [1, 1024], strides = [1, 1]} : vector<27x1024xf32> to vector<1x1024xf32>
    %26 = vector.broadcast %25 : vector<1x1024xf32> to vector<4x1024xf32>
    %27 = arith.mulf %24, %26 : vector<4x1024xf32>
    %28 = vector.extract_strided_slice %3 {offsets = [0, 71], sizes = [4, 1024], strides = [1, 1]} : vector<4x1280xf32> to vector<4x1024xf32>
    %29 = vector.extract_strided_slice %0 {offsets = [6, 0], sizes = [1, 1024], strides = [1, 1]} : vector<27x1024xf32> to vector<1x1024xf32>
    %30 = vector.broadcast %29 : vector<1x1024xf32> to vector<4x1024xf32>
    %31 = arith.mulf %28, %30 : vector<4x1024xf32>
    %32 = vector.extract_strided_slice %3 {offsets = [0, 72], sizes = [4, 1024], strides = [1, 1]} : vector<4x1280xf32> to vector<4x1024xf32>
    %33 = vector.extract_strided_slice %0 {offsets = [7, 0], sizes = [1, 1024], strides = [1, 1]} : vector<27x1024xf32> to vector<1x1024xf32>
    %34 = vector.broadcast %33 : vector<1x1024xf32> to vector<4x1024xf32>
    %35 = arith.mulf %32, %34 : vector<4x1024xf32>
    %36 = vector.extract_strided_slice %3 {offsets = [0, 73], sizes = [4, 1024], strides = [1, 1]} : vector<4x1280xf32> to vector<4x1024xf32>
    %37 = vector.extract_strided_slice %0 {offsets = [8, 0], sizes = [1, 1024], strides = [1, 1]} : vector<27x1024xf32> to vector<1x1024xf32>
    %38 = vector.broadcast %37 : vector<1x1024xf32> to vector<4x1024xf32>
    %39 = arith.mulf %36, %38 : vector<4x1024xf32>
    %40 = vector.extract_strided_slice %3 {offsets = [0, 119], sizes = [4, 1024], strides = [1, 1]} : vector<4x1280xf32> to vector<4x1024xf32>
    %41 = vector.extract_strided_slice %0 {offsets = [9, 0], sizes = [1, 1024], strides = [1, 1]} : vector<27x1024xf32> to vector<1x1024xf32>
    %42 = vector.broadcast %41 : vector<1x1024xf32> to vector<4x1024xf32>
    %43 = arith.mulf %40, %42 : vector<4x1024xf32>
    %44 = vector.extract_strided_slice %3 {offsets = [0, 120], sizes = [4, 1024], strides = [1, 1]} : vector<4x1280xf32> to vector<4x1024xf32>
    %45 = vector.extract_strided_slice %0 {offsets = [10, 0], sizes = [1, 1024], strides = [1, 1]} : vector<27x1024xf32> to vector<1x1024xf32>
    %46 = vector.broadcast %45 : vector<1x1024xf32> to vector<4x1024xf32>
    %47 = arith.mulf %44, %46 : vector<4x1024xf32>
    %48 = vector.extract_strided_slice %3 {offsets = [0, 121], sizes = [4, 1024], strides = [1, 1]} : vector<4x1280xf32> to vector<4x1024xf32>
    %49 = vector.extract_strided_slice %0 {offsets = [11, 0], sizes = [1, 1024], strides = [1, 1]} : vector<27x1024xf32> to vector<1x1024xf32>
    %50 = vector.broadcast %49 : vector<1x1024xf32> to vector<4x1024xf32>
    %51 = arith.mulf %48, %50 : vector<4x1024xf32>
    %52 = vector.extract_strided_slice %3 {offsets = [0, 127], sizes = [4, 1024], strides = [1, 1]} : vector<4x1280xf32> to vector<4x1024xf32>
    %53 = vector.extract_strided_slice %0 {offsets = [12, 0], sizes = [1, 1024], strides = [1, 1]} : vector<27x1024xf32> to vector<1x1024xf32>
    %54 = vector.broadcast %53 : vector<1x1024xf32> to vector<4x1024xf32>
    %55 = arith.mulf %52, %54 : vector<4x1024xf32>
    %56 = vector.extract_strided_slice %3 {offsets = [0, 128], sizes = [4, 1024], strides = [1, 1]} : vector<4x1280xf32> to vector<4x1024xf32>
    %57 = vector.extract_strided_slice %0 {offsets = [13, 0], sizes = [1, 1024], strides = [1, 1]} : vector<27x1024xf32> to vector<1x1024xf32>
    %58 = vector.broadcast %57 : vector<1x1024xf32> to vector<4x1024xf32>
    %59 = arith.mulf %56, %58 : vector<4x1024xf32>
    %60 = vector.extract_strided_slice %3 {offsets = [0, 129], sizes = [4, 1024], strides = [1, 1]} : vector<4x1280xf32> to vector<4x1024xf32>
    %61 = vector.extract_strided_slice %0 {offsets = [14, 0], sizes = [1, 1024], strides = [1, 1]} : vector<27x1024xf32> to vector<1x1024xf32>
    %62 = vector.broadcast %61 : vector<1x1024xf32> to vector<4x1024xf32>
    %63 = arith.mulf %60, %62 : vector<4x1024xf32>
    %64 = vector.extract_strided_slice %3 {offsets = [0, 135], sizes = [4, 1024], strides = [1, 1]} : vector<4x1280xf32> to vector<4x1024xf32>
    %65 = vector.extract_strided_slice %0 {offsets = [15, 0], sizes = [1, 1024], strides = [1, 1]} : vector<27x1024xf32> to vector<1x1024xf32>
    %66 = vector.broadcast %65 : vector<1x1024xf32> to vector<4x1024xf32>
    %67 = arith.mulf %64, %66 : vector<4x1024xf32>
    %68 = vector.extract_strided_slice %3 {offsets = [0, 136], sizes = [4, 1024], strides = [1, 1]} : vector<4x1280xf32> to vector<4x1024xf32>
    %69 = vector.extract_strided_slice %0 {offsets = [16, 0], sizes = [1, 1024], strides = [1, 1]} : vector<27x1024xf32> to vector<1x1024xf32>
    %70 = vector.broadcast %69 : vector<1x1024xf32> to vector<4x1024xf32>
    %71 = arith.mulf %68, %70 : vector<4x1024xf32>
    %72 = vector.extract_strided_slice %3 {offsets = [0, 137], sizes = [4, 1024], strides = [1, 1]} : vector<4x1280xf32> to vector<4x1024xf32>
    %73 = vector.extract_strided_slice %0 {offsets = [17, 0], sizes = [1, 1024], strides = [1, 1]} : vector<27x1024xf32> to vector<1x1024xf32>
    %74 = vector.broadcast %73 : vector<1x1024xf32> to vector<4x1024xf32>
    %75 = arith.mulf %72, %74 : vector<4x1024xf32>
    %76 = vector.extract_strided_slice %3 {offsets = [0, 183], sizes = [4, 1024], strides = [1, 1]} : vector<4x1280xf32> to vector<4x1024xf32>
    %77 = vector.extract_strided_slice %0 {offsets = [18, 0], sizes = [1, 1024], strides = [1, 1]} : vector<27x1024xf32> to vector<1x1024xf32>
    %78 = vector.broadcast %77 : vector<1x1024xf32> to vector<4x1024xf32>
    %79 = arith.mulf %76, %78 : vector<4x1024xf32>
    %80 = vector.extract_strided_slice %3 {offsets = [0, 184], sizes = [4, 1024], strides = [1, 1]} : vector<4x1280xf32> to vector<4x1024xf32>
    %81 = vector.extract_strided_slice %0 {offsets = [19, 0], sizes = [1, 1024], strides = [1, 1]} : vector<27x1024xf32> to vector<1x1024xf32>
    %82 = vector.broadcast %81 : vector<1x1024xf32> to vector<4x1024xf32>
    %83 = arith.mulf %80, %82 : vector<4x1024xf32>
    %84 = vector.extract_strided_slice %3 {offsets = [0, 185], sizes = [4, 1024], strides = [1, 1]} : vector<4x1280xf32> to vector<4x1024xf32>
    %85 = vector.extract_strided_slice %0 {offsets = [20, 0], sizes = [1, 1024], strides = [1, 1]} : vector<27x1024xf32> to vector<1x1024xf32>
    %86 = vector.broadcast %85 : vector<1x1024xf32> to vector<4x1024xf32>
    %87 = arith.mulf %84, %86 : vector<4x1024xf32>
    %88 = vector.extract_strided_slice %3 {offsets = [0, 191], sizes = [4, 1024], strides = [1, 1]} : vector<4x1280xf32> to vector<4x1024xf32>
    %89 = vector.extract_strided_slice %0 {offsets = [21, 0], sizes = [1, 1024], strides = [1, 1]} : vector<27x1024xf32> to vector<1x1024xf32>
    %90 = vector.broadcast %89 : vector<1x1024xf32> to vector<4x1024xf32>
    %91 = arith.mulf %88, %90 : vector<4x1024xf32>
    %92 = vector.extract_strided_slice %3 {offsets = [0, 192], sizes = [4, 1024], strides = [1, 1]} : vector<4x1280xf32> to vector<4x1024xf32>
    %93 = vector.extract_strided_slice %0 {offsets = [22, 0], sizes = [1, 1024], strides = [1, 1]} : vector<27x1024xf32> to vector<1x1024xf32>
    %94 = vector.broadcast %93 : vector<1x1024xf32> to vector<4x1024xf32>
    %95 = arith.mulf %92, %94 : vector<4x1024xf32>
    %96 = vector.extract_strided_slice %3 {offsets = [0, 193], sizes = [4, 1024], strides = [1, 1]} : vector<4x1280xf32> to vector<4x1024xf32>
    %97 = vector.extract_strided_slice %0 {offsets = [23, 0], sizes = [1, 1024], strides = [1, 1]} : vector<27x1024xf32> to vector<1x1024xf32>
    %98 = vector.broadcast %97 : vector<1x1024xf32> to vector<4x1024xf32>
    %99 = arith.mulf %96, %98 : vector<4x1024xf32>
    %100 = vector.extract_strided_slice %3 {offsets = [0, 199], sizes = [4, 1024], strides = [1, 1]} : vector<4x1280xf32> to vector<4x1024xf32>
    %101 = vector.extract_strided_slice %0 {offsets = [24, 0], sizes = [1, 1024], strides = [1, 1]} : vector<27x1024xf32> to vector<1x1024xf32>
    %102 = vector.broadcast %101 : vector<1x1024xf32> to vector<4x1024xf32>
    %103 = arith.mulf %100, %102 : vector<4x1024xf32>
    %104 = vector.extract_strided_slice %3 {offsets = [0, 200], sizes = [4, 1024], strides = [1, 1]} : vector<4x1280xf32> to vector<4x1024xf32>
    %105 = vector.extract_strided_slice %0 {offsets = [25, 0], sizes = [1, 1024], strides = [1, 1]} : vector<27x1024xf32> to vector<1x1024xf32>
    %106 = vector.broadcast %105 : vector<1x1024xf32> to vector<4x1024xf32>
    %107 = arith.mulf %104, %106 : vector<4x1024xf32>
    %108 = vector.extract_strided_slice %3 {offsets = [0, 201], sizes = [4, 1024], strides = [1, 1]} : vector<4x1280xf32> to vector<4x1024xf32>
    %109 = vector.extract_strided_slice %0 {offsets = [26, 0], sizes = [1, 1024], strides = [1, 1]} : vector<27x1024xf32> to vector<1x1024xf32>
    %110 = vector.broadcast %109 : vector<1x1024xf32> to vector<4x1024xf32>
    %111 = arith.mulf %108, %110 : vector<4x1024xf32>
    %112 = tpu.concatenate %7, %11, %15, %19, %23, %27, %31, %35, %39, %43, %47, %51, %55, %59, %63, %67 in 0 : vector<4x1024xf32>, vector<4x1024xf32>, vector<4x1024xf32>, vector<4x1024xf32>, vector<4x1024xf32>, vector<4x1024xf32>, vector<4x1024xf32>, vector<4x1024xf32>, vector<4x1024xf32>, vector<4x1024xf32>, vector<4x1024xf32>, vector<4x1024xf32>, vector<4x1024xf32>, vector<4x1024xf32>, vector<4x1024xf32>, vector<4x1024xf32> -> vector<64x1024xf32>
    %113 = tpu.concatenate %71, %75, %79, %83, %87, %91, %95, %99, %103, %107, %111 in 0 : vector<4x1024xf32>, vector<4x1024xf32>, vector<4x1024xf32>, vector<4x1024xf32>, vector<4x1024xf32>, vector<4x1024xf32>, vector<4x1024xf32>, vector<4x1024xf32>, vector<4x1024xf32>, vector<4x1024xf32>, vector<4x1024xf32> -> vector<44x1024xf32>
    %114 = tpu.concatenate %112, %113 in 0 : vector<64x1024xf32>, vector<44x1024xf32> -> vector<108x1024xf32>
    %c0_3 = arith.constant 0 : index
    %c0_4 = arith.constant 0 : index
    %115 = vector.load %arg3[%c0_3, %c0_4] : memref<8x108xf32, #tpu.memory_space<vmem>>, vector<8x108xf32>
    %cst_5 = arith.constant dense<0.000000e+00> : vector<8x1024xf32>
    %116 = tpu.matmul %115, %114, %cst_5 {dimension_numbers = #tpu.dot_dimension_numbers<[1], [0], [0], [1], [0, 0, 1, 1], [], []>} : vector<8x108xf32>, vector<108x1024xf32>, vector<8x1024xf32> -> vector<8x1024xf32>
    %c0_6 = arith.constant 0 : index
    %c0_7 = arith.constant 0 : index
    %117 = vector.load %arg4[%c0_6, %c0_7] : memref<8x1xf32, #tpu.memory_space<vmem>>, vector<8x1xf32>
    %118 = vector.broadcast %117 : vector<8x1xf32> to vector<8x1024xf32>
    %119 = arith.addf %116, %118 : vector<8x1024xf32>
    %cst_8 = arith.constant 0.000000e+00 : f32
    %120 = vector.broadcast %cst_8 : f32 to vector<8x1024xf32>
    %121 = arith.maximumf %119, %120 : vector<8x1024xf32>
    %cst_9 = arith.constant 0.000000e+00 : f32
    %122 = vector.broadcast %cst_9 : f32 to vector<8x128xf32>
    %123 = tpu.concatenate %122, %121, %122 in 1 : vector<8x128xf32>, vector<8x1024xf32>, vector<8x128xf32> -> vector<8x1280xf32>
    %124 = vector.extract_strided_slice %123 {offsets = [0, 55], sizes = [8, 1024], strides = [1, 1]} : vector<8x1280xf32> to vector<8x1024xf32>
    %125 = vector.extract_strided_slice %0 {offsets = [0, 0], sizes = [1, 1024], strides = [1, 1]} : vector<27x1024xf32> to vector<1x1024xf32>
    %126 = vector.broadcast %125 : vector<1x1024xf32> to vector<8x1024xf32>
    %127 = arith.mulf %124, %126 : vector<8x1024xf32>
    %128 = vector.extract_strided_slice %123 {offsets = [0, 56], sizes = [8, 1024], strides = [1, 1]} : vector<8x1280xf32> to vector<8x1024xf32>
    %129 = vector.extract_strided_slice %0 {offsets = [1, 0], sizes = [1, 1024], strides = [1, 1]} : vector<27x1024xf32> to vector<1x1024xf32>
    %130 = vector.broadcast %129 : vector<1x1024xf32> to vector<8x1024xf32>
    %131 = arith.mulf %128, %130 : vector<8x1024xf32>
    %132 = vector.extract_strided_slice %123 {offsets = [0, 57], sizes = [8, 1024], strides = [1, 1]} : vector<8x1280xf32> to vector<8x1024xf32>
    %133 = vector.extract_strided_slice %0 {offsets = [2, 0], sizes = [1, 1024], strides = [1, 1]} : vector<27x1024xf32> to vector<1x1024xf32>
    %134 = vector.broadcast %133 : vector<1x1024xf32> to vector<8x1024xf32>
    %135 = arith.mulf %132, %134 : vector<8x1024xf32>
    %136 = vector.extract_strided_slice %123 {offsets = [0, 63], sizes = [8, 1024], strides = [1, 1]} : vector<8x1280xf32> to vector<8x1024xf32>
    %137 = vector.extract_strided_slice %0 {offsets = [3, 0], sizes = [1, 1024], strides = [1, 1]} : vector<27x1024xf32> to vector<1x1024xf32>
    %138 = vector.broadcast %137 : vector<1x1024xf32> to vector<8x1024xf32>
    %139 = arith.mulf %136, %138 : vector<8x1024xf32>
    %140 = vector.extract_strided_slice %123 {offsets = [0, 64], sizes = [8, 1024], strides = [1, 1]} : vector<8x1280xf32> to vector<8x1024xf32>
    %141 = vector.extract_strided_slice %0 {offsets = [4, 0], sizes = [1, 1024], strides = [1, 1]} : vector<27x1024xf32> to vector<1x1024xf32>
    %142 = vector.broadcast %141 : vector<1x1024xf32> to vector<8x1024xf32>
    %143 = arith.mulf %140, %142 : vector<8x1024xf32>
    %144 = vector.extract_strided_slice %123 {offsets = [0, 65], sizes = [8, 1024], strides = [1, 1]} : vector<8x1280xf32> to vector<8x1024xf32>
    %145 = vector.extract_strided_slice %0 {offsets = [5, 0], sizes = [1, 1024], strides = [1, 1]} : vector<27x1024xf32> to vector<1x1024xf32>
    %146 = vector.broadcast %145 : vector<1x1024xf32> to vector<8x1024xf32>
    %147 = arith.mulf %144, %146 : vector<8x1024xf32>
    %148 = vector.extract_strided_slice %123 {offsets = [0, 71], sizes = [8, 1024], strides = [1, 1]} : vector<8x1280xf32> to vector<8x1024xf32>
    %149 = vector.extract_strided_slice %0 {offsets = [6, 0], sizes = [1, 1024], strides = [1, 1]} : vector<27x1024xf32> to vector<1x1024xf32>
    %150 = vector.broadcast %149 : vector<1x1024xf32> to vector<8x1024xf32>
    %151 = arith.mulf %148, %150 : vector<8x1024xf32>
    %152 = vector.extract_strided_slice %123 {offsets = [0, 72], sizes = [8, 1024], strides = [1, 1]} : vector<8x1280xf32> to vector<8x1024xf32>
    %153 = vector.extract_strided_slice %0 {offsets = [7, 0], sizes = [1, 1024], strides = [1, 1]} : vector<27x1024xf32> to vector<1x1024xf32>
    %154 = vector.broadcast %153 : vector<1x1024xf32> to vector<8x1024xf32>
    %155 = arith.mulf %152, %154 : vector<8x1024xf32>
    %156 = vector.extract_strided_slice %123 {offsets = [0, 73], sizes = [8, 1024], strides = [1, 1]} : vector<8x1280xf32> to vector<8x1024xf32>
    %157 = vector.extract_strided_slice %0 {offsets = [8, 0], sizes = [1, 1024], strides = [1, 1]} : vector<27x1024xf32> to vector<1x1024xf32>
    %158 = vector.broadcast %157 : vector<1x1024xf32> to vector<8x1024xf32>
    %159 = arith.mulf %156, %158 : vector<8x1024xf32>
    %160 = vector.extract_strided_slice %123 {offsets = [0, 119], sizes = [8, 1024], strides = [1, 1]} : vector<8x1280xf32> to vector<8x1024xf32>
    %161 = vector.extract_strided_slice %0 {offsets = [9, 0], sizes = [1, 1024], strides = [1, 1]} : vector<27x1024xf32> to vector<1x1024xf32>
    %162 = vector.broadcast %161 : vector<1x1024xf32> to vector<8x1024xf32>
    %163 = arith.mulf %160, %162 : vector<8x1024xf32>
    %164 = vector.extract_strided_slice %123 {offsets = [0, 120], sizes = [8, 1024], strides = [1, 1]} : vector<8x1280xf32> to vector<8x1024xf32>
    %165 = vector.extract_strided_slice %0 {offsets = [10, 0], sizes = [1, 1024], strides = [1, 1]} : vector<27x1024xf32> to vector<1x1024xf32>
    %166 = vector.broadcast %165 : vector<1x1024xf32> to vector<8x1024xf32>
    %167 = arith.mulf %164, %166 : vector<8x1024xf32>
    %168 = vector.extract_strided_slice %123 {offsets = [0, 121], sizes = [8, 1024], strides = [1, 1]} : vector<8x1280xf32> to vector<8x1024xf32>
    %169 = vector.extract_strided_slice %0 {offsets = [11, 0], sizes = [1, 1024], strides = [1, 1]} : vector<27x1024xf32> to vector<1x1024xf32>
    %170 = vector.broadcast %169 : vector<1x1024xf32> to vector<8x1024xf32>
    %171 = arith.mulf %168, %170 : vector<8x1024xf32>
    %172 = vector.extract_strided_slice %123 {offsets = [0, 127], sizes = [8, 1024], strides = [1, 1]} : vector<8x1280xf32> to vector<8x1024xf32>
    %173 = vector.extract_strided_slice %0 {offsets = [12, 0], sizes = [1, 1024], strides = [1, 1]} : vector<27x1024xf32> to vector<1x1024xf32>
    %174 = vector.broadcast %173 : vector<1x1024xf32> to vector<8x1024xf32>
    %175 = arith.mulf %172, %174 : vector<8x1024xf32>
    %176 = vector.extract_strided_slice %123 {offsets = [0, 128], sizes = [8, 1024], strides = [1, 1]} : vector<8x1280xf32> to vector<8x1024xf32>
    %177 = vector.extract_strided_slice %0 {offsets = [13, 0], sizes = [1, 1024], strides = [1, 1]} : vector<27x1024xf32> to vector<1x1024xf32>
    %178 = vector.broadcast %177 : vector<1x1024xf32> to vector<8x1024xf32>
    %179 = arith.mulf %176, %178 : vector<8x1024xf32>
    %180 = vector.extract_strided_slice %123 {offsets = [0, 129], sizes = [8, 1024], strides = [1, 1]} : vector<8x1280xf32> to vector<8x1024xf32>
    %181 = vector.extract_strided_slice %0 {offsets = [14, 0], sizes = [1, 1024], strides = [1, 1]} : vector<27x1024xf32> to vector<1x1024xf32>
    %182 = vector.broadcast %181 : vector<1x1024xf32> to vector<8x1024xf32>
    %183 = arith.mulf %180, %182 : vector<8x1024xf32>
    %184 = vector.extract_strided_slice %123 {offsets = [0, 135], sizes = [8, 1024], strides = [1, 1]} : vector<8x1280xf32> to vector<8x1024xf32>
    %185 = vector.extract_strided_slice %0 {offsets = [15, 0], sizes = [1, 1024], strides = [1, 1]} : vector<27x1024xf32> to vector<1x1024xf32>
    %186 = vector.broadcast %185 : vector<1x1024xf32> to vector<8x1024xf32>
    %187 = arith.mulf %184, %186 : vector<8x1024xf32>
    %188 = vector.extract_strided_slice %123 {offsets = [0, 136], sizes = [8, 1024], strides = [1, 1]} : vector<8x1280xf32> to vector<8x1024xf32>
    %189 = vector.extract_strided_slice %0 {offsets = [16, 0], sizes = [1, 1024], strides = [1, 1]} : vector<27x1024xf32> to vector<1x1024xf32>
    %190 = vector.broadcast %189 : vector<1x1024xf32> to vector<8x1024xf32>
    %191 = arith.mulf %188, %190 : vector<8x1024xf32>
    %192 = vector.extract_strided_slice %123 {offsets = [0, 137], sizes = [8, 1024], strides = [1, 1]} : vector<8x1280xf32> to vector<8x1024xf32>
    %193 = vector.extract_strided_slice %0 {offsets = [17, 0], sizes = [1, 1024], strides = [1, 1]} : vector<27x1024xf32> to vector<1x1024xf32>
    %194 = vector.broadcast %193 : vector<1x1024xf32> to vector<8x1024xf32>
    %195 = arith.mulf %192, %194 : vector<8x1024xf32>
    %196 = vector.extract_strided_slice %123 {offsets = [0, 183], sizes = [8, 1024], strides = [1, 1]} : vector<8x1280xf32> to vector<8x1024xf32>
    %197 = vector.extract_strided_slice %0 {offsets = [18, 0], sizes = [1, 1024], strides = [1, 1]} : vector<27x1024xf32> to vector<1x1024xf32>
    %198 = vector.broadcast %197 : vector<1x1024xf32> to vector<8x1024xf32>
    %199 = arith.mulf %196, %198 : vector<8x1024xf32>
    %200 = vector.extract_strided_slice %123 {offsets = [0, 184], sizes = [8, 1024], strides = [1, 1]} : vector<8x1280xf32> to vector<8x1024xf32>
    %201 = vector.extract_strided_slice %0 {offsets = [19, 0], sizes = [1, 1024], strides = [1, 1]} : vector<27x1024xf32> to vector<1x1024xf32>
    %202 = vector.broadcast %201 : vector<1x1024xf32> to vector<8x1024xf32>
    %203 = arith.mulf %200, %202 : vector<8x1024xf32>
    %204 = vector.extract_strided_slice %123 {offsets = [0, 185], sizes = [8, 1024], strides = [1, 1]} : vector<8x1280xf32> to vector<8x1024xf32>
    %205 = vector.extract_strided_slice %0 {offsets = [20, 0], sizes = [1, 1024], strides = [1, 1]} : vector<27x1024xf32> to vector<1x1024xf32>
    %206 = vector.broadcast %205 : vector<1x1024xf32> to vector<8x1024xf32>
    %207 = arith.mulf %204, %206 : vector<8x1024xf32>
    %208 = vector.extract_strided_slice %123 {offsets = [0, 191], sizes = [8, 1024], strides = [1, 1]} : vector<8x1280xf32> to vector<8x1024xf32>
    %209 = vector.extract_strided_slice %0 {offsets = [21, 0], sizes = [1, 1024], strides = [1, 1]} : vector<27x1024xf32> to vector<1x1024xf32>
    %210 = vector.broadcast %209 : vector<1x1024xf32> to vector<8x1024xf32>
    %211 = arith.mulf %208, %210 : vector<8x1024xf32>
    %212 = vector.extract_strided_slice %123 {offsets = [0, 192], sizes = [8, 1024], strides = [1, 1]} : vector<8x1280xf32> to vector<8x1024xf32>
    %213 = vector.extract_strided_slice %0 {offsets = [22, 0], sizes = [1, 1024], strides = [1, 1]} : vector<27x1024xf32> to vector<1x1024xf32>
    %214 = vector.broadcast %213 : vector<1x1024xf32> to vector<8x1024xf32>
    %215 = arith.mulf %212, %214 : vector<8x1024xf32>
    %216 = vector.extract_strided_slice %123 {offsets = [0, 193], sizes = [8, 1024], strides = [1, 1]} : vector<8x1280xf32> to vector<8x1024xf32>
    %217 = vector.extract_strided_slice %0 {offsets = [23, 0], sizes = [1, 1024], strides = [1, 1]} : vector<27x1024xf32> to vector<1x1024xf32>
    %218 = vector.broadcast %217 : vector<1x1024xf32> to vector<8x1024xf32>
    %219 = arith.mulf %216, %218 : vector<8x1024xf32>
    %220 = vector.extract_strided_slice %123 {offsets = [0, 199], sizes = [8, 1024], strides = [1, 1]} : vector<8x1280xf32> to vector<8x1024xf32>
    %221 = vector.extract_strided_slice %0 {offsets = [24, 0], sizes = [1, 1024], strides = [1, 1]} : vector<27x1024xf32> to vector<1x1024xf32>
    %222 = vector.broadcast %221 : vector<1x1024xf32> to vector<8x1024xf32>
    %223 = arith.mulf %220, %222 : vector<8x1024xf32>
    %224 = vector.extract_strided_slice %123 {offsets = [0, 200], sizes = [8, 1024], strides = [1, 1]} : vector<8x1280xf32> to vector<8x1024xf32>
    %225 = vector.extract_strided_slice %0 {offsets = [25, 0], sizes = [1, 1024], strides = [1, 1]} : vector<27x1024xf32> to vector<1x1024xf32>
    %226 = vector.broadcast %225 : vector<1x1024xf32> to vector<8x1024xf32>
    %227 = arith.mulf %224, %226 : vector<8x1024xf32>
    %228 = vector.extract_strided_slice %123 {offsets = [0, 201], sizes = [8, 1024], strides = [1, 1]} : vector<8x1280xf32> to vector<8x1024xf32>
    %229 = vector.extract_strided_slice %0 {offsets = [26, 0], sizes = [1, 1024], strides = [1, 1]} : vector<27x1024xf32> to vector<1x1024xf32>
    %230 = vector.broadcast %229 : vector<1x1024xf32> to vector<8x1024xf32>
    %231 = arith.mulf %228, %230 : vector<8x1024xf32>
    %232 = tpu.concatenate %127, %131, %135, %139, %143, %147, %151, %155, %159, %163, %167, %171, %175, %179, %183, %187 in 0 : vector<8x1024xf32>, vector<8x1024xf32>, vector<8x1024xf32>, vector<8x1024xf32>, vector<8x1024xf32>, vector<8x1024xf32>, vector<8x1024xf32>, vector<8x1024xf32>, vector<8x1024xf32>, vector<8x1024xf32>, vector<8x1024xf32>, vector<8x1024xf32>, vector<8x1024xf32>, vector<8x1024xf32>, vector<8x1024xf32>, vector<8x1024xf32> -> vector<128x1024xf32>
    %233 = tpu.concatenate %191, %195, %199, %203, %207, %211, %215, %219, %223, %227, %231 in 0 : vector<8x1024xf32>, vector<8x1024xf32>, vector<8x1024xf32>, vector<8x1024xf32>, vector<8x1024xf32>, vector<8x1024xf32>, vector<8x1024xf32>, vector<8x1024xf32>, vector<8x1024xf32>, vector<8x1024xf32>, vector<8x1024xf32> -> vector<88x1024xf32>
    %234 = tpu.concatenate %232, %233 in 0 : vector<128x1024xf32>, vector<88x1024xf32> -> vector<216x1024xf32>
    %c0_10 = arith.constant 0 : index
    %c0_11 = arith.constant 0 : index
    %235 = vector.load %arg5[%c0_10, %c0_11] : memref<16x216xf32, #tpu.memory_space<vmem>>, vector<16x216xf32>
    %cst_12 = arith.constant dense<0.000000e+00> : vector<16x1024xf32>
    %236 = tpu.matmul %235, %234, %cst_12 {dimension_numbers = #tpu.dot_dimension_numbers<[1], [0], [0], [1], [0, 0, 1, 1], [], []>} : vector<16x216xf32>, vector<216x1024xf32>, vector<16x1024xf32> -> vector<16x1024xf32>
    %c0_13 = arith.constant 0 : index
    %c0_14 = arith.constant 0 : index
    %237 = vector.load %arg6[%c0_13, %c0_14] : memref<16x1xf32, #tpu.memory_space<vmem>>, vector<16x1xf32>
    %238 = vector.broadcast %237 : vector<16x1xf32> to vector<16x1024xf32>
    %239 = arith.addf %236, %238 : vector<16x1024xf32>
    %cst_15 = arith.constant 0.000000e+00 : f32
    %240 = vector.broadcast %cst_15 : f32 to vector<16x1024xf32>
    %241 = arith.maximumf %239, %240 : vector<16x1024xf32>
    %c0_16 = arith.constant 0 : index
    %c0_17 = arith.constant 0 : index
    %242 = vector.load %arg2[%c0_16, %c0_17] : memref<1024x2xf32, #tpu.memory_space<vmem>>, vector<1024x2xf32>
    %cst_18 = arith.constant dense<0.000000e+00> : vector<16x2xf32>
    %243 = tpu.matmul %241, %242, %cst_18 {dimension_numbers = #tpu.dot_dimension_numbers<[1], [0], [0], [1], [0, 0, 1, 1], [], []>} : vector<16x1024xf32>, vector<1024x2xf32>, vector<16x2xf32> -> vector<16x2xf32>
    %cst_19 = arith.constant dense<0.000000e+00> : vector<2xf32>
    %244 = vector.multi_reduction <add>, %243, %cst_19 [0] : vector<16x2xf32> to vector<2xf32>
    %245 = vector.shape_cast %244 : vector<2xf32> to vector<1x2xf32>
    %cst_20 = arith.constant 1.600000e+01 : f32
    %246 = vector.broadcast %cst_20 : f32 to vector<1x2xf32>
    %247 = arith.divf %245, %246 : vector<1x2xf32>
    %248 = vector.broadcast %247 : vector<1x2xf32> to vector<16x2xf32>
    %249 = arith.subf %243, %248 : vector<16x2xf32>
    %250 = arith.mulf %249, %249 : vector<16x2xf32>
    %cst_21 = arith.constant dense<0.000000e+00> : vector<2xf32>
    %251 = vector.multi_reduction <add>, %250, %cst_21 [0] : vector<16x2xf32> to vector<2xf32>
    %252 = vector.shape_cast %251 : vector<2xf32> to vector<1x2xf32>
    %cst_22 = arith.constant 1.600000e+01 : f32
    %253 = vector.broadcast %cst_22 : f32 to vector<1x2xf32>
    %254 = arith.divf %252, %253 : vector<1x2xf32>
    %255 = vector.broadcast %247 : vector<1x2xf32> to vector<16x2xf32>
    %256 = arith.subf %243, %255 : vector<16x2xf32>
    %cst_23 = arith.constant 9.99999974E-6 : f32
    %257 = vector.broadcast %cst_23 : f32 to vector<1x2xf32>
    %258 = arith.addf %254, %257 : vector<1x2xf32>
    %259 = math.rsqrt %258 : vector<1x2xf32>
    %260 = vector.broadcast %259 : vector<1x2xf32> to vector<16x2xf32>
    %261 = arith.mulf %256, %260 : vector<16x2xf32>
    %c0_24 = arith.constant 0 : index
    %c0_25 = arith.constant 0 : index
    %262 = vector.load %arg7[%c0_24, %c0_25] : memref<16x1xf32, #tpu.memory_space<vmem>>, vector<16x1xf32>
    %263 = vector.broadcast %262 : vector<16x1xf32> to vector<16x2xf32>
    %264 = arith.mulf %261, %263 : vector<16x2xf32>
    %c0_26 = arith.constant 0 : index
    %c0_27 = arith.constant 0 : index
    %265 = vector.load %arg8[%c0_26, %c0_27] : memref<16x1xf32, #tpu.memory_space<vmem>>, vector<16x1xf32>
    %266 = vector.broadcast %265 : vector<16x1xf32> to vector<16x2xf32>
    %267 = arith.addf %264, %266 : vector<16x2xf32>
    %c0_28 = arith.constant 0 : index
    %c0_29 = arith.constant 0 : index
    %268 = vector.load %arg9[%c0_28, %c0_29] : memref<32x16xf32, #tpu.memory_space<vmem>>, vector<32x16xf32>
    %cst_30 = arith.constant dense<0.000000e+00> : vector<32x2xf32>
    %269 = tpu.matmul %268, %267, %cst_30 {dimension_numbers = #tpu.dot_dimension_numbers<[1], [0], [0], [1], [0, 0, 1, 1], [], []>} : vector<32x16xf32>, vector<16x2xf32>, vector<32x2xf32> -> vector<32x2xf32>
    %c0_31 = arith.constant 0 : index
    %c0_32 = arith.constant 0 : index
    %270 = vector.load %arg10[%c0_31, %c0_32] : memref<32x1xf32, #tpu.memory_space<vmem>>, vector<32x1xf32>
    %271 = vector.broadcast %270 : vector<32x1xf32> to vector<32x2xf32>
    %272 = arith.addf %269, %271 : vector<32x2xf32>
    %cst_33 = arith.constant 0.000000e+00 : f32
    %273 = vector.broadcast %cst_33 : f32 to vector<32x2xf32>
    %274 = arith.maximumf %272, %273 : vector<32x2xf32>
    %c0_34 = arith.constant 0 : index
    %c0_35 = arith.constant 0 : index
    %275 = vector.load %arg11[%c0_34, %c0_35] : memref<8x32xf32, #tpu.memory_space<vmem>>, vector<8x32xf32>
    %cst_36 = arith.constant dense<0.000000e+00> : vector<8x2xf32>
    %276 = tpu.matmul %275, %274, %cst_36 {dimension_numbers = #tpu.dot_dimension_numbers<[1], [0], [0], [1], [0, 0, 1, 1], [], []>} : vector<8x32xf32>, vector<32x2xf32>, vector<8x2xf32> -> vector<8x2xf32>
    %c0_37 = arith.constant 0 : index
    %c0_38 = arith.constant 0 : index
    %277 = vector.load %arg12[%c0_37, %c0_38] : memref<8x1xf32, #tpu.memory_space<vmem>>, vector<8x1xf32>
    %278 = vector.broadcast %277 : vector<8x1xf32> to vector<8x2xf32>
    %279 = arith.addf %276, %278 : vector<8x2xf32>
    %c0_39 = arith.constant 0 : index
    %c0_40 = arith.constant 0 : index
    %280 = vector.load %arg13[%c0_39, %c0_40] : memref<8x2xf32, #tpu.memory_space<vmem>>, vector<8x2xf32>
    tpu.vector_store %arg13[%c0_39, %c0_40], %279 {strides = array<i32>} : memref<8x2xf32, #tpu.memory_space<vmem>>, vector<8x2xf32>,
    return
  }
}

</mosaic_0001>

<llo_original>
// kernel: cnn_forward.1
$region0: #{cnn_forward.1}
  #allocation0 [shape = 'u32[]', space=smem, size = 0x4, offset = 0x4, fixed_abs, tag = 'smem constant byte address 0x4 - core index']
  #allocation1 [shape = 'u32[144,128]{1,0:T(1,128)}', space=vmem, size = 0x12000, scoped, tag = 'internal scratch']
  %s0 = inlined_call_operand.vmem [shape: f32[4,1024], index: 0, kind: input, shape index: {}]
  %s1 = inlined_call_operand.vmem [shape: f32[27,1024], index: 1, kind: input, shape index: {}]
  %s2 = inlined_call_operand.vmem [shape: f32[1024,2], index: 2, kind: input, shape index: {}]
  %s3 = inlined_call_operand.vmem [shape: f32[8,108], index: 3, kind: input, shape index: {}]
  %s4 = inlined_call_operand.vmem [shape: f32[8,1], index: 4, kind: input, shape index: {}]
  %s5 = inlined_call_operand.vmem [shape: f32[16,216], index: 5, kind: input, shape index: {}]
  %s6 = inlined_call_operand.vmem [shape: f32[16,1], index: 6, kind: input, shape index: {}]
  %s7 = inlined_call_operand.vmem [shape: f32[16,1], index: 7, kind: input, shape index: {}]
  %s8 = inlined_call_operand.vmem [shape: f32[16,1], index: 8, kind: input, shape index: {}]
  %s9 = inlined_call_operand.vmem [shape: f32[32,16], index: 9, kind: input, shape index: {}]
  %s10 = inlined_call_operand.vmem [shape: f32[32,1], index: 10, kind: input, shape index: {}]
  %s11 = inlined_call_operand.vmem [shape: f32[8,32], index: 11, kind: input, shape index: {}]
  %s12 = inlined_call_operand.vmem [shape: f32[8,1], index: 12, kind: input, shape index: {}]
  %s13 = inlined_call_operand.vmem [shape: f32[8,2], index: 13, kind: output, shape index: {}]
  %s14 = sld [smem:[#allocation0]]
  $region62: #{cnn_forward.1} parent=0
    _
  %s16 = ssub.s32 1, %s14
  %s17 = scalar_select 0, %s16, %s14
  // Predicated region
  $region2: #{cnn_forward.1} parent=0 // pred_check
    _
  $region3: #{cnn_forward.1} parent=0 // pred_check_branch
    %19 = sbr.rel (0) target = $region5
  $region4: #{cnn_forward.1} parent=0 // pred_region
    _
  $region5: #{cnn_forward.1} parent=0 // pred_fallthru
    _
  // Predicated region
  $region6: #{cnn_forward.1} parent=0 // pred_check
    _
  $region7: #{cnn_forward.1} parent=0 // pred_check_branch
    %21 = sbr.rel (0) target = $region9
  $region8: #{cnn_forward.1} parent=0 // pred_region
    _
  $region9: #{cnn_forward.1} parent=0 // pred_fallthru
    _
  // Predicated region
  $region10: #{cnn_forward.1} parent=0 // pred_check
    _
  $region11: #{cnn_forward.1} parent=0 // pred_check_branch
    %23 = sbr.rel (0) target = $region13
  $region12: #{cnn_forward.1} parent=0 // pred_region
    _
  $region13: #{cnn_forward.1} parent=0 // pred_fallthru
    _
  // Predicated region
  $region14: #{cnn_forward.1} parent=0 // pred_check
    _
  $region15: #{cnn_forward.1} parent=0 // pred_check_branch
    %25 = sbr.rel (0) target = $region17
  $region16: #{cnn_forward.1} parent=0 // pred_region
    _
  $region17: #{cnn_forward.1} parent=0 // pred_fallthru
    _
  // Predicated region
  $region18: #{cnn_forward.1} parent=0 // pred_check
    _
  $region19: #{cnn_forward.1} parent=0 // pred_check_branch
    %27 = sbr.rel (0) target = $region21
  $region20: #{cnn_forward.1} parent=0 // pred_region
    _
  $region21: #{cnn_forward.1} parent=0 // pred_fallthru
    _
  // Predicated region
  $region22: #{cnn_forward.1} parent=0 // pred_check
    _
  $region23: #{cnn_forward.1} parent=0 // pred_check_branch
    %29 = sbr.rel (0) target = $region25
  $region24: #{cnn_forward.1} parent=0 // pred_region
    _
  $region25: #{cnn_forward.1} parent=0 // pred_fallthru
    _
  // Predicated region
  $region26: #{cnn_forward.1} parent=0 // pred_check
    _
  $region27: #{cnn_forward.1} parent=0 // pred_check_branch
    %31 = sbr.rel (0) target = $region29
  $region28: #{cnn_forward.1} parent=0 // pred_region
    _
  $region29: #{cnn_forward.1} parent=0 // pred_fallthru
    _
  // Predicated region
  $region30: #{cnn_forward.1} parent=0 // pred_check
    _
  $region31: #{cnn_forward.1} parent=0 // pred_check_branch
    %33 = sbr.rel (0) target = $region33
  $region32: #{cnn_forward.1} parent=0 // pred_region
    _
  $region33: #{cnn_forward.1} parent=0 // pred_fallthru
    _
  // Predicated region
  $region34: #{cnn_forward.1} parent=0 // pred_check
    _
  $region35: #{cnn_forward.1} parent=0 // pred_check_branch
    %35 = sbr.rel (0) target = $region37
  $region36: #{cnn_forward.1} parent=0 // pred_region
    _
  $region37: #{cnn_forward.1} parent=0 // pred_fallthru
    _
  // Predicated region
  $region38: #{cnn_forward.1} parent=0 // pred_check
    _
  $region39: #{cnn_forward.1} parent=0 // pred_check_branch
    %37 = sbr.rel (0) target = $region41
  $region40: #{cnn_forward.1} parent=0 // pred_region
    _
  $region41: #{cnn_forward.1} parent=0 // pred_fallthru
    _
  // Predicated region
  $region42: #{cnn_forward.1} parent=0 // pred_check
    _
  $region43: #{cnn_forward.1} parent=0 // pred_check_branch
    %39 = sbr.rel (0) target = $region45
  $region44: #{cnn_forward.1} parent=0 // pred_region
    _
  $region45: #{cnn_forward.1} parent=0 // pred_fallthru
    _
  // Predicated region
  $region46: #{cnn_forward.1} parent=0 // pred_check
    _
  $region47: #{cnn_forward.1} parent=0 // pred_check_branch
    %41 = sbr.rel (0) target = $region49
  $region48: #{cnn_forward.1} parent=0 // pred_region
    _
  $region49: #{cnn_forward.1} parent=0 // pred_fallthru
    _
  // Predicated region
  $region50: #{cnn_forward.1} parent=0 // pred_check
    _
  $region51: #{cnn_forward.1} parent=0 // pred_check_branch
    %43 = sbr.rel (0) target = $region53
  $region52: #{cnn_forward.1} parent=0 // pred_region
    _
  $region53: #{cnn_forward.1} parent=0 // pred_fallthru
    _
  %v44 = vld [vmem:[%s1] sm:$0xff]
  %v45 = vld [vmem:[%s1 + $0x8] sm:$0xff]
  %v46 = vld [vmem:[%s1 + $0x10] sm:$0xff]
  %v47 = vld [vmem:[%s1 + $0x18] sm:$0xff]
  %v48 = vld [vmem:[%s1 + $0x20] sm:$0xff]
  %v49 = vld [vmem:[%s1 + $0x28] sm:$0xff]
  %v50 = vld [vmem:[%s1 + $0x30] sm:$0xff]
  %v51 = vld [vmem:[%s1 + $0x38] sm:$0xff]
  %v52 = vld [vmem:[%s1 + $0x40] sm:$0xff]
  %v53 = vld [vmem:[%s1 + $0x48] sm:$0xff]
  %v54 = vld [vmem:[%s1 + $0x50] sm:$0xff]
  %v55 = vld [vmem:[%s1 + $0x58] sm:$0xff]
  %v56 = vld [vmem:[%s1 + $0x60] sm:$0xff]
  %v57 = vld [vmem:[%s1 + $0x68] sm:$0xff]
  %v58 = vld [vmem:[%s1 + $0x70] sm:$0xff]
  %v59 = vld [vmem:[%s1 + $0x78] sm:$0xff]
  %v60 = vld [vmem:[%s1 + $0x80] sm:$0xff]
  %v61 = vld [vmem:[%s1 + $0x88] sm:$0xff]
  %v62 = vld [vmem:[%s1 + $0x90] sm:$0xff]
  %v63 = vld [vmem:[%s1 + $0x98] sm:$0xff]
  %v64 = vld [vmem:[%s1 + $0xa0] sm:$0xff]
  %v65 = vld [vmem:[%s1 + $0xa8] sm:$0xff]
  %v66 = vld [vmem:[%s1 + $0xb0] sm:$0xff]
  %v67 = vld [vmem:[%s1 + $0xb8] sm:$0xff]
  %v68 = vld [vmem:[%s1 + $0xc0] sm:$0x7]
  %v69 = vld [vmem:[%s1 + $0xc8] sm:$0x7]
  %v70 = vld [vmem:[%s1 + $0xd0] sm:$0x7]
  %v71 = vld [vmem:[%s1 + $0xd8] sm:$0x7]
  %v72 = vld [vmem:[%s1 + $0xe0] sm:$0x7]
  %v73 = vld [vmem:[%s1 + $0xe8] sm:$0x7]
  %v74 = vld [vmem:[%s1 + $0xf0] sm:$0x7]
  %v75 = vld [vmem:[%s1 + $0xf8] sm:$0x7]
  %v76 = vld [vmem:[%s0] sm:$0xff]
  %v77 = vld [vmem:[%s0 + $0x8] sm:$0xff]
  %v78 = vld [vmem:[%s0 + $0x10] sm:$0xff]
  %v79 = vld [vmem:[%s0 + $0x18] sm:$0xff]
  %v84 = vcombine.high %v76, %v76
  %v85 = vcombine.high %v77, %v77
  %v86 = vcombine.high %v78, %v78
  %v87 = vcombine.high %v79, %v79
  %v92 = vlaneseq
  %v93 = vshrl.u32 %v92, 7
  %v94 = vsub.s32 0, %v93
  %v95 = vrot.slane %v44, %v94
  %v96 = vlaneseq
  %v97 = vshrl.u32 %v96, 7
  %v98 = vsub.s32 0, %v97
  %v99 = vrot.slane %v45, %v98
  %v100 = vlaneseq
  %v101 = vshrl.u32 %v100, 7
  %v102 = vsub.s32 0, %v101
  %v103 = vrot.slane %v46, %v102
  %v104 = vlaneseq
  %v105 = vshrl.u32 %v104, 7
  %v106 = vsub.s32 0, %v105
  %v107 = vrot.slane %v47, %v106
  %v108 = vlaneseq
  %v109 = vshrl.u32 %v108, 7
  %v110 = vsub.s32 0, %v109
  %v111 = vrot.slane %v48, %v110
  %v112 = vlaneseq
  %v113 = vshrl.u32 %v112, 7
  %v114 = vsub.s32 0, %v113
  %v115 = vrot.slane %v49, %v114
  %v116 = vlaneseq
  %v117 = vshrl.u32 %v116, 7
  %v118 = vsub.s32 0, %v117
  %v119 = vrot.slane %v50, %v118
  %v120 = vlaneseq
  %v121 = vshrl.u32 %v120, 7
  %v122 = vsub.s32 0, %v121
  %v123 = vrot.slane %v51, %v122
  %132 = vrot.lane.b32.xlu0 %v95, 55
  %v133 = vpop.permute.xlu0 %132
  %134 = vrot.lane.b32.xlu0 %v99, 55
  %v135 = vpop.permute.xlu0 %134
  %136 = vrot.lane.b32.xlu0 %v103, 55
  %v137 = vpop.permute.xlu0 %136
  %138 = vrot.lane.b32.xlu0 %v107, 55
  %v139 = vpop.permute.xlu0 %138
  %140 = vrot.lane.b32.xlu0 %v111, 55
  %v141 = vpop.permute.xlu0 %140
  %142 = vrot.lane.b32.xlu0 %v115, 55
  %v143 = vpop.permute.xlu0 %142
  %144 = vrot.lane.b32.xlu0 %v119, 55
  %v145 = vpop.permute.xlu0 %144
  %146 = vrot.lane.b32.xlu0 %v123, 55
  %v147 = vpop.permute.xlu0 %146
  %vm148 = vcmask 449536
  %v149 = vsel %vm148, %v133, %v135
  %v150 = vsel %vm148, %v135, %v137
  %v151 = vsel %vm148, %v137, %v139
  %v152 = vsel %vm148, %v139, %v141
  %v153 = vsel %vm148, %v141, %v143
  %v154 = vsel %vm148, %v143, %v145
  %v155 = vsel %vm148, %v145, %v147
  %v165 = vmul.f32 %v133, 0.0
  %v166 = vmul.f32 %v76, %v149
  %v167 = vmul.f32 %v84, %v150
  %v168 = vmul.f32 %v77, %v151
  %v169 = vmul.f32 %v85, %v152
  %v170 = vmul.f32 %v78, %v153
  %v171 = vmul.f32 %v86, %v154
  %v172 = vmul.f32 %v79, %v155
  %v173 = vmul.f32 %v87, %v147
  %v174 = vlaneseq
  %v175 = vshrl.u32 %v174, 7
  %v176 = vsub.s32 1, %v175
  %v177 = vrot.slane %v44, %v176
  %v178 = vlaneseq
  %v179 = vshrl.u32 %v178, 7
  %v180 = vsub.s32 1, %v179
  %v181 = vrot.slane %v45, %v180
  %v182 = vlaneseq
  %v183 = vshrl.u32 %v182, 7
  %v184 = vsub.s32 1, %v183
  %v185 = vrot.slane %v46, %v184
  %v186 = vlaneseq
  %v187 = vshrl.u32 %v186, 7
  %v188 = vsub.s32 1, %v187
  %v189 = vrot.slane %v47, %v188
  %v190 = vlaneseq
  %v191 = vshrl.u32 %v190, 7
  %v192 = vsub.s32 1, %v191
  %v193 = vrot.slane %v48, %v192
  %v194 = vlaneseq
  %v195 = vshrl.u32 %v194, 7
  %v196 = vsub.s32 1, %v195
  %v197 = vrot.slane %v49, %v196
  %v198 = vlaneseq
  %v199 = vshrl.u32 %v198, 7
  %v200 = vsub.s32 1, %v199
  %v201 = vrot.slane %v50, %v200
  %v202 = vlaneseq
  %v203 = vshrl.u32 %v202, 7
  %v204 = vsub.s32 1, %v203
  %v205 = vrot.slane %v51, %v204
  %214 = vrot.lane.b32.xlu0 %v177, 56
  %v215 = vpop.permute.xlu0 %214
  %216 = vrot.lane.b32.xlu0 %v181, 56
  %v217 = vpop.permute.xlu0 %216
  %218 = vrot.lane.b32.xlu0 %v185, 56
  %v219 = vpop.permute.xlu0 %218
  %220 = vrot.lane.b32.xlu0 %v189, 56
  %v221 = vpop.permute.xlu0 %220
  %222 = vrot.lane.b32.xlu0 %v193, 56
  %v223 = vpop.permute.xlu0 %222
  %224 = vrot.lane.b32.xlu0 %v197, 56
  %v225 = vpop.permute.xlu0 %224
  %226 = vrot.lane.b32.xlu0 %v201, 56
  %v227 = vpop.permute.xlu0 %226
  %228 = vrot.lane.b32.xlu0 %v205, 56
  %v229 = vpop.permute.xlu0 %228
  %vm230 = vcmask 457728
  %v231 = vsel %vm230, %v215, %v217
  %v232 = vsel %vm230, %v217, %v219
  %v233 = vsel %vm230, %v219, %v221
  %v234 = vsel %vm230, %v221, %v223
  %v235 = vsel %vm230, %v223, %v225
  %v236 = vsel %vm230, %v225, %v227
  %v237 = vsel %vm230, %v227, %v229
  %v247 = vmul.f32 %v215, 0.0
  %v248 = vmul.f32 %v76, %v231
  %v249 = vmul.f32 %v84, %v232
  %v250 = vmul.f32 %v77, %v233
  %v251 = vmul.f32 %v85, %v234
  %v252 = vmul.f32 %v78, %v235
  %v253 = vmul.f32 %v86, %v236
  %v254 = vmul.f32 %v79, %v237
  %v255 = vmul.f32 %v87, %v229
  %v256 = vlaneseq
  %v257 = vshrl.u32 %v256, 7
  %v258 = vsub.s32 2, %v257
  %v259 = vrot.slane %v44, %v258
  %v260 = vlaneseq
  %v261 = vshrl.u32 %v260, 7
  %v262 = vsub.s32 2, %v261
  %v263 = vrot.slane %v45, %v262
  %v264 = vlaneseq
  %v265 = vshrl.u32 %v264, 7
  %v266 = vsub.s32 2, %v265
  %v267 = vrot.slane %v46, %v266
  %v268 = vlaneseq
  %v269 = vshrl.u32 %v268, 7
  %v270 = vsub.s32 2, %v269
  %v271 = vrot.slane %v47, %v270
  %v272 = vlaneseq
  %v273 = vshrl.u32 %v272, 7
  %v274 = vsub.s32 2, %v273
  %v275 = vrot.slane %v48, %v274
  %v276 = vlaneseq
  %v277 = vshrl.u32 %v276, 7
  %v278 = vsub.s32 2, %v277
  %v279 = vrot.slane %v49, %v278
  %v280 = vlaneseq
  %v281 = vshrl.u32 %v280, 7
  %v282 = vsub.s32 2, %v281
  %v283 = vrot.slane %v50, %v282
  %v284 = vlaneseq
  %v285 = vshrl.u32 %v284, 7
  %v286 = vsub.s32 2, %v285
  %v287 = vrot.slane %v51, %v286
  %296 = vrot.lane.b32.xlu0 %v259, 57
  %v297 = vpop.permute.xlu0 %296
  %298 = vrot.lane.b32.xlu0 %v263, 57
  %v299 = vpop.permute.xlu0 %298
  %300 = vrot.lane.b32.xlu0 %v267, 57
  %v301 = vpop.permute.xlu0 %300
  %302 = vrot.lane.b32.xlu0 %v271, 57
  %v303 = vpop.permute.xlu0 %302
  %304 = vrot.lane.b32.xlu0 %v275, 57
  %v305 = vpop.permute.xlu0 %304
  %306 = vrot.lane.b32.xlu0 %v279, 57
  %v307 = vpop.permute.xlu0 %306
  %308 = vrot.lane.b32.xlu0 %v283, 57
  %v309 = vpop.permute.xlu0 %308
  %310 = vrot.lane.b32.xlu0 %v287, 57
  %v311 = vpop.permute.xlu0 %310
  %vm312 = vcmask 465920
  %v313 = vsel %vm312, %v297, %v299
  %v314 = vsel %vm312, %v299, %v301
  %v315 = vsel %vm312, %v301, %v303
  %v316 = vsel %vm312, %v303, %v305
  %v317 = vsel %vm312, %v305, %v307
  %v318 = vsel %vm312, %v307, %v309
  %v319 = vsel %vm312, %v309, %v311
  %v329 = vmul.f32 %v297, 0.0
  %v330 = vmul.f32 %v76, %v313
  %v331 = vmul.f32 %v84, %v314
  %v332 = vmul.f32 %v77, %v315
  %v333 = vmul.f32 %v85, %v316
  %v334 = vmul.f32 %v78, %v317
  %v335 = vmul.f32 %v86, %v318
  %v336 = vmul.f32 %v79, %v319
  %v337 = vmul.f32 %v87, %v311
  %v338 = vlaneseq
  %v339 = vshrl.u32 %v338, 7
  %v340 = vsub.s32 3, %v339
  %v341 = vrot.slane %v44, %v340
  %v342 = vlaneseq
  %v343 = vshrl.u32 %v342, 7
  %v344 = vsub.s32 3, %v343
  %v345 = vrot.slane %v45, %v344
  %v346 = vlaneseq
  %v347 = vshrl.u32 %v346, 7
  %v348 = vsub.s32 3, %v347
  %v349 = vrot.slane %v46, %v348
  %v350 = vlaneseq
  %v351 = vshrl.u32 %v350, 7
  %v352 = vsub.s32 3, %v351
  %v353 = vrot.slane %v47, %v352
  %v354 = vlaneseq
  %v355 = vshrl.u32 %v354, 7
  %v356 = vsub.s32 3, %v355
  %v357 = vrot.slane %v48, %v356
  %v358 = vlaneseq
  %v359 = vshrl.u32 %v358, 7
  %v360 = vsub.s32 3, %v359
  %v361 = vrot.slane %v49, %v360
  %v362 = vlaneseq
  %v363 = vshrl.u32 %v362, 7
  %v364 = vsub.s32 3, %v363
  %v365 = vrot.slane %v50, %v364
  %v366 = vlaneseq
  %v367 = vshrl.u32 %v366, 7
  %v368 = vsub.s32 3, %v367
  %v369 = vrot.slane %v51, %v368
  %378 = vrot.lane.b32.xlu0 %v341, 63
  %v379 = vpop.permute.xlu0 %378
  %380 = vrot.lane.b32.xlu0 %v345, 63
  %v381 = vpop.permute.xlu0 %380
  %382 = vrot.lane.b32.xlu0 %v349, 63
  %v383 = vpop.permute.xlu0 %382
  %384 = vrot.lane.b32.xlu0 %v353, 63
  %v385 = vpop.permute.xlu0 %384
  %386 = vrot.lane.b32.xlu0 %v357, 63
  %v387 = vpop.permute.xlu0 %386
  %388 = vrot.lane.b32.xlu0 %v361, 63
  %v389 = vpop.permute.xlu0 %388
  %390 = vrot.lane.b32.xlu0 %v365, 63
  %v391 = vpop.permute.xlu0 %390
  %392 = vrot.lane.b32.xlu0 %v369, 63
  %v393 = vpop.permute.xlu0 %392
  %vm394 = vcmask 515072
  %v395 = vsel %vm394, %v379, %v381
  %v396 = vsel %vm394, %v381, %v383
  %v397 = vsel %vm394, %v383, %v385
  %v398 = vsel %vm394, %v385, %v387
  %v399 = vsel %vm394, %v387, %v389
  %v400 = vsel %vm394, %v389, %v391
  %v401 = vsel %vm394, %v391, %v393
  %v411 = vmul.f32 %v379, 0.0
  %v412 = vmul.f32 %v76, %v395
  %v413 = vmul.f32 %v84, %v396
  %v414 = vmul.f32 %v77, %v397
  %v415 = vmul.f32 %v85, %v398
  %v416 = vmul.f32 %v78, %v399
  %v417 = vmul.f32 %v86, %v400
  %v418 = vmul.f32 %v79, %v401
  %v419 = vmul.f32 %v87, %v393
  %v420 = vlaneseq
  %v421 = vshrl.u32 %v420, 7
  %v422 = vsub.s32 4, %v421
  %v423 = vrot.slane %v44, %v422
  %v424 = vlaneseq
  %v425 = vshrl.u32 %v424, 7
  %v426 = vsub.s32 4, %v425
  %v427 = vrot.slane %v45, %v426
  %v428 = vlaneseq
  %v429 = vshrl.u32 %v428, 7
  %v430 = vsub.s32 4, %v429
  %v431 = vrot.slane %v46, %v430
  %v432 = vlaneseq
  %v433 = vshrl.u32 %v432, 7
  %v434 = vsub.s32 4, %v433
  %v435 = vrot.slane %v47, %v434
  %v436 = vlaneseq
  %v437 = vshrl.u32 %v436, 7
  %v438 = vsub.s32 4, %v437
  %v439 = vrot.slane %v48, %v438
  %v440 = vlaneseq
  %v441 = vshrl.u32 %v440, 7
  %v442 = vsub.s32 4, %v441
  %v443 = vrot.slane %v49, %v442
  %v444 = vlaneseq
  %v445 = vshrl.u32 %v444, 7
  %v446 = vsub.s32 4, %v445
  %v447 = vrot.slane %v50, %v446
  %v448 = vlaneseq
  %v449 = vshrl.u32 %v448, 7
  %v450 = vsub.s32 4, %v449
  %v451 = vrot.slane %v51, %v450
  %460 = vrot.lane.b32.xlu0 %v423, 64
  %v461 = vpop.permute.xlu0 %460
  %462 = vrot.lane.b32.xlu0 %v427, 64
  %v463 = vpop.permute.xlu0 %462
  %464 = vrot.lane.b32.xlu0 %v431, 64
  %v465 = vpop.permute.xlu0 %464
  %466 = vrot.lane.b32.xlu0 %v435, 64
  %v467 = vpop.permute.xlu0 %466
  %468 = vrot.lane.b32.xlu0 %v439, 64
  %v469 = vpop.permute.xlu0 %468
  %470 = vrot.lane.b32.xlu0 %v443, 64
  %v471 = vpop.permute.xlu0 %470
  %472 = vrot.lane.b32.xlu0 %v447, 64
  %v473 = vpop.permute.xlu0 %472
  %474 = vrot.lane.b32.xlu0 %v451, 64
  %v475 = vpop.permute.xlu0 %474
  %vm476 = vcmask 523264
  %v477 = vsel %vm476, %v461, %v463
  %v478 = vsel %vm476, %v463, %v465
  %v479 = vsel %vm476, %v465, %v467
  %v480 = vsel %vm476, %v467, %v469
  %v481 = vsel %vm476, %v469, %v471
  %v482 = vsel %vm476, %v471, %v473
  %v483 = vsel %vm476, %v473, %v475
  %v493 = vmul.f32 %v461, 0.0
  %v494 = vmul.f32 %v76, %v477
  %v495 = vmul.f32 %v84, %v478
  %v496 = vmul.f32 %v77, %v479
  %v497 = vmul.f32 %v85, %v480
  %v498 = vmul.f32 %v78, %v481
  %v499 = vmul.f32 %v86, %v482
  %v500 = vmul.f32 %v79, %v483
  %v501 = vmul.f32 %v87, %v475
  %v502 = vlaneseq
  %v503 = vshrl.u32 %v502, 7
  %v504 = vsub.s32 5, %v503
  %v505 = vrot.slane %v44, %v504
  %v506 = vlaneseq
  %v507 = vshrl.u32 %v506, 7
  %v508 = vsub.s32 5, %v507
  %v509 = vrot.slane %v45, %v508
  %v510 = vlaneseq
  %v511 = vshrl.u32 %v510, 7
  %v512 = vsub.s32 5, %v511
  %v513 = vrot.slane %v46, %v512
  %v514 = vlaneseq
  %v515 = vshrl.u32 %v514, 7
  %v516 = vsub.s32 5, %v515
  %v517 = vrot.slane %v47, %v516
  %v518 = vlaneseq
  %v519 = vshrl.u32 %v518, 7
  %v520 = vsub.s32 5, %v519
  %v521 = vrot.slane %v48, %v520
  %v522 = vlaneseq
  %v523 = vshrl.u32 %v522, 7
  %v524 = vsub.s32 5, %v523
  %v525 = vrot.slane %v49, %v524
  %v526 = vlaneseq
  %v527 = vshrl.u32 %v526, 7
  %v528 = vsub.s32 5, %v527
  %v529 = vrot.slane %v50, %v528
  %v530 = vlaneseq
  %v531 = vshrl.u32 %v530, 7
  %v532 = vsub.s32 5, %v531
  %v533 = vrot.slane %v51, %v532
  %542 = vrot.lane.b32.xlu0 %v505, 65
  %v543 = vpop.permute.xlu0 %542
  %544 = vrot.lane.b32.xlu0 %v509, 65
  %v545 = vpop.permute.xlu0 %544
  %546 = vrot.lane.b32.xlu0 %v513, 65
  %v547 = vpop.permute.xlu0 %546
  %548 = vrot.lane.b32.xlu0 %v517, 65
  %v549 = vpop.permute.xlu0 %548
  %550 = vrot.lane.b32.xlu0 %v521, 65
  %v551 = vpop.permute.xlu0 %550
  %552 = vrot.lane.b32.xlu0 %v525, 65
  %v553 = vpop.permute.xlu0 %552
  %554 = vrot.lane.b32.xlu0 %v529, 65
  %v555 = vpop.permute.xlu0 %554
  %556 = vrot.lane.b32.xlu0 %v533, 65
  %v557 = vpop.permute.xlu0 %556
  %vm558 = vcmask 531456
  %v559 = vsel %vm558, %v543, %v545
  %v560 = vsel %vm558, %v545, %v547
  %v561 = vsel %vm558, %v547, %v549
  %v562 = vsel %vm558, %v549, %v551
  %v563 = vsel %vm558, %v551, %v553
  %v564 = vsel %vm558, %v553, %v555
  %v565 = vsel %vm558, %v555, %v557
  %v575 = vmul.f32 %v543, 0.0
  %v576 = vmul.f32 %v76, %v559
  %v577 = vmul.f32 %v84, %v560
  %v578 = vmul.f32 %v77, %v561
  %v579 = vmul.f32 %v85, %v562
  %v580 = vmul.f32 %v78, %v563
  %v581 = vmul.f32 %v86, %v564
  %v582 = vmul.f32 %v79, %v565
  %v583 = vmul.f32 %v87, %v557
  %v584 = vlaneseq
  %v585 = vshrl.u32 %v584, 7
  %v586 = vsub.s32 6, %v585
  %v587 = vrot.slane %v44, %v586
  %v588 = vlaneseq
  %v589 = vshrl.u32 %v588, 7
  %v590 = vsub.s32 6, %v589
  %v591 = vrot.slane %v45, %v590
  %v592 = vlaneseq
  %v593 = vshrl.u32 %v592, 7
  %v594 = vsub.s32 6, %v593
  %v595 = vrot.slane %v46, %v594
  %v596 = vlaneseq
  %v597 = vshrl.u32 %v596, 7
  %v598 = vsub.s32 6, %v597
  %v599 = vrot.slane %v47, %v598
  %v600 = vlaneseq
  %v601 = vshrl.u32 %v600, 7
  %v602 = vsub.s32 6, %v601
  %v603 = vrot.slane %v48, %v602
  %v604 = vlaneseq
  %v605 = vshrl.u32 %v604, 7
  %v606 = vsub.s32 6, %v605
  %v607 = vrot.slane %v49, %v606
  %v608 = vlaneseq
  %v609 = vshrl.u32 %v608, 7
  %v610 = vsub.s32 6, %v609
  %v611 = vrot.slane %v50, %v610
  %v612 = vlaneseq
  %v613 = vshrl.u32 %v612, 7
  %v614 = vsub.s32 6, %v613
  %v615 = vrot.slane %v51, %v614
  %624 = vrot.lane.b32.xlu0 %v587, 71
  %v625 = vpop.permute.xlu0 %624
  %626 = vrot.lane.b32.xlu0 %v591, 71
  %v627 = vpop.permute.xlu0 %626
  %628 = vrot.lane.b32.xlu0 %v595, 71
  %v629 = vpop.permute.xlu0 %628
  %630 = vrot.lane.b32.xlu0 %v599, 71
  %v631 = vpop.permute.xlu0 %630
  %632 = vrot.lane.b32.xlu0 %v603, 71
  %v633 = vpop.permute.xlu0 %632
  %634 = vrot.lane.b32.xlu0 %v607, 71
  %v635 = vpop.permute.xlu0 %634
  %636 = vrot.lane.b32.xlu0 %v611, 71
  %v637 = vpop.permute.xlu0 %636
  %638 = vrot.lane.b32.xlu0 %v615, 71
  %v639 = vpop.permute.xlu0 %638
  %vm640 = vcmask 580608
  %v641 = vsel %vm640, %v625, %v627
  %v642 = vsel %vm640, %v627, %v629
  %v643 = vsel %vm640, %v629, %v631
  %v644 = vsel %vm640, %v631, %v633
  %v645 = vsel %vm640, %v633, %v635
  %v646 = vsel %vm640, %v635, %v637
  %v647 = vsel %vm640, %v637, %v639
  %v657 = vmul.f32 %v625, 0.0
  %v658 = vmul.f32 %v76, %v641
  %v659 = vmul.f32 %v84, %v642
  %v660 = vmul.f32 %v77, %v643
  %v661 = vmul.f32 %v85, %v644
  %v662 = vmul.f32 %v78, %v645
  %v663 = vmul.f32 %v86, %v646
  %v664 = vmul.f32 %v79, %v647
  %v665 = vmul.f32 %v87, %v639
  %v666 = vlaneseq
  %v667 = vshrl.u32 %v666, 7
  %v668 = vsub.s32 7, %v667
  %v669 = vrot.slane %v44, %v668
  %v670 = vlaneseq
  %v671 = vshrl.u32 %v670, 7
  %v672 = vsub.s32 7, %v671
  %v673 = vrot.slane %v45, %v672
  %v674 = vlaneseq
  %v675 = vshrl.u32 %v674, 7
  %v676 = vsub.s32 7, %v675
  %v677 = vrot.slane %v46, %v676
  %v678 = vlaneseq
  %v679 = vshrl.u32 %v678, 7
  %v680 = vsub.s32 7, %v679
  %v681 = vrot.slane %v47, %v680
  %v682 = vlaneseq
  %v683 = vshrl.u32 %v682, 7
  %v684 = vsub.s32 7, %v683
  %v685 = vrot.slane %v48, %v684
  %v686 = vlaneseq
  %v687 = vshrl.u32 %v686, 7
  %v688 = vsub.s32 7, %v687
  %v689 = vrot.slane %v49, %v688
  %v690 = vlaneseq
  %v691 = vshrl.u32 %v690, 7
  %v692 = vsub.s32 7, %v691
  %v693 = vrot.slane %v50, %v692
  %v694 = vlaneseq
  %v695 = vshrl.u32 %v694, 7
  %v696 = vsub.s32 7, %v695
  %v697 = vrot.slane %v51, %v696
  %706 = vrot.lane.b32.xlu0 %v669, 72
  %v707 = vpop.permute.xlu0 %706
  %708 = vrot.lane.b32.xlu0 %v673, 72
  %v709 = vpop.permute.xlu0 %708
  %710 = vrot.lane.b32.xlu0 %v677, 72
  %v711 = vpop.permute.xlu0 %710
  %712 = vrot.lane.b32.xlu0 %v681, 72
  %v713 = vpop.permute.xlu0 %712
  %714 = vrot.lane.b32.xlu0 %v685, 72
  %v715 = vpop.permute.xlu0 %714
  %716 = vrot.lane.b32.xlu0 %v689, 72
  %v717 = vpop.permute.xlu0 %716
  %718 = vrot.lane.b32.xlu0 %v693, 72
  %v719 = vpop.permute.xlu0 %718
  %720 = vrot.lane.b32.xlu0 %v697, 72
  %v721 = vpop.permute.xlu0 %720
  %vm722 = vcmask 588800
  %v723 = vsel %vm722, %v707, %v709
  %v724 = vsel %vm722, %v709, %v711
  %v725 = vsel %vm722, %v711, %v713
  %v726 = vsel %vm722, %v713, %v715
  %v727 = vsel %vm722, %v715, %v717
  %v728 = vsel %vm722, %v717, %v719
  %v729 = vsel %vm722, %v719, %v721
  %v739 = vmul.f32 %v707, 0.0
  %v740 = vmul.f32 %v76, %v723
  %v741 = vmul.f32 %v84, %v724
  %v742 = vmul.f32 %v77, %v725
  %v743 = vmul.f32 %v85, %v726
  %v744 = vmul.f32 %v78, %v727
  %v745 = vmul.f32 %v86, %v728
  %v746 = vmul.f32 %v79, %v729
  %v747 = vmul.f32 %v87, %v721
  %v748 = vlaneseq
  %v749 = vshrl.u32 %v748, 7
  %v750 = vsub.s32 0, %v749
  %v751 = vrot.slane %v52, %v750
  %v752 = vlaneseq
  %v753 = vshrl.u32 %v752, 7
  %v754 = vsub.s32 0, %v753
  %v755 = vrot.slane %v53, %v754
  %v756 = vlaneseq
  %v757 = vshrl.u32 %v756, 7
  %v758 = vsub.s32 0, %v757
  %v759 = vrot.slane %v54, %v758
  %v760 = vlaneseq
  %v761 = vshrl.u32 %v760, 7
  %v762 = vsub.s32 0, %v761
  %v763 = vrot.slane %v55, %v762
  %v764 = vlaneseq
  %v765 = vshrl.u32 %v764, 7
  %v766 = vsub.s32 0, %v765
  %v767 = vrot.slane %v56, %v766
  %v768 = vlaneseq
  %v769 = vshrl.u32 %v768, 7
  %v770 = vsub.s32 0, %v769
  %v771 = vrot.slane %v57, %v770
  %v772 = vlaneseq
  %v773 = vshrl.u32 %v772, 7
  %v774 = vsub.s32 0, %v773
  %v775 = vrot.slane %v58, %v774
  %v776 = vlaneseq
  %v777 = vshrl.u32 %v776, 7
  %v778 = vsub.s32 0, %v777
  %v779 = vrot.slane %v59, %v778
  %788 = vrot.lane.b32.xlu0 %v751, 73
  %v789 = vpop.permute.xlu0 %788
  %790 = vrot.lane.b32.xlu0 %v755, 73
  %v791 = vpop.permute.xlu0 %790
  %792 = vrot.lane.b32.xlu0 %v759, 73
  %v793 = vpop.permute.xlu0 %792
  %794 = vrot.lane.b32.xlu0 %v763, 73
  %v795 = vpop.permute.xlu0 %794
  %796 = vrot.lane.b32.xlu0 %v767, 73
  %v797 = vpop.permute.xlu0 %796
  %798 = vrot.lane.b32.xlu0 %v771, 73
  %v799 = vpop.permute.xlu0 %798
  %800 = vrot.lane.b32.xlu0 %v775, 73
  %v801 = vpop.permute.xlu0 %800
  %802 = vrot.lane.b32.xlu0 %v779, 73
  %v803 = vpop.permute.xlu0 %802
  %vm804 = vcmask 596992
  %v805 = vsel %vm804, %v789, %v791
  %v806 = vsel %vm804, %v791, %v793
  %v807 = vsel %vm804, %v793, %v795
  %v808 = vsel %vm804, %v795, %v797
  %v809 = vsel %vm804, %v797, %v799
  %v810 = vsel %vm804, %v799, %v801
  %v811 = vsel %vm804, %v801, %v803
  %v821 = vmul.f32 %v789, 0.0
  %v822 = vmul.f32 %v76, %v805
  %v823 = vmul.f32 %v84, %v806
  %v824 = vmul.f32 %v77, %v807
  %v825 = vmul.f32 %v85, %v808
  %v826 = vmul.f32 %v78, %v809
  %v827 = vmul.f32 %v86, %v810
  %v828 = vmul.f32 %v79, %v811
  %v829 = vmul.f32 %v87, %v803
  %v830 = vlaneseq
  %v831 = vshrl.u32 %v830, 7
  %v832 = vsub.s32 1, %v831
  %v833 = vrot.slane %v52, %v832
  %v834 = vlaneseq
  %v835 = vshrl.u32 %v834, 7
  %v836 = vsub.s32 1, %v835
  %v837 = vrot.slane %v53, %v836
  %v838 = vlaneseq
  %v839 = vshrl.u32 %v838, 7
  %v840 = vsub.s32 1, %v839
  %v841 = vrot.slane %v54, %v840
  %v842 = vlaneseq
  %v843 = vshrl.u32 %v842, 7
  %v844 = vsub.s32 1, %v843
  %v845 = vrot.slane %v55, %v844
  %v846 = vlaneseq
  %v847 = vshrl.u32 %v846, 7
  %v848 = vsub.s32 1, %v847
  %v849 = vrot.slane %v56, %v848
  %v850 = vlaneseq
  %v851 = vshrl.u32 %v850, 7
  %v852 = vsub.s32 1, %v851
  %v853 = vrot.slane %v57, %v852
  %v854 = vlaneseq
  %v855 = vshrl.u32 %v854, 7
  %v856 = vsub.s32 1, %v855
  %v857 = vrot.slane %v58, %v856
  %v858 = vlaneseq
  %v859 = vshrl.u32 %v858, 7
  %v860 = vsub.s32 1, %v859
  %v861 = vrot.slane %v59, %v860
  %870 = vrot.lane.b32.xlu0 %v833, 119
  %v871 = vpop.permute.xlu0 %870
  %872 = vrot.lane.b32.xlu0 %v837, 119
  %v873 = vpop.permute.xlu0 %872
  %874 = vrot.lane.b32.xlu0 %v841, 119
  %v875 = vpop.permute.xlu0 %874
  %876 = vrot.lane.b32.xlu0 %v845, 119
  %v877 = vpop.permute.xlu0 %876
  %878 = vrot.lane.b32.xlu0 %v849, 119
  %v879 = vpop.permute.xlu0 %878
  %880 = vrot.lane.b32.xlu0 %v853, 119
  %v881 = vpop.permute.xlu0 %880
  %882 = vrot.lane.b32.xlu0 %v857, 119
  %v883 = vpop.permute.xlu0 %882
  %884 = vrot.lane.b32.xlu0 %v861, 119
  %v885 = vpop.permute.xlu0 %884
  %vm886 = vcmask 973824
  %v887 = vsel %vm886, %v871, %v873
  %v888 = vsel %vm886, %v873, %v875
  %v889 = vsel %vm886, %v875, %v877
  %v890 = vsel %vm886, %v877, %v879
  %v891 = vsel %vm886, %v879, %v881
  %v892 = vsel %vm886, %v881, %v883
  %v893 = vsel %vm886, %v883, %v885
  %v903 = vmul.f32 %v871, 0.0
  %v904 = vmul.f32 %v76, %v887
  %v905 = vmul.f32 %v84, %v888
  %v906 = vmul.f32 %v77, %v889
  %v907 = vmul.f32 %v85, %v890
  %v908 = vmul.f32 %v78, %v891
  %v909 = vmul.f32 %v86, %v892
  %v910 = vmul.f32 %v79, %v893
  %v911 = vmul.f32 %v87, %v885
  %v912 = vlaneseq
  %v913 = vshrl.u32 %v912, 7
  %v914 = vsub.s32 2, %v913
  %v915 = vrot.slane %v52, %v914
  %v916 = vlaneseq
  %v917 = vshrl.u32 %v916, 7
  %v918 = vsub.s32 2, %v917
  %v919 = vrot.slane %v53, %v918
  %v920 = vlaneseq
  %v921 = vshrl.u32 %v920, 7
  %v922 = vsub.s32 2, %v921
  %v923 = vrot.slane %v54, %v922
  %v924 = vlaneseq
  %v925 = vshrl.u32 %v924, 7
  %v926 = vsub.s32 2, %v925
  %v927 = vrot.slane %v55, %v926
  %v928 = vlaneseq
  %v929 = vshrl.u32 %v928, 7
  %v930 = vsub.s32 2, %v929
  %v931 = vrot.slane %v56, %v930
  %v932 = vlaneseq
  %v933 = vshrl.u32 %v932, 7
  %v934 = vsub.s32 2, %v933
  %v935 = vrot.slane %v57, %v934
  %v936 = vlaneseq
  %v937 = vshrl.u32 %v936, 7
  %v938 = vsub.s32 2, %v937
  %v939 = vrot.slane %v58, %v938
  %v940 = vlaneseq
  %v941 = vshrl.u32 %v940, 7
  %v942 = vsub.s32 2, %v941
  %v943 = vrot.slane %v59, %v942
  %952 = vrot.lane.b32.xlu0 %v915, 120
  %v953 = vpop.permute.xlu0 %952
  %954 = vrot.lane.b32.xlu0 %v919, 120
  %v955 = vpop.permute.xlu0 %954
  %956 = vrot.lane.b32.xlu0 %v923, 120
  %v957 = vpop.permute.xlu0 %956
  %958 = vrot.lane.b32.xlu0 %v927, 120
  %v959 = vpop.permute.xlu0 %958
  %960 = vrot.lane.b32.xlu0 %v931, 120
  %v961 = vpop.permute.xlu0 %960
  %962 = vrot.lane.b32.xlu0 %v935, 120
  %v963 = vpop.permute.xlu0 %962
  %964 = vrot.lane.b32.xlu0 %v939, 120
  %v965 = vpop.permute.xlu0 %964
  %966 = vrot.lane.b32.xlu0 %v943, 120
  %v967 = vpop.permute.xlu0 %966
  %vm968 = vcmask 982016
  %v969 = vsel %vm968, %v953, %v955
  %v970 = vsel %vm968, %v955, %v957
  %v971 = vsel %vm968, %v957, %v959
  %v972 = vsel %vm968, %v959, %v961
  %v973 = vsel %vm968, %v961, %v963
  %v974 = vsel %vm968, %v963, %v965
  %v975 = vsel %vm968, %v965, %v967
  %v985 = vmul.f32 %v953, 0.0
  %v986 = vmul.f32 %v76, %v969
  %v987 = vmul.f32 %v84, %v970
  %v988 = vmul.f32 %v77, %v971
  %v989 = vmul.f32 %v85, %v972
  %v990 = vmul.f32 %v78, %v973
  %v991 = vmul.f32 %v86, %v974
  %v992 = vmul.f32 %v79, %v975
  %v993 = vmul.f32 %v87, %v967
  %v994 = vlaneseq
  %v995 = vshrl.u32 %v994, 7
  %v996 = vsub.s32 3, %v995
  %v997 = vrot.slane %v52, %v996
  %v998 = vlaneseq
  %v999 = vshrl.u32 %v998, 7
  %v1000 = vsub.s32 3, %v999
  %v1001 = vrot.slane %v53, %v1000
  %v1002 = vlaneseq
  %v1003 = vshrl.u32 %v1002, 7
  %v1004 = vsub.s32 3, %v1003
  %v1005 = vrot.slane %v54, %v1004
  %v1006 = vlaneseq
  %v1007 = vshrl.u32 %v1006, 7
  %v1008 = vsub.s32 3, %v1007
  %v1009 = vrot.slane %v55, %v1008
  %v1010 = vlaneseq
  %v1011 = vshrl.u32 %v1010, 7
  %v1012 = vsub.s32 3, %v1011
  %v1013 = vrot.slane %v56, %v1012
  %v1014 = vlaneseq
  %v1015 = vshrl.u32 %v1014, 7
  %v1016 = vsub.s32 3, %v1015
  %v1017 = vrot.slane %v57, %v1016
  %v1018 = vlaneseq
  %v1019 = vshrl.u32 %v1018, 7
  %v1020 = vsub.s32 3, %v1019
  %v1021 = vrot.slane %v58, %v1020
  %v1022 = vlaneseq
  %v1023 = vshrl.u32 %v1022, 7
  %v1024 = vsub.s32 3, %v1023
  %v1025 = vrot.slane %v59, %v1024
  %1034 = vrot.lane.b32.xlu0 %v997, 121
  %v1035 = vpop.permute.xlu0 %1034
  %1036 = vrot.lane.b32.xlu0 %v1001, 121
  %v1037 = vpop.permute.xlu0 %1036
  %1038 = vrot.lane.b32.xlu0 %v1005, 121
  %v1039 = vpop.permute.xlu0 %1038
  %1040 = vrot.lane.b32.xlu0 %v1009, 121
  %v1041 = vpop.permute.xlu0 %1040
  %1042 = vrot.lane.b32.xlu0 %v1013, 121
  %v1043 = vpop.permute.xlu0 %1042
  %1044 = vrot.lane.b32.xlu0 %v1017, 121
  %v1045 = vpop.permute.xlu0 %1044
  %1046 = vrot.lane.b32.xlu0 %v1021, 121
  %v1047 = vpop.permute.xlu0 %1046
  %1048 = vrot.lane.b32.xlu0 %v1025, 121
  %v1049 = vpop.permute.xlu0 %1048
  %vm1050 = vcmask 990208
  %v1051 = vsel %vm1050, %v1035, %v1037
  %v1052 = vsel %vm1050, %v1037, %v1039
  %v1053 = vsel %vm1050, %v1039, %v1041
  %v1054 = vsel %vm1050, %v1041, %v1043
  %v1055 = vsel %vm1050, %v1043, %v1045
  %v1056 = vsel %vm1050, %v1045, %v1047
  %v1057 = vsel %vm1050, %v1047, %v1049
  %v1067 = vmul.f32 %v1035, 0.0
  %v1068 = vmul.f32 %v76, %v1051
  %v1069 = vmul.f32 %v84, %v1052
  %v1070 = vmul.f32 %v77, %v1053
  %v1071 = vmul.f32 %v85, %v1054
  %v1072 = vmul.f32 %v78, %v1055
  %v1073 = vmul.f32 %v86, %v1056
  %v1074 = vmul.f32 %v79, %v1057
  %v1075 = vmul.f32 %v87, %v1049
  %v1076 = vlaneseq
  %v1077 = vshrl.u32 %v1076, 7
  %v1078 = vsub.s32 4, %v1077
  %v1079 = vrot.slane %v52, %v1078
  %v1080 = vlaneseq
  %v1081 = vshrl.u32 %v1080, 7
  %v1082 = vsub.s32 4, %v1081
  %v1083 = vrot.slane %v53, %v1082
  %v1084 = vlaneseq
  %v1085 = vshrl.u32 %v1084, 7
  %v1086 = vsub.s32 4, %v1085
  %v1087 = vrot.slane %v54, %v1086
  %v1088 = vlaneseq
  %v1089 = vshrl.u32 %v1088, 7
  %v1090 = vsub.s32 4, %v1089
  %v1091 = vrot.slane %v55, %v1090
  %v1092 = vlaneseq
  %v1093 = vshrl.u32 %v1092, 7
  %v1094 = vsub.s32 4, %v1093
  %v1095 = vrot.slane %v56, %v1094
  %v1096 = vlaneseq
  %v1097 = vshrl.u32 %v1096, 7
  %v1098 = vsub.s32 4, %v1097
  %v1099 = vrot.slane %v57, %v1098
  %v1100 = vlaneseq
  %v1101 = vshrl.u32 %v1100, 7
  %v1102 = vsub.s32 4, %v1101
  %v1103 = vrot.slane %v58, %v1102
  %v1104 = vlaneseq
  %v1105 = vshrl.u32 %v1104, 7
  %v1106 = vsub.s32 4, %v1105
  %v1107 = vrot.slane %v59, %v1106
  %1116 = vrot.lane.b32.xlu0 %v1079, 127
  %v1117 = vpop.permute.xlu0 %1116
  %1118 = vrot.lane.b32.xlu0 %v1083, 127
  %v1119 = vpop.permute.xlu0 %1118
  %1120 = vrot.lane.b32.xlu0 %v1087, 127
  %v1121 = vpop.permute.xlu0 %1120
  %1122 = vrot.lane.b32.xlu0 %v1091, 127
  %v1123 = vpop.permute.xlu0 %1122
  %1124 = vrot.lane.b32.xlu0 %v1095, 127
  %v1125 = vpop.permute.xlu0 %1124
  %1126 = vrot.lane.b32.xlu0 %v1099, 127
  %v1127 = vpop.permute.xlu0 %1126
  %1128 = vrot.lane.b32.xlu0 %v1103, 127
  %v1129 = vpop.permute.xlu0 %1128
  %1130 = vrot.lane.b32.xlu0 %v1107, 127
  %v1131 = vpop.permute.xlu0 %1130
  %vm1132 = vcmask 1039360
  %v1133 = vsel %vm1132, %v1117, %v1119
  %v1134 = vsel %vm1132, %v1119, %v1121
  %v1135 = vsel %vm1132, %v1121, %v1123
  %v1136 = vsel %vm1132, %v1123, %v1125
  %v1137 = vsel %vm1132, %v1125, %v1127
  %v1138 = vsel %vm1132, %v1127, %v1129
  %v1139 = vsel %vm1132, %v1129, %v1131
  %v1149 = vmul.f32 %v1117, 0.0
  %v1150 = vmul.f32 %v76, %v1133
  %v1151 = vmul.f32 %v84, %v1134
  %v1152 = vmul.f32 %v77, %v1135
  %v1153 = vmul.f32 %v85, %v1136
  %v1154 = vmul.f32 %v78, %v1137
  %v1155 = vmul.f32 %v86, %v1138
  %v1156 = vmul.f32 %v79, %v1139
  %v1157 = vmul.f32 %v87, %v1131
  %v1158 = vlaneseq
  %v1159 = vshrl.u32 %v1158, 7
  %v1160 = vsub.s32 5, %v1159
  %v1161 = vrot.slane %v52, %v1160
  %v1162 = vlaneseq
  %v1163 = vshrl.u32 %v1162, 7
  %v1164 = vsub.s32 5, %v1163
  %v1165 = vrot.slane %v53, %v1164
  %v1166 = vlaneseq
  %v1167 = vshrl.u32 %v1166, 7
  %v1168 = vsub.s32 5, %v1167
  %v1169 = vrot.slane %v54, %v1168
  %v1170 = vlaneseq
  %v1171 = vshrl.u32 %v1170, 7
  %v1172 = vsub.s32 5, %v1171
  %v1173 = vrot.slane %v55, %v1172
  %v1174 = vlaneseq
  %v1175 = vshrl.u32 %v1174, 7
  %v1176 = vsub.s32 5, %v1175
  %v1177 = vrot.slane %v56, %v1176
  %v1178 = vlaneseq
  %v1179 = vshrl.u32 %v1178, 7
  %v1180 = vsub.s32 5, %v1179
  %v1181 = vrot.slane %v57, %v1180
  %v1182 = vlaneseq
  %v1183 = vshrl.u32 %v1182, 7
  %v1184 = vsub.s32 5, %v1183
  %v1185 = vrot.slane %v58, %v1184
  %v1186 = vlaneseq
  %v1187 = vshrl.u32 %v1186, 7
  %v1188 = vsub.s32 5, %v1187
  %v1189 = vrot.slane %v59, %v1188
  %v1190 = vmul.f32 %v76, %v1161
  %v1191 = vmul.f32 %v84, %v1165
  %v1192 = vmul.f32 %v77, %v1169
  %v1193 = vmul.f32 %v85, %v1173
  %v1194 = vmul.f32 %v78, %v1177
  %v1195 = vmul.f32 %v86, %v1181
  %v1196 = vmul.f32 %v79, %v1185
  %v1197 = vmul.f32 %v87, %v1189
  %v1198 = vlaneseq
  %v1199 = vshrl.u32 %v1198, 7
  %v1200 = vsub.s32 6, %v1199
  %v1201 = vrot.slane %v52, %v1200
  %v1202 = vlaneseq
  %v1203 = vshrl.u32 %v1202, 7
  %v1204 = vsub.s32 6, %v1203
  %v1205 = vrot.slane %v53, %v1204
  %v1206 = vlaneseq
  %v1207 = vshrl.u32 %v1206, 7
  %v1208 = vsub.s32 6, %v1207
  %v1209 = vrot.slane %v54, %v1208
  %v1210 = vlaneseq
  %v1211 = vshrl.u32 %v1210, 7
  %v1212 = vsub.s32 6, %v1211
  %v1213 = vrot.slane %v55, %v1212
  %v1214 = vlaneseq
  %v1215 = vshrl.u32 %v1214, 7
  %v1216 = vsub.s32 6, %v1215
  %v1217 = vrot.slane %v56, %v1216
  %v1218 = vlaneseq
  %v1219 = vshrl.u32 %v1218, 7
  %v1220 = vsub.s32 6, %v1219
  %v1221 = vrot.slane %v57, %v1220
  %v1222 = vlaneseq
  %v1223 = vshrl.u32 %v1222, 7
  %v1224 = vsub.s32 6, %v1223
  %v1225 = vrot.slane %v58, %v1224
  %v1226 = vlaneseq
  %v1227 = vshrl.u32 %v1226, 7
  %v1228 = vsub.s32 6, %v1227
  %v1229 = vrot.slane %v59, %v1228
  %1238 = vrot.lane.b32.xlu0 %v1201, 1
  %v1239 = vpop.permute.xlu0 %1238
  %1240 = vrot.lane.b32.xlu0 %v1205, 1
  %v1241 = vpop.permute.xlu0 %1240
  %1242 = vrot.lane.b32.xlu0 %v1209, 1
  %v1243 = vpop.permute.xlu0 %1242
  %1244 = vrot.lane.b32.xlu0 %v1213, 1
  %v1245 = vpop.permute.xlu0 %1244
  %1246 = vrot.lane.b32.xlu0 %v1217, 1
  %v1247 = vpop.permute.xlu0 %1246
  %1248 = vrot.lane.b32.xlu0 %v1221, 1
  %v1249 = vpop.permute.xlu0 %1248
  %1250 = vrot.lane.b32.xlu0 %v1225, 1
  %v1251 = vpop.permute.xlu0 %1250
  %1252 = vrot.lane.b32.xlu0 %v1229, 1
  %v1253 = vpop.permute.xlu0 %1252
  %vm1254 = vcmask 7168
  %v1255 = vsel %vm1254, %v1239, %v1241
  %v1256 = vsel %vm1254, %v1241, %v1243
  %v1257 = vsel %vm1254, %v1243, %v1245
  %v1258 = vsel %vm1254, %v1245, %v1247
  %v1259 = vsel %vm1254, %v1247, %v1249
  %v1260 = vsel %vm1254, %v1249, %v1251
  %v1261 = vsel %vm1254, %v1251, %v1253
  %v1271 = vmul.f32 %v76, %v1239
  %v1272 = vmul.f32 %v84, %v1255
  %v1273 = vmul.f32 %v77, %v1256
  %v1274 = vmul.f32 %v85, %v1257
  %v1275 = vmul.f32 %v78, %v1258
  %v1276 = vmul.f32 %v86, %v1259
  %v1277 = vmul.f32 %v79, %v1260
  %v1278 = vmul.f32 %v87, %v1261
  %v1279 = vmul.f32 %v1253, 0.0
  %v1280 = vlaneseq
  %v1281 = vshrl.u32 %v1280, 7
  %v1282 = vsub.s32 7, %v1281
  %v1283 = vrot.slane %v52, %v1282
  %v1284 = vlaneseq
  %v1285 = vshrl.u32 %v1284, 7
  %v1286 = vsub.s32 7, %v1285
  %v1287 = vrot.slane %v53, %v1286
  %v1288 = vlaneseq
  %v1289 = vshrl.u32 %v1288, 7
  %v1290 = vsub.s32 7, %v1289
  %v1291 = vrot.slane %v54, %v1290
  %v1292 = vlaneseq
  %v1293 = vshrl.u32 %v1292, 7
  %v1294 = vsub.s32 7, %v1293
  %v1295 = vrot.slane %v55, %v1294
  %v1296 = vlaneseq
  %v1297 = vshrl.u32 %v1296, 7
  %v1298 = vsub.s32 7, %v1297
  %v1299 = vrot.slane %v56, %v1298
  %v1300 = vlaneseq
  %v1301 = vshrl.u32 %v1300, 7
  %v1302 = vsub.s32 7, %v1301
  %v1303 = vrot.slane %v57, %v1302
  %v1304 = vlaneseq
  %v1305 = vshrl.u32 %v1304, 7
  %v1306 = vsub.s32 7, %v1305
  %v1307 = vrot.slane %v58, %v1306
  %v1308 = vlaneseq
  %v1309 = vshrl.u32 %v1308, 7
  %v1310 = vsub.s32 7, %v1309
  %v1311 = vrot.slane %v59, %v1310
  %1320 = vrot.lane.b32.xlu0 %v1283, 7
  %v1321 = vpop.permute.xlu0 %1320
  %1322 = vrot.lane.b32.xlu0 %v1287, 7
  %v1323 = vpop.permute.xlu0 %1322
  %1324 = vrot.lane.b32.xlu0 %v1291, 7
  %v1325 = vpop.permute.xlu0 %1324
  %1326 = vrot.lane.b32.xlu0 %v1295, 7
  %v1327 = vpop.permute.xlu0 %1326
  %1328 = vrot.lane.b32.xlu0 %v1299, 7
  %v1329 = vpop.permute.xlu0 %1328
  %1330 = vrot.lane.b32.xlu0 %v1303, 7
  %v1331 = vpop.permute.xlu0 %1330
  %1332 = vrot.lane.b32.xlu0 %v1307, 7
  %v1333 = vpop.permute.xlu0 %1332
  %1334 = vrot.lane.b32.xlu0 %v1311, 7
  %v1335 = vpop.permute.xlu0 %1334
  %vm1336 = vcmask 56320
  %v1337 = vsel %vm1336, %v1321, %v1323
  %v1338 = vsel %vm1336, %v1323, %v1325
  %v1339 = vsel %vm1336, %v1325, %v1327
  %v1340 = vsel %vm1336, %v1327, %v1329
  %v1341 = vsel %vm1336, %v1329, %v1331
  %v1342 = vsel %vm1336, %v1331, %v1333
  %v1343 = vsel %vm1336, %v1333, %v1335
  %v1353 = vmul.f32 %v76, %v1321
  %v1354 = vmul.f32 %v84, %v1337
  %v1355 = vmul.f32 %v77, %v1338
  %v1356 = vmul.f32 %v85, %v1339
  %v1357 = vmul.f32 %v78, %v1340
  %v1358 = vmul.f32 %v86, %v1341
  %v1359 = vmul.f32 %v79, %v1342
  %v1360 = vmul.f32 %v87, %v1343
  %v1361 = vmul.f32 %v1335, 0.0
  %v1362 = vlaneseq
  %v1363 = vshrl.u32 %v1362, 7
  %v1364 = vsub.s32 0, %v1363
  %v1365 = vrot.slane %v60, %v1364
  %v1366 = vlaneseq
  %v1367 = vshrl.u32 %v1366, 7
  %v1368 = vsub.s32 0, %v1367
  %v1369 = vrot.slane %v61, %v1368
  %v1370 = vlaneseq
  %v1371 = vshrl.u32 %v1370, 7
  %v1372 = vsub.s32 0, %v1371
  %v1373 = vrot.slane %v62, %v1372
  %v1374 = vlaneseq
  %v1375 = vshrl.u32 %v1374, 7
  %v1376 = vsub.s32 0, %v1375
  %v1377 = vrot.slane %v63, %v1376
  %v1378 = vlaneseq
  %v1379 = vshrl.u32 %v1378, 7
  %v1380 = vsub.s32 0, %v1379
  %v1381 = vrot.slane %v64, %v1380
  %v1382 = vlaneseq
  %v1383 = vshrl.u32 %v1382, 7
  %v1384 = vsub.s32 0, %v1383
  %v1385 = vrot.slane %v65, %v1384
  %v1386 = vlaneseq
  %v1387 = vshrl.u32 %v1386, 7
  %v1388 = vsub.s32 0, %v1387
  %v1389 = vrot.slane %v66, %v1388
  %v1390 = vlaneseq
  %v1391 = vshrl.u32 %v1390, 7
  %v1392 = vsub.s32 0, %v1391
  %v1393 = vrot.slane %v67, %v1392
  %1402 = vrot.lane.b32.xlu0 %v1365, 8
  %v1403 = vpop.permute.xlu0 %1402
  %1404 = vrot.lane.b32.xlu0 %v1369, 8
  %v1405 = vpop.permute.xlu0 %1404
  %1406 = vrot.lane.b32.xlu0 %v1373, 8
  %v1407 = vpop.permute.xlu0 %1406
  %1408 = vrot.lane.b32.xlu0 %v1377, 8
  %v1409 = vpop.permute.xlu0 %1408
  %1410 = vrot.lane.b32.xlu0 %v1381, 8
  %v1411 = vpop.permute.xlu0 %1410
  %1412 = vrot.lane.b32.xlu0 %v1385, 8
  %v1413 = vpop.permute.xlu0 %1412
  %1414 = vrot.lane.b32.xlu0 %v1389, 8
  %v1415 = vpop.permute.xlu0 %1414
  %1416 = vrot.lane.b32.xlu0 %v1393, 8
  %v1417 = vpop.permute.xlu0 %1416
  %vm1418 = vcmask 64512
  %v1419 = vsel %vm1418, %v1403, %v1405
  %v1420 = vsel %vm1418, %v1405, %v1407
  %v1421 = vsel %vm1418, %v1407, %v1409
  %v1422 = vsel %vm1418, %v1409, %v1411
  %v1423 = vsel %vm1418, %v1411, %v1413
  %v1424 = vsel %vm1418, %v1413, %v1415
  %v1425 = vsel %vm1418, %v1415, %v1417
  %v1435 = vmul.f32 %v76, %v1403
  %v1436 = vmul.f32 %v84, %v1419
  %v1437 = vmul.f32 %v77, %v1420
  %v1438 = vmul.f32 %v85, %v1421
  %v1439 = vmul.f32 %v78, %v1422
  %v1440 = vmul.f32 %v86, %v1423
  %v1441 = vmul.f32 %v79, %v1424
  %v1442 = vmul.f32 %v87, %v1425
  %v1443 = vmul.f32 %v1417, 0.0
  %v1444 = vlaneseq
  %v1445 = vshrl.u32 %v1444, 7
  %v1446 = vsub.s32 1, %v1445
  %v1447 = vrot.slane %v60, %v1446
  %v1448 = vlaneseq
  %v1449 = vshrl.u32 %v1448, 7
  %v1450 = vsub.s32 1, %v1449
  %v1451 = vrot.slane %v61, %v1450
  %v1452 = vlaneseq
  %v1453 = vshrl.u32 %v1452, 7
  %v1454 = vsub.s32 1, %v1453
  %v1455 = vrot.slane %v62, %v1454
  %v1456 = vlaneseq
  %v1457 = vshrl.u32 %v1456, 7
  %v1458 = vsub.s32 1, %v1457
  %v1459 = vrot.slane %v63, %v1458
  %v1460 = vlaneseq
  %v1461 = vshrl.u32 %v1460, 7
  %v1462 = vsub.s32 1, %v1461
  %v1463 = vrot.slane %v64, %v1462
  %v1464 = vlaneseq
  %v1465 = vshrl.u32 %v1464, 7
  %v1466 = vsub.s32 1, %v1465
  %v1467 = vrot.slane %v65, %v1466
  %v1468 = vlaneseq
  %v1469 = vshrl.u32 %v1468, 7
  %v1470 = vsub.s32 1, %v1469
  %v1471 = vrot.slane %v66, %v1470
  %v1472 = vlaneseq
  %v1473 = vshrl.u32 %v1472, 7
  %v1474 = vsub.s32 1, %v1473
  %v1475 = vrot.slane %v67, %v1474
  %1484 = vrot.lane.b32.xlu0 %v1447, 9
  %v1485 = vpop.permute.xlu0 %1484
  %1486 = vrot.lane.b32.xlu0 %v1451, 9
  %v1487 = vpop.permute.xlu0 %1486
  %1488 = vrot.lane.b32.xlu0 %v1455, 9
  %v1489 = vpop.permute.xlu0 %1488
  %1490 = vrot.lane.b32.xlu0 %v1459, 9
  %v1491 = vpop.permute.xlu0 %1490
  %1492 = vrot.lane.b32.xlu0 %v1463, 9
  %v1493 = vpop.permute.xlu0 %1492
  %1494 = vrot.lane.b32.xlu0 %v1467, 9
  %v1495 = vpop.permute.xlu0 %1494
  %1496 = vrot.lane.b32.xlu0 %v1471, 9
  %v1497 = vpop.permute.xlu0 %1496
  %1498 = vrot.lane.b32.xlu0 %v1475, 9
  %v1499 = vpop.permute.xlu0 %1498
  %vm1500 = vcmask 72704
  %v1501 = vsel %vm1500, %v1485, %v1487
  %v1502 = vsel %vm1500, %v1487, %v1489
  %v1503 = vsel %vm1500, %v1489, %v1491
  %v1504 = vsel %vm1500, %v1491, %v1493
  %v1505 = vsel %vm1500, %v1493, %v1495
  %v1506 = vsel %vm1500, %v1495, %v1497
  %v1507 = vsel %vm1500, %v1497, %v1499
  %v1517 = vmul.f32 %v76, %v1485
  %v1518 = vmul.f32 %v84, %v1501
  %v1519 = vmul.f32 %v77, %v1502
  %v1520 = vmul.f32 %v85, %v1503
  %v1521 = vmul.f32 %v78, %v1504
  %v1522 = vmul.f32 %v86, %v1505
  %v1523 = vmul.f32 %v79, %v1506
  %v1524 = vmul.f32 %v87, %v1507
  %v1525 = vmul.f32 %v1499, 0.0
  %v1526 = vlaneseq
  %v1527 = vshrl.u32 %v1526, 7
  %v1528 = vsub.s32 2, %v1527
  %v1529 = vrot.slane %v60, %v1528
  %v1530 = vlaneseq
  %v1531 = vshrl.u32 %v1530, 7
  %v1532 = vsub.s32 2, %v1531
  %v1533 = vrot.slane %v61, %v1532
  %v1534 = vlaneseq
  %v1535 = vshrl.u32 %v1534, 7
  %v1536 = vsub.s32 2, %v1535
  %v1537 = vrot.slane %v62, %v1536
  %v1538 = vlaneseq
  %v1539 = vshrl.u32 %v1538, 7
  %v1540 = vsub.s32 2, %v1539
  %v1541 = vrot.slane %v63, %v1540
  %v1542 = vlaneseq
  %v1543 = vshrl.u32 %v1542, 7
  %v1544 = vsub.s32 2, %v1543
  %v1545 = vrot.slane %v64, %v1544
  %v1546 = vlaneseq
  %v1547 = vshrl.u32 %v1546, 7
  %v1548 = vsub.s32 2, %v1547
  %v1549 = vrot.slane %v65, %v1548
  %v1550 = vlaneseq
  %v1551 = vshrl.u32 %v1550, 7
  %v1552 = vsub.s32 2, %v1551
  %v1553 = vrot.slane %v66, %v1552
  %v1554 = vlaneseq
  %v1555 = vshrl.u32 %v1554, 7
  %v1556 = vsub.s32 2, %v1555
  %v1557 = vrot.slane %v67, %v1556
  %1566 = vrot.lane.b32.xlu0 %v1529, 55
  %v1567 = vpop.permute.xlu0 %1566
  %1568 = vrot.lane.b32.xlu0 %v1533, 55
  %v1569 = vpop.permute.xlu0 %1568
  %1570 = vrot.lane.b32.xlu0 %v1537, 55
  %v1571 = vpop.permute.xlu0 %1570
  %1572 = vrot.lane.b32.xlu0 %v1541, 55
  %v1573 = vpop.permute.xlu0 %1572
  %1574 = vrot.lane.b32.xlu0 %v1545, 55
  %v1575 = vpop.permute.xlu0 %1574
  %1576 = vrot.lane.b32.xlu0 %v1549, 55
  %v1577 = vpop.permute.xlu0 %1576
  %1578 = vrot.lane.b32.xlu0 %v1553, 55
  %v1579 = vpop.permute.xlu0 %1578
  %1580 = vrot.lane.b32.xlu0 %v1557, 55
  %v1581 = vpop.permute.xlu0 %1580
  %v1582 = vsel %vm148, %v1567, %v1569
  %v1583 = vsel %vm148, %v1569, %v1571
  %v1584 = vsel %vm148, %v1571, %v1573
  %v1585 = vsel %vm148, %v1573, %v1575
  %v1586 = vsel %vm148, %v1575, %v1577
  %v1587 = vsel %vm148, %v1577, %v1579
  %v1588 = vsel %vm148, %v1579, %v1581
  %v1598 = vmul.f32 %v76, %v1567
  %v1599 = vmul.f32 %v84, %v1582
  %v1600 = vmul.f32 %v77, %v1583
  %v1601 = vmul.f32 %v85, %v1584
  %v1602 = vmul.f32 %v78, %v1585
  %v1603 = vmul.f32 %v86, %v1586
  %v1604 = vmul.f32 %v79, %v1587
  %v1605 = vmul.f32 %v87, %v1588
  %v1606 = vmul.f32 %v1581, 0.0
  %v1607 = vlaneseq
  %v1608 = vshrl.u32 %v1607, 7
  %v1609 = vsub.s32 3, %v1608
  %v1610 = vrot.slane %v60, %v1609
  %v1611 = vlaneseq
  %v1612 = vshrl.u32 %v1611, 7
  %v1613 = vsub.s32 3, %v1612
  %v1614 = vrot.slane %v61, %v1613
  %v1615 = vlaneseq
  %v1616 = vshrl.u32 %v1615, 7
  %v1617 = vsub.s32 3, %v1616
  %v1618 = vrot.slane %v62, %v1617
  %v1619 = vlaneseq
  %v1620 = vshrl.u32 %v1619, 7
  %v1621 = vsub.s32 3, %v1620
  %v1622 = vrot.slane %v63, %v1621
  %v1623 = vlaneseq
  %v1624 = vshrl.u32 %v1623, 7
  %v1625 = vsub.s32 3, %v1624
  %v1626 = vrot.slane %v64, %v1625
  %v1627 = vlaneseq
  %v1628 = vshrl.u32 %v1627, 7
  %v1629 = vsub.s32 3, %v1628
  %v1630 = vrot.slane %v65, %v1629
  %v1631 = vlaneseq
  %v1632 = vshrl.u32 %v1631, 7
  %v1633 = vsub.s32 3, %v1632
  %v1634 = vrot.slane %v66, %v1633
  %v1635 = vlaneseq
  %v1636 = vshrl.u32 %v1635, 7
  %v1637 = vsub.s32 3, %v1636
  %v1638 = vrot.slane %v67, %v1637
  %1647 = vrot.lane.b32.xlu0 %v1610, 56
  %v1648 = vpop.permute.xlu0 %1647
  %1649 = vrot.lane.b32.xlu0 %v1614, 56
  %v1650 = vpop.permute.xlu0 %1649
  %1651 = vrot.lane.b32.xlu0 %v1618, 56
  %v1652 = vpop.permute.xlu0 %1651
  %1653 = vrot.lane.b32.xlu0 %v1622, 56
  %v1654 = vpop.permute.xlu0 %1653
  %1655 = vrot.lane.b32.xlu0 %v1626, 56
  %v1656 = vpop.permute.xlu0 %1655
  %1657 = vrot.lane.b32.xlu0 %v1630, 56
  %v1658 = vpop.permute.xlu0 %1657
  %1659 = vrot.lane.b32.xlu0 %v1634, 56
  %v1660 = vpop.permute.xlu0 %1659
  %1661 = vrot.lane.b32.xlu0 %v1638, 56
  %v1662 = vpop.permute.xlu0 %1661
  %v1663 = vsel %vm230, %v1648, %v1650
  %v1664 = vsel %vm230, %v1650, %v1652
  %v1665 = vsel %vm230, %v1652, %v1654
  %v1666 = vsel %vm230, %v1654, %v1656
  %v1667 = vsel %vm230, %v1656, %v1658
  %v1668 = vsel %vm230, %v1658, %v1660
  %v1669 = vsel %vm230, %v1660, %v1662
  %v1679 = vmul.f32 %v76, %v1648
  %v1680 = vmul.f32 %v84, %v1663
  %v1681 = vmul.f32 %v77, %v1664
  %v1682 = vmul.f32 %v85, %v1665
  %v1683 = vmul.f32 %v78, %v1666
  %v1684 = vmul.f32 %v86, %v1667
  %v1685 = vmul.f32 %v79, %v1668
  %v1686 = vmul.f32 %v87, %v1669
  %v1687 = vmul.f32 %v1662, 0.0
  %v1688 = vlaneseq
  %v1689 = vshrl.u32 %v1688, 7
  %v1690 = vsub.s32 4, %v1689
  %v1691 = vrot.slane %v60, %v1690
  %v1692 = vlaneseq
  %v1693 = vshrl.u32 %v1692, 7
  %v1694 = vsub.s32 4, %v1693
  %v1695 = vrot.slane %v61, %v1694
  %v1696 = vlaneseq
  %v1697 = vshrl.u32 %v1696, 7
  %v1698 = vsub.s32 4, %v1697
  %v1699 = vrot.slane %v62, %v1698
  %v1700 = vlaneseq
  %v1701 = vshrl.u32 %v1700, 7
  %v1702 = vsub.s32 4, %v1701
  %v1703 = vrot.slane %v63, %v1702
  %v1704 = vlaneseq
  %v1705 = vshrl.u32 %v1704, 7
  %v1706 = vsub.s32 4, %v1705
  %v1707 = vrot.slane %v64, %v1706
  %v1708 = vlaneseq
  %v1709 = vshrl.u32 %v1708, 7
  %v1710 = vsub.s32 4, %v1709
  %v1711 = vrot.slane %v65, %v1710
  %v1712 = vlaneseq
  %v1713 = vshrl.u32 %v1712, 7
  %v1714 = vsub.s32 4, %v1713
  %v1715 = vrot.slane %v66, %v1714
  %v1716 = vlaneseq
  %v1717 = vshrl.u32 %v1716, 7
  %v1718 = vsub.s32 4, %v1717
  %v1719 = vrot.slane %v67, %v1718
  %1728 = vrot.lane.b32.xlu0 %v1691, 57
  %v1729 = vpop.permute.xlu0 %1728
  %1730 = vrot.lane.b32.xlu0 %v1695, 57
  %v1731 = vpop.permute.xlu0 %1730
  %1732 = vrot.lane.b32.xlu0 %v1699, 57
  %v1733 = vpop.permute.xlu0 %1732
  %1734 = vrot.lane.b32.xlu0 %v1703, 57
  %v1735 = vpop.permute.xlu0 %1734
  %1736 = vrot.lane.b32.xlu0 %v1707, 57
  %v1737 = vpop.permute.xlu0 %1736
  %1738 = vrot.lane.b32.xlu0 %v1711, 57
  %v1739 = vpop.permute.xlu0 %1738
  %1740 = vrot.lane.b32.xlu0 %v1715, 57
  %v1741 = vpop.permute.xlu0 %1740
  %1742 = vrot.lane.b32.xlu0 %v1719, 57
  %v1743 = vpop.permute.xlu0 %1742
  %v1744 = vsel %vm312, %v1729, %v1731
  %v1745 = vsel %vm312, %v1731, %v1733
  %v1746 = vsel %vm312, %v1733, %v1735
  %v1747 = vsel %vm312, %v1735, %v1737
  %v1748 = vsel %vm312, %v1737, %v1739
  %v1749 = vsel %vm312, %v1739, %v1741
  %v1750 = vsel %vm312, %v1741, %v1743
  %v1760 = vmul.f32 %v76, %v1729
  %v1761 = vmul.f32 %v84, %v1744
  %v1762 = vmul.f32 %v77, %v1745
  %v1763 = vmul.f32 %v85, %v1746
  %v1764 = vmul.f32 %v78, %v1747
  %v1765 = vmul.f32 %v86, %v1748
  %v1766 = vmul.f32 %v79, %v1749
  %v1767 = vmul.f32 %v87, %v1750
  %v1768 = vmul.f32 %v1743, 0.0
  %v1769 = vlaneseq
  %v1770 = vshrl.u32 %v1769, 7
  %v1771 = vsub.s32 5, %v1770
  %v1772 = vrot.slane %v60, %v1771
  %v1773 = vlaneseq
  %v1774 = vshrl.u32 %v1773, 7
  %v1775 = vsub.s32 5, %v1774
  %v1776 = vrot.slane %v61, %v1775
  %v1777 = vlaneseq
  %v1778 = vshrl.u32 %v1777, 7
  %v1779 = vsub.s32 5, %v1778
  %v1780 = vrot.slane %v62, %v1779
  %v1781 = vlaneseq
  %v1782 = vshrl.u32 %v1781, 7
  %v1783 = vsub.s32 5, %v1782
  %v1784 = vrot.slane %v63, %v1783
  %v1785 = vlaneseq
  %v1786 = vshrl.u32 %v1785, 7
  %v1787 = vsub.s32 5, %v1786
  %v1788 = vrot.slane %v64, %v1787
  %v1789 = vlaneseq
  %v1790 = vshrl.u32 %v1789, 7
  %v1791 = vsub.s32 5, %v1790
  %v1792 = vrot.slane %v65, %v1791
  %v1793 = vlaneseq
  %v1794 = vshrl.u32 %v1793, 7
  %v1795 = vsub.s32 5, %v1794
  %v1796 = vrot.slane %v66, %v1795
  %v1797 = vlaneseq
  %v1798 = vshrl.u32 %v1797, 7
  %v1799 = vsub.s32 5, %v1798
  %v1800 = vrot.slane %v67, %v1799
  %1809 = vrot.lane.b32.xlu0 %v1772, 63
  %v1810 = vpop.permute.xlu0 %1809
  %1811 = vrot.lane.b32.xlu0 %v1776, 63
  %v1812 = vpop.permute.xlu0 %1811
  %1813 = vrot.lane.b32.xlu0 %v1780, 63
  %v1814 = vpop.permute.xlu0 %1813
  %1815 = vrot.lane.b32.xlu0 %v1784, 63
  %v1816 = vpop.permute.xlu0 %1815
  %1817 = vrot.lane.b32.xlu0 %v1788, 63
  %v1818 = vpop.permute.xlu0 %1817
  %1819 = vrot.lane.b32.xlu0 %v1792, 63
  %v1820 = vpop.permute.xlu0 %1819
  %1821 = vrot.lane.b32.xlu0 %v1796, 63
  %v1822 = vpop.permute.xlu0 %1821
  %1823 = vrot.lane.b32.xlu0 %v1800, 63
  %v1824 = vpop.permute.xlu0 %1823
  %v1825 = vsel %vm394, %v1810, %v1812
  %v1826 = vsel %vm394, %v1812, %v1814
  %v1827 = vsel %vm394, %v1814, %v1816
  %v1828 = vsel %vm394, %v1816, %v1818
  %v1829 = vsel %vm394, %v1818, %v1820
  %v1830 = vsel %vm394, %v1820, %v1822
  %v1831 = vsel %vm394, %v1822, %v1824
  %v1841 = vmul.f32 %v76, %v1810
  %v1842 = vmul.f32 %v84, %v1825
  %v1843 = vmul.f32 %v77, %v1826
  %v1844 = vmul.f32 %v85, %v1827
  %v1845 = vmul.f32 %v78, %v1828
  %v1846 = vmul.f32 %v86, %v1829
  %v1847 = vmul.f32 %v79, %v1830
  %v1848 = vmul.f32 %v87, %v1831
  %v1849 = vmul.f32 %v1824, 0.0
  %v1850 = vlaneseq
  %v1851 = vshrl.u32 %v1850, 7
  %v1852 = vsub.s32 6, %v1851
  %v1853 = vrot.slane %v60, %v1852
  %v1854 = vlaneseq
  %v1855 = vshrl.u32 %v1854, 7
  %v1856 = vsub.s32 6, %v1855
  %v1857 = vrot.slane %v61, %v1856
  %v1858 = vlaneseq
  %v1859 = vshrl.u32 %v1858, 7
  %v1860 = vsub.s32 6, %v1859
  %v1861 = vrot.slane %v62, %v1860
  %v1862 = vlaneseq
  %v1863 = vshrl.u32 %v1862, 7
  %v1864 = vsub.s32 6, %v1863
  %v1865 = vrot.slane %v63, %v1864
  %v1866 = vlaneseq
  %v1867 = vshrl.u32 %v1866, 7
  %v1868 = vsub.s32 6, %v1867
  %v1869 = vrot.slane %v64, %v1868
  %v1870 = vlaneseq
  %v1871 = vshrl.u32 %v1870, 7
  %v1872 = vsub.s32 6, %v1871
  %v1873 = vrot.slane %v65, %v1872
  %v1874 = vlaneseq
  %v1875 = vshrl.u32 %v1874, 7
  %v1876 = vsub.s32 6, %v1875
  %v1877 = vrot.slane %v66, %v1876
  %v1878 = vlaneseq
  %v1879 = vshrl.u32 %v1878, 7
  %v1880 = vsub.s32 6, %v1879
  %v1881 = vrot.slane %v67, %v1880
  %1890 = vrot.lane.b32.xlu0 %v1853, 64
  %v1891 = vpop.permute.xlu0 %1890
  %1892 = vrot.lane.b32.xlu0 %v1857, 64
  %v1893 = vpop.permute.xlu0 %1892
  %1894 = vrot.lane.b32.xlu0 %v1861, 64
  %v1895 = vpop.permute.xlu0 %1894
  %1896 = vrot.lane.b32.xlu0 %v1865, 64
  %v1897 = vpop.permute.xlu0 %1896
  %1898 = vrot.lane.b32.xlu0 %v1869, 64
  %v1899 = vpop.permute.xlu0 %1898
  %1900 = vrot.lane.b32.xlu0 %v1873, 64
  %v1901 = vpop.permute.xlu0 %1900
  %1902 = vrot.lane.b32.xlu0 %v1877, 64
  %v1903 = vpop.permute.xlu0 %1902
  %1904 = vrot.lane.b32.xlu0 %v1881, 64
  %v1905 = vpop.permute.xlu0 %1904
  %v1906 = vsel %vm476, %v1891, %v1893
  %v1907 = vsel %vm476, %v1893, %v1895
  %v1908 = vsel %vm476, %v1895, %v1897
  %v1909 = vsel %vm476, %v1897, %v1899
  %v1910 = vsel %vm476, %v1899, %v1901
  %v1911 = vsel %vm476, %v1901, %v1903
  %v1912 = vsel %vm476, %v1903, %v1905
  %v1922 = vmul.f32 %v76, %v1891
  %v1923 = vmul.f32 %v84, %v1906
  %v1924 = vmul.f32 %v77, %v1907
  %v1925 = vmul.f32 %v85, %v1908
  %v1926 = vmul.f32 %v78, %v1909
  %v1927 = vmul.f32 %v86, %v1910
  %v1928 = vmul.f32 %v79, %v1911
  %v1929 = vmul.f32 %v87, %v1912
  %v1930 = vmul.f32 %v1905, 0.0
  %v1931 = vlaneseq
  %v1932 = vshrl.u32 %v1931, 7
  %v1933 = vsub.s32 7, %v1932
  %v1934 = vrot.slane %v60, %v1933
  %v1935 = vlaneseq
  %v1936 = vshrl.u32 %v1935, 7
  %v1937 = vsub.s32 7, %v1936
  %v1938 = vrot.slane %v61, %v1937
  %v1939 = vlaneseq
  %v1940 = vshrl.u32 %v1939, 7
  %v1941 = vsub.s32 7, %v1940
  %v1942 = vrot.slane %v62, %v1941
  %v1943 = vlaneseq
  %v1944 = vshrl.u32 %v1943, 7
  %v1945 = vsub.s32 7, %v1944
  %v1946 = vrot.slane %v63, %v1945
  %v1947 = vlaneseq
  %v1948 = vshrl.u32 %v1947, 7
  %v1949 = vsub.s32 7, %v1948
  %v1950 = vrot.slane %v64, %v1949
  %v1951 = vlaneseq
  %v1952 = vshrl.u32 %v1951, 7
  %v1953 = vsub.s32 7, %v1952
  %v1954 = vrot.slane %v65, %v1953
  %v1955 = vlaneseq
  %v1956 = vshrl.u32 %v1955, 7
  %v1957 = vsub.s32 7, %v1956
  %v1958 = vrot.slane %v66, %v1957
  %v1959 = vlaneseq
  %v1960 = vshrl.u32 %v1959, 7
  %v1961 = vsub.s32 7, %v1960
  %v1962 = vrot.slane %v67, %v1961
  %1971 = vrot.lane.b32.xlu0 %v1934, 65
  %v1972 = vpop.permute.xlu0 %1971
  %1973 = vrot.lane.b32.xlu0 %v1938, 65
  %v1974 = vpop.permute.xlu0 %1973
  %1975 = vrot.lane.b32.xlu0 %v1942, 65
  %v1976 = vpop.permute.xlu0 %1975
  %1977 = vrot.lane.b32.xlu0 %v1946, 65
  %v1978 = vpop.permute.xlu0 %1977
  %1979 = vrot.lane.b32.xlu0 %v1950, 65
  %v1980 = vpop.permute.xlu0 %1979
  %1981 = vrot.lane.b32.xlu0 %v1954, 65
  %v1982 = vpop.permute.xlu0 %1981
  %1983 = vrot.lane.b32.xlu0 %v1958, 65
  %v1984 = vpop.permute.xlu0 %1983
  %1985 = vrot.lane.b32.xlu0 %v1962, 65
  %v1986 = vpop.permute.xlu0 %1985
  %v1987 = vsel %vm558, %v1972, %v1974
  %v1988 = vsel %vm558, %v1974, %v1976
  %v1989 = vsel %vm558, %v1976, %v1978
  %v1990 = vsel %vm558, %v1978, %v1980
  %v1991 = vsel %vm558, %v1980, %v1982
  %v1992 = vsel %vm558, %v1982, %v1984
  %v1993 = vsel %vm558, %v1984, %v1986
  %v2003 = vmul.f32 %v76, %v1972
  %v2004 = vmul.f32 %v84, %v1987
  %v2005 = vmul.f32 %v77, %v1988
  %v2006 = vmul.f32 %v85, %v1989
  %v2007 = vmul.f32 %v78, %v1990
  %v2008 = vmul.f32 %v86, %v1991
  %v2009 = vmul.f32 %v79, %v1992
  %v2010 = vmul.f32 %v87, %v1993
  %v2011 = vmul.f32 %v1986, 0.0
  %v2012 = vlaneseq
  %v2013 = vshrl.u32 %v2012, 7
  %v2014 = vsub.s32 0, %v2013
  %v2015 = vrot.slane %v68, %v2014
  %v2016 = vlaneseq
  %v2017 = vshrl.u32 %v2016, 7
  %v2018 = vsub.s32 0, %v2017
  %v2019 = vrot.slane %v69, %v2018
  %v2020 = vlaneseq
  %v2021 = vshrl.u32 %v2020, 7
  %v2022 = vsub.s32 0, %v2021
  %v2023 = vrot.slane %v70, %v2022
  %v2024 = vlaneseq
  %v2025 = vshrl.u32 %v2024, 7
  %v2026 = vsub.s32 0, %v2025
  %v2027 = vrot.slane %v71, %v2026
  %v2028 = vlaneseq
  %v2029 = vshrl.u32 %v2028, 7
  %v2030 = vsub.s32 0, %v2029
  %v2031 = vrot.slane %v72, %v2030
  %v2032 = vlaneseq
  %v2033 = vshrl.u32 %v2032, 7
  %v2034 = vsub.s32 0, %v2033
  %v2035 = vrot.slane %v73, %v2034
  %v2036 = vlaneseq
  %v2037 = vshrl.u32 %v2036, 7
  %v2038 = vsub.s32 0, %v2037
  %v2039 = vrot.slane %v74, %v2038
  %v2040 = vlaneseq
  %v2041 = vshrl.u32 %v2040, 7
  %v2042 = vsub.s32 0, %v2041
  %v2043 = vrot.slane %v75, %v2042
  %2052 = vrot.lane.b32.xlu0 %v2015, 71
  %v2053 = vpop.permute.xlu0 %2052
  %2054 = vrot.lane.b32.xlu0 %v2019, 71
  %v2055 = vpop.permute.xlu0 %2054
  %2056 = vrot.lane.b32.xlu0 %v2023, 71
  %v2057 = vpop.permute.xlu0 %2056
  %2058 = vrot.lane.b32.xlu0 %v2027, 71
  %v2059 = vpop.permute.xlu0 %2058
  %2060 = vrot.lane.b32.xlu0 %v2031, 71
  %v2061 = vpop.permute.xlu0 %2060
  %2062 = vrot.lane.b32.xlu0 %v2035, 71
  %v2063 = vpop.permute.xlu0 %2062
  %2064 = vrot.lane.b32.xlu0 %v2039, 71
  %v2065 = vpop.permute.xlu0 %2064
  %2066 = vrot.lane.b32.xlu0 %v2043, 71
  %v2067 = vpop.permute.xlu0 %2066
  %v2068 = vsel %vm640, %v2053, %v2055
  %v2069 = vsel %vm640, %v2055, %v2057
  %v2070 = vsel %vm640, %v2057, %v2059
  %v2071 = vsel %vm640, %v2059, %v2061
  %v2072 = vsel %vm640, %v2061, %v2063
  %v2073 = vsel %vm640, %v2063, %v2065
  %v2074 = vsel %vm640, %v2065, %v2067
  %v2084 = vmul.f32 %v76, %v2053
  %v2085 = vmul.f32 %v84, %v2068
  %v2086 = vmul.f32 %v77, %v2069
  %v2087 = vmul.f32 %v85, %v2070
  %v2088 = vmul.f32 %v78, %v2071
  %v2089 = vmul.f32 %v86, %v2072
  %v2090 = vmul.f32 %v79, %v2073
  %v2091 = vmul.f32 %v87, %v2074
  %v2092 = vmul.f32 %v2067, 0.0
  %v2093 = vlaneseq
  %v2094 = vshrl.u32 %v2093, 7
  %v2095 = vsub.s32 1, %v2094
  %v2096 = vrot.slane %v68, %v2095
  %v2097 = vlaneseq
  %v2098 = vshrl.u32 %v2097, 7
  %v2099 = vsub.s32 1, %v2098
  %v2100 = vrot.slane %v69, %v2099
  %v2101 = vlaneseq
  %v2102 = vshrl.u32 %v2101, 7
  %v2103 = vsub.s32 1, %v2102
  %v2104 = vrot.slane %v70, %v2103
  %v2105 = vlaneseq
  %v2106 = vshrl.u32 %v2105, 7
  %v2107 = vsub.s32 1, %v2106
  %v2108 = vrot.slane %v71, %v2107
  %v2109 = vlaneseq
  %v2110 = vshrl.u32 %v2109, 7
  %v2111 = vsub.s32 1, %v2110
  %v2112 = vrot.slane %v72, %v2111
  %v2113 = vlaneseq
  %v2114 = vshrl.u32 %v2113, 7
  %v2115 = vsub.s32 1, %v2114
  %v2116 = vrot.slane %v73, %v2115
  %v2117 = vlaneseq
  %v2118 = vshrl.u32 %v2117, 7
  %v2119 = vsub.s32 1, %v2118
  %v2120 = vrot.slane %v74, %v2119
  %v2121 = vlaneseq
  %v2122 = vshrl.u32 %v2121, 7
  %v2123 = vsub.s32 1, %v2122
  %v2124 = vrot.slane %v75, %v2123
  %2133 = vrot.lane.b32.xlu0 %v2096, 72
  %v2134 = vpop.permute.xlu0 %2133
  %2135 = vrot.lane.b32.xlu0 %v2100, 72
  %v2136 = vpop.permute.xlu0 %2135
  %2137 = vrot.lane.b32.xlu0 %v2104, 72
  %v2138 = vpop.permute.xlu0 %2137
  %2139 = vrot.lane.b32.xlu0 %v2108, 72
  %v2140 = vpop.permute.xlu0 %2139
  %2141 = vrot.lane.b32.xlu0 %v2112, 72
  %v2142 = vpop.permute.xlu0 %2141
  %2143 = vrot.lane.b32.xlu0 %v2116, 72
  %v2144 = vpop.permute.xlu0 %2143
  %2145 = vrot.lane.b32.xlu0 %v2120, 72
  %v2146 = vpop.permute.xlu0 %2145
  %2147 = vrot.lane.b32.xlu0 %v2124, 72
  %v2148 = vpop.permute.xlu0 %2147
  %v2149 = vsel %vm722, %v2134, %v2136
  %v2150 = vsel %vm722, %v2136, %v2138
  %v2151 = vsel %vm722, %v2138, %v2140
  %v2152 = vsel %vm722, %v2140, %v2142
  %v2153 = vsel %vm722, %v2142, %v2144
  %v2154 = vsel %vm722, %v2144, %v2146
  %v2155 = vsel %vm722, %v2146, %v2148
  %v2165 = vmul.f32 %v76, %v2134
  %v2166 = vmul.f32 %v84, %v2149
  %v2167 = vmul.f32 %v77, %v2150
  %v2168 = vmul.f32 %v85, %v2151
  %v2169 = vmul.f32 %v78, %v2152
  %v2170 = vmul.f32 %v86, %v2153
  %v2171 = vmul.f32 %v79, %v2154
  %v2172 = vmul.f32 %v87, %v2155
  %v2173 = vmul.f32 %v2148, 0.0
  %v2174 = vlaneseq
  %v2175 = vshrl.u32 %v2174, 7
  %v2176 = vsub.s32 2, %v2175
  %v2177 = vrot.slane %v68, %v2176
  %v2178 = vlaneseq
  %v2179 = vshrl.u32 %v2178, 7
  %v2180 = vsub.s32 2, %v2179
  %v2181 = vrot.slane %v69, %v2180
  %v2182 = vlaneseq
  %v2183 = vshrl.u32 %v2182, 7
  %v2184 = vsub.s32 2, %v2183
  %v2185 = vrot.slane %v70, %v2184
  %v2186 = vlaneseq
  %v2187 = vshrl.u32 %v2186, 7
  %v2188 = vsub.s32 2, %v2187
  %v2189 = vrot.slane %v71, %v2188
  %v2190 = vlaneseq
  %v2191 = vshrl.u32 %v2190, 7
  %v2192 = vsub.s32 2, %v2191
  %v2193 = vrot.slane %v72, %v2192
  %v2194 = vlaneseq
  %v2195 = vshrl.u32 %v2194, 7
  %v2196 = vsub.s32 2, %v2195
  %v2197 = vrot.slane %v73, %v2196
  %v2198 = vlaneseq
  %v2199 = vshrl.u32 %v2198, 7
  %v2200 = vsub.s32 2, %v2199
  %v2201 = vrot.slane %v74, %v2200
  %v2202 = vlaneseq
  %v2203 = vshrl.u32 %v2202, 7
  %v2204 = vsub.s32 2, %v2203
  %v2205 = vrot.slane %v75, %v2204
  %2214 = vrot.lane.b32.xlu0 %v2177, 73
  %v2215 = vpop.permute.xlu0 %2214
  %2216 = vrot.lane.b32.xlu0 %v2181, 73
  %v2217 = vpop.permute.xlu0 %2216
  %2218 = vrot.lane.b32.xlu0 %v2185, 73
  %v2219 = vpop.permute.xlu0 %2218
  %2220 = vrot.lane.b32.xlu0 %v2189, 73
  %v2221 = vpop.permute.xlu0 %2220
  %2222 = vrot.lane.b32.xlu0 %v2193, 73
  %v2223 = vpop.permute.xlu0 %2222
  %2224 = vrot.lane.b32.xlu0 %v2197, 73
  %v2225 = vpop.permute.xlu0 %2224
  %2226 = vrot.lane.b32.xlu0 %v2201, 73
  %v2227 = vpop.permute.xlu0 %2226
  %2228 = vrot.lane.b32.xlu0 %v2205, 73
  %v2229 = vpop.permute.xlu0 %2228
  %v2230 = vsel %vm804, %v2215, %v2217
  %v2231 = vsel %vm804, %v2217, %v2219
  %v2232 = vsel %vm804, %v2219, %v2221
  %v2233 = vsel %vm804, %v2221, %v2223
  %v2234 = vsel %vm804, %v2223, %v2225
  %v2235 = vsel %vm804, %v2225, %v2227
  %v2236 = vsel %vm804, %v2227, %v2229
  %v2246 = vmul.f32 %v76, %v2215
  %v2247 = vmul.f32 %v84, %v2230
  %v2248 = vmul.f32 %v77, %v2231
  %v2249 = vmul.f32 %v85, %v2232
  %v2250 = vmul.f32 %v78, %v2233
  %v2251 = vmul.f32 %v86, %v2234
  %v2252 = vmul.f32 %v79, %v2235
  %v2253 = vmul.f32 %v87, %v2236
  %v2254 = vmul.f32 %v2229, 0.0
  %v2264 = vrot.slane %v247, 4
  %v2265 = vrot.slane %v248, 4
  %v2266 = vrot.slane %v249, 4
  %v2267 = vrot.slane %v250, 4
  %v2268 = vrot.slane %v251, 4
  %v2269 = vrot.slane %v252, 4
  %v2270 = vrot.slane %v253, 4
  %v2271 = vrot.slane %v254, 4
  %v2272 = vrot.slane %v255, 4
  %2273 = vrot.lane.b32.xlu0 %v2264, 127
  %v2274 = vpop.permute.xlu0 %2273
  %2275 = vrot.lane.b32.xlu0 %v2265, 127
  %v2276 = vpop.permute.xlu0 %2275
  %2277 = vrot.lane.b32.xlu0 %v2266, 127
  %v2278 = vpop.permute.xlu0 %2277
  %2279 = vrot.lane.b32.xlu0 %v2267, 127
  %v2280 = vpop.permute.xlu0 %2279
  %2281 = vrot.lane.b32.xlu0 %v2268, 127
  %v2282 = vpop.permute.xlu0 %2281
  %2283 = vrot.lane.b32.xlu0 %v2269, 127
  %v2284 = vpop.permute.xlu0 %2283
  %2285 = vrot.lane.b32.xlu0 %v2270, 127
  %v2286 = vpop.permute.xlu0 %2285
  %2287 = vrot.lane.b32.xlu0 %v2271, 127
  %v2288 = vpop.permute.xlu0 %2287
  %2289 = vrot.lane.b32.xlu0 %v2272, 127
  %v2290 = vpop.permute.xlu0 %2289
  %v2291 = vsel %vm1132, %v2274, %v2276
  %v2292 = vsel %vm1132, %v2276, %v2278
  %v2293 = vsel %vm1132, %v2278, %v2280
  %v2294 = vsel %vm1132, %v2280, %v2282
  %v2295 = vsel %vm1132, %v2282, %v2284
  %v2296 = vsel %vm1132, %v2284, %v2286
  %v2297 = vsel %vm1132, %v2286, %v2288
  %v2298 = vsel %vm1132, %v2288, %v2290
  %2317 = vrot.lane.b32.xlu0 %v329, 126
  %v2318 = vpop.permute.xlu0 %2317
  %2319 = vrot.lane.b32.xlu0 %v330, 126
  %v2320 = vpop.permute.xlu0 %2319
  %2321 = vrot.lane.b32.xlu0 %v331, 126
  %v2322 = vpop.permute.xlu0 %2321
  %2323 = vrot.lane.b32.xlu0 %v332, 126
  %v2324 = vpop.permute.xlu0 %2323
  %2325 = vrot.lane.b32.xlu0 %v333, 126
  %v2326 = vpop.permute.xlu0 %2325
  %2327 = vrot.lane.b32.xlu0 %v334, 126
  %v2328 = vpop.permute.xlu0 %2327
  %2329 = vrot.lane.b32.xlu0 %v335, 126
  %v2330 = vpop.permute.xlu0 %2329
  %2331 = vrot.lane.b32.xlu0 %v336, 126
  %v2332 = vpop.permute.xlu0 %2331
  %2333 = vrot.lane.b32.xlu0 %v337, 126
  %v2334 = vpop.permute.xlu0 %2333
  %vm2335 = vcmask 1031168
  %v2336 = vsel %vm2335, %v2318, %v2320
  %v2337 = vsel %vm2335, %v2320, %v2322
  %v2338 = vsel %vm2335, %v2322, %v2324
  %v2339 = vsel %vm2335, %v2324, %v2326
  %v2340 = vsel %vm2335, %v2326, %v2328
  %v2341 = vsel %vm2335, %v2328, %v2330
  %v2342 = vsel %vm2335, %v2330, %v2332
  %v2343 = vsel %vm2335, %v2332, %v2334
  %v2362 = vrot.slane %v411, 4
  %v2363 = vrot.slane %v412, 4
  %v2364 = vrot.slane %v413, 4
  %v2365 = vrot.slane %v414, 4
  %v2366 = vrot.slane %v415, 4
  %v2367 = vrot.slane %v416, 4
  %v2368 = vrot.slane %v417, 4
  %v2369 = vrot.slane %v418, 4
  %v2370 = vrot.slane %v419, 4
  %2371 = vrot.lane.b32.xlu0 %v2362, 120
  %v2372 = vpop.permute.xlu0 %2371
  %2373 = vrot.lane.b32.xlu0 %v2363, 120
  %v2374 = vpop.permute.xlu0 %2373
  %2375 = vrot.lane.b32.xlu0 %v2364, 120
  %v2376 = vpop.permute.xlu0 %2375
  %2377 = vrot.lane.b32.xlu0 %v2365, 120
  %v2378 = vpop.permute.xlu0 %2377
  %2379 = vrot.lane.b32.xlu0 %v2366, 120
  %v2380 = vpop.permute.xlu0 %2379
  %2381 = vrot.lane.b32.xlu0 %v2367, 120
  %v2382 = vpop.permute.xlu0 %2381
  %2383 = vrot.lane.b32.xlu0 %v2368, 120
  %v2384 = vpop.permute.xlu0 %2383
  %2385 = vrot.lane.b32.xlu0 %v2369, 120
  %v2386 = vpop.permute.xlu0 %2385
  %2387 = vrot.lane.b32.xlu0 %v2370, 120
  %v2388 = vpop.permute.xlu0 %2387
  %v2389 = vsel %vm968, %v2372, %v2374
  %v2390 = vsel %vm968, %v2374, %v2376
  %v2391 = vsel %vm968, %v2376, %v2378
  %v2392 = vsel %vm968, %v2378, %v2380
  %v2393 = vsel %vm968, %v2380, %v2382
  %v2394 = vsel %vm968, %v2382, %v2384
  %v2395 = vsel %vm968, %v2384, %v2386
  %v2396 = vsel %vm968, %v2386, %v2388
  %2415 = vrot.lane.b32.xlu0 %v493, 119
  %v2416 = vpop.permute.xlu0 %2415
  %2417 = vrot.lane.b32.xlu0 %v494, 119
  %v2418 = vpop.permute.xlu0 %2417
  %2419 = vrot.lane.b32.xlu0 %v495, 119
  %v2420 = vpop.permute.xlu0 %2419
  %2421 = vrot.lane.b32.xlu0 %v496, 119
  %v2422 = vpop.permute.xlu0 %2421
  %2423 = vrot.lane.b32.xlu0 %v497, 119
  %v2424 = vpop.permute.xlu0 %2423
  %2425 = vrot.lane.b32.xlu0 %v498, 119
  %v2426 = vpop.permute.xlu0 %2425
  %2427 = vrot.lane.b32.xlu0 %v499, 119
  %v2428 = vpop.permute.xlu0 %2427
  %2429 = vrot.lane.b32.xlu0 %v500, 119
  %v2430 = vpop.permute.xlu0 %2429
  %2431 = vrot.lane.b32.xlu0 %v501, 119
  %v2432 = vpop.permute.xlu0 %2431
  %v2433 = vsel %vm886, %v2416, %v2418
  %v2434 = vsel %vm886, %v2418, %v2420
  %v2435 = vsel %vm886, %v2420, %v2422
  %v2436 = vsel %vm886, %v2422, %v2424
  %v2437 = vsel %vm886, %v2424, %v2426
  %v2438 = vsel %vm886, %v2426, %v2428
  %v2439 = vsel %vm886, %v2428, %v2430
  %v2440 = vsel %vm886, %v2430, %v2432
  %v2459 = vrot.slane %v575, 4
  %v2460 = vrot.slane %v576, 4
  %v2461 = vrot.slane %v577, 4
  %v2462 = vrot.slane %v578, 4
  %v2463 = vrot.slane %v579, 4
  %v2464 = vrot.slane %v580, 4
  %v2465 = vrot.slane %v581, 4
  %v2466 = vrot.slane %v582, 4
  %v2467 = vrot.slane %v583, 4
  %2468 = vrot.lane.b32.xlu0 %v2459, 118
  %v2469 = vpop.permute.xlu0 %2468
  %2470 = vrot.lane.b32.xlu0 %v2460, 118
  %v2471 = vpop.permute.xlu0 %2470
  %2472 = vrot.lane.b32.xlu0 %v2461, 118
  %v2473 = vpop.permute.xlu0 %2472
  %2474 = vrot.lane.b32.xlu0 %v2462, 118
  %v2475 = vpop.permute.xlu0 %2474
  %2476 = vrot.lane.b32.xlu0 %v2463, 118
  %v2477 = vpop.permute.xlu0 %2476
  %2478 = vrot.lane.b32.xlu0 %v2464, 118
  %v2479 = vpop.permute.xlu0 %2478
  %2480 = vrot.lane.b32.xlu0 %v2465, 118
  %v2481 = vpop.permute.xlu0 %2480
  %2482 = vrot.lane.b32.xlu0 %v2466, 118
  %v2483 = vpop.permute.xlu0 %2482
  %2484 = vrot.lane.b32.xlu0 %v2467, 118
  %v2485 = vpop.permute.xlu0 %2484
  %vm2486 = vcmask 965632
  %v2487 = vsel %vm2486, %v2469, %v2471
  %v2488 = vsel %vm2486, %v2471, %v2473
  %v2489 = vsel %vm2486, %v2473, %v2475
  %v2490 = vsel %vm2486, %v2475, %v2477
  %v2491 = vsel %vm2486, %v2477, %v2479
  %v2492 = vsel %vm2486, %v2479, %v2481
  %v2493 = vsel %vm2486, %v2481, %v2483
  %v2494 = vsel %vm2486, %v2483, %v2485
  %2513 = vrot.lane.b32.xlu0 %v657, 112
  %v2514 = vpop.permute.xlu0 %2513
  %2515 = vrot.lane.b32.xlu0 %v658, 112
  %v2516 = vpop.permute.xlu0 %2515
  %2517 = vrot.lane.b32.xlu0 %v659, 112
  %v2518 = vpop.permute.xlu0 %2517
  %2519 = vrot.lane.b32.xlu0 %v660, 112
  %v2520 = vpop.permute.xlu0 %2519
  %2521 = vrot.lane.b32.xlu0 %v661, 112
  %v2522 = vpop.permute.xlu0 %2521
  %2523 = vrot.lane.b32.xlu0 %v662, 112
  %v2524 = vpop.permute.xlu0 %2523
  %2525 = vrot.lane.b32.xlu0 %v663, 112
  %v2526 = vpop.permute.xlu0 %2525
  %2527 = vrot.lane.b32.xlu0 %v664, 112
  %v2528 = vpop.permute.xlu0 %2527
  %2529 = vrot.lane.b32.xlu0 %v665, 112
  %v2530 = vpop.permute.xlu0 %2529
  %vm2531 = vcmask 916480
  %v2532 = vsel %vm2531, %v2514, %v2516
  %v2533 = vsel %vm2531, %v2516, %v2518
  %v2534 = vsel %vm2531, %v2518, %v2520
  %v2535 = vsel %vm2531, %v2520, %v2522
  %v2536 = vsel %vm2531, %v2522, %v2524
  %v2537 = vsel %vm2531, %v2524, %v2526
  %v2538 = vsel %vm2531, %v2526, %v2528
  %v2539 = vsel %vm2531, %v2528, %v2530
  %v2558 = vrot.slane %v739, 4
  %v2559 = vrot.slane %v740, 4
  %v2560 = vrot.slane %v741, 4
  %v2561 = vrot.slane %v742, 4
  %v2562 = vrot.slane %v743, 4
  %v2563 = vrot.slane %v744, 4
  %v2564 = vrot.slane %v745, 4
  %v2565 = vrot.slane %v746, 4
  %v2566 = vrot.slane %v747, 4
  %2567 = vrot.lane.b32.xlu0 %v2558, 111
  %v2568 = vpop.permute.xlu0 %2567
  %2569 = vrot.lane.b32.xlu0 %v2559, 111
  %v2570 = vpop.permute.xlu0 %2569
  %2571 = vrot.lane.b32.xlu0 %v2560, 111
  %v2572 = vpop.permute.xlu0 %2571
  %2573 = vrot.lane.b32.xlu0 %v2561, 111
  %v2574 = vpop.permute.xlu0 %2573
  %2575 = vrot.lane.b32.xlu0 %v2562, 111
  %v2576 = vpop.permute.xlu0 %2575
  %2577 = vrot.lane.b32.xlu0 %v2563, 111
  %v2578 = vpop.permute.xlu0 %2577
  %2579 = vrot.lane.b32.xlu0 %v2564, 111
  %v2580 = vpop.permute.xlu0 %2579
  %2581 = vrot.lane.b32.xlu0 %v2565, 111
  %v2582 = vpop.permute.xlu0 %2581
  %2583 = vrot.lane.b32.xlu0 %v2566, 111
  %v2584 = vpop.permute.xlu0 %2583
  %vm2585 = vcmask 908288
  %v2586 = vsel %vm2585, %v2568, %v2570
  %v2587 = vsel %vm2585, %v2570, %v2572
  %v2588 = vsel %vm2585, %v2572, %v2574
  %v2589 = vsel %vm2585, %v2574, %v2576
  %v2590 = vsel %vm2585, %v2576, %v2578
  %v2591 = vsel %vm2585, %v2578, %v2580
  %v2592 = vsel %vm2585, %v2580, %v2582
  %v2593 = vsel %vm2585, %v2582, %v2584
  %2612 = vrot.lane.b32.xlu0 %v821, 110
  %v2613 = vpop.permute.xlu0 %2612
  %2614 = vrot.lane.b32.xlu0 %v822, 110
  %v2615 = vpop.permute.xlu0 %2614
  %2616 = vrot.lane.b32.xlu0 %v823, 110
  %v2617 = vpop.permute.xlu0 %2616
  %2618 = vrot.lane.b32.xlu0 %v824, 110
  %v2619 = vpop.permute.xlu0 %2618
  %2620 = vrot.lane.b32.xlu0 %v825, 110
  %v2621 = vpop.permute.xlu0 %2620
  %2622 = vrot.lane.b32.xlu0 %v826, 110
  %v2623 = vpop.permute.xlu0 %2622
  %2624 = vrot.lane.b32.xlu0 %v827, 110
  %v2625 = vpop.permute.xlu0 %2624
  %2626 = vrot.lane.b32.xlu0 %v828, 110
  %v2627 = vpop.permute.xlu0 %2626
  %2628 = vrot.lane.b32.xlu0 %v829, 110
  %v2629 = vpop.permute.xlu0 %2628
  %vm2630 = vcmask 900096
  %v2631 = vsel %vm2630, %v2613, %v2615
  %v2632 = vsel %vm2630, %v2615, %v2617
  %v2633 = vsel %vm2630, %v2617, %v2619
  %v2634 = vsel %vm2630, %v2619, %v2621
  %v2635 = vsel %vm2630, %v2621, %v2623
  %v2636 = vsel %vm2630, %v2623, %v2625
  %v2637 = vsel %vm2630, %v2625, %v2627
  %v2638 = vsel %vm2630, %v2627, %v2629
  %v2657 = vrot.slane %v903, 4
  %v2658 = vrot.slane %v904, 4
  %v2659 = vrot.slane %v905, 4
  %v2660 = vrot.slane %v906, 4
  %v2661 = vrot.slane %v907, 4
  %v2662 = vrot.slane %v908, 4
  %v2663 = vrot.slane %v909, 4
  %v2664 = vrot.slane %v910, 4
  %v2665 = vrot.slane %v911, 4
  %2666 = vrot.lane.b32.xlu0 %v2657, 64
  %v2667 = vpop.permute.xlu0 %2666
  %2668 = vrot.lane.b32.xlu0 %v2658, 64
  %v2669 = vpop.permute.xlu0 %2668
  %2670 = vrot.lane.b32.xlu0 %v2659, 64
  %v2671 = vpop.permute.xlu0 %2670
  %2672 = vrot.lane.b32.xlu0 %v2660, 64
  %v2673 = vpop.permute.xlu0 %2672
  %2674 = vrot.lane.b32.xlu0 %v2661, 64
  %v2675 = vpop.permute.xlu0 %2674
  %2676 = vrot.lane.b32.xlu0 %v2662, 64
  %v2677 = vpop.permute.xlu0 %2676
  %2678 = vrot.lane.b32.xlu0 %v2663, 64
  %v2679 = vpop.permute.xlu0 %2678
  %2680 = vrot.lane.b32.xlu0 %v2664, 64
  %v2681 = vpop.permute.xlu0 %2680
  %2682 = vrot.lane.b32.xlu0 %v2665, 64
  %v2683 = vpop.permute.xlu0 %2682
  %v2684 = vsel %vm476, %v2667, %v2669
  %v2685 = vsel %vm476, %v2669, %v2671
  %v2686 = vsel %vm476, %v2671, %v2673
  %v2687 = vsel %vm476, %v2673, %v2675
  %v2688 = vsel %vm476, %v2675, %v2677
  %v2689 = vsel %vm476, %v2677, %v2679
  %v2690 = vsel %vm476, %v2679, %v2681
  %v2691 = vsel %vm476, %v2681, %v2683
  %2710 = vrot.lane.b32.xlu0 %v985, 63
  %v2711 = vpop.permute.xlu0 %2710
  %2712 = vrot.lane.b32.xlu0 %v986, 63
  %v2713 = vpop.permute.xlu0 %2712
  %2714 = vrot.lane.b32.xlu0 %v987, 63
  %v2715 = vpop.permute.xlu0 %2714
  %2716 = vrot.lane.b32.xlu0 %v988, 63
  %v2717 = vpop.permute.xlu0 %2716
  %2718 = vrot.lane.b32.xlu0 %v989, 63
  %v2719 = vpop.permute.xlu0 %2718
  %2720 = vrot.lane.b32.xlu0 %v990, 63
  %v2721 = vpop.permute.xlu0 %2720
  %2722 = vrot.lane.b32.xlu0 %v991, 63
  %v2723 = vpop.permute.xlu0 %2722
  %2724 = vrot.lane.b32.xlu0 %v992, 63
  %v2725 = vpop.permute.xlu0 %2724
  %2726 = vrot.lane.b32.xlu0 %v993, 63
  %v2727 = vpop.permute.xlu0 %2726
  %v2728 = vsel %vm394, %v2711, %v2713
  %v2729 = vsel %vm394, %v2713, %v2715
  %v2730 = vsel %vm394, %v2715, %v2717
  %v2731 = vsel %vm394, %v2717, %v2719
  %v2732 = vsel %vm394, %v2719, %v2721
  %v2733 = vsel %vm394, %v2721, %v2723
  %v2734 = vsel %vm394, %v2723, %v2725
  %v2735 = vsel %vm394, %v2725, %v2727
  %v2754 = vrot.slane %v1067, 4
  %v2755 = vrot.slane %v1068, 4
  %v2756 = vrot.slane %v1069, 4
  %v2757 = vrot.slane %v1070, 4
  %v2758 = vrot.slane %v1071, 4
  %v2759 = vrot.slane %v1072, 4
  %v2760 = vrot.slane %v1073, 4
  %v2761 = vrot.slane %v1074, 4
  %v2762 = vrot.slane %v1075, 4
  %2763 = vrot.lane.b32.xlu0 %v2754, 62
  %v2764 = vpop.permute.xlu0 %2763
  %2765 = vrot.lane.b32.xlu0 %v2755, 62
  %v2766 = vpop.permute.xlu0 %2765
  %2767 = vrot.lane.b32.xlu0 %v2756, 62
  %v2768 = vpop.permute.xlu0 %2767
  %2769 = vrot.lane.b32.xlu0 %v2757, 62
  %v2770 = vpop.permute.xlu0 %2769
  %2771 = vrot.lane.b32.xlu0 %v2758, 62
  %v2772 = vpop.permute.xlu0 %2771
  %2773 = vrot.lane.b32.xlu0 %v2759, 62
  %v2774 = vpop.permute.xlu0 %2773
  %2775 = vrot.lane.b32.xlu0 %v2760, 62
  %v2776 = vpop.permute.xlu0 %2775
  %2777 = vrot.lane.b32.xlu0 %v2761, 62
  %v2778 = vpop.permute.xlu0 %2777
  %2779 = vrot.lane.b32.xlu0 %v2762, 62
  %v2780 = vpop.permute.xlu0 %2779
  %vm2781 = vcmask 506880
  %v2782 = vsel %vm2781, %v2764, %v2766
  %v2783 = vsel %vm2781, %v2766, %v2768
  %v2784 = vsel %vm2781, %v2768, %v2770
  %v2785 = vsel %vm2781, %v2770, %v2772
  %v2786 = vsel %vm2781, %v2772, %v2774
  %v2787 = vsel %vm2781, %v2774, %v2776
  %v2788 = vsel %vm2781, %v2776, %v2778
  %v2789 = vsel %vm2781, %v2778, %v2780
  %2808 = vrot.lane.b32.xlu0 %v1149, 56
  %v2809 = vpop.permute.xlu0 %2808
  %2810 = vrot.lane.b32.xlu0 %v1150, 56
  %v2811 = vpop.permute.xlu0 %2810
  %2812 = vrot.lane.b32.xlu0 %v1151, 56
  %v2813 = vpop.permute.xlu0 %2812
  %2814 = vrot.lane.b32.xlu0 %v1152, 56
  %v2815 = vpop.permute.xlu0 %2814
  %2816 = vrot.lane.b32.xlu0 %v1153, 56
  %v2817 = vpop.permute.xlu0 %2816
  %2818 = vrot.lane.b32.xlu0 %v1154, 56
  %v2819 = vpop.permute.xlu0 %2818
  %2820 = vrot.lane.b32.xlu0 %v1155, 56
  %v2821 = vpop.permute.xlu0 %2820
  %2822 = vrot.lane.b32.xlu0 %v1156, 56
  %v2823 = vpop.permute.xlu0 %2822
  %2824 = vrot.lane.b32.xlu0 %v1157, 56
  %v2825 = vpop.permute.xlu0 %2824
  %v2826 = vsel %vm230, %v2809, %v2811
  %v2827 = vsel %vm230, %v2811, %v2813
  %v2828 = vsel %vm230, %v2813, %v2815
  %v2829 = vsel %vm230, %v2815, %v2817
  %v2830 = vsel %vm230, %v2817, %v2819
  %v2831 = vsel %vm230, %v2819, %v2821
  %v2832 = vsel %vm230, %v2821, %v2823
  %v2833 = vsel %vm230, %v2823, %v2825
  %v2851 = vrot.slane %v1190, 4
  %v2852 = vrot.slane %v1191, 4
  %v2853 = vrot.slane %v1192, 4
  %v2854 = vrot.slane %v1193, 4
  %v2855 = vrot.slane %v1194, 4
  %v2856 = vrot.slane %v1195, 4
  %v2857 = vrot.slane %v1196, 4
  %v2858 = vrot.slane %v1197, 4
  %2859 = vrot.lane.b32.xlu0 %v2851, 55
  %v2860 = vpop.permute.xlu0 %2859
  %2861 = vrot.lane.b32.xlu0 %v2852, 55
  %v2862 = vpop.permute.xlu0 %2861
  %2863 = vrot.lane.b32.xlu0 %v2853, 55
  %v2864 = vpop.permute.xlu0 %2863
  %2865 = vrot.lane.b32.xlu0 %v2854, 55
  %v2866 = vpop.permute.xlu0 %2865
  %2867 = vrot.lane.b32.xlu0 %v2855, 55
  %v2868 = vpop.permute.xlu0 %2867
  %2869 = vrot.lane.b32.xlu0 %v2856, 55
  %v2870 = vpop.permute.xlu0 %2869
  %2871 = vrot.lane.b32.xlu0 %v2857, 55
  %v2872 = vpop.permute.xlu0 %2871
  %2873 = vrot.lane.b32.xlu0 %v2858, 55
  %v2874 = vpop.permute.xlu0 %2873
  %v2875 = vsel %vm148, %v2860, %v2862
  %v2876 = vsel %vm148, %v2862, %v2864
  %v2877 = vsel %vm148, %v2864, %v2866
  %v2878 = vsel %vm148, %v2866, %v2868
  %v2879 = vsel %vm148, %v2868, %v2870
  %v2880 = vsel %vm148, %v2870, %v2872
  %v2881 = vsel %vm148, %v2872, %v2874
  %2900 = vrot.lane.b32.xlu0 %v1271, 54
  %v2901 = vpop.permute.xlu0 %2900
  %2902 = vrot.lane.b32.xlu0 %v1272, 54
  %v2903 = vpop.permute.xlu0 %2902
  %2904 = vrot.lane.b32.xlu0 %v1273, 54
  %v2905 = vpop.permute.xlu0 %2904
  %2906 = vrot.lane.b32.xlu0 %v1274, 54
  %v2907 = vpop.permute.xlu0 %2906
  %2908 = vrot.lane.b32.xlu0 %v1275, 54
  %v2909 = vpop.permute.xlu0 %2908
  %2910 = vrot.lane.b32.xlu0 %v1276, 54
  %v2911 = vpop.permute.xlu0 %2910
  %2912 = vrot.lane.b32.xlu0 %v1277, 54
  %v2913 = vpop.permute.xlu0 %2912
  %2914 = vrot.lane.b32.xlu0 %v1278, 54
  %v2915 = vpop.permute.xlu0 %2914
  %2916 = vrot.lane.b32.xlu0 %v1279, 54
  %v2917 = vpop.permute.xlu0 %2916
  %vm2918 = vcmask 441344
  %v2919 = vsel %vm2918, %v2901, %v2903
  %v2920 = vsel %vm2918, %v2903, %v2905
  %v2921 = vsel %vm2918, %v2905, %v2907
  %v2922 = vsel %vm2918, %v2907, %v2909
  %v2923 = vsel %vm2918, %v2909, %v2911
  %v2924 = vsel %vm2918, %v2911, %v2913
  %v2925 = vsel %vm2918, %v2913, %v2915
  %v2926 = vsel %vm2918, %v2915, %v2917
  %v2945 = vrot.slane %v1353, 4
  %v2946 = vrot.slane %v1354, 4
  %v2947 = vrot.slane %v1355, 4
  %v2948 = vrot.slane %v1356, 4
  %v2949 = vrot.slane %v1357, 4
  %v2950 = vrot.slane %v1358, 4
  %v2951 = vrot.slane %v1359, 4
  %v2952 = vrot.slane %v1360, 4
  %v2953 = vrot.slane %v1361, 4
  %2954 = vrot.lane.b32.xlu0 %v2945, 48
  %v2955 = vpop.permute.xlu0 %2954
  %2956 = vrot.lane.b32.xlu0 %v2946, 48
  %v2957 = vpop.permute.xlu0 %2956
  %2958 = vrot.lane.b32.xlu0 %v2947, 48
  %v2959 = vpop.permute.xlu0 %2958
  %2960 = vrot.lane.b32.xlu0 %v2948, 48
  %v2961 = vpop.permute.xlu0 %2960
  %2962 = vrot.lane.b32.xlu0 %v2949, 48
  %v2963 = vpop.permute.xlu0 %2962
  %2964 = vrot.lane.b32.xlu0 %v2950, 48
  %v2965 = vpop.permute.xlu0 %2964
  %2966 = vrot.lane.b32.xlu0 %v2951, 48
  %v2967 = vpop.permute.xlu0 %2966
  %2968 = vrot.lane.b32.xlu0 %v2952, 48
  %v2969 = vpop.permute.xlu0 %2968
  %2970 = vrot.lane.b32.xlu0 %v2953, 48
  %v2971 = vpop.permute.xlu0 %2970
  %vm2972 = vcmask 392192
  %v2973 = vsel %vm2972, %v2955, %v2957
  %v2974 = vsel %vm2972, %v2957, %v2959
  %v2975 = vsel %vm2972, %v2959, %v2961
  %v2976 = vsel %vm2972, %v2961, %v2963
  %v2977 = vsel %vm2972, %v2963, %v2965
  %v2978 = vsel %vm2972, %v2965, %v2967
  %v2979 = vsel %vm2972, %v2967, %v2969
  %v2980 = vsel %vm2972, %v2969, %v2971
  %vm2990 = vcmask 1043456
  %v2991 = vsel %vm2990, %v165, %v2291
  %v2992 = vsel %vm2990, %v166, %v2292
  %v2993 = vsel %vm2990, %v167, %v2293
  %v2994 = vsel %vm2990, %v168, %v2294
  %v2995 = vsel %vm2990, %v169, %v2295
  %v2996 = vsel %vm2990, %v170, %v2296
  %v2997 = vsel %vm2990, %v171, %v2297
  %v2998 = vsel %vm2990, %v172, %v2298
  %v2999 = vsel %vm2990, %v173, %v2290
  %v3000 = vsel %vm2990, %v2336, %v2389
  %v3001 = vsel %vm2990, %v2337, %v2390
  %v3002 = vsel %vm2990, %v2338, %v2391
  %v3003 = vsel %vm2990, %v2339, %v2392
  %v3004 = vsel %vm2990, %v2340, %v2393
  %v3005 = vsel %vm2990, %v2341, %v2394
  %v3006 = vsel %vm2990, %v2342, %v2395
  %v3007 = vsel %vm2990, %v2343, %v2396
  %v3008 = vsel %vm2990, %v2334, %v2388
  %v3009 = vsel %vm2990, %v2433, %v2487
  %v3010 = vsel %vm2990, %v2434, %v2488
  %v3011 = vsel %vm2990, %v2435, %v2489
  %v3012 = vsel %vm2990, %v2436, %v2490
  %v3013 = vsel %vm2990, %v2437, %v2491
  %v3014 = vsel %vm2990, %v2438, %v2492
  %v3015 = vsel %vm2990, %v2439, %v2493
  %v3016 = vsel %vm2990, %v2440, %v2494
  %v3017 = vsel %vm2990, %v2432, %v2485
  %v3018 = vsel %vm2990, %v2532, %v2586
  %v3019 = vsel %vm2990, %v2533, %v2587
  %v3020 = vsel %vm2990, %v2534, %v2588
  %v3021 = vsel %vm2990, %v2535, %v2589
  %v3022 = vsel %vm2990, %v2536, %v2590
  %v3023 = vsel %vm2990, %v2537, %v2591
  %v3024 = vsel %vm2990, %v2538, %v2592
  %v3025 = vsel %vm2990, %v2539, %v2593
  %v3026 = vsel %vm2990, %v2530, %v2584
  %v3027 = vsel %vm2990, %v2631, %v2684
  %v3028 = vsel %vm2990, %v2632, %v2685
  %v3029 = vsel %vm2990, %v2633, %v2686
  %v3030 = vsel %vm2990, %v2634, %v2687
  %v3031 = vsel %vm2990, %v2635, %v2688
  %v3032 = vsel %vm2990, %v2636, %v2689
  %v3033 = vsel %vm2990, %v2637, %v2690
  %v3034 = vsel %vm2990, %v2638, %v2691
  %v3035 = vsel %vm2990, %v2629, %v2683
  %v3036 = vsel %vm2990, %v2728, %v2782
  %v3037 = vsel %vm2990, %v2729, %v2783
  %v3038 = vsel %vm2990, %v2730, %v2784
  %v3039 = vsel %vm2990, %v2731, %v2785
  %v3040 = vsel %vm2990, %v2732, %v2786
  %v3041 = vsel %vm2990, %v2733, %v2787
  %v3042 = vsel %vm2990, %v2734, %v2788
  %v3043 = vsel %vm2990, %v2735, %v2789
  %v3044 = vsel %vm2990, %v2727, %v2780
  %v3045 = vsel %vm2990, %v2826, %v2860
  %v3046 = vsel %vm2990, %v2827, %v2875
  %v3047 = vsel %vm2990, %v2828, %v2876
  %v3048 = vsel %vm2990, %v2829, %v2877
  %v3049 = vsel %vm2990, %v2830, %v2878
  %v3050 = vsel %vm2990, %v2831, %v2879
  %v3051 = vsel %vm2990, %v2832, %v2880
  %v3052 = vsel %vm2990, %v2833, %v2881
  %v3053 = vsel %vm2990, %v2825, %v2874
  %v3054 = vsel %vm2990, %v2901, %v2955
  %v3055 = vsel %vm2990, %v2919, %v2973
  %v3056 = vsel %vm2990, %v2920, %v2974
  %v3057 = vsel %vm2990, %v2921, %v2975
  %v3058 = vsel %vm2990, %v2922, %v2976
  %v3059 = vsel %vm2990, %v2923, %v2977
  %v3060 = vsel %vm2990, %v2924, %v2978
  %v3061 = vsel %vm2990, %v2925, %v2979
  %v3062 = vsel %vm2990, %v2926, %v2980
  %v3072 = vrot.slane %v1517, 4
  %v3073 = vrot.slane %v1518, 4
  %v3074 = vrot.slane %v1519, 4
  %v3075 = vrot.slane %v1520, 4
  %v3076 = vrot.slane %v1521, 4
  %v3077 = vrot.slane %v1522, 4
  %v3078 = vrot.slane %v1523, 4
  %v3079 = vrot.slane %v1524, 4
  %v3080 = vrot.slane %v1525, 4
  %3081 = vrot.lane.b32.xlu0 %v3072, 127
  %v3082 = vpop.permute.xlu0 %3081
  %3083 = vrot.lane.b32.xlu0 %v3073, 127
  %v3084 = vpop.permute.xlu0 %3083
  %3085 = vrot.lane.b32.xlu0 %v3074, 127
  %v3086 = vpop.permute.xlu0 %3085
  %3087 = vrot.lane.b32.xlu0 %v3075, 127
  %v3088 = vpop.permute.xlu0 %3087
  %3089 = vrot.lane.b32.xlu0 %v3076, 127
  %v3090 = vpop.permute.xlu0 %3089
  %3091 = vrot.lane.b32.xlu0 %v3077, 127
  %v3092 = vpop.permute.xlu0 %3091
  %3093 = vrot.lane.b32.xlu0 %v3078, 127
  %v3094 = vpop.permute.xlu0 %3093
  %3095 = vrot.lane.b32.xlu0 %v3079, 127
  %v3096 = vpop.permute.xlu0 %3095
  %3097 = vrot.lane.b32.xlu0 %v3080, 127
  %v3098 = vpop.permute.xlu0 %3097
  %v3099 = vsel %vm1132, %v3082, %v3084
  %v3100 = vsel %vm1132, %v3084, %v3086
  %v3101 = vsel %vm1132, %v3086, %v3088
  %v3102 = vsel %vm1132, %v3088, %v3090
  %v3103 = vsel %vm1132, %v3090, %v3092
  %v3104 = vsel %vm1132, %v3092, %v3094
  %v3105 = vsel %vm1132, %v3094, %v3096
  %v3106 = vsel %vm1132, %v3096, %v3098
  %3125 = vrot.lane.b32.xlu0 %v1598, 81
  %v3126 = vpop.permute.xlu0 %3125
  %3127 = vrot.lane.b32.xlu0 %v1599, 81
  %v3128 = vpop.permute.xlu0 %3127
  %3129 = vrot.lane.b32.xlu0 %v1600, 81
  %v3130 = vpop.permute.xlu0 %3129
  %3131 = vrot.lane.b32.xlu0 %v1601, 81
  %v3132 = vpop.permute.xlu0 %3131
  %3133 = vrot.lane.b32.xlu0 %v1602, 81
  %v3134 = vpop.permute.xlu0 %3133
  %3135 = vrot.lane.b32.xlu0 %v1603, 81
  %v3136 = vpop.permute.xlu0 %3135
  %3137 = vrot.lane.b32.xlu0 %v1604, 81
  %v3138 = vpop.permute.xlu0 %3137
  %3139 = vrot.lane.b32.xlu0 %v1605, 81
  %v3140 = vpop.permute.xlu0 %3139
  %3141 = vrot.lane.b32.xlu0 %v1606, 81
  %v3142 = vpop.permute.xlu0 %3141
  %vm3143 = vcmask 662528
  %v3144 = vsel %vm3143, %v3126, %v3128
  %v3145 = vsel %vm3143, %v3128, %v3130
  %v3146 = vsel %vm3143, %v3130, %v3132
  %v3147 = vsel %vm3143, %v3132, %v3134
  %v3148 = vsel %vm3143, %v3134, %v3136
  %v3149 = vsel %vm3143, %v3136, %v3138
  %v3150 = vsel %vm3143, %v3138, %v3140
  %v3151 = vsel %vm3143, %v3140, %v3142
  %v3170 = vrot.slane %v1679, 4
  %v3171 = vrot.slane %v1680, 4
  %v3172 = vrot.slane %v1681, 4
  %v3173 = vrot.slane %v1682, 4
  %v3174 = vrot.slane %v1683, 4
  %v3175 = vrot.slane %v1684, 4
  %v3176 = vrot.slane %v1685, 4
  %v3177 = vrot.slane %v1686, 4
  %v3178 = vrot.slane %v1687, 4
  %3179 = vrot.lane.b32.xlu0 %v3170, 80
  %v3180 = vpop.permute.xlu0 %3179
  %3181 = vrot.lane.b32.xlu0 %v3171, 80
  %v3182 = vpop.permute.xlu0 %3181
  %3183 = vrot.lane.b32.xlu0 %v3172, 80
  %v3184 = vpop.permute.xlu0 %3183
  %3185 = vrot.lane.b32.xlu0 %v3173, 80
  %v3186 = vpop.permute.xlu0 %3185
  %3187 = vrot.lane.b32.xlu0 %v3174, 80
  %v3188 = vpop.permute.xlu0 %3187
  %3189 = vrot.lane.b32.xlu0 %v3175, 80
  %v3190 = vpop.permute.xlu0 %3189
  %3191 = vrot.lane.b32.xlu0 %v3176, 80
  %v3192 = vpop.permute.xlu0 %3191
  %3193 = vrot.lane.b32.xlu0 %v3177, 80
  %v3194 = vpop.permute.xlu0 %3193
  %3195 = vrot.lane.b32.xlu0 %v3178, 80
  %v3196 = vpop.permute.xlu0 %3195
  %vm3197 = vcmask 654336
  %v3198 = vsel %vm3197, %v3180, %v3182
  %v3199 = vsel %vm3197, %v3182, %v3184
  %v3200 = vsel %vm3197, %v3184, %v3186
  %v3201 = vsel %vm3197, %v3186, %v3188
  %v3202 = vsel %vm3197, %v3188, %v3190
  %v3203 = vsel %vm3197, %v3190, %v3192
  %v3204 = vsel %vm3197, %v3192, %v3194
  %v3205 = vsel %vm3197, %v3194, %v3196
  %3224 = vrot.lane.b32.xlu0 %v1760, 79
  %v3225 = vpop.permute.xlu0 %3224
  %3226 = vrot.lane.b32.xlu0 %v1761, 79
  %v3227 = vpop.permute.xlu0 %3226
  %3228 = vrot.lane.b32.xlu0 %v1762, 79
  %v3229 = vpop.permute.xlu0 %3228
  %3230 = vrot.lane.b32.xlu0 %v1763, 79
  %v3231 = vpop.permute.xlu0 %3230
  %3232 = vrot.lane.b32.xlu0 %v1764, 79
  %v3233 = vpop.permute.xlu0 %3232
  %3234 = vrot.lane.b32.xlu0 %v1765, 79
  %v3235 = vpop.permute.xlu0 %3234
  %3236 = vrot.lane.b32.xlu0 %v1766, 79
  %v3237 = vpop.permute.xlu0 %3236
  %3238 = vrot.lane.b32.xlu0 %v1767, 79
  %v3239 = vpop.permute.xlu0 %3238
  %3240 = vrot.lane.b32.xlu0 %v1768, 79
  %v3241 = vpop.permute.xlu0 %3240
  %vm3242 = vcmask 646144
  %v3243 = vsel %vm3242, %v3225, %v3227
  %v3244 = vsel %vm3242, %v3227, %v3229
  %v3245 = vsel %vm3242, %v3229, %v3231
  %v3246 = vsel %vm3242, %v3231, %v3233
  %v3247 = vsel %vm3242, %v3233, %v3235
  %v3248 = vsel %vm3242, %v3235, %v3237
  %v3249 = vsel %vm3242, %v3237, %v3239
  %v3250 = vsel %vm3242, %v3239, %v3241
  %v3269 = vrot.slane %v1841, 4
  %v3270 = vrot.slane %v1842, 4
  %v3271 = vrot.slane %v1843, 4
  %v3272 = vrot.slane %v1844, 4
  %v3273 = vrot.slane %v1845, 4
  %v3274 = vrot.slane %v1846, 4
  %v3275 = vrot.slane %v1847, 4
  %v3276 = vrot.slane %v1848, 4
  %v3277 = vrot.slane %v1849, 4
  %3278 = vrot.lane.b32.xlu0 %v3269, 73
  %v3279 = vpop.permute.xlu0 %3278
  %3280 = vrot.lane.b32.xlu0 %v3270, 73
  %v3281 = vpop.permute.xlu0 %3280
  %3282 = vrot.lane.b32.xlu0 %v3271, 73
  %v3283 = vpop.permute.xlu0 %3282
  %3284 = vrot.lane.b32.xlu0 %v3272, 73
  %v3285 = vpop.permute.xlu0 %3284
  %3286 = vrot.lane.b32.xlu0 %v3273, 73
  %v3287 = vpop.permute.xlu0 %3286
  %3288 = vrot.lane.b32.xlu0 %v3274, 73
  %v3289 = vpop.permute.xlu0 %3288
  %3290 = vrot.lane.b32.xlu0 %v3275, 73
  %v3291 = vpop.permute.xlu0 %3290
  %3292 = vrot.lane.b32.xlu0 %v3276, 73
  %v3293 = vpop.permute.xlu0 %3292
  %3294 = vrot.lane.b32.xlu0 %v3277, 73
  %v3295 = vpop.permute.xlu0 %3294
  %v3296 = vsel %vm804, %v3279, %v3281
  %v3297 = vsel %vm804, %v3281, %v3283
  %v3298 = vsel %vm804, %v3283, %v3285
  %v3299 = vsel %vm804, %v3285, %v3287
  %v3300 = vsel %vm804, %v3287, %v3289
  %v3301 = vsel %vm804, %v3289, %v3291
  %v3302 = vsel %vm804, %v3291, %v3293
  %v3303 = vsel %vm804, %v3293, %v3295
  %3322 = vrot.lane.b32.xlu0 %v1922, 72
  %v3323 = vpop.permute.xlu0 %3322
  %3324 = vrot.lane.b32.xlu0 %v1923, 72
  %v3325 = vpop.permute.xlu0 %3324
  %3326 = vrot.lane.b32.xlu0 %v1924, 72
  %v3327 = vpop.permute.xlu0 %3326
  %3328 = vrot.lane.b32.xlu0 %v1925, 72
  %v3329 = vpop.permute.xlu0 %3328
  %3330 = vrot.lane.b32.xlu0 %v1926, 72
  %v3331 = vpop.permute.xlu0 %3330
  %3332 = vrot.lane.b32.xlu0 %v1927, 72
  %v3333 = vpop.permute.xlu0 %3332
  %3334 = vrot.lane.b32.xlu0 %v1928, 72
  %v3335 = vpop.permute.xlu0 %3334
  %3336 = vrot.lane.b32.xlu0 %v1929, 72
  %v3337 = vpop.permute.xlu0 %3336
  %3338 = vrot.lane.b32.xlu0 %v1930, 72
  %v3339 = vpop.permute.xlu0 %3338
  %v3340 = vsel %vm722, %v3323, %v3325
  %v3341 = vsel %vm722, %v3325, %v3327
  %v3342 = vsel %vm722, %v3327, %v3329
  %v3343 = vsel %vm722, %v3329, %v3331
  %v3344 = vsel %vm722, %v3331, %v3333
  %v3345 = vsel %vm722, %v3333, %v3335
  %v3346 = vsel %vm722, %v3335, %v3337
  %v3347 = vsel %vm722, %v3337, %v3339
  %v3366 = vrot.slane %v2003, 4
  %v3367 = vrot.slane %v2004, 4
  %v3368 = vrot.slane %v2005, 4
  %v3369 = vrot.slane %v2006, 4
  %v3370 = vrot.slane %v2007, 4
  %v3371 = vrot.slane %v2008, 4
  %v3372 = vrot.slane %v2009, 4
  %v3373 = vrot.slane %v2010, 4
  %v3374 = vrot.slane %v2011, 4
  %3375 = vrot.lane.b32.xlu0 %v3366, 71
  %v3376 = vpop.permute.xlu0 %3375
  %3377 = vrot.lane.b32.xlu0 %v3367, 71
  %v3378 = vpop.permute.xlu0 %3377
  %3379 = vrot.lane.b32.xlu0 %v3368, 71
  %v3380 = vpop.permute.xlu0 %3379
  %3381 = vrot.lane.b32.xlu0 %v3369, 71
  %v3382 = vpop.permute.xlu0 %3381
  %3383 = vrot.lane.b32.xlu0 %v3370, 71
  %v3384 = vpop.permute.xlu0 %3383
  %3385 = vrot.lane.b32.xlu0 %v3371, 71
  %v3386 = vpop.permute.xlu0 %3385
  %3387 = vrot.lane.b32.xlu0 %v3372, 71
  %v3388 = vpop.permute.xlu0 %3387
  %3389 = vrot.lane.b32.xlu0 %v3373, 71
  %v3390 = vpop.permute.xlu0 %3389
  %3391 = vrot.lane.b32.xlu0 %v3374, 71
  %v3392 = vpop.permute.xlu0 %3391
  %v3393 = vsel %vm640, %v3376, %v3378
  %v3394 = vsel %vm640, %v3378, %v3380
  %v3395 = vsel %vm640, %v3380, %v3382
  %v3396 = vsel %vm640, %v3382, %v3384
  %v3397 = vsel %vm640, %v3384, %v3386
  %v3398 = vsel %vm640, %v3386, %v3388
  %v3399 = vsel %vm640, %v3388, %v3390
  %v3400 = vsel %vm640, %v3390, %v3392
  %3419 = vrot.lane.b32.xlu0 %v2084, 65
  %v3420 = vpop.permute.xlu0 %3419
  %3421 = vrot.lane.b32.xlu0 %v2085, 65
  %v3422 = vpop.permute.xlu0 %3421
  %3423 = vrot.lane.b32.xlu0 %v2086, 65
  %v3424 = vpop.permute.xlu0 %3423
  %3425 = vrot.lane.b32.xlu0 %v2087, 65
  %v3426 = vpop.permute.xlu0 %3425
  %3427 = vrot.lane.b32.xlu0 %v2088, 65
  %v3428 = vpop.permute.xlu0 %3427
  %3429 = vrot.lane.b32.xlu0 %v2089, 65
  %v3430 = vpop.permute.xlu0 %3429
  %3431 = vrot.lane.b32.xlu0 %v2090, 65
  %v3432 = vpop.permute.xlu0 %3431
  %3433 = vrot.lane.b32.xlu0 %v2091, 65
  %v3434 = vpop.permute.xlu0 %3433
  %3435 = vrot.lane.b32.xlu0 %v2092, 65
  %v3436 = vpop.permute.xlu0 %3435
  %v3437 = vsel %vm558, %v3420, %v3422
  %v3438 = vsel %vm558, %v3422, %v3424
  %v3439 = vsel %vm558, %v3424, %v3426
  %v3440 = vsel %vm558, %v3426, %v3428
  %v3441 = vsel %vm558, %v3428, %v3430
  %v3442 = vsel %vm558, %v3430, %v3432
  %v3443 = vsel %vm558, %v3432, %v3434
  %v3444 = vsel %vm558, %v3434, %v3436
  %v3463 = vrot.slane %v2165, 4
  %v3464 = vrot.slane %v2166, 4
  %v3465 = vrot.slane %v2167, 4
  %v3466 = vrot.slane %v2168, 4
  %v3467 = vrot.slane %v2169, 4
  %v3468 = vrot.slane %v2170, 4
  %v3469 = vrot.slane %v2171, 4
  %v3470 = vrot.slane %v2172, 4
  %v3471 = vrot.slane %v2173, 4
  %3472 = vrot.lane.b32.xlu0 %v3463, 64
  %v3473 = vpop.permute.xlu0 %3472
  %3474 = vrot.lane.b32.xlu0 %v3464, 64
  %v3475 = vpop.permute.xlu0 %3474
  %3476 = vrot.lane.b32.xlu0 %v3465, 64
  %v3477 = vpop.permute.xlu0 %3476
  %3478 = vrot.lane.b32.xlu0 %v3466, 64
  %v3479 = vpop.permute.xlu0 %3478
  %3480 = vrot.lane.b32.xlu0 %v3467, 64
  %v3481 = vpop.permute.xlu0 %3480
  %3482 = vrot.lane.b32.xlu0 %v3468, 64
  %v3483 = vpop.permute.xlu0 %3482
  %3484 = vrot.lane.b32.xlu0 %v3469, 64
  %v3485 = vpop.permute.xlu0 %3484
  %3486 = vrot.lane.b32.xlu0 %v3470, 64
  %v3487 = vpop.permute.xlu0 %3486
  %3488 = vrot.lane.b32.xlu0 %v3471, 64
  %v3489 = vpop.permute.xlu0 %3488
  %v3490 = vsel %vm476, %v3473, %v3475
  %v3491 = vsel %vm476, %v3475, %v3477
  %v3492 = vsel %vm476, %v3477, %v3479
  %v3493 = vsel %vm476, %v3479, %v3481
  %v3494 = vsel %vm476, %v3481, %v3483
  %v3495 = vsel %vm476, %v3483, %v3485
  %v3496 = vsel %vm476, %v3485, %v3487
  %v3497 = vsel %vm476, %v3487, %v3489
  %3516 = vrot.lane.b32.xlu0 %v2246, 63
  %v3517 = vpop.permute.xlu0 %3516
  %3518 = vrot.lane.b32.xlu0 %v2247, 63
  %v3519 = vpop.permute.xlu0 %3518
  %3520 = vrot.lane.b32.xlu0 %v2248, 63
  %v3521 = vpop.permute.xlu0 %3520
  %3522 = vrot.lane.b32.xlu0 %v2249, 63
  %v3523 = vpop.permute.xlu0 %3522
  %3524 = vrot.lane.b32.xlu0 %v2250, 63
  %v3525 = vpop.permute.xlu0 %3524
  %3526 = vrot.lane.b32.xlu0 %v2251, 63
  %v3527 = vpop.permute.xlu0 %3526
  %3528 = vrot.lane.b32.xlu0 %v2252, 63
  %v3529 = vpop.permute.xlu0 %3528
  %3530 = vrot.lane.b32.xlu0 %v2253, 63
  %v3531 = vpop.permute.xlu0 %3530
  %3532 = vrot.lane.b32.xlu0 %v2254, 63
  %v3533 = vpop.permute.xlu0 %3532
  %v3534 = vsel %vm394, %v3517, %v3519
  %v3535 = vsel %vm394, %v3519, %v3521
  %v3536 = vsel %vm394, %v3521, %v3523
  %v3537 = vsel %vm394, %v3523, %v3525
  %v3538 = vsel %vm394, %v3525, %v3527
  %v3539 = vsel %vm394, %v3527, %v3529
  %v3540 = vsel %vm394, %v3529, %v3531
  %v3541 = vsel %vm394, %v3531, %v3533
  %v3542 = vsel %vm2990, %v1435, %v3099
  %v3543 = vsel %vm2990, %v1436, %v3100
  %v3544 = vsel %vm2990, %v1437, %v3101
  %v3545 = vsel %vm2990, %v1438, %v3102
  %v3546 = vsel %vm2990, %v1439, %v3103
  %v3547 = vsel %vm2990, %v1440, %v3104
  %v3548 = vsel %vm2990, %v1441, %v3105
  %v3549 = vsel %vm2990, %v1442, %v3106
  %v3550 = vsel %vm2990, %v1443, %v3098
  %v3551 = vsel %vm2990, %v3144, %v3198
  %v3552 = vsel %vm2990, %v3145, %v3199
  %v3553 = vsel %vm2990, %v3146, %v3200
  %v3554 = vsel %vm2990, %v3147, %v3201
  %v3555 = vsel %vm2990, %v3148, %v3202
  %v3556 = vsel %vm2990, %v3149, %v3203
  %v3557 = vsel %vm2990, %v3150, %v3204
  %v3558 = vsel %vm2990, %v3151, %v3205
  %v3559 = vsel %vm2990, %v3142, %v3196
  %v3560 = vsel %vm2990, %v3243, %v3296
  %v3561 = vsel %vm2990, %v3244, %v3297
  %v3562 = vsel %vm2990, %v3245, %v3298
  %v3563 = vsel %vm2990, %v3246, %v3299
  %v3564 = vsel %vm2990, %v3247, %v3300
  %v3565 = vsel %vm2990, %v3248, %v3301
  %v3566 = vsel %vm2990, %v3249, %v3302
  %v3567 = vsel %vm2990, %v3250, %v3303
  %v3568 = vsel %vm2990, %v3241, %v3295
  %v3569 = vsel %vm2990, %v3340, %v3393
  %v3570 = vsel %vm2990, %v3341, %v3394
  %v3571 = vsel %vm2990, %v3342, %v3395
  %v3572 = vsel %vm2990, %v3343, %v3396
  %v3573 = vsel %vm2990, %v3344, %v3397
  %v3574 = vsel %vm2990, %v3345, %v3398
  %v3575 = vsel %vm2990, %v3346, %v3399
  %v3576 = vsel %vm2990, %v3347, %v3400
  %v3577 = vsel %vm2990, %v3339, %v3392
  %v3578 = vsel %vm2990, %v3437, %v3490
  %v3579 = vsel %vm2990, %v3438, %v3491
  %v3580 = vsel %vm2990, %v3439, %v3492
  %v3581 = vsel %vm2990, %v3440, %v3493
  %v3582 = vsel %vm2990, %v3441, %v3494
  %v3583 = vsel %vm2990, %v3442, %v3495
  %v3584 = vsel %vm2990, %v3443, %v3496
  %v3585 = vsel %vm2990, %v3444, %v3497
  %v3586 = vsel %vm2990, %v3436, %v3489
  %3632 = vrot.lane.b32.xlu0 %v3542, 47
  %v3633 = vpop.permute.xlu0 %3632
  %3634 = vrot.lane.b32.xlu0 %v3543, 47
  %v3635 = vpop.permute.xlu0 %3634
  %3636 = vrot.lane.b32.xlu0 %v3544, 47
  %v3637 = vpop.permute.xlu0 %3636
  %3638 = vrot.lane.b32.xlu0 %v3545, 47
  %v3639 = vpop.permute.xlu0 %3638
  %3640 = vrot.lane.b32.xlu0 %v3546, 47
  %v3641 = vpop.permute.xlu0 %3640
  %3642 = vrot.lane.b32.xlu0 %v3547, 47
  %v3643 = vpop.permute.xlu0 %3642
  %3644 = vrot.lane.b32.xlu0 %v3548, 47
  %v3645 = vpop.permute.xlu0 %3644
  %3646 = vrot.lane.b32.xlu0 %v3549, 47
  %v3647 = vpop.permute.xlu0 %3646
  %3648 = vrot.lane.b32.xlu0 %v3550, 47
  %v3649 = vpop.permute.xlu0 %3648
  %3650 = vrot.lane.b32.xlu0 %v3551, 47
  %v3651 = vpop.permute.xlu0 %3650
  %3652 = vrot.lane.b32.xlu0 %v3552, 47
  %v3653 = vpop.permute.xlu0 %3652
  %3654 = vrot.lane.b32.xlu0 %v3553, 47
  %v3655 = vpop.permute.xlu0 %3654
  %3656 = vrot.lane.b32.xlu0 %v3554, 47
  %v3657 = vpop.permute.xlu0 %3656
  %3658 = vrot.lane.b32.xlu0 %v3555, 47
  %v3659 = vpop.permute.xlu0 %3658
  %3660 = vrot.lane.b32.xlu0 %v3556, 47
  %v3661 = vpop.permute.xlu0 %3660
  %3662 = vrot.lane.b32.xlu0 %v3557, 47
  %v3663 = vpop.permute.xlu0 %3662
  %3664 = vrot.lane.b32.xlu0 %v3558, 47
  %v3665 = vpop.permute.xlu0 %3664
  %3666 = vrot.lane.b32.xlu0 %v3559, 47
  %v3667 = vpop.permute.xlu0 %3666
  %3668 = vrot.lane.b32.xlu0 %v3560, 47
  %v3669 = vpop.permute.xlu0 %3668
  %3670 = vrot.lane.b32.xlu0 %v3561, 47
  %v3671 = vpop.permute.xlu0 %3670
  %3672 = vrot.lane.b32.xlu0 %v3562, 47
  %v3673 = vpop.permute.xlu0 %3672
  %3674 = vrot.lane.b32.xlu0 %v3563, 47
  %v3675 = vpop.permute.xlu0 %3674
  %3676 = vrot.lane.b32.xlu0 %v3564, 47
  %v3677 = vpop.permute.xlu0 %3676
  %3678 = vrot.lane.b32.xlu0 %v3565, 47
  %v3679 = vpop.permute.xlu0 %3678
  %3680 = vrot.lane.b32.xlu0 %v3566, 47
  %v3681 = vpop.permute.xlu0 %3680
  %3682 = vrot.lane.b32.xlu0 %v3567, 47
  %v3683 = vpop.permute.xlu0 %3682
  %3684 = vrot.lane.b32.xlu0 %v3568, 47
  %v3685 = vpop.permute.xlu0 %3684
  %3686 = vrot.lane.b32.xlu0 %v3569, 47
  %v3687 = vpop.permute.xlu0 %3686
  %3688 = vrot.lane.b32.xlu0 %v3570, 47
  %v3689 = vpop.permute.xlu0 %3688
  %3690 = vrot.lane.b32.xlu0 %v3571, 47
  %v3691 = vpop.permute.xlu0 %3690
  %3692 = vrot.lane.b32.xlu0 %v3572, 47
  %v3693 = vpop.permute.xlu0 %3692
  %3694 = vrot.lane.b32.xlu0 %v3573, 47
  %v3695 = vpop.permute.xlu0 %3694
  %3696 = vrot.lane.b32.xlu0 %v3574, 47
  %v3697 = vpop.permute.xlu0 %3696
  %3698 = vrot.lane.b32.xlu0 %v3575, 47
  %v3699 = vpop.permute.xlu0 %3698
  %3700 = vrot.lane.b32.xlu0 %v3576, 47
  %v3701 = vpop.permute.xlu0 %3700
  %3702 = vrot.lane.b32.xlu0 %v3577, 47
  %v3703 = vpop.permute.xlu0 %3702
  %3704 = vrot.lane.b32.xlu0 %v3578, 47
  %v3705 = vpop.permute.xlu0 %3704
  %3706 = vrot.lane.b32.xlu0 %v3579, 47
  %v3707 = vpop.permute.xlu0 %3706
  %3708 = vrot.lane.b32.xlu0 %v3580, 47
  %v3709 = vpop.permute.xlu0 %3708
  %3710 = vrot.lane.b32.xlu0 %v3581, 47
  %v3711 = vpop.permute.xlu0 %3710
  %3712 = vrot.lane.b32.xlu0 %v3582, 47
  %v3713 = vpop.permute.xlu0 %3712
  %3714 = vrot.lane.b32.xlu0 %v3583, 47
  %v3715 = vpop.permute.xlu0 %3714
  %3716 = vrot.lane.b32.xlu0 %v3584, 47
  %v3717 = vpop.permute.xlu0 %3716
  %3718 = vrot.lane.b32.xlu0 %v3585, 47
  %v3719 = vpop.permute.xlu0 %3718
  %3720 = vrot.lane.b32.xlu0 %v3586, 47
  %v3721 = vpop.permute.xlu0 %3720
  %3722 = vrot.lane.b32.xlu0 %v3534, 47
  %v3723 = vpop.permute.xlu0 %3722
  %3724 = vrot.lane.b32.xlu0 %v3535, 47
  %v3725 = vpop.permute.xlu0 %3724
  %3726 = vrot.lane.b32.xlu0 %v3536, 47
  %v3727 = vpop.permute.xlu0 %3726
  %3728 = vrot.lane.b32.xlu0 %v3537, 47
  %v3729 = vpop.permute.xlu0 %3728
  %3730 = vrot.lane.b32.xlu0 %v3538, 47
  %v3731 = vpop.permute.xlu0 %3730
  %3732 = vrot.lane.b32.xlu0 %v3539, 47
  %v3733 = vpop.permute.xlu0 %3732
  %3734 = vrot.lane.b32.xlu0 %v3540, 47
  %v3735 = vpop.permute.xlu0 %3734
  %3736 = vrot.lane.b32.xlu0 %v3541, 47
  %v3737 = vpop.permute.xlu0 %3736
  %3738 = vrot.lane.b32.xlu0 %v3533, 47
  %v3739 = vpop.permute.xlu0 %3738
  %vm3740 = vcmask 384000
  %v3741 = vsel %vm3740, %v3633, %v3635
  %v3742 = vsel %vm3740, %v3635, %v3637
  %v3743 = vsel %vm3740, %v3637, %v3639
  %v3744 = vsel %vm3740, %v3639, %v3641
  %v3745 = vsel %vm3740, %v3641, %v3643
  %v3746 = vsel %vm3740, %v3643, %v3645
  %v3747 = vsel %vm3740, %v3645, %v3647
  %v3748 = vsel %vm3740, %v3647, %v3649
  %v3749 = vsel %vm3740, %v3651, %v3653
  %v3750 = vsel %vm3740, %v3653, %v3655
  %v3751 = vsel %vm3740, %v3655, %v3657
  %v3752 = vsel %vm3740, %v3657, %v3659
  %v3753 = vsel %vm3740, %v3659, %v3661
  %v3754 = vsel %vm3740, %v3661, %v3663
  %v3755 = vsel %vm3740, %v3663, %v3665
  %v3756 = vsel %vm3740, %v3665, %v3667
  %v3757 = vsel %vm3740, %v3669, %v3671
  %v3758 = vsel %vm3740, %v3671, %v3673
  %v3759 = vsel %vm3740, %v3673, %v3675
  %v3760 = vsel %vm3740, %v3675, %v3677
  %v3761 = vsel %vm3740, %v3677, %v3679
  %v3762 = vsel %vm3740, %v3679, %v3681
  %v3763 = vsel %vm3740, %v3681, %v3683
  %v3764 = vsel %vm3740, %v3683, %v3685
  %v3765 = vsel %vm3740, %v3687, %v3689
  %v3766 = vsel %vm3740, %v3689, %v3691
  %v3767 = vsel %vm3740, %v3691, %v3693
  %v3768 = vsel %vm3740, %v3693, %v3695
  %v3769 = vsel %vm3740, %v3695, %v3697
  %v3770 = vsel %vm3740, %v3697, %v3699
  %v3771 = vsel %vm3740, %v3699, %v3701
  %v3772 = vsel %vm3740, %v3701, %v3703
  %v3773 = vsel %vm3740, %v3705, %v3707
  %v3774 = vsel %vm3740, %v3707, %v3709
  %v3775 = vsel %vm3740, %v3709, %v3711
  %v3776 = vsel %vm3740, %v3711, %v3713
  %v3777 = vsel %vm3740, %v3713, %v3715
  %v3778 = vsel %vm3740, %v3715, %v3717
  %v3779 = vsel %vm3740, %v3717, %v3719
  %v3780 = vsel %vm3740, %v3719, %v3721
  %v3781 = vsel %vm3740, %v3723, %v3725
  %v3782 = vsel %vm3740, %v3725, %v3727
  %v3783 = vsel %vm3740, %v3727, %v3729
  %v3784 = vsel %vm3740, %v3729, %v3731
  %v3785 = vsel %vm3740, %v3731, %v3733
  %v3786 = vsel %vm3740, %v3733, %v3735
  %v3787 = vsel %vm3740, %v3735, %v3737
  %v3788 = vsel %vm3740, %v3737, %v3739
  %v3789 = vld [vmem:[%s3] sm:$0xff]
  %v3790 = vld [vmem:[%s4] sm:$0xff]
  %3792 = vset.pattern.permute.xlu0 0
  %3793 = vperm.xlu0 %3792, %v3790
  %v3794 = vpop.permute.xlu0 %3793
  %3868 = vrot.lane.b32.xlu0 %v2991, 73
  %v3869 = vpop.permute.xlu0 %3868
  %3870 = vrot.lane.b32.xlu0 %v2992, 73
  %v3871 = vpop.permute.xlu0 %3870
  %3872 = vrot.lane.b32.xlu0 %v2993, 73
  %v3873 = vpop.permute.xlu0 %3872
  %3874 = vrot.lane.b32.xlu0 %v2994, 73
  %v3875 = vpop.permute.xlu0 %3874
  %3876 = vrot.lane.b32.xlu0 %v2995, 73
  %v3877 = vpop.permute.xlu0 %3876
  %3878 = vrot.lane.b32.xlu0 %v2996, 73
  %v3879 = vpop.permute.xlu0 %3878
  %3880 = vrot.lane.b32.xlu0 %v2997, 73
  %v3881 = vpop.permute.xlu0 %3880
  %3882 = vrot.lane.b32.xlu0 %v2998, 73
  %v3883 = vpop.permute.xlu0 %3882
  %3884 = vrot.lane.b32.xlu0 %v2999, 73
  %v3885 = vpop.permute.xlu0 %3884
  %3886 = vrot.lane.b32.xlu0 %v3000, 73
  %v3887 = vpop.permute.xlu0 %3886
  %3888 = vrot.lane.b32.xlu0 %v3001, 73
  %v3889 = vpop.permute.xlu0 %3888
  %3890 = vrot.lane.b32.xlu0 %v3002, 73
  %v3891 = vpop.permute.xlu0 %3890
  %3892 = vrot.lane.b32.xlu0 %v3003, 73
  %v3893 = vpop.permute.xlu0 %3892
  %3894 = vrot.lane.b32.xlu0 %v3004, 73
  %v3895 = vpop.permute.xlu0 %3894
  %3896 = vrot.lane.b32.xlu0 %v3005, 73
  %v3897 = vpop.permute.xlu0 %3896
  %3898 = vrot.lane.b32.xlu0 %v3006, 73
  %v3899 = vpop.permute.xlu0 %3898
  %3900 = vrot.lane.b32.xlu0 %v3007, 73
  %v3901 = vpop.permute.xlu0 %3900
  %3902 = vrot.lane.b32.xlu0 %v3008, 73
  %v3903 = vpop.permute.xlu0 %3902
  %3904 = vrot.lane.b32.xlu0 %v3009, 73
  %v3905 = vpop.permute.xlu0 %3904
  %3906 = vrot.lane.b32.xlu0 %v3010, 73
  %v3907 = vpop.permute.xlu0 %3906
  %3908 = vrot.lane.b32.xlu0 %v3011, 73
  %v3909 = vpop.permute.xlu0 %3908
  %3910 = vrot.lane.b32.xlu0 %v3012, 73
  %v3911 = vpop.permute.xlu0 %3910
  %3912 = vrot.lane.b32.xlu0 %v3013, 73
  %v3913 = vpop.permute.xlu0 %3912
  %3914 = vrot.lane.b32.xlu0 %v3014, 73
  %v3915 = vpop.permute.xlu0 %3914
  %3916 = vrot.lane.b32.xlu0 %v3015, 73
  %v3917 = vpop.permute.xlu0 %3916
  %3918 = vrot.lane.b32.xlu0 %v3016, 73
  %v3919 = vpop.permute.xlu0 %3918
  %3920 = vrot.lane.b32.xlu0 %v3017, 73
  %v3921 = vpop.permute.xlu0 %3920
  %3922 = vrot.lane.b32.xlu0 %v3018, 73
  %v3923 = vpop.permute.xlu0 %3922
  %3924 = vrot.lane.b32.xlu0 %v3019, 73
  %v3925 = vpop.permute.xlu0 %3924
  %3926 = vrot.lane.b32.xlu0 %v3020, 73
  %v3927 = vpop.permute.xlu0 %3926
  %3928 = vrot.lane.b32.xlu0 %v3021, 73
  %v3929 = vpop.permute.xlu0 %3928
  %3930 = vrot.lane.b32.xlu0 %v3022, 73
  %v3931 = vpop.permute.xlu0 %3930
  %3932 = vrot.lane.b32.xlu0 %v3023, 73
  %v3933 = vpop.permute.xlu0 %3932
  %3934 = vrot.lane.b32.xlu0 %v3024, 73
  %v3935 = vpop.permute.xlu0 %3934
  %3936 = vrot.lane.b32.xlu0 %v3025, 73
  %v3937 = vpop.permute.xlu0 %3936
  %3938 = vrot.lane.b32.xlu0 %v3026, 73
  %v3939 = vpop.permute.xlu0 %3938
  %3940 = vrot.lane.b32.xlu0 %v3027, 73
  %v3941 = vpop.permute.xlu0 %3940
  %3942 = vrot.lane.b32.xlu0 %v3028, 73
  %v3943 = vpop.permute.xlu0 %3942
  %3944 = vrot.lane.b32.xlu0 %v3029, 73
  %v3945 = vpop.permute.xlu0 %3944
  %3946 = vrot.lane.b32.xlu0 %v3030, 73
  %v3947 = vpop.permute.xlu0 %3946
  %3948 = vrot.lane.b32.xlu0 %v3031, 73
  %v3949 = vpop.permute.xlu0 %3948
  %3950 = vrot.lane.b32.xlu0 %v3032, 73
  %v3951 = vpop.permute.xlu0 %3950
  %3952 = vrot.lane.b32.xlu0 %v3033, 73
  %v3953 = vpop.permute.xlu0 %3952
  %3954 = vrot.lane.b32.xlu0 %v3034, 73
  %v3955 = vpop.permute.xlu0 %3954
  %3956 = vrot.lane.b32.xlu0 %v3035, 73
  %v3957 = vpop.permute.xlu0 %3956
  %3958 = vrot.lane.b32.xlu0 %v3036, 73
  %v3959 = vpop.permute.xlu0 %3958
  %3960 = vrot.lane.b32.xlu0 %v3037, 73
  %v3961 = vpop.permute.xlu0 %3960
  %3962 = vrot.lane.b32.xlu0 %v3038, 73
  %v3963 = vpop.permute.xlu0 %3962
  %3964 = vrot.lane.b32.xlu0 %v3039, 73
  %v3965 = vpop.permute.xlu0 %3964
  %3966 = vrot.lane.b32.xlu0 %v3040, 73
  %v3967 = vpop.permute.xlu0 %3966
  %3968 = vrot.lane.b32.xlu0 %v3041, 73
  %v3969 = vpop.permute.xlu0 %3968
  %3970 = vrot.lane.b32.xlu0 %v3042, 73
  %v3971 = vpop.permute.xlu0 %3970
  %3972 = vrot.lane.b32.xlu0 %v3043, 73
  %v3973 = vpop.permute.xlu0 %3972
  %3974 = vrot.lane.b32.xlu0 %v3044, 73
  %v3975 = vpop.permute.xlu0 %3974
  %3976 = vrot.lane.b32.xlu0 %v3045, 73
  %v3977 = vpop.permute.xlu0 %3976
  %3978 = vrot.lane.b32.xlu0 %v3046, 73
  %v3979 = vpop.permute.xlu0 %3978
  %3980 = vrot.lane.b32.xlu0 %v3047, 73
  %v3981 = vpop.permute.xlu0 %3980
  %3982 = vrot.lane.b32.xlu0 %v3048, 73
  %v3983 = vpop.permute.xlu0 %3982
  %3984 = vrot.lane.b32.xlu0 %v3049, 73
  %v3985 = vpop.permute.xlu0 %3984
  %3986 = vrot.lane.b32.xlu0 %v3050, 73
  %v3987 = vpop.permute.xlu0 %3986
  %3988 = vrot.lane.b32.xlu0 %v3051, 73
  %v3989 = vpop.permute.xlu0 %3988
  %3990 = vrot.lane.b32.xlu0 %v3052, 73
  %v3991 = vpop.permute.xlu0 %3990
  %3992 = vrot.lane.b32.xlu0 %v3053, 73
  %v3993 = vpop.permute.xlu0 %3992
  %3994 = vrot.lane.b32.xlu0 %v3054, 73
  %v3995 = vpop.permute.xlu0 %3994
  %3996 = vrot.lane.b32.xlu0 %v3055, 73
  %v3997 = vpop.permute.xlu0 %3996
  %3998 = vrot.lane.b32.xlu0 %v3056, 73
  %v3999 = vpop.permute.xlu0 %3998
  %4000 = vrot.lane.b32.xlu0 %v3057, 73
  %v4001 = vpop.permute.xlu0 %4000
  %4002 = vrot.lane.b32.xlu0 %v3058, 73
  %v4003 = vpop.permute.xlu0 %4002
  %4004 = vrot.lane.b32.xlu0 %v3059, 73
  %v4005 = vpop.permute.xlu0 %4004
  %4006 = vrot.lane.b32.xlu0 %v3060, 73
  %v4007 = vpop.permute.xlu0 %4006
  %4008 = vrot.lane.b32.xlu0 %v3061, 73
  %v4009 = vpop.permute.xlu0 %4008
  %4010 = vrot.lane.b32.xlu0 %v3062, 73
  %v4011 = vpop.permute.xlu0 %4010
  %4012 = vrot.lane.b32.xlu0 %v3633, 73
  %v4013 = vpop.permute.xlu0 %4012
  %4014 = vrot.lane.b32.xlu0 %v3741, 73
  %v4015 = vpop.permute.xlu0 %4014
  %4016 = vrot.lane.b32.xlu0 %v3742, 73
  %v4017 = vpop.permute.xlu0 %4016
  %4018 = vrot.lane.b32.xlu0 %v3743, 73
  %v4019 = vpop.permute.xlu0 %4018
  %4020 = vrot.lane.b32.xlu0 %v3744, 73
  %v4021 = vpop.permute.xlu0 %4020
  %4022 = vrot.lane.b32.xlu0 %v3745, 73
  %v4023 = vpop.permute.xlu0 %4022
  %4024 = vrot.lane.b32.xlu0 %v3746, 73
  %v4025 = vpop.permute.xlu0 %4024
  %4026 = vrot.lane.b32.xlu0 %v3747, 73
  %v4027 = vpop.permute.xlu0 %4026
  %4028 = vrot.lane.b32.xlu0 %v3748, 73
  %v4029 = vpop.permute.xlu0 %4028
  %4030 = vrot.lane.b32.xlu0 %v3651, 73
  %v4031 = vpop.permute.xlu0 %4030
  %4032 = vrot.lane.b32.xlu0 %v3749, 73
  %v4033 = vpop.permute.xlu0 %4032
  %4034 = vrot.lane.b32.xlu0 %v3750, 73
  %v4035 = vpop.permute.xlu0 %4034
  %4036 = vrot.lane.b32.xlu0 %v3751, 73
  %v4037 = vpop.permute.xlu0 %4036
  %4038 = vrot.lane.b32.xlu0 %v3752, 73
  %v4039 = vpop.permute.xlu0 %4038
  %4040 = vrot.lane.b32.xlu0 %v3753, 73
  %v4041 = vpop.permute.xlu0 %4040
  %4042 = vrot.lane.b32.xlu0 %v3754, 73
  %v4043 = vpop.permute.xlu0 %4042
  %4044 = vrot.lane.b32.xlu0 %v3755, 73
  %v4045 = vpop.permute.xlu0 %4044
  %4046 = vrot.lane.b32.xlu0 %v3756, 73
  %v4047 = vpop.permute.xlu0 %4046
  %4048 = vrot.lane.b32.xlu0 %v3669, 73
  %v4049 = vpop.permute.xlu0 %4048
  %4050 = vrot.lane.b32.xlu0 %v3757, 73
  %v4051 = vpop.permute.xlu0 %4050
  %4052 = vrot.lane.b32.xlu0 %v3758, 73
  %v4053 = vpop.permute.xlu0 %4052
  %4054 = vrot.lane.b32.xlu0 %v3759, 73
  %v4055 = vpop.permute.xlu0 %4054
  %4056 = vrot.lane.b32.xlu0 %v3760, 73
  %v4057 = vpop.permute.xlu0 %4056
  %4058 = vrot.lane.b32.xlu0 %v3761, 73
  %v4059 = vpop.permute.xlu0 %4058
  %4060 = vrot.lane.b32.xlu0 %v3762, 73
  %v4061 = vpop.permute.xlu0 %4060
  %4062 = vrot.lane.b32.xlu0 %v3763, 73
  %v4063 = vpop.permute.xlu0 %4062
  %4064 = vrot.lane.b32.xlu0 %v3764, 73
  %v4065 = vpop.permute.xlu0 %4064
  %4066 = vrot.lane.b32.xlu0 %v3687, 73
  %v4067 = vpop.permute.xlu0 %4066
  %4068 = vrot.lane.b32.xlu0 %v3765, 73
  %v4069 = vpop.permute.xlu0 %4068
  %4070 = vrot.lane.b32.xlu0 %v3766, 73
  %v4071 = vpop.permute.xlu0 %4070
  %4072 = vrot.lane.b32.xlu0 %v3767, 73
  %v4073 = vpop.permute.xlu0 %4072
  %4074 = vrot.lane.b32.xlu0 %v3768, 73
  %v4075 = vpop.permute.xlu0 %4074
  %4076 = vrot.lane.b32.xlu0 %v3769, 73
  %v4077 = vpop.permute.xlu0 %4076
  %4078 = vrot.lane.b32.xlu0 %v3770, 73
  %v4079 = vpop.permute.xlu0 %4078
  %4080 = vrot.lane.b32.xlu0 %v3771, 73
  %v4081 = vpop.permute.xlu0 %4080
  %4082 = vrot.lane.b32.xlu0 %v3772, 73
  %v4083 = vpop.permute.xlu0 %4082
  %4084 = vrot.lane.b32.xlu0 %v3705, 73
  %v4085 = vpop.permute.xlu0 %4084
  %4086 = vrot.lane.b32.xlu0 %v3773, 73
  %v4087 = vpop.permute.xlu0 %4086
  %4088 = vrot.lane.b32.xlu0 %v3774, 73
  %v4089 = vpop.permute.xlu0 %4088
  %4090 = vrot.lane.b32.xlu0 %v3775, 73
  %v4091 = vpop.permute.xlu0 %4090
  %4092 = vrot.lane.b32.xlu0 %v3776, 73
  %v4093 = vpop.permute.xlu0 %4092
  %4094 = vrot.lane.b32.xlu0 %v3777, 73
  %v4095 = vpop.permute.xlu0 %4094
  %4096 = vrot.lane.b32.xlu0 %v3778, 73
  %v4097 = vpop.permute.xlu0 %4096
  %4098 = vrot.lane.b32.xlu0 %v3779, 73
  %v4099 = vpop.permute.xlu0 %4098
  %4100 = vrot.lane.b32.xlu0 %v3780, 73
  %v4101 = vpop.permute.xlu0 %4100
  %4102 = vrot.lane.b32.xlu0 %v3723, 73
  %v4103 = vpop.permute.xlu0 %4102
  %4104 = vrot.lane.b32.xlu0 %v3781, 73
  %v4105 = vpop.permute.xlu0 %4104
  %4106 = vrot.lane.b32.xlu0 %v3782, 73
  %v4107 = vpop.permute.xlu0 %4106
  %4108 = vrot.lane.b32.xlu0 %v3783, 73
  %v4109 = vpop.permute.xlu0 %4108
  %4110 = vrot.lane.b32.xlu0 %v3784, 73
  %v4111 = vpop.permute.xlu0 %4110
  %4112 = vrot.lane.b32.xlu0 %v3785, 73
  %v4113 = vpop.permute.xlu0 %4112
  %4114 = vrot.lane.b32.xlu0 %v3786, 73
  %v4115 = vpop.permute.xlu0 %4114
  %4116 = vrot.lane.b32.xlu0 %v3787, 73
  %v4117 = vpop.permute.xlu0 %4116
  %4118 = vrot.lane.b32.xlu0 %v3788, 73
  %v4119 = vpop.permute.xlu0 %4118
  %v4120 = vsel %vm804, %v3869, %v3871
  %v4121 = vsel %vm804, %v3871, %v3873
  %v4122 = vsel %vm804, %v3873, %v3875
  %v4123 = vsel %vm804, %v3875, %v3877
  %v4124 = vsel %vm804, %v3877, %v3879
  %v4125 = vsel %vm804, %v3879, %v3881
  %v4126 = vsel %vm804, %v3881, %v3883
  %v4127 = vsel %vm804, %v3883, %v3885
  %v4128 = vsel %vm804, %v3887, %v3889
  %v4129 = vsel %vm804, %v3889, %v3891
  %v4130 = vsel %vm804, %v3891, %v3893
  %v4131 = vsel %vm804, %v3893, %v3895
  %v4132 = vsel %vm804, %v3895, %v3897
  %v4133 = vsel %vm804, %v3897, %v3899
  %v4134 = vsel %vm804, %v3899, %v3901
  %v4135 = vsel %vm804, %v3901, %v3903
  %v4136 = vsel %vm804, %v3905, %v3907
  %v4137 = vsel %vm804, %v3907, %v3909
  %v4138 = vsel %vm804, %v3909, %v3911
  %v4139 = vsel %vm804, %v3911, %v3913
  %v4140 = vsel %vm804, %v3913, %v3915
  %v4141 = vsel %vm804, %v3915, %v3917
  %v4142 = vsel %vm804, %v3917, %v3919
  %v4143 = vsel %vm804, %v3919, %v3921
  %v4144 = vsel %vm804, %v3923, %v3925
  %v4145 = vsel %vm804, %v3925, %v3927
  %v4146 = vsel %vm804, %v3927, %v3929
  %v4147 = vsel %vm804, %v3929, %v3931
  %v4148 = vsel %vm804, %v3931, %v3933
  %v4149 = vsel %vm804, %v3933, %v3935
  %v4150 = vsel %vm804, %v3935, %v3937
  %v4151 = vsel %vm804, %v3937, %v3939
  %v4152 = vsel %vm804, %v3941, %v3943
  %v4153 = vsel %vm804, %v3943, %v3945
  %v4154 = vsel %vm804, %v3945, %v3947
  %v4155 = vsel %vm804, %v3947, %v3949
  %v4156 = vsel %vm804, %v3949, %v3951
  %v4157 = vsel %vm804, %v3951, %v3953
  %v4158 = vsel %vm804, %v3953, %v3955
  %v4159 = vsel %vm804, %v3955, %v3957
  %v4160 = vsel %vm804, %v3959, %v3961
  %v4161 = vsel %vm804, %v3961, %v3963
  %v4162 = vsel %vm804, %v3963, %v3965
  %v4163 = vsel %vm804, %v3965, %v3967
  %v4164 = vsel %vm804, %v3967, %v3969
  %v4165 = vsel %vm804, %v3969, %v3971
  %v4166 = vsel %vm804, %v3971, %v3973
  %v4167 = vsel %vm804, %v3973, %v3975
  %v4168 = vsel %vm804, %v3977, %v3979
  %v4169 = vsel %vm804, %v3979, %v3981
  %v4170 = vsel %vm804, %v3981, %v3983
  %v4171 = vsel %vm804, %v3983, %v3985
  %v4172 = vsel %vm804, %v3985, %v3987
  %v4173 = vsel %vm804, %v3987, %v3989
  %v4174 = vsel %vm804, %v3989, %v3991
  %v4175 = vsel %vm804, %v3991, %v3993
  %v4176 = vsel %vm804, %v3995, %v3997
  %v4177 = vsel %vm804, %v3997, %v3999
  %v4178 = vsel %vm804, %v3999, %v4001
  %v4179 = vsel %vm804, %v4001, %v4003
  %v4180 = vsel %vm804, %v4003, %v4005
  %v4181 = vsel %vm804, %v4005, %v4007
  %v4182 = vsel %vm804, %v4007, %v4009
  %v4183 = vsel %vm804, %v4009, %v4011
  %v4184 = vsel %vm804, %v4013, %v4015
  %v4185 = vsel %vm804, %v4015, %v4017
  %v4186 = vsel %vm804, %v4017, %v4019
  %v4187 = vsel %vm804, %v4019, %v4021
  %v4188 = vsel %vm804, %v4021, %v4023
  %v4189 = vsel %vm804, %v4023, %v4025
  %v4190 = vsel %vm804, %v4025, %v4027
  %v4191 = vsel %vm804, %v4027, %v4029
  %v4192 = vsel %vm804, %v4031, %v4033
  %v4193 = vsel %vm804, %v4033, %v4035
  %v4194 = vsel %vm804, %v4035, %v4037
  %v4195 = vsel %vm804, %v4037, %v4039
  %v4196 = vsel %vm804, %v4039, %v4041
  %v4197 = vsel %vm804, %v4041, %v4043
  %v4198 = vsel %vm804, %v4043, %v4045
  %v4199 = vsel %vm804, %v4045, %v4047
  %v4200 = vsel %vm804, %v4049, %v4051
  %v4201 = vsel %vm804, %v4051, %v4053
  %v4202 = vsel %vm804, %v4053, %v4055
  %v4203 = vsel %vm804, %v4055, %v4057
  %v4204 = vsel %vm804, %v4057, %v4059
  %v4205 = vsel %vm804, %v4059, %v4061
  %v4206 = vsel %vm804, %v4061, %v4063
  %v4207 = vsel %vm804, %v4063, %v4065
  %v4208 = vsel %vm804, %v4067, %v4069
  %v4209 = vsel %vm804, %v4069, %v4071
  %v4210 = vsel %vm804, %v4071, %v4073
  %v4211 = vsel %vm804, %v4073, %v4075
  %v4212 = vsel %vm804, %v4075, %v4077
  %v4213 = vsel %vm804, %v4077, %v4079
  %v4214 = vsel %vm804, %v4079, %v4081
  %v4215 = vsel %vm804, %v4081, %v4083
  %v4216 = vsel %vm804, %v4085, %v4087
  %v4217 = vsel %vm804, %v4087, %v4089
  %v4218 = vsel %vm804, %v4089, %v4091
  %v4219 = vsel %vm804, %v4091, %v4093
  %v4220 = vsel %vm804, %v4093, %v4095
  %v4221 = vsel %vm804, %v4095, %v4097
  %v4222 = vsel %vm804, %v4097, %v4099
  %v4223 = vsel %vm804, %v4099, %v4101
  %v4224 = vsel %vm804, %v4103, %v4105
  %v4225 = vsel %vm804, %v4105, %v4107
  %v4226 = vsel %vm804, %v4107, %v4109
  %v4227 = vsel %vm804, %v4109, %v4111
  %v4228 = vsel %vm804, %v4111, %v4113
  %v4229 = vsel %vm804, %v4113, %v4115
  %v4230 = vsel %vm804, %v4115, %v4117
  %v4231 = vsel %vm804, %v4117, %v4119
  %vm4336 = vcmask 883712
  %v4338 = vsel %vm4336, %v3789, 0
  %v4340 = vsel %vm2990, %v4224, 0
  %v4342 = vsel %vm2990, %v4225, 0
  %v4344 = vsel %vm2990, %v4226, 0
  %v4346 = vsel %vm2990, %v4227, 0
  %v4348 = vsel %vm2990, %v4228, 0
  %v4350 = vsel %vm2990, %v4229, 0
  %v4352 = vsel %vm2990, %v4230, 0
  %v4354 = vsel %vm2990, %v4231, 0
  %4356 = vmatprep.subr.mxu0 %v4121
  %4357 = vmatpush1.msra.mxu0 %v4120
  %4358 = vmatprep.subr.mxu0 %v4129
  %4359 = vmatpush1.msra.mxu0 %v4128
  %4360 = vmatprep.subr.mxu0 %v4137
  %4361 = vmatpush1.msra.mxu0 %v4136
  %4362 = vmatprep.subr.mxu0 %v4145
  %4363 = vmatpush1.msra.mxu0 %v4144
  %4364 = vmatprep.subr.mxu0 %v4153
  %4365 = vmatpush1.msra.mxu0 %v4152
  %4366 = vmatprep.subr.mxu0 %v4161
  %4367 = vmatpush1.msra.mxu0 %v4160
  %4368 = vmatprep.subr.mxu0 %v4169
  %4369 = vmatpush1.msra.mxu0 %v4168
  %4370 = vmatprep.subr.mxu0 %v4177
  %4371 = vmatpush1.msra.mxu0 %v4176
  %4372 = vmatprep.subr.mxu0 %v4185
  %4373 = vmatpush1.msra.mxu0 %v4184
  %4374 = vmatprep.subr.mxu0 %v4193
  %4375 = vmatpush1.msra.mxu0 %v4192
  %4376 = vmatprep.subr.mxu0 %v4201
  %4377 = vmatpush1.msra.mxu0 %v4200
  %4378 = vmatprep.subr.mxu0 %v4209
  %4379 = vmatpush1.msra.mxu0 %v4208
  %4380 = vmatprep.subr.mxu0 %v4217
  %4381 = vmatpush1.msra.mxu0 %v4216
  %4382 = vmatprep.subr.mxu0 %v4342
  %4383 = vmatpush1.msra.mxu0 %v4340
  %4384 = vmatprep.subr.mxu0 0.0
  %4385 = vmatpush1.msra.mxu0 0.0
  %4386 = vmatprep.subr.mxu0 0.0
  %4387 = vmatpush1.msra.mxu0 0.0
  %4388 = vmatprep.subr.mxu0 0.0
  %4389 = vmatpush1.msra.mxu0 0.0
  %4390 = vmatprep.subr.mxu0 0.0
  %4391 = vmatpush1.msra.mxu0 0.0
  %4392 = vmatprep.subr.mxu0 0.0
  %4393 = vmatpush1.msra.mxu0 0.0
  %4394 = vmatprep.subr.mxu0 0.0
  %4395 = vmatpush1.msra.mxu0 0.0
  %4396 = vmatprep.subr.mxu0 0.0
  %4397 = vmatpush1.msra.mxu0 0.0
  %4398 = vmatprep.subr.mxu0 0.0
  %4399 = vmatpush1.msra.mxu0 0.0
  %4400 = vmatprep.subr.mxu0 0.0
  %4401 = vmatpush1.msra.mxu0 0.0
  %4402 = vmatprep.subr.mxu0 0.0
  %4403 = vmatpush1.msra.mxu0 0.0
  %4404 = vmatprep.subr.mxu0 0.0
  %4405 = vmatpush1.msra.mxu0 0.0
  %4406 = vmatprep.subr.mxu0 0.0
  %4407 = vmatpush1.msra.mxu0 0.0
  %4408 = vmatprep.subr.mxu0 0.0
  %4409 = vmatpush1.msra.mxu0 0.0
  %4410 = vmatprep.subr.mxu0 0.0
  %4411 = vmatpush1.msra.mxu0 0.0
  %4412 = vmatprep.subr.mxu0 0.0
  %4413 = vmatpush1.msra.mxu0 0.0
  %4414 = vmatprep.subr.mxu0 0.0
  %4415 = vmatpush1.msra.mxu0 0.0
  %4416 = vmatprep.subr.mxu0 0.0
  %4417 = vmatpush1.msra.mxu0 0.0
  %4418 = vmatprep.subr.mxu0 0.0
  %4419 = vmatpush1.msra.mxu0 0.0
  %4420 = vmatprep.mubr.f32.mxu0 0.0
  %4421 = vmatmul.mubr.f32.gmra.mrb[0].mxu0 %v4338
  %v4422 = vpop.f32.mrb[0].mxu0
  %v4423 = vadd.f32 %v3794, %v4422
  %v4424 = vpop.f32.mrb[0].mxu0
  %v4425 = vadd.f32 %v3794, %v4424
  %4426 = vdwg.mxu0
  %4427 = vmatprep.subr.mxu0 %v4123
  %4428 = vmatpush1.msra.mxu0 %v4122
  %4429 = vmatprep.subr.mxu0 %v4131
  %4430 = vmatpush1.msra.mxu0 %v4130
  %4431 = vmatprep.subr.mxu0 %v4139
  %4432 = vmatpush1.msra.mxu0 %v4138
  %4433 = vmatprep.subr.mxu0 %v4147
  %4434 = vmatpush1.msra.mxu0 %v4146
  %4435 = vmatprep.subr.mxu0 %v4155
  %4436 = vmatpush1.msra.mxu0 %v4154
  %4437 = vmatprep.subr.mxu0 %v4163
  %4438 = vmatpush1.msra.mxu0 %v4162
  %4439 = vmatprep.subr.mxu0 %v4171
  %4440 = vmatpush1.msra.mxu0 %v4170
  %4441 = vmatprep.subr.mxu0 %v4179
  %4442 = vmatpush1.msra.mxu0 %v4178
  %4443 = vmatprep.subr.mxu0 %v4187
  %4444 = vmatpush1.msra.mxu0 %v4186
  %4445 = vmatprep.subr.mxu0 %v4195
  %4446 = vmatpush1.msra.mxu0 %v4194
  %4447 = vmatprep.subr.mxu0 %v4203
  %4448 = vmatpush1.msra.mxu0 %v4202
  %4449 = vmatprep.subr.mxu0 %v4211
  %4450 = vmatpush1.msra.mxu0 %v4210
  %4451 = vmatprep.subr.mxu0 %v4219
  %4452 = vmatpush1.msra.mxu0 %v4218
  %4453 = vmatprep.subr.mxu0 %v4346
  %4454 = vmatpush1.msra.mxu0 %v4344
  %4455 = vmatprep.subr.mxu0 0.0
  %4456 = vmatpush1.msra.mxu0 0.0
  %4457 = vmatprep.subr.mxu0 0.0
  %4458 = vmatpush1.msra.mxu0 0.0
  %4459 = vmatprep.subr.mxu0 0.0
  %4460 = vmatpush1.msra.mxu0 0.0
  %4461 = vmatprep.subr.mxu0 0.0
  %4462 = vmatpush1.msra.mxu0 0.0
  %4463 = vmatprep.subr.mxu0 0.0
  %4464 = vmatpush1.msra.mxu0 0.0
  %4465 = vmatprep.subr.mxu0 0.0
  %4466 = vmatpush1.msra.mxu0 0.0
  %4467 = vmatprep.subr.mxu0 0.0
  %4468 = vmatpush1.msra.mxu0 0.0
  %4469 = vmatprep.subr.mxu0 0.0
  %4470 = vmatpush1.msra.mxu0 0.0
  %4471 = vmatprep.subr.mxu0 0.0
  %4472 = vmatpush1.msra.mxu0 0.0
  %4473 = vmatprep.subr.mxu0 0.0
  %4474 = vmatpush1.msra.mxu0 0.0
  %4475 = vmatprep.subr.mxu0 0.0
  %4476 = vmatpush1.msra.mxu0 0.0
  %4477 = vmatprep.subr.mxu0 0.0
  %4478 = vmatpush1.msra.mxu0 0.0
  %4479 = vmatprep.subr.mxu0 0.0
  %4480 = vmatpush1.msra.mxu0 0.0
  %4481 = vmatprep.subr.mxu0 0.0
  %4482 = vmatpush1.msra.mxu0 0.0
  %4483 = vmatprep.subr.mxu0 0.0
  %4484 = vmatpush1.msra.mxu0 0.0
  %4485 = vmatprep.subr.mxu0 0.0
  %4486 = vmatpush1.msra.mxu0 0.0
  %4487 = vmatprep.subr.mxu0 0.0
  %4488 = vmatpush1.msra.mxu0 0.0
  %4489 = vmatprep.subr.mxu0 0.0
  %4490 = vmatpush1.msra.mxu0 0.0
  %4491 = vmatprep.mubr.f32.mxu0 0.0
  %4492 = vmatmul.mubr.f32.gmra.mrb[0].mxu0 %v4338
  %v4493 = vpop.f32.mrb[0].mxu0
  %v4494 = vadd.f32 %v3794, %v4493
  %v4495 = vpop.f32.mrb[0].mxu0
  %v4496 = vadd.f32 %v3794, %v4495
  %4497 = vdwg.mxu0
  %4498 = vmatprep.subr.mxu0 %v4125
  %4499 = vmatpush1.msra.mxu0 %v4124
  %4500 = vmatprep.subr.mxu0 %v4133
  %4501 = vmatpush1.msra.mxu0 %v4132
  %4502 = vmatprep.subr.mxu0 %v4141
  %4503 = vmatpush1.msra.mxu0 %v4140
  %4504 = vmatprep.subr.mxu0 %v4149
  %4505 = vmatpush1.msra.mxu0 %v4148
  %4506 = vmatprep.subr.mxu0 %v4157
  %4507 = vmatpush1.msra.mxu0 %v4156
  %4508 = vmatprep.subr.mxu0 %v4165
  %4509 = vmatpush1.msra.mxu0 %v4164
  %4510 = vmatprep.subr.mxu0 %v4173
  %4511 = vmatpush1.msra.mxu0 %v4172
  %4512 = vmatprep.subr.mxu0 %v4181
  %4513 = vmatpush1.msra.mxu0 %v4180
  %4514 = vmatprep.subr.mxu0 %v4189
  %4515 = vmatpush1.msra.mxu0 %v4188
  %4516 = vmatprep.subr.mxu0 %v4197
  %4517 = vmatpush1.msra.mxu0 %v4196
  %4518 = vmatprep.subr.mxu0 %v4205
  %4519 = vmatpush1.msra.mxu0 %v4204
  %4520 = vmatprep.subr.mxu0 %v4213
  %4521 = vmatpush1.msra.mxu0 %v4212
  %4522 = vmatprep.subr.mxu0 %v4221
  %4523 = vmatpush1.msra.mxu0 %v4220
  %4524 = vmatprep.subr.mxu0 %v4350
  %4525 = vmatpush1.msra.mxu0 %v4348
  %4526 = vmatprep.subr.mxu0 0.0
  %4527 = vmatpush1.msra.mxu0 0.0
  %4528 = vmatprep.subr.mxu0 0.0
  %4529 = vmatpush1.msra.mxu0 0.0
  %4530 = vmatprep.subr.mxu0 0.0
  %4531 = vmatpush1.msra.mxu0 0.0
  %4532 = vmatprep.subr.mxu0 0.0
  %4533 = vmatpush1.msra.mxu0 0.0
  %4534 = vmatprep.subr.mxu0 0.0
  %4535 = vmatpush1.msra.mxu0 0.0
  %4536 = vmatprep.subr.mxu0 0.0
  %4537 = vmatpush1.msra.mxu0 0.0
  %4538 = vmatprep.subr.mxu0 0.0
  %4539 = vmatpush1.msra.mxu0 0.0
  %4540 = vmatprep.subr.mxu0 0.0
  %4541 = vmatpush1.msra.mxu0 0.0
  %4542 = vmatprep.subr.mxu0 0.0
  %4543 = vmatpush1.msra.mxu0 0.0
  %4544 = vmatprep.subr.mxu0 0.0
  %4545 = vmatpush1.msra.mxu0 0.0
  %4546 = vmatprep.subr.mxu0 0.0
  %4547 = vmatpush1.msra.mxu0 0.0
  %4548 = vmatprep.subr.mxu0 0.0
  %4549 = vmatpush1.msra.mxu0 0.0
  %4550 = vmatprep.subr.mxu0 0.0
  %4551 = vmatpush1.msra.mxu0 0.0
  %4552 = vmatprep.subr.mxu0 0.0
  %4553 = vmatpush1.msra.mxu0 0.0
  %4554 = vmatprep.subr.mxu0 0.0
  %4555 = vmatpush1.msra.mxu0 0.0
  %4556 = vmatprep.subr.mxu0 0.0
  %4557 = vmatpush1.msra.mxu0 0.0
  %4558 = vmatprep.subr.mxu0 0.0
  %4559 = vmatpush1.msra.mxu0 0.0
  %4560 = vmatprep.subr.mxu0 0.0
  %4561 = vmatpush1.msra.mxu0 0.0
  %4562 = vmatprep.mubr.f32.mxu0 0.0
  %4563 = vmatmul.mubr.f32.gmra.mrb[0].mxu0 %v4338
  %v4564 = vpop.f32.mrb[0].mxu0
  %v4565 = vadd.f32 %v3794, %v4564
  %v4566 = vpop.f32.mrb[0].mxu0
  %v4567 = vadd.f32 %v3794, %v4566
  %4568 = vdwg.mxu0
  %4569 = vmatprep.subr.mxu0 %v4127
  %4570 = vmatpush1.msra.mxu0 %v4126
  %4571 = vmatprep.subr.mxu0 %v4135
  %4572 = vmatpush1.msra.mxu0 %v4134
  %4573 = vmatprep.subr.mxu0 %v4143
  %4574 = vmatpush1.msra.mxu0 %v4142
  %4575 = vmatprep.subr.mxu0 %v4151
  %4576 = vmatpush1.msra.mxu0 %v4150
  %4577 = vmatprep.subr.mxu0 %v4159
  %4578 = vmatpush1.msra.mxu0 %v4158
  %4579 = vmatprep.subr.mxu0 %v4167
  %4580 = vmatpush1.msra.mxu0 %v4166
  %4581 = vmatprep.subr.mxu0 %v4175
  %4582 = vmatpush1.msra.mxu0 %v4174
  %4583 = vmatprep.subr.mxu0 %v4183
  %4584 = vmatpush1.msra.mxu0 %v4182
  %4585 = vmatprep.subr.mxu0 %v4191
  %4586 = vmatpush1.msra.mxu0 %v4190
  %4587 = vmatprep.subr.mxu0 %v4199
  %4588 = vmatpush1.msra.mxu0 %v4198
  %4589 = vmatprep.subr.mxu0 %v4207
  %4590 = vmatpush1.msra.mxu0 %v4206
  %4591 = vmatprep.subr.mxu0 %v4215
  %4592 = vmatpush1.msra.mxu0 %v4214
  %4593 = vmatprep.subr.mxu0 %v4223
  %4594 = vmatpush1.msra.mxu0 %v4222
  %4595 = vmatprep.subr.mxu0 %v4354
  %4596 = vmatpush1.msra.mxu0 %v4352
  %4597 = vmatprep.subr.mxu0 0.0
  %4598 = vmatpush1.msra.mxu0 0.0
  %4599 = vmatprep.subr.mxu0 0.0
  %4600 = vmatpush1.msra.mxu0 0.0
  %4601 = vmatprep.subr.mxu0 0.0
  %4602 = vmatpush1.msra.mxu0 0.0
  %4603 = vmatprep.subr.mxu0 0.0
  %4604 = vmatpush1.msra.mxu0 0.0
  %4605 = vmatprep.subr.mxu0 0.0
  %4606 = vmatpush1.msra.mxu0 0.0
  %4607 = vmatprep.subr.mxu0 0.0
  %4608 = vmatpush1.msra.mxu0 0.0
  %4609 = vmatprep.subr.mxu0 0.0
  %4610 = vmatpush1.msra.mxu0 0.0
  %4611 = vmatprep.subr.mxu0 0.0
  %4612 = vmatpush1.msra.mxu0 0.0
  %4613 = vmatprep.subr.mxu0 0.0
  %4614 = vmatpush1.msra.mxu0 0.0
  %4615 = vmatprep.subr.mxu0 0.0
  %4616 = vmatpush1.msra.mxu0 0.0
  %4617 = vmatprep.subr.mxu0 0.0
  %4618 = vmatpush1.msra.mxu0 0.0
  %4619 = vmatprep.subr.mxu0 0.0
  %4620 = vmatpush1.msra.mxu0 0.0
  %4621 = vmatprep.subr.mxu0 0.0
  %4622 = vmatpush1.msra.mxu0 0.0
  %4623 = vmatprep.subr.mxu0 0.0
  %4624 = vmatpush1.msra.mxu0 0.0
  %4625 = vmatprep.subr.mxu0 0.0
  %4626 = vmatpush1.msra.mxu0 0.0
  %4627 = vmatprep.subr.mxu0 0.0
  %4628 = vmatpush1.msra.mxu0 0.0
  %4629 = vmatprep.subr.mxu0 0.0
  %4630 = vmatpush1.msra.mxu0 0.0
  %4631 = vmatprep.subr.mxu0 0.0
  %4632 = vmatpush1.msra.mxu0 0.0
  %4633 = vmatprep.mubr.f32.mxu0 0.0
  %4634 = vmatmul.mubr.f32.gmra.mrb[0].mxu0 %v4338
  %v4635 = vpop.f32.mrb[0].mxu0
  %v4636 = vadd.f32 %v3794, %v4635
  %v4637 = vpop.f32.mrb[0].mxu0
  %v4638 = vadd.f32 %v3794, %v4637
  %4639 = vdwg.mxu0
  %v4640 = vmax.f32 %v4423, 0.0
  %v4641 = vmax.f32 %v4425, 0.0
  %v4642 = vmax.f32 %v4494, 0.0
  %v4643 = vmax.f32 %v4496, 0.0
  %v4644 = vmax.f32 %v4565, 0.0
  %v4645 = vmax.f32 %v4567, 0.0
  %v4646 = vmax.f32 %v4636, 0.0
  %v4647 = vmax.f32 %v4638, 0.0
  %v4648 = vmul.f32 %v4640, %v149
  %v4649 = vmul.f32 %v4641, %v150
  %v4650 = vmul.f32 %v4642, %v151
  %v4651 = vmul.f32 %v4643, %v152
  %v4652 = vmul.f32 %v4644, %v153
  %v4653 = vmul.f32 %v4645, %v154
  %v4654 = vmul.f32 %v4646, %v155
  %v4655 = vmul.f32 %v4647, %v147
  %v4656 = vmul.f32 %v4640, %v231
  %v4657 = vmul.f32 %v4641, %v232
  %v4658 = vmul.f32 %v4642, %v233
  %v4659 = vmul.f32 %v4643, %v234
  %v4660 = vmul.f32 %v4644, %v235
  %v4661 = vmul.f32 %v4645, %v236
  %v4662 = vmul.f32 %v4646, %v237
  %v4663 = vmul.f32 %v4647, %v229
  %v4664 = vmul.f32 %v4640, %v313
  %v4665 = vmul.f32 %v4641, %v314
  %v4666 = vmul.f32 %v4642, %v315
  %v4667 = vmul.f32 %v4643, %v316
  %v4668 = vmul.f32 %v4644, %v317
  %v4669 = vmul.f32 %v4645, %v318
  %v4670 = vmul.f32 %v4646, %v319
  %v4671 = vmul.f32 %v4647, %v311
  %v4672 = vmul.f32 %v4640, %v395
  %v4673 = vmul.f32 %v4641, %v396
  %v4674 = vmul.f32 %v4642, %v397
  %v4675 = vmul.f32 %v4643, %v398
  %v4676 = vmul.f32 %v4644, %v399
  %v4677 = vmul.f32 %v4645, %v400
  %v4678 = vmul.f32 %v4646, %v401
  %v4679 = vmul.f32 %v4647, %v393
  %v4680 = vmul.f32 %v4640, %v477
  %v4681 = vmul.f32 %v4641, %v478
  %v4682 = vmul.f32 %v4642, %v479
  %v4683 = vmul.f32 %v4643, %v480
  %v4684 = vmul.f32 %v4644, %v481
  %v4685 = vmul.f32 %v4645, %v482
  %v4686 = vmul.f32 %v4646, %v483
  %v4687 = vmul.f32 %v4647, %v475
  %v4688 = vmul.f32 %v4640, %v559
  %v4689 = vmul.f32 %v4641, %v560
  %v4690 = vmul.f32 %v4642, %v561
  %v4691 = vmul.f32 %v4643, %v562
  %v4692 = vmul.f32 %v4644, %v563
  %v4693 = vmul.f32 %v4645, %v564
  %v4694 = vmul.f32 %v4646, %v565
  %v4695 = vmul.f32 %v4647, %v557
  %v4696 = vmul.f32 %v4640, %v641
  %v4697 = vmul.f32 %v4641, %v642
  %v4698 = vmul.f32 %v4642, %v643
  %v4699 = vmul.f32 %v4643, %v644
  %v4700 = vmul.f32 %v4644, %v645
  %v4701 = vmul.f32 %v4645, %v646
  %v4702 = vmul.f32 %v4646, %v647
  %v4703 = vmul.f32 %v4647, %v639
  %v4704 = vmul.f32 %v4640, %v723
  %v4705 = vmul.f32 %v4641, %v724
  %v4706 = vmul.f32 %v4642, %v725
  %v4707 = vmul.f32 %v4643, %v726
  %v4708 = vmul.f32 %v4644, %v727
  %v4709 = vmul.f32 %v4645, %v728
  %v4710 = vmul.f32 %v4646, %v729
  %v4711 = vmul.f32 %v4647, %v721
  %v4712 = vmul.f32 %v4640, %v805
  %v4713 = vmul.f32 %v4641, %v806
  %v4714 = vmul.f32 %v4642, %v807
  %v4715 = vmul.f32 %v4643, %v808
  %v4716 = vmul.f32 %v4644, %v809
  %v4717 = vmul.f32 %v4645, %v810
  %v4718 = vmul.f32 %v4646, %v811
  %v4719 = vmul.f32 %v4647, %v803
  %v4720 = vmul.f32 %v4640, %v887
  %v4721 = vmul.f32 %v4641, %v888
  %v4722 = vmul.f32 %v4642, %v889
  %v4723 = vmul.f32 %v4643, %v890
  %v4724 = vmul.f32 %v4644, %v891
  %v4725 = vmul.f32 %v4645, %v892
  %v4726 = vmul.f32 %v4646, %v893
  %v4727 = vmul.f32 %v4647, %v885
  %v4728 = vmul.f32 %v4640, %v969
  %v4729 = vmul.f32 %v4641, %v970
  %v4730 = vmul.f32 %v4642, %v971
  %v4731 = vmul.f32 %v4643, %v972
  %v4732 = vmul.f32 %v4644, %v973
  %v4733 = vmul.f32 %v4645, %v974
  %v4734 = vmul.f32 %v4646, %v975
  %v4735 = vmul.f32 %v4647, %v967
  %v4736 = vmul.f32 %v4640, %v1051
  %v4737 = vmul.f32 %v4641, %v1052
  %v4738 = vmul.f32 %v4642, %v1053
  %v4739 = vmul.f32 %v4643, %v1054
  %v4740 = vmul.f32 %v4644, %v1055
  %v4741 = vmul.f32 %v4645, %v1056
  %v4742 = vmul.f32 %v4646, %v1057
  %v4743 = vmul.f32 %v4647, %v1049
  %v4744 = vmul.f32 %v4640, %v1133
  %v4745 = vmul.f32 %v4641, %v1134
  %v4746 = vmul.f32 %v4642, %v1135
  %v4747 = vmul.f32 %v4643, %v1136
  %v4748 = vmul.f32 %v4644, %v1137
  %v4749 = vmul.f32 %v4645, %v1138
  %v4750 = vmul.f32 %v4646, %v1139
  %v4751 = vmul.f32 %v4647, %v1131
  %v4752 = vmul.f32 %v4640, %v1161
  %v4753 = vmul.f32 %v4641, %v1165
  %v4754 = vmul.f32 %v4642, %v1169
  %v4755 = vmul.f32 %v4643, %v1173
  %v4756 = vmul.f32 %v4644, %v1177
  %v4757 = vmul.f32 %v4645, %v1181
  %v4758 = vmul.f32 %v4646, %v1185
  %v4759 = vmul.f32 %v4647, %v1189
  %v4760 = vmul.f32 %v4640, %v1239
  %v4761 = vmul.f32 %v4641, %v1255
  %v4762 = vmul.f32 %v4642, %v1256
  %v4763 = vmul.f32 %v4643, %v1257
  %v4764 = vmul.f32 %v4644, %v1258
  %v4765 = vmul.f32 %v4645, %v1259
  %v4766 = vmul.f32 %v4646, %v1260
  %v4767 = vmul.f32 %v4647, %v1261
  %v4768 = vmul.f32 %v4640, %v1321
  %v4769 = vmul.f32 %v4641, %v1337
  %v4770 = vmul.f32 %v4642, %v1338
  %v4771 = vmul.f32 %v4643, %v1339
  %v4772 = vmul.f32 %v4644, %v1340
  %v4773 = vmul.f32 %v4645, %v1341
  %v4774 = vmul.f32 %v4646, %v1342
  %v4775 = vmul.f32 %v4647, %v1343
  %v4776 = vmul.f32 %v4640, %v1403
  %v4777 = vmul.f32 %v4641, %v1419
  %v4778 = vmul.f32 %v4642, %v1420
  %v4779 = vmul.f32 %v4643, %v1421
  %v4780 = vmul.f32 %v4644, %v1422
  %v4781 = vmul.f32 %v4645, %v1423
  %v4782 = vmul.f32 %v4646, %v1424
  %v4783 = vmul.f32 %v4647, %v1425
  %v4784 = vmul.f32 %v4640, %v1485
  %v4785 = vmul.f32 %v4641, %v1501
  %v4786 = vmul.f32 %v4642, %v1502
  %v4787 = vmul.f32 %v4643, %v1503
  %v4788 = vmul.f32 %v4644, %v1504
  %v4789 = vmul.f32 %v4645, %v1505
  %v4790 = vmul.f32 %v4646, %v1506
  %v4791 = vmul.f32 %v4647, %v1507
  %v4792 = vmul.f32 %v4640, %v1567
  %v4793 = vmul.f32 %v4641, %v1582
  %v4794 = vmul.f32 %v4642, %v1583
  %v4795 = vmul.f32 %v4643, %v1584
  %v4796 = vmul.f32 %v4644, %v1585
  %v4797 = vmul.f32 %v4645, %v1586
  %v4798 = vmul.f32 %v4646, %v1587
  %v4799 = vmul.f32 %v4647, %v1588
  %v4800 = vmul.f32 %v4640, %v1648
  %v4801 = vmul.f32 %v4641, %v1663
  %v4802 = vmul.f32 %v4642, %v1664
  %v4803 = vmul.f32 %v4643, %v1665
  %v4804 = vmul.f32 %v4644, %v1666
  %v4805 = vmul.f32 %v4645, %v1667
  %v4806 = vmul.f32 %v4646, %v1668
  %v4807 = vmul.f32 %v4647, %v1669
  %v4808 = vmul.f32 %v4640, %v1729
  %v4809 = vmul.f32 %v4641, %v1744
  %v4810 = vmul.f32 %v4642, %v1745
  %v4811 = vmul.f32 %v4643, %v1746
  %v4812 = vmul.f32 %v4644, %v1747
  %v4813 = vmul.f32 %v4645, %v1748
  %v4814 = vmul.f32 %v4646, %v1749
  %v4815 = vmul.f32 %v4647, %v1750
  %v4816 = vmul.f32 %v4640, %v1810
  %v4817 = vmul.f32 %v4641, %v1825
  %v4818 = vmul.f32 %v4642, %v1826
  %v4819 = vmul.f32 %v4643, %v1827
  %v4820 = vmul.f32 %v4644, %v1828
  %v4821 = vmul.f32 %v4645, %v1829
  %v4822 = vmul.f32 %v4646, %v1830
  %v4823 = vmul.f32 %v4647, %v1831
  %v4824 = vmul.f32 %v4640, %v1891
  %v4825 = vmul.f32 %v4641, %v1906
  %v4826 = vmul.f32 %v4642, %v1907
  %v4827 = vmul.f32 %v4643, %v1908
  %v4828 = vmul.f32 %v4644, %v1909
  %v4829 = vmul.f32 %v4645, %v1910
  %v4830 = vmul.f32 %v4646, %v1911
  %v4831 = vmul.f32 %v4647, %v1912
  %v4832 = vmul.f32 %v4640, %v1972
  %v4833 = vmul.f32 %v4641, %v1987
  %v4834 = vmul.f32 %v4642, %v1988
  %v4835 = vmul.f32 %v4643, %v1989
  %v4836 = vmul.f32 %v4644, %v1990
  %v4837 = vmul.f32 %v4645, %v1991
  %v4838 = vmul.f32 %v4646, %v1992
  %v4839 = vmul.f32 %v4647, %v1993
  %v4840 = vmul.f32 %v4640, %v2053
  %v4841 = vmul.f32 %v4641, %v2068
  %v4842 = vmul.f32 %v4642, %v2069
  %v4843 = vmul.f32 %v4643, %v2070
  %v4844 = vmul.f32 %v4644, %v2071
  %v4845 = vmul.f32 %v4645, %v2072
  %v4846 = vmul.f32 %v4646, %v2073
  %v4847 = vmul.f32 %v4647, %v2074
  %v4848 = vmul.f32 %v4640, %v2134
  %v4849 = vmul.f32 %v4641, %v2149
  %v4850 = vmul.f32 %v4642, %v2150
  %v4851 = vmul.f32 %v4643, %v2151
  %v4852 = vmul.f32 %v4644, %v2152
  %v4853 = vmul.f32 %v4645, %v2153
  %v4854 = vmul.f32 %v4646, %v2154
  %v4855 = vmul.f32 %v4647, %v2155
  %v4856 = vmul.f32 %v4640, %v2215
  %v4857 = vmul.f32 %v4641, %v2230
  %v4858 = vmul.f32 %v4642, %v2231
  %v4859 = vmul.f32 %v4643, %v2232
  %v4860 = vmul.f32 %v4644, %v2233
  %v4861 = vmul.f32 %v4645, %v2234
  %v4862 = vmul.f32 %v4646, %v2235
  %v4863 = vmul.f32 %v4647, %v2236
  %4872 = vrot.lane.b32.xlu0 %v247, 127
  %v4873 = vpop.permute.xlu0 %4872
  %4874 = vrot.lane.b32.xlu0 %v4656, 127
  %v4875 = vpop.permute.xlu0 %4874
  %4876 = vrot.lane.b32.xlu0 %v4657, 127
  %v4877 = vpop.permute.xlu0 %4876
  %4878 = vrot.lane.b32.xlu0 %v4658, 127
  %v4879 = vpop.permute.xlu0 %4878
  %4880 = vrot.lane.b32.xlu0 %v4659, 127
  %v4881 = vpop.permute.xlu0 %4880
  %4882 = vrot.lane.b32.xlu0 %v4660, 127
  %v4883 = vpop.permute.xlu0 %4882
  %4884 = vrot.lane.b32.xlu0 %v4661, 127
  %v4885 = vpop.permute.xlu0 %4884
  %4886 = vrot.lane.b32.xlu0 %v4662, 127
  %v4887 = vpop.permute.xlu0 %4886
  %4888 = vrot.lane.b32.xlu0 %v4663, 127
  %v4889 = vpop.permute.xlu0 %4888
  %v4890 = vsel %vm1132, %v4873, %v4875
  %v4891 = vsel %vm1132, %v4875, %v4877
  %v4892 = vsel %vm1132, %v4877, %v4879
  %v4893 = vsel %vm1132, %v4879, %v4881
  %v4894 = vsel %vm1132, %v4881, %v4883
  %v4895 = vsel %vm1132, %v4883, %v4885
  %v4896 = vsel %vm1132, %v4885, %v4887
  %v4897 = vsel %vm1132, %v4887, %v4889
  %4906 = vrot.lane.b32.xlu0 %v4664, 126
  %v4907 = vpop.permute.xlu0 %4906
  %4908 = vrot.lane.b32.xlu0 %v4665, 126
  %v4909 = vpop.permute.xlu0 %4908
  %4910 = vrot.lane.b32.xlu0 %v4666, 126
  %v4911 = vpop.permute.xlu0 %4910
  %4912 = vrot.lane.b32.xlu0 %v4667, 126
  %v4913 = vpop.permute.xlu0 %4912
  %4914 = vrot.lane.b32.xlu0 %v4668, 126
  %v4915 = vpop.permute.xlu0 %4914
  %4916 = vrot.lane.b32.xlu0 %v4669, 126
  %v4917 = vpop.permute.xlu0 %4916
  %4918 = vrot.lane.b32.xlu0 %v4670, 126
  %v4919 = vpop.permute.xlu0 %4918
  %4920 = vrot.lane.b32.xlu0 %v4671, 126
  %v4921 = vpop.permute.xlu0 %4920
  %v4922 = vsel %vm2335, %v2318, %v4907
  %v4923 = vsel %vm2335, %v4907, %v4909
  %v4924 = vsel %vm2335, %v4909, %v4911
  %v4925 = vsel %vm2335, %v4911, %v4913
  %v4926 = vsel %vm2335, %v4913, %v4915
  %v4927 = vsel %vm2335, %v4915, %v4917
  %v4928 = vsel %vm2335, %v4917, %v4919
  %v4929 = vsel %vm2335, %v4919, %v4921
  %4938 = vrot.lane.b32.xlu0 %v411, 120
  %v4939 = vpop.permute.xlu0 %4938
  %4940 = vrot.lane.b32.xlu0 %v4672, 120
  %v4941 = vpop.permute.xlu0 %4940
  %4942 = vrot.lane.b32.xlu0 %v4673, 120
  %v4943 = vpop.permute.xlu0 %4942
  %4944 = vrot.lane.b32.xlu0 %v4674, 120
  %v4945 = vpop.permute.xlu0 %4944
  %4946 = vrot.lane.b32.xlu0 %v4675, 120
  %v4947 = vpop.permute.xlu0 %4946
  %4948 = vrot.lane.b32.xlu0 %v4676, 120
  %v4949 = vpop.permute.xlu0 %4948
  %4950 = vrot.lane.b32.xlu0 %v4677, 120
  %v4951 = vpop.permute.xlu0 %4950
  %4952 = vrot.lane.b32.xlu0 %v4678, 120
  %v4953 = vpop.permute.xlu0 %4952
  %4954 = vrot.lane.b32.xlu0 %v4679, 120
  %v4955 = vpop.permute.xlu0 %4954
  %v4956 = vsel %vm968, %v4939, %v4941
  %v4957 = vsel %vm968, %v4941, %v4943
  %v4958 = vsel %vm968, %v4943, %v4945
  %v4959 = vsel %vm968, %v4945, %v4947
  %v4960 = vsel %vm968, %v4947, %v4949
  %v4961 = vsel %vm968, %v4949, %v4951
  %v4962 = vsel %vm968, %v4951, %v4953
  %v4963 = vsel %vm968, %v4953, %v4955
  %4972 = vrot.lane.b32.xlu0 %v4680, 119
  %v4973 = vpop.permute.xlu0 %4972
  %4974 = vrot.lane.b32.xlu0 %v4681, 119
  %v4975 = vpop.permute.xlu0 %4974
  %4976 = vrot.lane.b32.xlu0 %v4682, 119
  %v4977 = vpop.permute.xlu0 %4976
  %4978 = vrot.lane.b32.xlu0 %v4683, 119
  %v4979 = vpop.permute.xlu0 %4978
  %4980 = vrot.lane.b32.xlu0 %v4684, 119
  %v4981 = vpop.permute.xlu0 %4980
  %4982 = vrot.lane.b32.xlu0 %v4685, 119
  %v4983 = vpop.permute.xlu0 %4982
  %4984 = vrot.lane.b32.xlu0 %v4686, 119
  %v4985 = vpop.permute.xlu0 %4984
  %4986 = vrot.lane.b32.xlu0 %v4687, 119
  %v4987 = vpop.permute.xlu0 %4986
  %v4988 = vsel %vm886, %v2416, %v4973
  %v4989 = vsel %vm886, %v4973, %v4975
  %v4990 = vsel %vm886, %v4975, %v4977
  %v4991 = vsel %vm886, %v4977, %v4979
  %v4992 = vsel %vm886, %v4979, %v4981
  %v4993 = vsel %vm886, %v4981, %v4983
  %v4994 = vsel %vm886, %v4983, %v4985
  %v4995 = vsel %vm886, %v4985, %v4987
  %5004 = vrot.lane.b32.xlu0 %v575, 118
  %v5005 = vpop.permute.xlu0 %5004
  %5006 = vrot.lane.b32.xlu0 %v4688, 118
  %v5007 = vpop.permute.xlu0 %5006
  %5008 = vrot.lane.b32.xlu0 %v4689, 118
  %v5009 = vpop.permute.xlu0 %5008
  %5010 = vrot.lane.b32.xlu0 %v4690, 118
  %v5011 = vpop.permute.xlu0 %5010
  %5012 = vrot.lane.b32.xlu0 %v4691, 118
  %v5013 = vpop.permute.xlu0 %5012
  %5014 = vrot.lane.b32.xlu0 %v4692, 118
  %v5015 = vpop.permute.xlu0 %5014
  %5016 = vrot.lane.b32.xlu0 %v4693, 118
  %v5017 = vpop.permute.xlu0 %5016
  %5018 = vrot.lane.b32.xlu0 %v4694, 118
  %v5019 = vpop.permute.xlu0 %5018
  %5020 = vrot.lane.b32.xlu0 %v4695, 118
  %v5021 = vpop.permute.xlu0 %5020
  %v5022 = vsel %vm2486, %v5005, %v5007
  %v5023 = vsel %vm2486, %v5007, %v5009
  %v5024 = vsel %vm2486, %v5009, %v5011
  %v5025 = vsel %vm2486, %v5011, %v5013
  %v5026 = vsel %vm2486, %v5013, %v5015
  %v5027 = vsel %vm2486, %v5015, %v5017
  %v5028 = vsel %vm2486, %v5017, %v5019
  %v5029 = vsel %vm2486, %v5019, %v5021
  %5038 = vrot.lane.b32.xlu0 %v4696, 112
  %v5039 = vpop.permute.xlu0 %5038
  %5040 = vrot.lane.b32.xlu0 %v4697, 112
  %v5041 = vpop.permute.xlu0 %5040
  %5042 = vrot.lane.b32.xlu0 %v4698, 112
  %v5043 = vpop.permute.xlu0 %5042
  %5044 = vrot.lane.b32.xlu0 %v4699, 112
  %v5045 = vpop.permute.xlu0 %5044
  %5046 = vrot.lane.b32.xlu0 %v4700, 112
  %v5047 = vpop.permute.xlu0 %5046
  %5048 = vrot.lane.b32.xlu0 %v4701, 112
  %v5049 = vpop.permute.xlu0 %5048
  %5050 = vrot.lane.b32.xlu0 %v4702, 112
  %v5051 = vpop.permute.xlu0 %5050
  %5052 = vrot.lane.b32.xlu0 %v4703, 112
  %v5053 = vpop.permute.xlu0 %5052
  %v5054 = vsel %vm2531, %v2514, %v5039
  %v5055 = vsel %vm2531, %v5039, %v5041
  %v5056 = vsel %vm2531, %v5041, %v5043
  %v5057 = vsel %vm2531, %v5043, %v5045
  %v5058 = vsel %vm2531, %v5045, %v5047
  %v5059 = vsel %vm2531, %v5047, %v5049
  %v5060 = vsel %vm2531, %v5049, %v5051
  %v5061 = vsel %vm2531, %v5051, %v5053
  %5070 = vrot.lane.b32.xlu0 %v739, 111
  %v5071 = vpop.permute.xlu0 %5070
  %5072 = vrot.lane.b32.xlu0 %v4704, 111
  %v5073 = vpop.permute.xlu0 %5072
  %5074 = vrot.lane.b32.xlu0 %v4705, 111
  %v5075 = vpop.permute.xlu0 %5074
  %5076 = vrot.lane.b32.xlu0 %v4706, 111
  %v5077 = vpop.permute.xlu0 %5076
  %5078 = vrot.lane.b32.xlu0 %v4707, 111
  %v5079 = vpop.permute.xlu0 %5078
  %5080 = vrot.lane.b32.xlu0 %v4708, 111
  %v5081 = vpop.permute.xlu0 %5080
  %5082 = vrot.lane.b32.xlu0 %v4709, 111
  %v5083 = vpop.permute.xlu0 %5082
  %5084 = vrot.lane.b32.xlu0 %v4710, 111
  %v5085 = vpop.permute.xlu0 %5084
  %5086 = vrot.lane.b32.xlu0 %v4711, 111
  %v5087 = vpop.permute.xlu0 %5086
  %v5088 = vsel %vm2585, %v5071, %v5073
  %v5089 = vsel %vm2585, %v5073, %v5075
  %v5090 = vsel %vm2585, %v5075, %v5077
  %v5091 = vsel %vm2585, %v5077, %v5079
  %v5092 = vsel %vm2585, %v5079, %v5081
  %v5093 = vsel %vm2585, %v5081, %v5083
  %v5094 = vsel %vm2585, %v5083, %v5085
  %v5095 = vsel %vm2585, %v5085, %v5087
  %5104 = vrot.lane.b32.xlu0 %v4712, 110
  %v5105 = vpop.permute.xlu0 %5104
  %5106 = vrot.lane.b32.xlu0 %v4713, 110
  %v5107 = vpop.permute.xlu0 %5106
  %5108 = vrot.lane.b32.xlu0 %v4714, 110
  %v5109 = vpop.permute.xlu0 %5108
  %5110 = vrot.lane.b32.xlu0 %v4715, 110
  %v5111 = vpop.permute.xlu0 %5110
  %5112 = vrot.lane.b32.xlu0 %v4716, 110
  %v5113 = vpop.permute.xlu0 %5112
  %5114 = vrot.lane.b32.xlu0 %v4717, 110
  %v5115 = vpop.permute.xlu0 %5114
  %5116 = vrot.lane.b32.xlu0 %v4718, 110
  %v5117 = vpop.permute.xlu0 %5116
  %5118 = vrot.lane.b32.xlu0 %v4719, 110
  %v5119 = vpop.permute.xlu0 %5118
  %v5120 = vsel %vm2630, %v2613, %v5105
  %v5121 = vsel %vm2630, %v5105, %v5107
  %v5122 = vsel %vm2630, %v5107, %v5109
  %v5123 = vsel %vm2630, %v5109, %v5111
  %v5124 = vsel %vm2630, %v5111, %v5113
  %v5125 = vsel %vm2630, %v5113, %v5115
  %v5126 = vsel %vm2630, %v5115, %v5117
  %v5127 = vsel %vm2630, %v5117, %v5119
  %5136 = vrot.lane.b32.xlu0 %v903, 64
  %v5137 = vpop.permute.xlu0 %5136
  %5138 = vrot.lane.b32.xlu0 %v4720, 64
  %v5139 = vpop.permute.xlu0 %5138
  %5140 = vrot.lane.b32.xlu0 %v4721, 64
  %v5141 = vpop.permute.xlu0 %5140
  %5142 = vrot.lane.b32.xlu0 %v4722, 64
  %v5143 = vpop.permute.xlu0 %5142
  %5144 = vrot.lane.b32.xlu0 %v4723, 64
  %v5145 = vpop.permute.xlu0 %5144
  %5146 = vrot.lane.b32.xlu0 %v4724, 64
  %v5147 = vpop.permute.xlu0 %5146
  %5148 = vrot.lane.b32.xlu0 %v4725, 64
  %v5149 = vpop.permute.xlu0 %5148
  %5150 = vrot.lane.b32.xlu0 %v4726, 64
  %v5151 = vpop.permute.xlu0 %5150
  %5152 = vrot.lane.b32.xlu0 %v4727, 64
  %v5153 = vpop.permute.xlu0 %5152
  %v5154 = vsel %vm476, %v5137, %v5139
  %v5155 = vsel %vm476, %v5139, %v5141
  %v5156 = vsel %vm476, %v5141, %v5143
  %v5157 = vsel %vm476, %v5143, %v5145
  %v5158 = vsel %vm476, %v5145, %v5147
  %v5159 = vsel %vm476, %v5147, %v5149
  %v5160 = vsel %vm476, %v5149, %v5151
  %v5161 = vsel %vm476, %v5151, %v5153
  %5170 = vrot.lane.b32.xlu0 %v4728, 63
  %v5171 = vpop.permute.xlu0 %5170
  %5172 = vrot.lane.b32.xlu0 %v4729, 63
  %v5173 = vpop.permute.xlu0 %5172
  %5174 = vrot.lane.b32.xlu0 %v4730, 63
  %v5175 = vpop.permute.xlu0 %5174
  %5176 = vrot.lane.b32.xlu0 %v4731, 63
  %v5177 = vpop.permute.xlu0 %5176
  %5178 = vrot.lane.b32.xlu0 %v4732, 63
  %v5179 = vpop.permute.xlu0 %5178
  %5180 = vrot.lane.b32.xlu0 %v4733, 63
  %v5181 = vpop.permute.xlu0 %5180
  %5182 = vrot.lane.b32.xlu0 %v4734, 63
  %v5183 = vpop.permute.xlu0 %5182
  %5184 = vrot.lane.b32.xlu0 %v4735, 63
  %v5185 = vpop.permute.xlu0 %5184
  %v5186 = vsel %vm394, %v2711, %v5171
  %v5187 = vsel %vm394, %v5171, %v5173
  %v5188 = vsel %vm394, %v5173, %v5175
  %v5189 = vsel %vm394, %v5175, %v5177
  %v5190 = vsel %vm394, %v5177, %v5179
  %v5191 = vsel %vm394, %v5179, %v5181
  %v5192 = vsel %vm394, %v5181, %v5183
  %v5193 = vsel %vm394, %v5183, %v5185
  %5202 = vrot.lane.b32.xlu0 %v1067, 62
  %v5203 = vpop.permute.xlu0 %5202
  %5204 = vrot.lane.b32.xlu0 %v4736, 62
  %v5205 = vpop.permute.xlu0 %5204
  %5206 = vrot.lane.b32.xlu0 %v4737, 62
  %v5207 = vpop.permute.xlu0 %5206
  %5208 = vrot.lane.b32.xlu0 %v4738, 62
  %v5209 = vpop.permute.xlu0 %5208
  %5210 = vrot.lane.b32.xlu0 %v4739, 62
  %v5211 = vpop.permute.xlu0 %5210
  %5212 = vrot.lane.b32.xlu0 %v4740, 62
  %v5213 = vpop.permute.xlu0 %5212
  %5214 = vrot.lane.b32.xlu0 %v4741, 62
  %v5215 = vpop.permute.xlu0 %5214
  %5216 = vrot.lane.b32.xlu0 %v4742, 62
  %v5217 = vpop.permute.xlu0 %5216
  %5218 = vrot.lane.b32.xlu0 %v4743, 62
  %v5219 = vpop.permute.xlu0 %5218
  %v5220 = vsel %vm2781, %v5203, %v5205
  %v5221 = vsel %vm2781, %v5205, %v5207
  %v5222 = vsel %vm2781, %v5207, %v5209
  %v5223 = vsel %vm2781, %v5209, %v5211
  %v5224 = vsel %vm2781, %v5211, %v5213
  %v5225 = vsel %vm2781, %v5213, %v5215
  %v5226 = vsel %vm2781, %v5215, %v5217
  %v5227 = vsel %vm2781, %v5217, %v5219
  %5236 = vrot.lane.b32.xlu0 %v4744, 56
  %v5237 = vpop.permute.xlu0 %5236
  %5238 = vrot.lane.b32.xlu0 %v4745, 56
  %v5239 = vpop.permute.xlu0 %5238
  %5240 = vrot.lane.b32.xlu0 %v4746, 56
  %v5241 = vpop.permute.xlu0 %5240
  %5242 = vrot.lane.b32.xlu0 %v4747, 56
  %v5243 = vpop.permute.xlu0 %5242
  %5244 = vrot.lane.b32.xlu0 %v4748, 56
  %v5245 = vpop.permute.xlu0 %5244
  %5246 = vrot.lane.b32.xlu0 %v4749, 56
  %v5247 = vpop.permute.xlu0 %5246
  %5248 = vrot.lane.b32.xlu0 %v4750, 56
  %v5249 = vpop.permute.xlu0 %5248
  %5250 = vrot.lane.b32.xlu0 %v4751, 56
  %v5251 = vpop.permute.xlu0 %5250
  %v5252 = vsel %vm230, %v2809, %v5237
  %v5253 = vsel %vm230, %v5237, %v5239
  %v5254 = vsel %vm230, %v5239, %v5241
  %v5255 = vsel %vm230, %v5241, %v5243
  %v5256 = vsel %vm230, %v5243, %v5245
  %v5257 = vsel %vm230, %v5245, %v5247
  %v5258 = vsel %vm230, %v5247, %v5249
  %v5259 = vsel %vm230, %v5249, %v5251
  %5268 = vrot.lane.b32.xlu0 %v4752, 55
  %v5269 = vpop.permute.xlu0 %5268
  %5270 = vrot.lane.b32.xlu0 %v4753, 55
  %v5271 = vpop.permute.xlu0 %5270
  %5272 = vrot.lane.b32.xlu0 %v4754, 55
  %v5273 = vpop.permute.xlu0 %5272
  %5274 = vrot.lane.b32.xlu0 %v4755, 55
  %v5275 = vpop.permute.xlu0 %5274
  %5276 = vrot.lane.b32.xlu0 %v4756, 55
  %v5277 = vpop.permute.xlu0 %5276
  %5278 = vrot.lane.b32.xlu0 %v4757, 55
  %v5279 = vpop.permute.xlu0 %5278
  %5280 = vrot.lane.b32.xlu0 %v4758, 55
  %v5281 = vpop.permute.xlu0 %5280
  %5282 = vrot.lane.b32.xlu0 %v4759, 55
  %v5283 = vpop.permute.xlu0 %5282
  %v5284 = vsel %vm148, %v5269, %v5271
  %v5285 = vsel %vm148, %v5271, %v5273
  %v5286 = vsel %vm148, %v5273, %v5275
  %v5287 = vsel %vm148, %v5275, %v5277
  %v5288 = vsel %vm148, %v5277, %v5279
  %v5289 = vsel %vm148, %v5279, %v5281
  %v5290 = vsel %vm148, %v5281, %v5283
  %5299 = vrot.lane.b32.xlu0 %v4760, 54
  %v5300 = vpop.permute.xlu0 %5299
  %5301 = vrot.lane.b32.xlu0 %v4761, 54
  %v5302 = vpop.permute.xlu0 %5301
  %5303 = vrot.lane.b32.xlu0 %v4762, 54
  %v5304 = vpop.permute.xlu0 %5303
  %5305 = vrot.lane.b32.xlu0 %v4763, 54
  %v5306 = vpop.permute.xlu0 %5305
  %5307 = vrot.lane.b32.xlu0 %v4764, 54
  %v5308 = vpop.permute.xlu0 %5307
  %5309 = vrot.lane.b32.xlu0 %v4765, 54
  %v5310 = vpop.permute.xlu0 %5309
  %5311 = vrot.lane.b32.xlu0 %v4766, 54
  %v5312 = vpop.permute.xlu0 %5311
  %5313 = vrot.lane.b32.xlu0 %v4767, 54
  %v5314 = vpop.permute.xlu0 %5313
  %v5315 = vsel %vm2918, %v5300, %v5302
  %v5316 = vsel %vm2918, %v5302, %v5304
  %v5317 = vsel %vm2918, %v5304, %v5306
  %v5318 = vsel %vm2918, %v5306, %v5308
  %v5319 = vsel %vm2918, %v5308, %v5310
  %v5320 = vsel %vm2918, %v5310, %v5312
  %v5321 = vsel %vm2918, %v5312, %v5314
  %v5322 = vsel %vm2918, %v5314, %v2917
  %5331 = vrot.lane.b32.xlu0 %v4768, 48
  %v5332 = vpop.permute.xlu0 %5331
  %5333 = vrot.lane.b32.xlu0 %v4769, 48
  %v5334 = vpop.permute.xlu0 %5333
  %5335 = vrot.lane.b32.xlu0 %v4770, 48
  %v5336 = vpop.permute.xlu0 %5335
  %5337 = vrot.lane.b32.xlu0 %v4771, 48
  %v5338 = vpop.permute.xlu0 %5337
  %5339 = vrot.lane.b32.xlu0 %v4772, 48
  %v5340 = vpop.permute.xlu0 %5339
  %5341 = vrot.lane.b32.xlu0 %v4773, 48
  %v5342 = vpop.permute.xlu0 %5341
  %5343 = vrot.lane.b32.xlu0 %v4774, 48
  %v5344 = vpop.permute.xlu0 %5343
  %5345 = vrot.lane.b32.xlu0 %v4775, 48
  %v5346 = vpop.permute.xlu0 %5345
  %5347 = vrot.lane.b32.xlu0 %v1361, 48
  %v5348 = vpop.permute.xlu0 %5347
  %v5349 = vsel %vm2972, %v5332, %v5334
  %v5350 = vsel %vm2972, %v5334, %v5336
  %v5351 = vsel %vm2972, %v5336, %v5338
  %v5352 = vsel %vm2972, %v5338, %v5340
  %v5353 = vsel %vm2972, %v5340, %v5342
  %v5354 = vsel %vm2972, %v5342, %v5344
  %v5355 = vsel %vm2972, %v5344, %v5346
  %v5356 = vsel %vm2972, %v5346, %v5348
  %5365 = vrot.lane.b32.xlu0 %v4784, 127
  %v5366 = vpop.permute.xlu0 %5365
  %5367 = vrot.lane.b32.xlu0 %v4785, 127
  %v5368 = vpop.permute.xlu0 %5367
  %5369 = vrot.lane.b32.xlu0 %v4786, 127
  %v5370 = vpop.permute.xlu0 %5369
  %5371 = vrot.lane.b32.xlu0 %v4787, 127
  %v5372 = vpop.permute.xlu0 %5371
  %5373 = vrot.lane.b32.xlu0 %v4788, 127
  %v5374 = vpop.permute.xlu0 %5373
  %5375 = vrot.lane.b32.xlu0 %v4789, 127
  %v5376 = vpop.permute.xlu0 %5375
  %5377 = vrot.lane.b32.xlu0 %v4790, 127
  %v5378 = vpop.permute.xlu0 %5377
  %5379 = vrot.lane.b32.xlu0 %v4791, 127
  %v5380 = vpop.permute.xlu0 %5379
  %5381 = vrot.lane.b32.xlu0 %v1525, 127
  %v5382 = vpop.permute.xlu0 %5381
  %v5383 = vsel %vm1132, %v5366, %v5368
  %v5384 = vsel %vm1132, %v5368, %v5370
  %v5385 = vsel %vm1132, %v5370, %v5372
  %v5386 = vsel %vm1132, %v5372, %v5374
  %v5387 = vsel %vm1132, %v5374, %v5376
  %v5388 = vsel %vm1132, %v5376, %v5378
  %v5389 = vsel %vm1132, %v5378, %v5380
  %v5390 = vsel %vm1132, %v5380, %v5382
  %5399 = vrot.lane.b32.xlu0 %v4792, 81
  %v5400 = vpop.permute.xlu0 %5399
  %5401 = vrot.lane.b32.xlu0 %v4793, 81
  %v5402 = vpop.permute.xlu0 %5401
  %5403 = vrot.lane.b32.xlu0 %v4794, 81
  %v5404 = vpop.permute.xlu0 %5403
  %5405 = vrot.lane.b32.xlu0 %v4795, 81
  %v5406 = vpop.permute.xlu0 %5405
  %5407 = vrot.lane.b32.xlu0 %v4796, 81
  %v5408 = vpop.permute.xlu0 %5407
  %5409 = vrot.lane.b32.xlu0 %v4797, 81
  %v5410 = vpop.permute.xlu0 %5409
  %5411 = vrot.lane.b32.xlu0 %v4798, 81
  %v5412 = vpop.permute.xlu0 %5411
  %5413 = vrot.lane.b32.xlu0 %v4799, 81
  %v5414 = vpop.permute.xlu0 %5413
  %v5415 = vsel %vm3143, %v5400, %v5402
  %v5416 = vsel %vm3143, %v5402, %v5404
  %v5417 = vsel %vm3143, %v5404, %v5406
  %v5418 = vsel %vm3143, %v5406, %v5408
  %v5419 = vsel %vm3143, %v5408, %v5410
  %v5420 = vsel %vm3143, %v5410, %v5412
  %v5421 = vsel %vm3143, %v5412, %v5414
  %v5422 = vsel %vm3143, %v5414, %v3142
  %5431 = vrot.lane.b32.xlu0 %v4800, 80
  %v5432 = vpop.permute.xlu0 %5431
  %5433 = vrot.lane.b32.xlu0 %v4801, 80
  %v5434 = vpop.permute.xlu0 %5433
  %5435 = vrot.lane.b32.xlu0 %v4802, 80
  %v5436 = vpop.permute.xlu0 %5435
  %5437 = vrot.lane.b32.xlu0 %v4803, 80
  %v5438 = vpop.permute.xlu0 %5437
  %5439 = vrot.lane.b32.xlu0 %v4804, 80
  %v5440 = vpop.permute.xlu0 %5439
  %5441 = vrot.lane.b32.xlu0 %v4805, 80
  %v5442 = vpop.permute.xlu0 %5441
  %5443 = vrot.lane.b32.xlu0 %v4806, 80
  %v5444 = vpop.permute.xlu0 %5443
  %5445 = vrot.lane.b32.xlu0 %v4807, 80
  %v5446 = vpop.permute.xlu0 %5445
  %5447 = vrot.lane.b32.xlu0 %v1687, 80
  %v5448 = vpop.permute.xlu0 %5447
  %v5449 = vsel %vm3197, %v5432, %v5434
  %v5450 = vsel %vm3197, %v5434, %v5436
  %v5451 = vsel %vm3197, %v5436, %v5438
  %v5452 = vsel %vm3197, %v5438, %v5440
  %v5453 = vsel %vm3197, %v5440, %v5442
  %v5454 = vsel %vm3197, %v5442, %v5444
  %v5455 = vsel %vm3197, %v5444, %v5446
  %v5456 = vsel %vm3197, %v5446, %v5448
  %5465 = vrot.lane.b32.xlu0 %v4808, 79
  %v5466 = vpop.permute.xlu0 %5465
  %5467 = vrot.lane.b32.xlu0 %v4809, 79
  %v5468 = vpop.permute.xlu0 %5467
  %5469 = vrot.lane.b32.xlu0 %v4810, 79
  %v5470 = vpop.permute.xlu0 %5469
  %5471 = vrot.lane.b32.xlu0 %v4811, 79
  %v5472 = vpop.permute.xlu0 %5471
  %5473 = vrot.lane.b32.xlu0 %v4812, 79
  %v5474 = vpop.permute.xlu0 %5473
  %5475 = vrot.lane.b32.xlu0 %v4813, 79
  %v5476 = vpop.permute.xlu0 %5475
  %5477 = vrot.lane.b32.xlu0 %v4814, 79
  %v5478 = vpop.permute.xlu0 %5477
  %5479 = vrot.lane.b32.xlu0 %v4815, 79
  %v5480 = vpop.permute.xlu0 %5479
  %v5481 = vsel %vm3242, %v5466, %v5468
  %v5482 = vsel %vm3242, %v5468, %v5470
  %v5483 = vsel %vm3242, %v5470, %v5472
  %v5484 = vsel %vm3242, %v5472, %v5474
  %v5485 = vsel %vm3242, %v5474, %v5476
  %v5486 = vsel %vm3242, %v5476, %v5478
  %v5487 = vsel %vm3242, %v5478, %v5480
  %v5488 = vsel %vm3242, %v5480, %v3241
  %5497 = vrot.lane.b32.xlu0 %v4816, 73
  %v5498 = vpop.permute.xlu0 %5497
  %5499 = vrot.lane.b32.xlu0 %v4817, 73
  %v5500 = vpop.permute.xlu0 %5499
  %5501 = vrot.lane.b32.xlu0 %v4818, 73
  %v5502 = vpop.permute.xlu0 %5501
  %5503 = vrot.lane.b32.xlu0 %v4819, 73
  %v5504 = vpop.permute.xlu0 %5503
  %5505 = vrot.lane.b32.xlu0 %v4820, 73
  %v5506 = vpop.permute.xlu0 %5505
  %5507 = vrot.lane.b32.xlu0 %v4821, 73
  %v5508 = vpop.permute.xlu0 %5507
  %5509 = vrot.lane.b32.xlu0 %v4822, 73
  %v5510 = vpop.permute.xlu0 %5509
  %5511 = vrot.lane.b32.xlu0 %v4823, 73
  %v5512 = vpop.permute.xlu0 %5511
  %5513 = vrot.lane.b32.xlu0 %v1849, 73
  %v5514 = vpop.permute.xlu0 %5513
  %v5515 = vsel %vm804, %v5498, %v5500
  %v5516 = vsel %vm804, %v5500, %v5502
  %v5517 = vsel %vm804, %v5502, %v5504
  %v5518 = vsel %vm804, %v5504, %v5506
  %v5519 = vsel %vm804, %v5506, %v5508
  %v5520 = vsel %vm804, %v5508, %v5510
  %v5521 = vsel %vm804, %v5510, %v5512
  %v5522 = vsel %vm804, %v5512, %v5514
  %5531 = vrot.lane.b32.xlu0 %v4824, 72
  %v5532 = vpop.permute.xlu0 %5531
  %5533 = vrot.lane.b32.xlu0 %v4825, 72
  %v5534 = vpop.permute.xlu0 %5533
  %5535 = vrot.lane.b32.xlu0 %v4826, 72
  %v5536 = vpop.permute.xlu0 %5535
  %5537 = vrot.lane.b32.xlu0 %v4827, 72
  %v5538 = vpop.permute.xlu0 %5537
  %5539 = vrot.lane.b32.xlu0 %v4828, 72
  %v5540 = vpop.permute.xlu0 %5539
  %5541 = vrot.lane.b32.xlu0 %v4829, 72
  %v5542 = vpop.permute.xlu0 %5541
  %5543 = vrot.lane.b32.xlu0 %v4830, 72
  %v5544 = vpop.permute.xlu0 %5543
  %5545 = vrot.lane.b32.xlu0 %v4831, 72
  %v5546 = vpop.permute.xlu0 %5545
  %v5547 = vsel %vm722, %v5532, %v5534
  %v5548 = vsel %vm722, %v5534, %v5536
  %v5549 = vsel %vm722, %v5536, %v5538
  %v5550 = vsel %vm722, %v5538, %v5540
  %v5551 = vsel %vm722, %v5540, %v5542
  %v5552 = vsel %vm722, %v5542, %v5544
  %v5553 = vsel %vm722, %v5544, %v5546
  %v5554 = vsel %vm722, %v5546, %v3339
  %5563 = vrot.lane.b32.xlu0 %v4832, 71
  %v5564 = vpop.permute.xlu0 %5563
  %5565 = vrot.lane.b32.xlu0 %v4833, 71
  %v5566 = vpop.permute.xlu0 %5565
  %5567 = vrot.lane.b32.xlu0 %v4834, 71
  %v5568 = vpop.permute.xlu0 %5567
  %5569 = vrot.lane.b32.xlu0 %v4835, 71
  %v5570 = vpop.permute.xlu0 %5569
  %5571 = vrot.lane.b32.xlu0 %v4836, 71
  %v5572 = vpop.permute.xlu0 %5571
  %5573 = vrot.lane.b32.xlu0 %v4837, 71
  %v5574 = vpop.permute.xlu0 %5573
  %5575 = vrot.lane.b32.xlu0 %v4838, 71
  %v5576 = vpop.permute.xlu0 %5575
  %5577 = vrot.lane.b32.xlu0 %v4839, 71
  %v5578 = vpop.permute.xlu0 %5577
  %5579 = vrot.lane.b32.xlu0 %v2011, 71
  %v5580 = vpop.permute.xlu0 %5579
  %v5581 = vsel %vm640, %v5564, %v5566
  %v5582 = vsel %vm640, %v5566, %v5568
  %v5583 = vsel %vm640, %v5568, %v5570
  %v5584 = vsel %vm640, %v5570, %v5572
  %v5585 = vsel %vm640, %v5572, %v5574
  %v5586 = vsel %vm640, %v5574, %v5576
  %v5587 = vsel %vm640, %v5576, %v5578
  %v5588 = vsel %vm640, %v5578, %v5580
  %5597 = vrot.lane.b32.xlu0 %v4840, 65
  %v5598 = vpop.permute.xlu0 %5597
  %5599 = vrot.lane.b32.xlu0 %v4841, 65
  %v5600 = vpop.permute.xlu0 %5599
  %5601 = vrot.lane.b32.xlu0 %v4842, 65
  %v5602 = vpop.permute.xlu0 %5601
  %5603 = vrot.lane.b32.xlu0 %v4843, 65
  %v5604 = vpop.permute.xlu0 %5603
  %5605 = vrot.lane.b32.xlu0 %v4844, 65
  %v5606 = vpop.permute.xlu0 %5605
  %5607 = vrot.lane.b32.xlu0 %v4845, 65
  %v5608 = vpop.permute.xlu0 %5607
  %5609 = vrot.lane.b32.xlu0 %v4846, 65
  %v5610 = vpop.permute.xlu0 %5609
  %5611 = vrot.lane.b32.xlu0 %v4847, 65
  %v5612 = vpop.permute.xlu0 %5611
  %v5613 = vsel %vm558, %v5598, %v5600
  %v5614 = vsel %vm558, %v5600, %v5602
  %v5615 = vsel %vm558, %v5602, %v5604
  %v5616 = vsel %vm558, %v5604, %v5606
  %v5617 = vsel %vm558, %v5606, %v5608
  %v5618 = vsel %vm558, %v5608, %v5610
  %v5619 = vsel %vm558, %v5610, %v5612
  %v5620 = vsel %vm558, %v5612, %v3436
  %5629 = vrot.lane.b32.xlu0 %v4848, 64
  %v5630 = vpop.permute.xlu0 %5629
  %5631 = vrot.lane.b32.xlu0 %v4849, 64
  %v5632 = vpop.permute.xlu0 %5631
  %5633 = vrot.lane.b32.xlu0 %v4850, 64
  %v5634 = vpop.permute.xlu0 %5633
  %5635 = vrot.lane.b32.xlu0 %v4851, 64
  %v5636 = vpop.permute.xlu0 %5635
  %5637 = vrot.lane.b32.xlu0 %v4852, 64
  %v5638 = vpop.permute.xlu0 %5637
  %5639 = vrot.lane.b32.xlu0 %v4853, 64
  %v5640 = vpop.permute.xlu0 %5639
  %5641 = vrot.lane.b32.xlu0 %v4854, 64
  %v5642 = vpop.permute.xlu0 %5641
  %5643 = vrot.lane.b32.xlu0 %v4855, 64
  %v5644 = vpop.permute.xlu0 %5643
  %5645 = vrot.lane.b32.xlu0 %v2173, 64
  %v5646 = vpop.permute.xlu0 %5645
  %v5647 = vsel %vm476, %v5630, %v5632
  %v5648 = vsel %vm476, %v5632, %v5634
  %v5649 = vsel %vm476, %v5634, %v5636
  %v5650 = vsel %vm476, %v5636, %v5638
  %v5651 = vsel %vm476, %v5638, %v5640
  %v5652 = vsel %vm476, %v5640, %v5642
  %v5653 = vsel %vm476, %v5642, %v5644
  %v5654 = vsel %vm476, %v5644, %v5646
  %5663 = vrot.lane.b32.xlu0 %v4856, 63
  %v5664 = vpop.permute.xlu0 %5663
  %5665 = vrot.lane.b32.xlu0 %v4857, 63
  %v5666 = vpop.permute.xlu0 %5665
  %5667 = vrot.lane.b32.xlu0 %v4858, 63
  %v5668 = vpop.permute.xlu0 %5667
  %5669 = vrot.lane.b32.xlu0 %v4859, 63
  %v5670 = vpop.permute.xlu0 %5669
  %5671 = vrot.lane.b32.xlu0 %v4860, 63
  %v5672 = vpop.permute.xlu0 %5671
  %5673 = vrot.lane.b32.xlu0 %v4861, 63
  %v5674 = vpop.permute.xlu0 %5673
  %5675 = vrot.lane.b32.xlu0 %v4862, 63
  %v5676 = vpop.permute.xlu0 %5675
  %5677 = vrot.lane.b32.xlu0 %v4863, 63
  %v5678 = vpop.permute.xlu0 %5677
  %v5679 = vsel %vm394, %v5664, %v5666
  %v5680 = vsel %vm394, %v5666, %v5668
  %v5681 = vsel %vm394, %v5668, %v5670
  %v5682 = vsel %vm394, %v5670, %v5672
  %v5683 = vsel %vm394, %v5672, %v5674
  %v5684 = vsel %vm394, %v5674, %v5676
  %v5685 = vsel %vm394, %v5676, %v5678
  %v5686 = vsel %vm394, %v5678, %v3533
  %5696 = vrot.lane.b32.xlu0 %v4776, 47
  %v5697 = vpop.permute.xlu0 %5696
  %5698 = vrot.lane.b32.xlu0 %v4777, 47
  %v5699 = vpop.permute.xlu0 %5698
  %5700 = vrot.lane.b32.xlu0 %v4778, 47
  %v5701 = vpop.permute.xlu0 %5700
  %5702 = vrot.lane.b32.xlu0 %v4779, 47
  %v5703 = vpop.permute.xlu0 %5702
  %5704 = vrot.lane.b32.xlu0 %v4780, 47
  %v5705 = vpop.permute.xlu0 %5704
  %5706 = vrot.lane.b32.xlu0 %v4781, 47
  %v5707 = vpop.permute.xlu0 %5706
  %5708 = vrot.lane.b32.xlu0 %v4782, 47
  %v5709 = vpop.permute.xlu0 %5708
  %5710 = vrot.lane.b32.xlu0 %v4783, 47
  %v5711 = vpop.permute.xlu0 %5710
  %5712 = vrot.lane.b32.xlu0 %v1443, 47
  %v5713 = vpop.permute.xlu0 %5712
  %5714 = vrot.lane.b32.xlu0 %v5383, 47
  %v5715 = vpop.permute.xlu0 %5714
  %5716 = vrot.lane.b32.xlu0 %v5384, 47
  %v5717 = vpop.permute.xlu0 %5716
  %5718 = vrot.lane.b32.xlu0 %v5385, 47
  %v5719 = vpop.permute.xlu0 %5718
  %5720 = vrot.lane.b32.xlu0 %v5386, 47
  %v5721 = vpop.permute.xlu0 %5720
  %5722 = vrot.lane.b32.xlu0 %v5387, 47
  %v5723 = vpop.permute.xlu0 %5722
  %5724 = vrot.lane.b32.xlu0 %v5388, 47
  %v5725 = vpop.permute.xlu0 %5724
  %5726 = vrot.lane.b32.xlu0 %v5389, 47
  %v5727 = vpop.permute.xlu0 %5726
  %5728 = vrot.lane.b32.xlu0 %v5390, 47
  %v5729 = vpop.permute.xlu0 %5728
  %5730 = vrot.lane.b32.xlu0 %v5382, 47
  %v5731 = vpop.permute.xlu0 %5730
  %5732 = vrot.lane.b32.xlu0 %v5415, 47
  %v5733 = vpop.permute.xlu0 %5732
  %5734 = vrot.lane.b32.xlu0 %v5416, 47
  %v5735 = vpop.permute.xlu0 %5734
  %5736 = vrot.lane.b32.xlu0 %v5417, 47
  %v5737 = vpop.permute.xlu0 %5736
  %5738 = vrot.lane.b32.xlu0 %v5418, 47
  %v5739 = vpop.permute.xlu0 %5738
  %5740 = vrot.lane.b32.xlu0 %v5419, 47
  %v5741 = vpop.permute.xlu0 %5740
  %5742 = vrot.lane.b32.xlu0 %v5420, 47
  %v5743 = vpop.permute.xlu0 %5742
  %5744 = vrot.lane.b32.xlu0 %v5421, 47
  %v5745 = vpop.permute.xlu0 %5744
  %5746 = vrot.lane.b32.xlu0 %v5422, 47
  %v5747 = vpop.permute.xlu0 %5746
  %5748 = vrot.lane.b32.xlu0 %v3142, 47
  %v5749 = vpop.permute.xlu0 %5748
  %5750 = vrot.lane.b32.xlu0 %v5449, 47
  %v5751 = vpop.permute.xlu0 %5750
  %5752 = vrot.lane.b32.xlu0 %v5450, 47
  %v5753 = vpop.permute.xlu0 %5752
  %5754 = vrot.lane.b32.xlu0 %v5451, 47
  %v5755 = vpop.permute.xlu0 %5754
  %5756 = vrot.lane.b32.xlu0 %v5452, 47
  %v5757 = vpop.permute.xlu0 %5756
  %5758 = vrot.lane.b32.xlu0 %v5453, 47
  %v5759 = vpop.permute.xlu0 %5758
  %5760 = vrot.lane.b32.xlu0 %v5454, 47
  %v5761 = vpop.permute.xlu0 %5760
  %5762 = vrot.lane.b32.xlu0 %v5455, 47
  %v5763 = vpop.permute.xlu0 %5762
  %5764 = vrot.lane.b32.xlu0 %v5456, 47
  %v5765 = vpop.permute.xlu0 %5764
  %5766 = vrot.lane.b32.xlu0 %v5448, 47
  %v5767 = vpop.permute.xlu0 %5766
  %5768 = vrot.lane.b32.xlu0 %v5481, 47
  %v5769 = vpop.permute.xlu0 %5768
  %5770 = vrot.lane.b32.xlu0 %v5482, 47
  %v5771 = vpop.permute.xlu0 %5770
  %5772 = vrot.lane.b32.xlu0 %v5483, 47
  %v5773 = vpop.permute.xlu0 %5772
  %5774 = vrot.lane.b32.xlu0 %v5484, 47
  %v5775 = vpop.permute.xlu0 %5774
  %5776 = vrot.lane.b32.xlu0 %v5485, 47
  %v5777 = vpop.permute.xlu0 %5776
  %5778 = vrot.lane.b32.xlu0 %v5486, 47
  %v5779 = vpop.permute.xlu0 %5778
  %5780 = vrot.lane.b32.xlu0 %v5487, 47
  %v5781 = vpop.permute.xlu0 %5780
  %5782 = vrot.lane.b32.xlu0 %v5488, 47
  %v5783 = vpop.permute.xlu0 %5782
  %5784 = vrot.lane.b32.xlu0 %v3241, 47
  %v5785 = vpop.permute.xlu0 %5784
  %5786 = vrot.lane.b32.xlu0 %v5515, 47
  %v5787 = vpop.permute.xlu0 %5786
  %5788 = vrot.lane.b32.xlu0 %v5516, 47
  %v5789 = vpop.permute.xlu0 %5788
  %5790 = vrot.lane.b32.xlu0 %v5517, 47
  %v5791 = vpop.permute.xlu0 %5790
  %5792 = vrot.lane.b32.xlu0 %v5518, 47
  %v5793 = vpop.permute.xlu0 %5792
  %5794 = vrot.lane.b32.xlu0 %v5519, 47
  %v5795 = vpop.permute.xlu0 %5794
  %5796 = vrot.lane.b32.xlu0 %v5520, 47
  %v5797 = vpop.permute.xlu0 %5796
  %5798 = vrot.lane.b32.xlu0 %v5521, 47
  %v5799 = vpop.permute.xlu0 %5798
  %5800 = vrot.lane.b32.xlu0 %v5522, 47
  %v5801 = vpop.permute.xlu0 %5800
  %5802 = vrot.lane.b32.xlu0 %v5514, 47
  %v5803 = vpop.permute.xlu0 %5802
  %5804 = vrot.lane.b32.xlu0 %v5547, 47
  %v5805 = vpop.permute.xlu0 %5804
  %5806 = vrot.lane.b32.xlu0 %v5548, 47
  %v5807 = vpop.permute.xlu0 %5806
  %5808 = vrot.lane.b32.xlu0 %v5549, 47
  %v5809 = vpop.permute.xlu0 %5808
  %5810 = vrot.lane.b32.xlu0 %v5550, 47
  %v5811 = vpop.permute.xlu0 %5810
  %5812 = vrot.lane.b32.xlu0 %v5551, 47
  %v5813 = vpop.permute.xlu0 %5812
  %5814 = vrot.lane.b32.xlu0 %v5552, 47
  %v5815 = vpop.permute.xlu0 %5814
  %5816 = vrot.lane.b32.xlu0 %v5553, 47
  %v5817 = vpop.permute.xlu0 %5816
  %5818 = vrot.lane.b32.xlu0 %v5554, 47
  %v5819 = vpop.permute.xlu0 %5818
  %5820 = vrot.lane.b32.xlu0 %v3339, 47
  %v5821 = vpop.permute.xlu0 %5820
  %5822 = vrot.lane.b32.xlu0 %v5581, 47
  %v5823 = vpop.permute.xlu0 %5822
  %5824 = vrot.lane.b32.xlu0 %v5582, 47
  %v5825 = vpop.permute.xlu0 %5824
  %5826 = vrot.lane.b32.xlu0 %v5583, 47
  %v5827 = vpop.permute.xlu0 %5826
  %5828 = vrot.lane.b32.xlu0 %v5584, 47
  %v5829 = vpop.permute.xlu0 %5828
  %5830 = vrot.lane.b32.xlu0 %v5585, 47
  %v5831 = vpop.permute.xlu0 %5830
  %5832 = vrot.lane.b32.xlu0 %v5586, 47
  %v5833 = vpop.permute.xlu0 %5832
  %5834 = vrot.lane.b32.xlu0 %v5587, 47
  %v5835 = vpop.permute.xlu0 %5834
  %5836 = vrot.lane.b32.xlu0 %v5588, 47
  %v5837 = vpop.permute.xlu0 %5836
  %5838 = vrot.lane.b32.xlu0 %v5580, 47
  %v5839 = vpop.permute.xlu0 %5838
  %5840 = vrot.lane.b32.xlu0 %v5613, 47
  %v5841 = vpop.permute.xlu0 %5840
  %5842 = vrot.lane.b32.xlu0 %v5614, 47
  %v5843 = vpop.permute.xlu0 %5842
  %5844 = vrot.lane.b32.xlu0 %v5615, 47
  %v5845 = vpop.permute.xlu0 %5844
  %5846 = vrot.lane.b32.xlu0 %v5616, 47
  %v5847 = vpop.permute.xlu0 %5846
  %5848 = vrot.lane.b32.xlu0 %v5617, 47
  %v5849 = vpop.permute.xlu0 %5848
  %5850 = vrot.lane.b32.xlu0 %v5618, 47
  %v5851 = vpop.permute.xlu0 %5850
  %5852 = vrot.lane.b32.xlu0 %v5619, 47
  %v5853 = vpop.permute.xlu0 %5852
  %5854 = vrot.lane.b32.xlu0 %v5620, 47
  %v5855 = vpop.permute.xlu0 %5854
  %5856 = vrot.lane.b32.xlu0 %v3436, 47
  %v5857 = vpop.permute.xlu0 %5856
  %5858 = vrot.lane.b32.xlu0 %v5647, 47
  %v5859 = vpop.permute.xlu0 %5858
  %5860 = vrot.lane.b32.xlu0 %v5648, 47
  %v5861 = vpop.permute.xlu0 %5860
  %5862 = vrot.lane.b32.xlu0 %v5649, 47
  %v5863 = vpop.permute.xlu0 %5862
  %5864 = vrot.lane.b32.xlu0 %v5650, 47
  %v5865 = vpop.permute.xlu0 %5864
  %5866 = vrot.lane.b32.xlu0 %v5651, 47
  %v5867 = vpop.permute.xlu0 %5866
  %5868 = vrot.lane.b32.xlu0 %v5652, 47
  %v5869 = vpop.permute.xlu0 %5868
  %5870 = vrot.lane.b32.xlu0 %v5653, 47
  %v5871 = vpop.permute.xlu0 %5870
  %5872 = vrot.lane.b32.xlu0 %v5654, 47
  %v5873 = vpop.permute.xlu0 %5872
  %5874 = vrot.lane.b32.xlu0 %v5646, 47
  %v5875 = vpop.permute.xlu0 %5874
  %5876 = vrot.lane.b32.xlu0 %v5679, 47
  %v5877 = vpop.permute.xlu0 %5876
  %5878 = vrot.lane.b32.xlu0 %v5680, 47
  %v5879 = vpop.permute.xlu0 %5878
  %5880 = vrot.lane.b32.xlu0 %v5681, 47
  %v5881 = vpop.permute.xlu0 %5880
  %5882 = vrot.lane.b32.xlu0 %v5682, 47
  %v5883 = vpop.permute.xlu0 %5882
  %5884 = vrot.lane.b32.xlu0 %v5683, 47
  %v5885 = vpop.permute.xlu0 %5884
  %5886 = vrot.lane.b32.xlu0 %v5684, 47
  %v5887 = vpop.permute.xlu0 %5886
  %5888 = vrot.lane.b32.xlu0 %v5685, 47
  %v5889 = vpop.permute.xlu0 %5888
  %5890 = vrot.lane.b32.xlu0 %v5686, 47
  %v5891 = vpop.permute.xlu0 %5890
  %v5892 = vsel %vm3740, %v5697, %v5699
  %v5893 = vsel %vm3740, %v5699, %v5701
  %v5894 = vsel %vm3740, %v5701, %v5703
  %v5895 = vsel %vm3740, %v5703, %v5705
  %v5896 = vsel %vm3740, %v5705, %v5707
  %v5897 = vsel %vm3740, %v5707, %v5709
  %v5898 = vsel %vm3740, %v5709, %v5711
  %v5899 = vsel %vm3740, %v5711, %v5713
  %v5900 = vsel %vm3740, %v5715, %v5717
  %v5901 = vsel %vm3740, %v5717, %v5719
  %v5902 = vsel %vm3740, %v5719, %v5721
  %v5903 = vsel %vm3740, %v5721, %v5723
  %v5904 = vsel %vm3740, %v5723, %v5725
  %v5905 = vsel %vm3740, %v5725, %v5727
  %v5906 = vsel %vm3740, %v5727, %v5729
  %v5907 = vsel %vm3740, %v5729, %v5731
  %v5908 = vsel %vm3740, %v5733, %v5735
  %v5909 = vsel %vm3740, %v5735, %v5737
  %v5910 = vsel %vm3740, %v5737, %v5739
  %v5911 = vsel %vm3740, %v5739, %v5741
  %v5912 = vsel %vm3740, %v5741, %v5743
  %v5913 = vsel %vm3740, %v5743, %v5745
  %v5914 = vsel %vm3740, %v5745, %v5747
  %v5915 = vsel %vm3740, %v5747, %v5749
  %v5916 = vsel %vm3740, %v5751, %v5753
  %v5917 = vsel %vm3740, %v5753, %v5755
  %v5918 = vsel %vm3740, %v5755, %v5757
  %v5919 = vsel %vm3740, %v5757, %v5759
  %v5920 = vsel %vm3740, %v5759, %v5761
  %v5921 = vsel %vm3740, %v5761, %v5763
  %v5922 = vsel %vm3740, %v5763, %v5765
  %v5923 = vsel %vm3740, %v5765, %v5767
  %v5924 = vsel %vm3740, %v5769, %v5771
  %v5925 = vsel %vm3740, %v5771, %v5773
  %v5926 = vsel %vm3740, %v5773, %v5775
  %v5927 = vsel %vm3740, %v5775, %v5777
  %v5928 = vsel %vm3740, %v5777, %v5779
  %v5929 = vsel %vm3740, %v5779, %v5781
  %v5930 = vsel %vm3740, %v5781, %v5783
  %v5931 = vsel %vm3740, %v5783, %v5785
  %v5932 = vsel %vm3740, %v5787, %v5789
  %v5933 = vsel %vm3740, %v5789, %v5791
  %v5934 = vsel %vm3740, %v5791, %v5793
  %v5935 = vsel %vm3740, %v5793, %v5795
  %v5936 = vsel %vm3740, %v5795, %v5797
  %v5937 = vsel %vm3740, %v5797, %v5799
  %v5938 = vsel %vm3740, %v5799, %v5801
  %v5939 = vsel %vm3740, %v5801, %v5803
  %v5940 = vsel %vm3740, %v5805, %v5807
  %v5941 = vsel %vm3740, %v5807, %v5809
  %v5942 = vsel %vm3740, %v5809, %v5811
  %v5943 = vsel %vm3740, %v5811, %v5813
  %v5944 = vsel %vm3740, %v5813, %v5815
  %v5945 = vsel %vm3740, %v5815, %v5817
  %v5946 = vsel %vm3740, %v5817, %v5819
  %v5947 = vsel %vm3740, %v5819, %v5821
  %v5948 = vsel %vm3740, %v5823, %v5825
  %v5949 = vsel %vm3740, %v5825, %v5827
  %v5950 = vsel %vm3740, %v5827, %v5829
  %v5951 = vsel %vm3740, %v5829, %v5831
  %v5952 = vsel %vm3740, %v5831, %v5833
  %v5953 = vsel %vm3740, %v5833, %v5835
  %v5954 = vsel %vm3740, %v5835, %v5837
  %v5955 = vsel %vm3740, %v5837, %v5839
  %v5956 = vsel %vm3740, %v5841, %v5843
  %v5957 = vsel %vm3740, %v5843, %v5845
  %v5958 = vsel %vm3740, %v5845, %v5847
  %v5959 = vsel %vm3740, %v5847, %v5849
  %v5960 = vsel %vm3740, %v5849, %v5851
  %v5961 = vsel %vm3740, %v5851, %v5853
  %v5962 = vsel %vm3740, %v5853, %v5855
  %v5963 = vsel %vm3740, %v5855, %v5857
  %v5964 = vsel %vm3740, %v5859, %v5861
  %v5965 = vsel %vm3740, %v5861, %v5863
  %v5966 = vsel %vm3740, %v5863, %v5865
  %v5967 = vsel %vm3740, %v5865, %v5867
  %v5968 = vsel %vm3740, %v5867, %v5869
  %v5969 = vsel %vm3740, %v5869, %v5871
  %v5970 = vsel %vm3740, %v5871, %v5873
  %v5971 = vsel %vm3740, %v5873, %v5875
  %v5972 = vsel %vm3740, %v5877, %v5879
  %v5973 = vsel %vm3740, %v5879, %v5881
  %v5974 = vsel %vm3740, %v5881, %v5883
  %v5975 = vsel %vm3740, %v5883, %v5885
  %v5976 = vsel %vm3740, %v5885, %v5887
  %v5977 = vsel %vm3740, %v5887, %v5889
  %v5978 = vsel %vm3740, %v5889, %v5891
  %v5979 = vsel %vm3740, %v5891, %v3739
  %v5980 = vld [vmem:[%s5] sm:$0xff]
  %v5981 = vld [vmem:[%s5 + $0x8] sm:$0xff]
  %v5982 = vld [vmem:[%s5 + $0x10] sm:$0xff]
  %v5983 = vld [vmem:[%s5 + $0x18] sm:$0xff]
  %v5984 = vld [vmem:[%s6] sm:$0xff]
  %v5985 = vld [vmem:[%s6 + $0x8] sm:$0xff]
  %5987 = vset.pattern.permute.xlu0 0
  %5988 = vperm.xlu0 %5987, %v5984
  %v5989 = vpop.permute.xlu0 %5988
  %5992 = vset.pattern.permute.xlu0 0
  %5993 = vperm.xlu0 %5992, %v5985
  %v5994 = vpop.permute.xlu0 %5993
  %6005 = vrot.lane.b32.xlu0 %v165, 73
  %v6006 = vpop.permute.xlu0 %6005
  %6007 = vrot.lane.b32.xlu0 %v4648, 73
  %v6008 = vpop.permute.xlu0 %6007
  %6009 = vrot.lane.b32.xlu0 %v4649, 73
  %v6010 = vpop.permute.xlu0 %6009
  %6011 = vrot.lane.b32.xlu0 %v4650, 73
  %v6012 = vpop.permute.xlu0 %6011
  %6013 = vrot.lane.b32.xlu0 %v4651, 73
  %v6014 = vpop.permute.xlu0 %6013
  %6015 = vrot.lane.b32.xlu0 %v4652, 73
  %v6016 = vpop.permute.xlu0 %6015
  %6017 = vrot.lane.b32.xlu0 %v4653, 73
  %v6018 = vpop.permute.xlu0 %6017
  %6019 = vrot.lane.b32.xlu0 %v4654, 73
  %v6020 = vpop.permute.xlu0 %6019
  %6021 = vrot.lane.b32.xlu0 %v4655, 73
  %v6022 = vpop.permute.xlu0 %6021
  %6023 = vrot.lane.b32.xlu0 %v4890, 73
  %v6024 = vpop.permute.xlu0 %6023
  %6025 = vrot.lane.b32.xlu0 %v4891, 73
  %v6026 = vpop.permute.xlu0 %6025
  %6027 = vrot.lane.b32.xlu0 %v4892, 73
  %v6028 = vpop.permute.xlu0 %6027
  %6029 = vrot.lane.b32.xlu0 %v4893, 73
  %v6030 = vpop.permute.xlu0 %6029
  %6031 = vrot.lane.b32.xlu0 %v4894, 73
  %v6032 = vpop.permute.xlu0 %6031
  %6033 = vrot.lane.b32.xlu0 %v4895, 73
  %v6034 = vpop.permute.xlu0 %6033
  %6035 = vrot.lane.b32.xlu0 %v4896, 73
  %v6036 = vpop.permute.xlu0 %6035
  %6037 = vrot.lane.b32.xlu0 %v4897, 73
  %v6038 = vpop.permute.xlu0 %6037
  %6039 = vrot.lane.b32.xlu0 %v4889, 73
  %v6040 = vpop.permute.xlu0 %6039
  %6041 = vrot.lane.b32.xlu0 %v4922, 73
  %v6042 = vpop.permute.xlu0 %6041
  %6043 = vrot.lane.b32.xlu0 %v4923, 73
  %v6044 = vpop.permute.xlu0 %6043
  %6045 = vrot.lane.b32.xlu0 %v4924, 73
  %v6046 = vpop.permute.xlu0 %6045
  %6047 = vrot.lane.b32.xlu0 %v4925, 73
  %v6048 = vpop.permute.xlu0 %6047
  %6049 = vrot.lane.b32.xlu0 %v4926, 73
  %v6050 = vpop.permute.xlu0 %6049
  %6051 = vrot.lane.b32.xlu0 %v4927, 73
  %v6052 = vpop.permute.xlu0 %6051
  %6053 = vrot.lane.b32.xlu0 %v4928, 73
  %v6054 = vpop.permute.xlu0 %6053
  %6055 = vrot.lane.b32.xlu0 %v4929, 73
  %v6056 = vpop.permute.xlu0 %6055
  %6057 = vrot.lane.b32.xlu0 %v4921, 73
  %v6058 = vpop.permute.xlu0 %6057
  %6059 = vrot.lane.b32.xlu0 %v4956, 73
  %v6060 = vpop.permute.xlu0 %6059
  %6061 = vrot.lane.b32.xlu0 %v4957, 73
  %v6062 = vpop.permute.xlu0 %6061
  %6063 = vrot.lane.b32.xlu0 %v4958, 73
  %v6064 = vpop.permute.xlu0 %6063
  %6065 = vrot.lane.b32.xlu0 %v4959, 73
  %v6066 = vpop.permute.xlu0 %6065
  %6067 = vrot.lane.b32.xlu0 %v4960, 73
  %v6068 = vpop.permute.xlu0 %6067
  %6069 = vrot.lane.b32.xlu0 %v4961, 73
  %v6070 = vpop.permute.xlu0 %6069
  %6071 = vrot.lane.b32.xlu0 %v4962, 73
  %v6072 = vpop.permute.xlu0 %6071
  %6073 = vrot.lane.b32.xlu0 %v4963, 73
  %v6074 = vpop.permute.xlu0 %6073
  %6075 = vrot.lane.b32.xlu0 %v4955, 73
  %v6076 = vpop.permute.xlu0 %6075
  %6077 = vrot.lane.b32.xlu0 %v4988, 73
  %v6078 = vpop.permute.xlu0 %6077
  %6079 = vrot.lane.b32.xlu0 %v4989, 73
  %v6080 = vpop.permute.xlu0 %6079
  %6081 = vrot.lane.b32.xlu0 %v4990, 73
  %v6082 = vpop.permute.xlu0 %6081
  %6083 = vrot.lane.b32.xlu0 %v4991, 73
  %v6084 = vpop.permute.xlu0 %6083
  %6085 = vrot.lane.b32.xlu0 %v4992, 73
  %v6086 = vpop.permute.xlu0 %6085
  %6087 = vrot.lane.b32.xlu0 %v4993, 73
  %v6088 = vpop.permute.xlu0 %6087
  %6089 = vrot.lane.b32.xlu0 %v4994, 73
  %v6090 = vpop.permute.xlu0 %6089
  %6091 = vrot.lane.b32.xlu0 %v4995, 73
  %v6092 = vpop.permute.xlu0 %6091
  %6093 = vrot.lane.b32.xlu0 %v4987, 73
  %v6094 = vpop.permute.xlu0 %6093
  %6095 = vrot.lane.b32.xlu0 %v5022, 73
  %v6096 = vpop.permute.xlu0 %6095
  %6097 = vrot.lane.b32.xlu0 %v5023, 73
  %v6098 = vpop.permute.xlu0 %6097
  %6099 = vrot.lane.b32.xlu0 %v5024, 73
  %v6100 = vpop.permute.xlu0 %6099
  %6101 = vrot.lane.b32.xlu0 %v5025, 73
  %v6102 = vpop.permute.xlu0 %6101
  %6103 = vrot.lane.b32.xlu0 %v5026, 73
  %v6104 = vpop.permute.xlu0 %6103
  %6105 = vrot.lane.b32.xlu0 %v5027, 73
  %v6106 = vpop.permute.xlu0 %6105
  %6107 = vrot.lane.b32.xlu0 %v5028, 73
  %v6108 = vpop.permute.xlu0 %6107
  %6109 = vrot.lane.b32.xlu0 %v5029, 73
  %v6110 = vpop.permute.xlu0 %6109
  %6111 = vrot.lane.b32.xlu0 %v5021, 73
  %v6112 = vpop.permute.xlu0 %6111
  %6113 = vrot.lane.b32.xlu0 %v5054, 73
  %v6114 = vpop.permute.xlu0 %6113
  %6115 = vrot.lane.b32.xlu0 %v5055, 73
  %v6116 = vpop.permute.xlu0 %6115
  %6117 = vrot.lane.b32.xlu0 %v5056, 73
  %v6118 = vpop.permute.xlu0 %6117
  %6119 = vrot.lane.b32.xlu0 %v5057, 73
  %v6120 = vpop.permute.xlu0 %6119
  %6121 = vrot.lane.b32.xlu0 %v5058, 73
  %v6122 = vpop.permute.xlu0 %6121
  %6123 = vrot.lane.b32.xlu0 %v5059, 73
  %v6124 = vpop.permute.xlu0 %6123
  %6125 = vrot.lane.b32.xlu0 %v5060, 73
  %v6126 = vpop.permute.xlu0 %6125
  %6127 = vrot.lane.b32.xlu0 %v5061, 73
  %v6128 = vpop.permute.xlu0 %6127
  %6129 = vrot.lane.b32.xlu0 %v5053, 73
  %v6130 = vpop.permute.xlu0 %6129
  %6131 = vrot.lane.b32.xlu0 %v5088, 73
  %v6132 = vpop.permute.xlu0 %6131
  %6133 = vrot.lane.b32.xlu0 %v5089, 73
  %v6134 = vpop.permute.xlu0 %6133
  %6135 = vrot.lane.b32.xlu0 %v5090, 73
  %v6136 = vpop.permute.xlu0 %6135
  %6137 = vrot.lane.b32.xlu0 %v5091, 73
  %v6138 = vpop.permute.xlu0 %6137
  %6139 = vrot.lane.b32.xlu0 %v5092, 73
  %v6140 = vpop.permute.xlu0 %6139
  %6141 = vrot.lane.b32.xlu0 %v5093, 73
  %v6142 = vpop.permute.xlu0 %6141
  %6143 = vrot.lane.b32.xlu0 %v5094, 73
  %v6144 = vpop.permute.xlu0 %6143
  %6145 = vrot.lane.b32.xlu0 %v5095, 73
  %v6146 = vpop.permute.xlu0 %6145
  %6147 = vrot.lane.b32.xlu0 %v5087, 73
  %v6148 = vpop.permute.xlu0 %6147
  %6149 = vrot.lane.b32.xlu0 %v5120, 73
  %v6150 = vpop.permute.xlu0 %6149
  %6151 = vrot.lane.b32.xlu0 %v5121, 73
  %v6152 = vpop.permute.xlu0 %6151
  %6153 = vrot.lane.b32.xlu0 %v5122, 73
  %v6154 = vpop.permute.xlu0 %6153
  %6155 = vrot.lane.b32.xlu0 %v5123, 73
  %v6156 = vpop.permute.xlu0 %6155
  %6157 = vrot.lane.b32.xlu0 %v5124, 73
  %v6158 = vpop.permute.xlu0 %6157
  %6159 = vrot.lane.b32.xlu0 %v5125, 73
  %v6160 = vpop.permute.xlu0 %6159
  %6161 = vrot.lane.b32.xlu0 %v5126, 73
  %v6162 = vpop.permute.xlu0 %6161
  %6163 = vrot.lane.b32.xlu0 %v5127, 73
  %v6164 = vpop.permute.xlu0 %6163
  %6165 = vrot.lane.b32.xlu0 %v5119, 73
  %v6166 = vpop.permute.xlu0 %6165
  %6167 = vrot.lane.b32.xlu0 %v5154, 73
  %v6168 = vpop.permute.xlu0 %6167
  %6169 = vrot.lane.b32.xlu0 %v5155, 73
  %v6170 = vpop.permute.xlu0 %6169
  %6171 = vrot.lane.b32.xlu0 %v5156, 73
  %v6172 = vpop.permute.xlu0 %6171
  %6173 = vrot.lane.b32.xlu0 %v5157, 73
  %v6174 = vpop.permute.xlu0 %6173
  %6175 = vrot.lane.b32.xlu0 %v5158, 73
  %v6176 = vpop.permute.xlu0 %6175
  %6177 = vrot.lane.b32.xlu0 %v5159, 73
  %v6178 = vpop.permute.xlu0 %6177
  %6179 = vrot.lane.b32.xlu0 %v5160, 73
  %v6180 = vpop.permute.xlu0 %6179
  %6181 = vrot.lane.b32.xlu0 %v5161, 73
  %v6182 = vpop.permute.xlu0 %6181
  %6183 = vrot.lane.b32.xlu0 %v5153, 73
  %v6184 = vpop.permute.xlu0 %6183
  %6185 = vrot.lane.b32.xlu0 %v5186, 73
  %v6186 = vpop.permute.xlu0 %6185
  %6187 = vrot.lane.b32.xlu0 %v5187, 73
  %v6188 = vpop.permute.xlu0 %6187
  %6189 = vrot.lane.b32.xlu0 %v5188, 73
  %v6190 = vpop.permute.xlu0 %6189
  %6191 = vrot.lane.b32.xlu0 %v5189, 73
  %v6192 = vpop.permute.xlu0 %6191
  %6193 = vrot.lane.b32.xlu0 %v5190, 73
  %v6194 = vpop.permute.xlu0 %6193
  %6195 = vrot.lane.b32.xlu0 %v5191, 73
  %v6196 = vpop.permute.xlu0 %6195
  %6197 = vrot.lane.b32.xlu0 %v5192, 73
  %v6198 = vpop.permute.xlu0 %6197
  %6199 = vrot.lane.b32.xlu0 %v5193, 73
  %v6200 = vpop.permute.xlu0 %6199
  %6201 = vrot.lane.b32.xlu0 %v5185, 73
  %v6202 = vpop.permute.xlu0 %6201
  %6203 = vrot.lane.b32.xlu0 %v5220, 73
  %v6204 = vpop.permute.xlu0 %6203
  %6205 = vrot.lane.b32.xlu0 %v5221, 73
  %v6206 = vpop.permute.xlu0 %6205
  %6207 = vrot.lane.b32.xlu0 %v5222, 73
  %v6208 = vpop.permute.xlu0 %6207
  %6209 = vrot.lane.b32.xlu0 %v5223, 73
  %v6210 = vpop.permute.xlu0 %6209
  %6211 = vrot.lane.b32.xlu0 %v5224, 73
  %v6212 = vpop.permute.xlu0 %6211
  %6213 = vrot.lane.b32.xlu0 %v5225, 73
  %v6214 = vpop.permute.xlu0 %6213
  %6215 = vrot.lane.b32.xlu0 %v5226, 73
  %v6216 = vpop.permute.xlu0 %6215
  %6217 = vrot.lane.b32.xlu0 %v5227, 73
  %v6218 = vpop.permute.xlu0 %6217
  %6219 = vrot.lane.b32.xlu0 %v5219, 73
  %v6220 = vpop.permute.xlu0 %6219
  %6221 = vrot.lane.b32.xlu0 %v5252, 73
  %v6222 = vpop.permute.xlu0 %6221
  %6223 = vrot.lane.b32.xlu0 %v5253, 73
  %v6224 = vpop.permute.xlu0 %6223
  %6225 = vrot.lane.b32.xlu0 %v5254, 73
  %v6226 = vpop.permute.xlu0 %6225
  %6227 = vrot.lane.b32.xlu0 %v5255, 73
  %v6228 = vpop.permute.xlu0 %6227
  %6229 = vrot.lane.b32.xlu0 %v5256, 73
  %v6230 = vpop.permute.xlu0 %6229
  %6231 = vrot.lane.b32.xlu0 %v5257, 73
  %v6232 = vpop.permute.xlu0 %6231
  %6233 = vrot.lane.b32.xlu0 %v5258, 73
  %v6234 = vpop.permute.xlu0 %6233
  %6235 = vrot.lane.b32.xlu0 %v5259, 73
  %v6236 = vpop.permute.xlu0 %6235
  %6237 = vrot.lane.b32.xlu0 %v5251, 73
  %v6238 = vpop.permute.xlu0 %6237
  %6239 = vrot.lane.b32.xlu0 %v5269, 73
  %v6240 = vpop.permute.xlu0 %6239
  %6241 = vrot.lane.b32.xlu0 %v5284, 73
  %v6242 = vpop.permute.xlu0 %6241
  %6243 = vrot.lane.b32.xlu0 %v5285, 73
  %v6244 = vpop.permute.xlu0 %6243
  %6245 = vrot.lane.b32.xlu0 %v5286, 73
  %v6246 = vpop.permute.xlu0 %6245
  %6247 = vrot.lane.b32.xlu0 %v5287, 73
  %v6248 = vpop.permute.xlu0 %6247
  %6249 = vrot.lane.b32.xlu0 %v5288, 73
  %v6250 = vpop.permute.xlu0 %6249
  %6251 = vrot.lane.b32.xlu0 %v5289, 73
  %v6252 = vpop.permute.xlu0 %6251
  %6253 = vrot.lane.b32.xlu0 %v5290, 73
  %v6254 = vpop.permute.xlu0 %6253
  %6255 = vrot.lane.b32.xlu0 %v5283, 73
  %v6256 = vpop.permute.xlu0 %6255
  %6257 = vrot.lane.b32.xlu0 %v5300, 73
  %v6258 = vpop.permute.xlu0 %6257
  %6259 = vrot.lane.b32.xlu0 %v5315, 73
  %v6260 = vpop.permute.xlu0 %6259
  %6261 = vrot.lane.b32.xlu0 %v5316, 73
  %v6262 = vpop.permute.xlu0 %6261
  %6263 = vrot.lane.b32.xlu0 %v5317, 73
  %v6264 = vpop.permute.xlu0 %6263
  %6265 = vrot.lane.b32.xlu0 %v5318, 73
  %v6266 = vpop.permute.xlu0 %6265
  %6267 = vrot.lane.b32.xlu0 %v5319, 73
  %v6268 = vpop.permute.xlu0 %6267
  %6269 = vrot.lane.b32.xlu0 %v5320, 73
  %v6270 = vpop.permute.xlu0 %6269
  %6271 = vrot.lane.b32.xlu0 %v5321, 73
  %v6272 = vpop.permute.xlu0 %6271
  %6273 = vrot.lane.b32.xlu0 %v5322, 73
  %v6274 = vpop.permute.xlu0 %6273
  %6275 = vrot.lane.b32.xlu0 %v5332, 73
  %v6276 = vpop.permute.xlu0 %6275
  %6277 = vrot.lane.b32.xlu0 %v5349, 73
  %v6278 = vpop.permute.xlu0 %6277
  %6279 = vrot.lane.b32.xlu0 %v5350, 73
  %v6280 = vpop.permute.xlu0 %6279
  %6281 = vrot.lane.b32.xlu0 %v5351, 73
  %v6282 = vpop.permute.xlu0 %6281
  %6283 = vrot.lane.b32.xlu0 %v5352, 73
  %v6284 = vpop.permute.xlu0 %6283
  %6285 = vrot.lane.b32.xlu0 %v5353, 73
  %v6286 = vpop.permute.xlu0 %6285
  %6287 = vrot.lane.b32.xlu0 %v5354, 73
  %v6288 = vpop.permute.xlu0 %6287
  %6289 = vrot.lane.b32.xlu0 %v5355, 73
  %v6290 = vpop.permute.xlu0 %6289
  %6291 = vrot.lane.b32.xlu0 %v5356, 73
  %v6292 = vpop.permute.xlu0 %6291
  %6293 = vrot.lane.b32.xlu0 %v5697, 73
  %v6294 = vpop.permute.xlu0 %6293
  %6295 = vrot.lane.b32.xlu0 %v5892, 73
  %v6296 = vpop.permute.xlu0 %6295
  %6297 = vrot.lane.b32.xlu0 %v5893, 73
  %v6298 = vpop.permute.xlu0 %6297
  %6299 = vrot.lane.b32.xlu0 %v5894, 73
  %v6300 = vpop.permute.xlu0 %6299
  %6301 = vrot.lane.b32.xlu0 %v5895, 73
  %v6302 = vpop.permute.xlu0 %6301
  %6303 = vrot.lane.b32.xlu0 %v5896, 73
  %v6304 = vpop.permute.xlu0 %6303
  %6305 = vrot.lane.b32.xlu0 %v5897, 73
  %v6306 = vpop.permute.xlu0 %6305
  %6307 = vrot.lane.b32.xlu0 %v5898, 73
  %v6308 = vpop.permute.xlu0 %6307
  %6309 = vrot.lane.b32.xlu0 %v5899, 73
  %v6310 = vpop.permute.xlu0 %6309
  %6311 = vrot.lane.b32.xlu0 %v5715, 73
  %v6312 = vpop.permute.xlu0 %6311
  %6313 = vrot.lane.b32.xlu0 %v5900, 73
  %v6314 = vpop.permute.xlu0 %6313
  %6315 = vrot.lane.b32.xlu0 %v5901, 73
  %v6316 = vpop.permute.xlu0 %6315
  %6317 = vrot.lane.b32.xlu0 %v5902, 73
  %v6318 = vpop.permute.xlu0 %6317
  %6319 = vrot.lane.b32.xlu0 %v5903, 73
  %v6320 = vpop.permute.xlu0 %6319
  %6321 = vrot.lane.b32.xlu0 %v5904, 73
  %v6322 = vpop.permute.xlu0 %6321
  %6323 = vrot.lane.b32.xlu0 %v5905, 73
  %v6324 = vpop.permute.xlu0 %6323
  %6325 = vrot.lane.b32.xlu0 %v5906, 73
  %v6326 = vpop.permute.xlu0 %6325
  %6327 = vrot.lane.b32.xlu0 %v5907, 73
  %v6328 = vpop.permute.xlu0 %6327
  %6329 = vrot.lane.b32.xlu0 %v5733, 73
  %v6330 = vpop.permute.xlu0 %6329
  %6331 = vrot.lane.b32.xlu0 %v5908, 73
  %v6332 = vpop.permute.xlu0 %6331
  %6333 = vrot.lane.b32.xlu0 %v5909, 73
  %v6334 = vpop.permute.xlu0 %6333
  %6335 = vrot.lane.b32.xlu0 %v5910, 73
  %v6336 = vpop.permute.xlu0 %6335
  %6337 = vrot.lane.b32.xlu0 %v5911, 73
  %v6338 = vpop.permute.xlu0 %6337
  %6339 = vrot.lane.b32.xlu0 %v5912, 73
  %v6340 = vpop.permute.xlu0 %6339
  %6341 = vrot.lane.b32.xlu0 %v5913, 73
  %v6342 = vpop.permute.xlu0 %6341
  %6343 = vrot.lane.b32.xlu0 %v5914, 73
  %v6344 = vpop.permute.xlu0 %6343
  %6345 = vrot.lane.b32.xlu0 %v5915, 73
  %v6346 = vpop.permute.xlu0 %6345
  %6347 = vrot.lane.b32.xlu0 %v5751, 73
  %v6348 = vpop.permute.xlu0 %6347
  %6349 = vrot.lane.b32.xlu0 %v5916, 73
  %v6350 = vpop.permute.xlu0 %6349
  %6351 = vrot.lane.b32.xlu0 %v5917, 73
  %v6352 = vpop.permute.xlu0 %6351
  %6353 = vrot.lane.b32.xlu0 %v5918, 73
  %v6354 = vpop.permute.xlu0 %6353
  %6355 = vrot.lane.b32.xlu0 %v5919, 73
  %v6356 = vpop.permute.xlu0 %6355
  %6357 = vrot.lane.b32.xlu0 %v5920, 73
  %v6358 = vpop.permute.xlu0 %6357
  %6359 = vrot.lane.b32.xlu0 %v5921, 73
  %v6360 = vpop.permute.xlu0 %6359
  %6361 = vrot.lane.b32.xlu0 %v5922, 73
  %v6362 = vpop.permute.xlu0 %6361
  %6363 = vrot.lane.b32.xlu0 %v5923, 73
  %v6364 = vpop.permute.xlu0 %6363
  %6365 = vrot.lane.b32.xlu0 %v5769, 73
  %v6366 = vpop.permute.xlu0 %6365
  %6367 = vrot.lane.b32.xlu0 %v5924, 73
  %v6368 = vpop.permute.xlu0 %6367
  %6369 = vrot.lane.b32.xlu0 %v5925, 73
  %v6370 = vpop.permute.xlu0 %6369
  %6371 = vrot.lane.b32.xlu0 %v5926, 73
  %v6372 = vpop.permute.xlu0 %6371
  %6373 = vrot.lane.b32.xlu0 %v5927, 73
  %v6374 = vpop.permute.xlu0 %6373
  %6375 = vrot.lane.b32.xlu0 %v5928, 73
  %v6376 = vpop.permute.xlu0 %6375
  %6377 = vrot.lane.b32.xlu0 %v5929, 73
  %v6378 = vpop.permute.xlu0 %6377
  %6379 = vrot.lane.b32.xlu0 %v5930, 73
  %v6380 = vpop.permute.xlu0 %6379
  %6381 = vrot.lane.b32.xlu0 %v5931, 73
  %v6382 = vpop.permute.xlu0 %6381
  %6383 = vrot.lane.b32.xlu0 %v5787, 73
  %v6384 = vpop.permute.xlu0 %6383
  %6385 = vrot.lane.b32.xlu0 %v5932, 73
  %v6386 = vpop.permute.xlu0 %6385
  %6387 = vrot.lane.b32.xlu0 %v5933, 73
  %v6388 = vpop.permute.xlu0 %6387
  %6389 = vrot.lane.b32.xlu0 %v5934, 73
  %v6390 = vpop.permute.xlu0 %6389
  %6391 = vrot.lane.b32.xlu0 %v5935, 73
  %v6392 = vpop.permute.xlu0 %6391
  %6393 = vrot.lane.b32.xlu0 %v5936, 73
  %v6394 = vpop.permute.xlu0 %6393
  %6395 = vrot.lane.b32.xlu0 %v5937, 73
  %v6396 = vpop.permute.xlu0 %6395
  %6397 = vrot.lane.b32.xlu0 %v5938, 73
  %v6398 = vpop.permute.xlu0 %6397
  %6399 = vrot.lane.b32.xlu0 %v5939, 73
  %v6400 = vpop.permute.xlu0 %6399
  %6401 = vrot.lane.b32.xlu0 %v5805, 73
  %v6402 = vpop.permute.xlu0 %6401
  %6403 = vrot.lane.b32.xlu0 %v5940, 73
  %v6404 = vpop.permute.xlu0 %6403
  %6405 = vrot.lane.b32.xlu0 %v5941, 73
  %v6406 = vpop.permute.xlu0 %6405
  %6407 = vrot.lane.b32.xlu0 %v5942, 73
  %v6408 = vpop.permute.xlu0 %6407
  %6409 = vrot.lane.b32.xlu0 %v5943, 73
  %v6410 = vpop.permute.xlu0 %6409
  %6411 = vrot.lane.b32.xlu0 %v5944, 73
  %v6412 = vpop.permute.xlu0 %6411
  %6413 = vrot.lane.b32.xlu0 %v5945, 73
  %v6414 = vpop.permute.xlu0 %6413
  %6415 = vrot.lane.b32.xlu0 %v5946, 73
  %v6416 = vpop.permute.xlu0 %6415
  %6417 = vrot.lane.b32.xlu0 %v5947, 73
  %v6418 = vpop.permute.xlu0 %6417
  %6419 = vrot.lane.b32.xlu0 %v5823, 73
  %v6420 = vpop.permute.xlu0 %6419
  %6421 = vrot.lane.b32.xlu0 %v5948, 73
  %v6422 = vpop.permute.xlu0 %6421
  %6423 = vrot.lane.b32.xlu0 %v5949, 73
  %v6424 = vpop.permute.xlu0 %6423
  %6425 = vrot.lane.b32.xlu0 %v5950, 73
  %v6426 = vpop.permute.xlu0 %6425
  %6427 = vrot.lane.b32.xlu0 %v5951, 73
  %v6428 = vpop.permute.xlu0 %6427
  %6429 = vrot.lane.b32.xlu0 %v5952, 73
  %v6430 = vpop.permute.xlu0 %6429
  %6431 = vrot.lane.b32.xlu0 %v5953, 73
  %v6432 = vpop.permute.xlu0 %6431
  %6433 = vrot.lane.b32.xlu0 %v5954, 73
  %v6434 = vpop.permute.xlu0 %6433
  %6435 = vrot.lane.b32.xlu0 %v5955, 73
  %v6436 = vpop.permute.xlu0 %6435
  %6437 = vrot.lane.b32.xlu0 %v5841, 73
  %v6438 = vpop.permute.xlu0 %6437
  %6439 = vrot.lane.b32.xlu0 %v5956, 73
  %v6440 = vpop.permute.xlu0 %6439
  %6441 = vrot.lane.b32.xlu0 %v5957, 73
  %v6442 = vpop.permute.xlu0 %6441
  %6443 = vrot.lane.b32.xlu0 %v5958, 73
  %v6444 = vpop.permute.xlu0 %6443
  %6445 = vrot.lane.b32.xlu0 %v5959, 73
  %v6446 = vpop.permute.xlu0 %6445
  %6447 = vrot.lane.b32.xlu0 %v5960, 73
  %v6448 = vpop.permute.xlu0 %6447
  %6449 = vrot.lane.b32.xlu0 %v5961, 73
  %v6450 = vpop.permute.xlu0 %6449
  %6451 = vrot.lane.b32.xlu0 %v5962, 73
  %v6452 = vpop.permute.xlu0 %6451
  %6453 = vrot.lane.b32.xlu0 %v5963, 73
  %v6454 = vpop.permute.xlu0 %6453
  %6455 = vrot.lane.b32.xlu0 %v5859, 73
  %v6456 = vpop.permute.xlu0 %6455
  %6457 = vrot.lane.b32.xlu0 %v5964, 73
  %v6458 = vpop.permute.xlu0 %6457
  %6459 = vrot.lane.b32.xlu0 %v5965, 73
  %v6460 = vpop.permute.xlu0 %6459
  %6461 = vrot.lane.b32.xlu0 %v5966, 73
  %v6462 = vpop.permute.xlu0 %6461
  %6463 = vrot.lane.b32.xlu0 %v5967, 73
  %v6464 = vpop.permute.xlu0 %6463
  %6465 = vrot.lane.b32.xlu0 %v5968, 73
  %v6466 = vpop.permute.xlu0 %6465
  %6467 = vrot.lane.b32.xlu0 %v5969, 73
  %v6468 = vpop.permute.xlu0 %6467
  %6469 = vrot.lane.b32.xlu0 %v5970, 73
  %v6470 = vpop.permute.xlu0 %6469
  %6471 = vrot.lane.b32.xlu0 %v5971, 73
  %v6472 = vpop.permute.xlu0 %6471
  %6473 = vrot.lane.b32.xlu0 %v5877, 73
  %v6474 = vpop.permute.xlu0 %6473
  %6475 = vrot.lane.b32.xlu0 %v5972, 73
  %v6476 = vpop.permute.xlu0 %6475
  %6477 = vrot.lane.b32.xlu0 %v5973, 73
  %v6478 = vpop.permute.xlu0 %6477
  %6479 = vrot.lane.b32.xlu0 %v5974, 73
  %v6480 = vpop.permute.xlu0 %6479
  %6481 = vrot.lane.b32.xlu0 %v5975, 73
  %v6482 = vpop.permute.xlu0 %6481
  %6483 = vrot.lane.b32.xlu0 %v5976, 73
  %v6484 = vpop.permute.xlu0 %6483
  %6485 = vrot.lane.b32.xlu0 %v5977, 73
  %v6486 = vpop.permute.xlu0 %6485
  %6487 = vrot.lane.b32.xlu0 %v5978, 73
  %v6488 = vpop.permute.xlu0 %6487
  %6489 = vrot.lane.b32.xlu0 %v5979, 73
  %v6490 = vpop.permute.xlu0 %6489
  %v6491 = vsel %vm804, %v6006, %v6008
  %v6492 = vsel %vm804, %v6008, %v6010
  %v6493 = vsel %vm804, %v6010, %v6012
  %v6494 = vsel %vm804, %v6012, %v6014
  %v6495 = vsel %vm804, %v6014, %v6016
  %v6496 = vsel %vm804, %v6016, %v6018
  %v6497 = vsel %vm804, %v6018, %v6020
  %v6498 = vsel %vm804, %v6020, %v6022
  %v6499 = vsel %vm804, %v6024, %v6026
  %v6500 = vsel %vm804, %v6026, %v6028
  %v6501 = vsel %vm804, %v6028, %v6030
  %v6502 = vsel %vm804, %v6030, %v6032
  %v6503 = vsel %vm804, %v6032, %v6034
  %v6504 = vsel %vm804, %v6034, %v6036
  %v6505 = vsel %vm804, %v6036, %v6038
  %v6506 = vsel %vm804, %v6038, %v6040
  %v6507 = vsel %vm804, %v6042, %v6044
  %v6508 = vsel %vm804, %v6044, %v6046
  %v6509 = vsel %vm804, %v6046, %v6048
  %v6510 = vsel %vm804, %v6048, %v6050
  %v6511 = vsel %vm804, %v6050, %v6052
  %v6512 = vsel %vm804, %v6052, %v6054
  %v6513 = vsel %vm804, %v6054, %v6056
  %v6514 = vsel %vm804, %v6056, %v6058
  %v6515 = vsel %vm804, %v6060, %v6062
  %v6516 = vsel %vm804, %v6062, %v6064
  %v6517 = vsel %vm804, %v6064, %v6066
  %v6518 = vsel %vm804, %v6066, %v6068
  %v6519 = vsel %vm804, %v6068, %v6070
  %v6520 = vsel %vm804, %v6070, %v6072
  %v6521 = vsel %vm804, %v6072, %v6074
  %v6522 = vsel %vm804, %v6074, %v6076
  %v6523 = vsel %vm804, %v6078, %v6080
  %v6524 = vsel %vm804, %v6080, %v6082
  %v6525 = vsel %vm804, %v6082, %v6084
  %v6526 = vsel %vm804, %v6084, %v6086
  %v6527 = vsel %vm804, %v6086, %v6088
  %v6528 = vsel %vm804, %v6088, %v6090
  %v6529 = vsel %vm804, %v6090, %v6092
  %v6530 = vsel %vm804, %v6092, %v6094
  %v6531 = vsel %vm804, %v6096, %v6098
  %v6532 = vsel %vm804, %v6098, %v6100
  %v6533 = vsel %vm804, %v6100, %v6102
  %v6534 = vsel %vm804, %v6102, %v6104
  %v6535 = vsel %vm804, %v6104, %v6106
  %v6536 = vsel %vm804, %v6106, %v6108
  %v6537 = vsel %vm804, %v6108, %v6110
  %v6538 = vsel %vm804, %v6110, %v6112
  %v6539 = vsel %vm804, %v6114, %v6116
  %v6540 = vsel %vm804, %v6116, %v6118
  %v6541 = vsel %vm804, %v6118, %v6120
  %v6542 = vsel %vm804, %v6120, %v6122
  %v6543 = vsel %vm804, %v6122, %v6124
  %v6544 = vsel %vm804, %v6124, %v6126
  %v6545 = vsel %vm804, %v6126, %v6128
  %v6546 = vsel %vm804, %v6128, %v6130
  %v6547 = vsel %vm804, %v6132, %v6134
  %v6548 = vsel %vm804, %v6134, %v6136
  %v6549 = vsel %vm804, %v6136, %v6138
  %v6550 = vsel %vm804, %v6138, %v6140
  %v6551 = vsel %vm804, %v6140, %v6142
  %v6552 = vsel %vm804, %v6142, %v6144
  %v6553 = vsel %vm804, %v6144, %v6146
  %v6554 = vsel %vm804, %v6146, %v6148
  %v6555 = vsel %vm804, %v6150, %v6152
  %v6556 = vsel %vm804, %v6152, %v6154
  %v6557 = vsel %vm804, %v6154, %v6156
  %v6558 = vsel %vm804, %v6156, %v6158
  %v6559 = vsel %vm804, %v6158, %v6160
  %v6560 = vsel %vm804, %v6160, %v6162
  %v6561 = vsel %vm804, %v6162, %v6164
  %v6562 = vsel %vm804, %v6164, %v6166
  %v6563 = vsel %vm804, %v6168, %v6170
  %v6564 = vsel %vm804, %v6170, %v6172
  %v6565 = vsel %vm804, %v6172, %v6174
  %v6566 = vsel %vm804, %v6174, %v6176
  %v6567 = vsel %vm804, %v6176, %v6178
  %v6568 = vsel %vm804, %v6178, %v6180
  %v6569 = vsel %vm804, %v6180, %v6182
  %v6570 = vsel %vm804, %v6182, %v6184
  %v6571 = vsel %vm804, %v6186, %v6188
  %v6572 = vsel %vm804, %v6188, %v6190
  %v6573 = vsel %vm804, %v6190, %v6192
  %v6574 = vsel %vm804, %v6192, %v6194
  %v6575 = vsel %vm804, %v6194, %v6196
  %v6576 = vsel %vm804, %v6196, %v6198
  %v6577 = vsel %vm804, %v6198, %v6200
  %v6578 = vsel %vm804, %v6200, %v6202
  %v6579 = vsel %vm804, %v6204, %v6206
  %v6580 = vsel %vm804, %v6206, %v6208
  %v6581 = vsel %vm804, %v6208, %v6210
  %v6582 = vsel %vm804, %v6210, %v6212
  %v6583 = vsel %vm804, %v6212, %v6214
  %v6584 = vsel %vm804, %v6214, %v6216
  %v6585 = vsel %vm804, %v6216, %v6218
  %v6586 = vsel %vm804, %v6218, %v6220
  %v6587 = vsel %vm804, %v6222, %v6224
  %v6588 = vsel %vm804, %v6224, %v6226
  %v6589 = vsel %vm804, %v6226, %v6228
  %v6590 = vsel %vm804, %v6228, %v6230
  %v6591 = vsel %vm804, %v6230, %v6232
  %v6592 = vsel %vm804, %v6232, %v6234
  %v6593 = vsel %vm804, %v6234, %v6236
  %v6594 = vsel %vm804, %v6236, %v6238
  %v6595 = vsel %vm804, %v6240, %v6242
  %v6596 = vsel %vm804, %v6242, %v6244
  %v6597 = vsel %vm804, %v6244, %v6246
  %v6598 = vsel %vm804, %v6246, %v6248
  %v6599 = vsel %vm804, %v6248, %v6250
  %v6600 = vsel %vm804, %v6250, %v6252
  %v6601 = vsel %vm804, %v6252, %v6254
  %v6602 = vsel %vm804, %v6254, %v6256
  %v6603 = vsel %vm804, %v6258, %v6260
  %v6604 = vsel %vm804, %v6260, %v6262
  %v6605 = vsel %vm804, %v6262, %v6264
  %v6606 = vsel %vm804, %v6264, %v6266
  %v6607 = vsel %vm804, %v6266, %v6268
  %v6608 = vsel %vm804, %v6268, %v6270
  %v6609 = vsel %vm804, %v6270, %v6272
  %v6610 = vsel %vm804, %v6272, %v6274
  %v6611 = vsel %vm804, %v6276, %v6278
  %v6612 = vsel %vm804, %v6278, %v6280
  %v6613 = vsel %vm804, %v6280, %v6282
  %v6614 = vsel %vm804, %v6282, %v6284
  %v6615 = vsel %vm804, %v6284, %v6286
  %v6616 = vsel %vm804, %v6286, %v6288
  %v6617 = vsel %vm804, %v6288, %v6290
  %v6618 = vsel %vm804, %v6290, %v6292
  %v6619 = vsel %vm804, %v6294, %v6296
  %v6620 = vsel %vm804, %v6296, %v6298
  %v6621 = vsel %vm804, %v6298, %v6300
  %v6622 = vsel %vm804, %v6300, %v6302
  %v6623 = vsel %vm804, %v6302, %v6304
  %v6624 = vsel %vm804, %v6304, %v6306
  %v6625 = vsel %vm804, %v6306, %v6308
  %v6626 = vsel %vm804, %v6308, %v6310
  %v6627 = vsel %vm804, %v6312, %v6314
  %v6628 = vsel %vm804, %v6314, %v6316
  %v6629 = vsel %vm804, %v6316, %v6318
  %v6630 = vsel %vm804, %v6318, %v6320
  %v6631 = vsel %vm804, %v6320, %v6322
  %v6632 = vsel %vm804, %v6322, %v6324
  %v6633 = vsel %vm804, %v6324, %v6326
  %v6634 = vsel %vm804, %v6326, %v6328
  %v6635 = vsel %vm804, %v6330, %v6332
  %v6636 = vsel %vm804, %v6332, %v6334
  %v6637 = vsel %vm804, %v6334, %v6336
  %v6638 = vsel %vm804, %v6336, %v6338
  %v6639 = vsel %vm804, %v6338, %v6340
  %v6640 = vsel %vm804, %v6340, %v6342
  %v6641 = vsel %vm804, %v6342, %v6344
  %v6642 = vsel %vm804, %v6344, %v6346
  %v6643 = vsel %vm804, %v6348, %v6350
  %v6644 = vsel %vm804, %v6350, %v6352
  %v6645 = vsel %vm804, %v6352, %v6354
  %v6646 = vsel %vm804, %v6354, %v6356
  %v6647 = vsel %vm804, %v6356, %v6358
  %v6648 = vsel %vm804, %v6358, %v6360
  %v6649 = vsel %vm804, %v6360, %v6362
  %v6650 = vsel %vm804, %v6362, %v6364
  %v6651 = vsel %vm804, %v6366, %v6368
  %v6652 = vsel %vm804, %v6368, %v6370
  %v6653 = vsel %vm804, %v6370, %v6372
  %v6654 = vsel %vm804, %v6372, %v6374
  %v6655 = vsel %vm804, %v6374, %v6376
  %v6656 = vsel %vm804, %v6376, %v6378
  %v6657 = vsel %vm804, %v6378, %v6380
  %v6658 = vsel %vm804, %v6380, %v6382
  %v6659 = vsel %vm804, %v6384, %v6386
  %v6660 = vsel %vm804, %v6386, %v6388
  %v6661 = vsel %vm804, %v6388, %v6390
  %v6662 = vsel %vm804, %v6390, %v6392
  %v6663 = vsel %vm804, %v6392, %v6394
  %v6664 = vsel %vm804, %v6394, %v6396
  %v6665 = vsel %vm804, %v6396, %v6398
  %v6666 = vsel %vm804, %v6398, %v6400
  %v6667 = vsel %vm804, %v6402, %v6404
  %v6668 = vsel %vm804, %v6404, %v6406
  %v6669 = vsel %vm804, %v6406, %v6408
  %v6670 = vsel %vm804, %v6408, %v6410
  %v6671 = vsel %vm804, %v6410, %v6412
  %v6672 = vsel %vm804, %v6412, %v6414
  %v6673 = vsel %vm804, %v6414, %v6416
  %v6674 = vsel %vm804, %v6416, %v6418
  %v6675 = vsel %vm804, %v6420, %v6422
  %v6676 = vsel %vm804, %v6422, %v6424
  %v6677 = vsel %vm804, %v6424, %v6426
  %v6678 = vsel %vm804, %v6426, %v6428
  %v6679 = vsel %vm804, %v6428, %v6430
  %v6680 = vsel %vm804, %v6430, %v6432
  %v6681 = vsel %vm804, %v6432, %v6434
  %v6682 = vsel %vm804, %v6434, %v6436
  %v6683 = vsel %vm804, %v6438, %v6440
  %v6684 = vsel %vm804, %v6440, %v6442
  %v6685 = vsel %vm804, %v6442, %v6444
  %v6686 = vsel %vm804, %v6444, %v6446
  %v6687 = vsel %vm804, %v6446, %v6448
  %v6688 = vsel %vm804, %v6448, %v6450
  %v6689 = vsel %vm804, %v6450, %v6452
  %v6690 = vsel %vm804, %v6452, %v6454
  %v6691 = vsel %vm804, %v6456, %v6458
  %v6692 = vsel %vm804, %v6458, %v6460
  %v6693 = vsel %vm804, %v6460, %v6462
  %v6694 = vsel %vm804, %v6462, %v6464
  %v6695 = vsel %vm804, %v6464, %v6466
  %v6696 = vsel %vm804, %v6466, %v6468
  %v6697 = vsel %vm804, %v6468, %v6470
  %v6698 = vsel %vm804, %v6470, %v6472
  %v6699 = vsel %vm804, %v6474, %v6476
  %v6700 = vsel %vm804, %v6476, %v6478
  %v6701 = vsel %vm804, %v6478, %v6480
  %v6702 = vsel %vm804, %v6480, %v6482
  %v6703 = vsel %vm804, %v6482, %v6484
  %v6704 = vsel %vm804, %v6484, %v6486
  %v6705 = vsel %vm804, %v6486, %v6488
  %v6706 = vsel %vm804, %v6488, %v6490
  %vm6923 = vcmask 719872
  %v6925 = vsel %vm6923, %v5981, 0
  %v6928 = vsel %vm6923, %v5983, 0
  %6930 = vmatprep.subr.mxu0 %v6492
  %6931 = vmatpush1.msra.mxu0 %v6491
  %6932 = vmatprep.subr.mxu0 %v6500
  %6933 = vmatpush1.msra.mxu0 %v6499
  %6934 = vmatprep.subr.mxu0 %v6508
  %6935 = vmatpush1.msra.mxu0 %v6507
  %6936 = vmatprep.subr.mxu0 %v6516
  %6937 = vmatpush1.msra.mxu0 %v6515
  %6938 = vmatprep.subr.mxu0 %v6524
  %6939 = vmatpush1.msra.mxu0 %v6523
  %6940 = vmatprep.subr.mxu0 %v6532
  %6941 = vmatpush1.msra.mxu0 %v6531
  %6942 = vmatprep.subr.mxu0 %v6540
  %6943 = vmatpush1.msra.mxu0 %v6539
  %6944 = vmatprep.subr.mxu0 %v6548
  %6945 = vmatpush1.msra.mxu0 %v6547
  %6946 = vmatprep.subr.mxu0 %v6556
  %6947 = vmatpush1.msra.mxu0 %v6555
  %6948 = vmatprep.subr.mxu0 %v6564
  %6949 = vmatpush1.msra.mxu0 %v6563
  %6950 = vmatprep.subr.mxu0 %v6572
  %6951 = vmatpush1.msra.mxu0 %v6571
  %6952 = vmatprep.subr.mxu0 %v6580
  %6953 = vmatpush1.msra.mxu0 %v6579
  %6954 = vmatprep.subr.mxu0 %v6588
  %6955 = vmatpush1.msra.mxu0 %v6587
  %6956 = vmatprep.subr.mxu0 %v6596
  %6957 = vmatpush1.msra.mxu0 %v6595
  %6958 = vmatprep.subr.mxu0 %v6604
  %6959 = vmatpush1.msra.mxu0 %v6603
  %6960 = vmatprep.subr.mxu0 %v6612
  %6961 = vmatpush1.msra.mxu0 %v6611
  %6962 = vmatprep.subr.mxu0 %v6620
  %6963 = vmatpush1.msra.mxu0 %v6619
  %6964 = vmatprep.subr.mxu0 %v6628
  %6965 = vmatpush1.msra.mxu0 %v6627
  %6966 = vmatprep.subr.mxu0 %v6636
  %6967 = vmatpush1.msra.mxu0 %v6635
  %6968 = vmatprep.subr.mxu0 %v6644
  %6969 = vmatpush1.msra.mxu0 %v6643
  %6970 = vmatprep.subr.mxu0 %v6652
  %6971 = vmatpush1.msra.mxu0 %v6651
  %6972 = vmatprep.subr.mxu0 %v6660
  %6973 = vmatpush1.msra.mxu0 %v6659
  %6974 = vmatprep.subr.mxu0 %v6668
  %6975 = vmatpush1.msra.mxu0 %v6667
  %6976 = vmatprep.subr.mxu0 %v6676
  %6977 = vmatpush1.msra.mxu0 %v6675
  %6978 = vmatprep.subr.mxu0 %v6684
  %6979 = vmatpush1.msra.mxu0 %v6683
  %6980 = vmatprep.subr.mxu0 %v6692
  %6981 = vmatpush1.msra.mxu0 %v6691
  %6982 = vmatprep.subr.mxu0 %v6700
  %6983 = vmatpush1.msra.mxu0 %v6699
  %6984 = vmatprep.subr.mxu0 0.0
  %6985 = vmatpush1.msra.mxu0 0.0
  %6986 = vmatprep.subr.mxu0 0.0
  %6987 = vmatpush1.msra.mxu0 0.0
  %6988 = vmatprep.subr.mxu0 0.0
  %6989 = vmatpush1.msra.mxu0 0.0
  %6990 = vmatprep.subr.mxu0 0.0
  %6991 = vmatpush1.msra.mxu0 0.0
  %6992 = vmatprep.subr.mxu0 0.0
  %6993 = vmatpush1.msra.mxu0 0.0
  %6994 = vmatprep.mubr.f32.mxu0 %v6925
  %6995 = vmatmul.mubr.f32.gmra.mrb[0].mxu0 %v5980
  %v6996 = vpop.f32.mrb[0].mxu0
  %v6997 = vadd.f32 %v5989, %v6996
  %v6998 = vpop.f32.mrb[0].mxu0
  %v6999 = vadd.f32 %v5989, %v6998
  %7000 = vmatprep.mubr.f32.mxu0 %v6928
  %7001 = vmatmul.mubr.f32.gmra.mrb[0].mxu0 %v5982
  %v7002 = vpop.f32.mrb[0].mxu0
  %v7003 = vadd.f32 %v5994, %v7002
  %v7004 = vpop.f32.mrb[0].mxu0
  %v7005 = vadd.f32 %v5994, %v7004
  %7006 = vdwg.mxu0
  %7007 = vmatprep.subr.mxu0 %v6494
  %7008 = vmatpush1.msra.mxu0 %v6493
  %7009 = vmatprep.subr.mxu0 %v6502
  %7010 = vmatpush1.msra.mxu0 %v6501
  %7011 = vmatprep.subr.mxu0 %v6510
  %7012 = vmatpush1.msra.mxu0 %v6509
  %7013 = vmatprep.subr.mxu0 %v6518
  %7014 = vmatpush1.msra.mxu0 %v6517
  %7015 = vmatprep.subr.mxu0 %v6526
  %7016 = vmatpush1.msra.mxu0 %v6525
  %7017 = vmatprep.subr.mxu0 %v6534
  %7018 = vmatpush1.msra.mxu0 %v6533
  %7019 = vmatprep.subr.mxu0 %v6542
  %7020 = vmatpush1.msra.mxu0 %v6541
  %7021 = vmatprep.subr.mxu0 %v6550
  %7022 = vmatpush1.msra.mxu0 %v6549
  %7023 = vmatprep.subr.mxu0 %v6558
  %7024 = vmatpush1.msra.mxu0 %v6557
  %7025 = vmatprep.subr.mxu0 %v6566
  %7026 = vmatpush1.msra.mxu0 %v6565
  %7027 = vmatprep.subr.mxu0 %v6574
  %7028 = vmatpush1.msra.mxu0 %v6573
  %7029 = vmatprep.subr.mxu0 %v6582
  %7030 = vmatpush1.msra.mxu0 %v6581
  %7031 = vmatprep.subr.mxu0 %v6590
  %7032 = vmatpush1.msra.mxu0 %v6589
  %7033 = vmatprep.subr.mxu0 %v6598
  %7034 = vmatpush1.msra.mxu0 %v6597
  %7035 = vmatprep.subr.mxu0 %v6606
  %7036 = vmatpush1.msra.mxu0 %v6605
  %7037 = vmatprep.subr.mxu0 %v6614
  %7038 = vmatpush1.msra.mxu0 %v6613
  %7039 = vmatprep.subr.mxu0 %v6622
  %7040 = vmatpush1.msra.mxu0 %v6621
  %7041 = vmatprep.subr.mxu0 %v6630
  %7042 = vmatpush1.msra.mxu0 %v6629
  %7043 = vmatprep.subr.mxu0 %v6638
  %7044 = vmatpush1.msra.mxu0 %v6637
  %7045 = vmatprep.subr.mxu0 %v6646
  %7046 = vmatpush1.msra.mxu0 %v6645
  %7047 = vmatprep.subr.mxu0 %v6654
  %7048 = vmatpush1.msra.mxu0 %v6653
  %7049 = vmatprep.subr.mxu0 %v6662
  %7050 = vmatpush1.msra.mxu0 %v6661
  %7051 = vmatprep.subr.mxu0 %v6670
  %7052 = vmatpush1.msra.mxu0 %v6669
  %7053 = vmatprep.subr.mxu0 %v6678
  %7054 = vmatpush1.msra.mxu0 %v6677
  %7055 = vmatprep.subr.mxu0 %v6686
  %7056 = vmatpush1.msra.mxu0 %v6685
  %7057 = vmatprep.subr.mxu0 %v6694
  %7058 = vmatpush1.msra.mxu0 %v6693
  %7059 = vmatprep.subr.mxu0 %v6702
  %7060 = vmatpush1.msra.mxu0 %v6701
  %7061 = vmatprep.subr.mxu0 0.0
  %7062 = vmatpush1.msra.mxu0 0.0
  %7063 = vmatprep.subr.mxu0 0.0
  %7064 = vmatpush1.msra.mxu0 0.0
  %7065 = vmatprep.subr.mxu0 0.0
  %7066 = vmatpush1.msra.mxu0 0.0
  %7067 = vmatprep.subr.mxu0 0.0
  %7068 = vmatpush1.msra.mxu0 0.0
  %7069 = vmatprep.subr.mxu0 0.0
  %7070 = vmatpush1.msra.mxu0 0.0
  %7071 = vmatprep.mubr.f32.mxu0 %v6925
  %7072 = vmatmul.mubr.f32.gmra.mrb[0].mxu0 %v5980
  %v7073 = vpop.f32.mrb[0].mxu0
  %v7074 = vadd.f32 %v5989, %v7073
  %v7075 = vpop.f32.mrb[0].mxu0
  %v7076 = vadd.f32 %v5989, %v7075
  %7077 = vmatprep.mubr.f32.mxu0 %v6928
  %7078 = vmatmul.mubr.f32.gmra.mrb[0].mxu0 %v5982
  %v7079 = vpop.f32.mrb[0].mxu0
  %v7080 = vadd.f32 %v5994, %v7079
  %v7081 = vpop.f32.mrb[0].mxu0
  %v7082 = vadd.f32 %v5994, %v7081
  %7083 = vdwg.mxu0
  %7084 = vmatprep.subr.mxu0 %v6496
  %7085 = vmatpush1.msra.mxu0 %v6495
  %7086 = vmatprep.subr.mxu0 %v6504
  %7087 = vmatpush1.msra.mxu0 %v6503
  %7088 = vmatprep.subr.mxu0 %v6512
  %7089 = vmatpush1.msra.mxu0 %v6511
  %7090 = vmatprep.subr.mxu0 %v6520
  %7091 = vmatpush1.msra.mxu0 %v6519
  %7092 = vmatprep.subr.mxu0 %v6528
  %7093 = vmatpush1.msra.mxu0 %v6527
  %7094 = vmatprep.subr.mxu0 %v6536
  %7095 = vmatpush1.msra.mxu0 %v6535
  %7096 = vmatprep.subr.mxu0 %v6544
  %7097 = vmatpush1.msra.mxu0 %v6543
  %7098 = vmatprep.subr.mxu0 %v6552
  %7099 = vmatpush1.msra.mxu0 %v6551
  %7100 = vmatprep.subr.mxu0 %v6560
  %7101 = vmatpush1.msra.mxu0 %v6559
  %7102 = vmatprep.subr.mxu0 %v6568
  %7103 = vmatpush1.msra.mxu0 %v6567
  %7104 = vmatprep.subr.mxu0 %v6576
  %7105 = vmatpush1.msra.mxu0 %v6575
  %7106 = vmatprep.subr.mxu0 %v6584
  %7107 = vmatpush1.msra.mxu0 %v6583
  %7108 = vmatprep.subr.mxu0 %v6592
  %7109 = vmatpush1.msra.mxu0 %v6591
  %7110 = vmatprep.subr.mxu0 %v6600
  %7111 = vmatpush1.msra.mxu0 %v6599
  %7112 = vmatprep.subr.mxu0 %v6608
  %7113 = vmatpush1.msra.mxu0 %v6607
  %7114 = vmatprep.subr.mxu0 %v6616
  %7115 = vmatpush1.msra.mxu0 %v6615
  %7116 = vmatprep.subr.mxu0 %v6624
  %7117 = vmatpush1.msra.mxu0 %v6623
  %7118 = vmatprep.subr.mxu0 %v6632
  %7119 = vmatpush1.msra.mxu0 %v6631
  %7120 = vmatprep.subr.mxu0 %v6640
  %7121 = vmatpush1.msra.mxu0 %v6639
  %7122 = vmatprep.subr.mxu0 %v6648
  %7123 = vmatpush1.msra.mxu0 %v6647
  %7124 = vmatprep.subr.mxu0 %v6656
  %7125 = vmatpush1.msra.mxu0 %v6655
  %7126 = vmatprep.subr.mxu0 %v6664
  %7127 = vmatpush1.msra.mxu0 %v6663
  %7128 = vmatprep.subr.mxu0 %v6672
  %7129 = vmatpush1.msra.mxu0 %v6671
  %7130 = vmatprep.subr.mxu0 %v6680
  %7131 = vmatpush1.msra.mxu0 %v6679
  %7132 = vmatprep.subr.mxu0 %v6688
  %7133 = vmatpush1.msra.mxu0 %v6687
  %7134 = vmatprep.subr.mxu0 %v6696
  %7135 = vmatpush1.msra.mxu0 %v6695
  %7136 = vmatprep.subr.mxu0 %v6704
  %7137 = vmatpush1.msra.mxu0 %v6703
  %7138 = vmatprep.subr.mxu0 0.0
  %7139 = vmatpush1.msra.mxu0 0.0
  %7140 = vmatprep.subr.mxu0 0.0
  %7141 = vmatpush1.msra.mxu0 0.0
  %7142 = vmatprep.subr.mxu0 0.0
  %7143 = vmatpush1.msra.mxu0 0.0
  %7144 = vmatprep.subr.mxu0 0.0
  %7145 = vmatpush1.msra.mxu0 0.0
  %7146 = vmatprep.subr.mxu0 0.0
  %7147 = vmatpush1.msra.mxu0 0.0
  %7148 = vmatprep.mubr.f32.mxu0 %v6925
  %7149 = vmatmul.mubr.f32.gmra.mrb[0].mxu0 %v5980
  %v7150 = vpop.f32.mrb[0].mxu0
  %v7151 = vadd.f32 %v5989, %v7150
  %v7152 = vpop.f32.mrb[0].mxu0
  %v7153 = vadd.f32 %v5989, %v7152
  %7154 = vmatprep.mubr.f32.mxu0 %v6928
  %7155 = vmatmul.mubr.f32.gmra.mrb[0].mxu0 %v5982
  %v7156 = vpop.f32.mrb[0].mxu0
  %v7157 = vadd.f32 %v5994, %v7156
  %v7158 = vpop.f32.mrb[0].mxu0
  %v7159 = vadd.f32 %v5994, %v7158
  %7160 = vdwg.mxu0
  %7161 = vmatprep.subr.mxu0 %v6498
  %7162 = vmatpush1.msra.mxu0 %v6497
  %7163 = vmatprep.subr.mxu0 %v6506
  %7164 = vmatpush1.msra.mxu0 %v6505
  %7165 = vmatprep.subr.mxu0 %v6514
  %7166 = vmatpush1.msra.mxu0 %v6513
  %7167 = vmatprep.subr.mxu0 %v6522
  %7168 = vmatpush1.msra.mxu0 %v6521
  %7169 = vmatprep.subr.mxu0 %v6530
  %7170 = vmatpush1.msra.mxu0 %v6529
  %7171 = vmatprep.subr.mxu0 %v6538
  %7172 = vmatpush1.msra.mxu0 %v6537
  %7173 = vmatprep.subr.mxu0 %v6546
  %7174 = vmatpush1.msra.mxu0 %v6545
  %7175 = vmatprep.subr.mxu0 %v6554
  %7176 = vmatpush1.msra.mxu0 %v6553
  %7177 = vmatprep.subr.mxu0 %v6562
  %7178 = vmatpush1.msra.mxu0 %v6561
  %7179 = vmatprep.subr.mxu0 %v6570
  %7180 = vmatpush1.msra.mxu0 %v6569
  %7181 = vmatprep.subr.mxu0 %v6578
  %7182 = vmatpush1.msra.mxu0 %v6577
  %7183 = vmatprep.subr.mxu0 %v6586
  %7184 = vmatpush1.msra.mxu0 %v6585
  %7185 = vmatprep.subr.mxu0 %v6594
  %7186 = vmatpush1.msra.mxu0 %v6593
  %7187 = vmatprep.subr.mxu0 %v6602
  %7188 = vmatpush1.msra.mxu0 %v6601
  %7189 = vmatprep.subr.mxu0 %v6610
  %7190 = vmatpush1.msra.mxu0 %v6609
  %7191 = vmatprep.subr.mxu0 %v6618
  %7192 = vmatpush1.msra.mxu0 %v6617
  %7193 = vmatprep.subr.mxu0 %v6626
  %7194 = vmatpush1.msra.mxu0 %v6625
  %7195 = vmatprep.subr.mxu0 %v6634
  %7196 = vmatpush1.msra.mxu0 %v6633
  %7197 = vmatprep.subr.mxu0 %v6642
  %7198 = vmatpush1.msra.mxu0 %v6641
  %7199 = vmatprep.subr.mxu0 %v6650
  %7200 = vmatpush1.msra.mxu0 %v6649
  %7201 = vmatprep.subr.mxu0 %v6658
  %7202 = vmatpush1.msra.mxu0 %v6657
  %7203 = vmatprep.subr.mxu0 %v6666
  %7204 = vmatpush1.msra.mxu0 %v6665
  %7205 = vmatprep.subr.mxu0 %v6674
  %7206 = vmatpush1.msra.mxu0 %v6673
  %7207 = vmatprep.subr.mxu0 %v6682
  %7208 = vmatpush1.msra.mxu0 %v6681
  %7209 = vmatprep.subr.mxu0 %v6690
  %7210 = vmatpush1.msra.mxu0 %v6689
  %7211 = vmatprep.subr.mxu0 %v6698
  %7212 = vmatpush1.msra.mxu0 %v6697
  %7213 = vmatprep.subr.mxu0 %v6706
  %7214 = vmatpush1.msra.mxu0 %v6705
  %7215 = vmatprep.subr.mxu0 0.0
  %7216 = vmatpush1.msra.mxu0 0.0
  %7217 = vmatprep.subr.mxu0 0.0
  %7218 = vmatpush1.msra.mxu0 0.0
  %7219 = vmatprep.subr.mxu0 0.0
  %7220 = vmatpush1.msra.mxu0 0.0
  %7221 = vmatprep.subr.mxu0 0.0
  %7222 = vmatpush1.msra.mxu0 0.0
  %7223 = vmatprep.subr.mxu0 0.0
  %7224 = vmatpush1.msra.mxu0 0.0
  %7225 = vmatprep.mubr.f32.mxu0 %v6925
  %7226 = vmatmul.mubr.f32.gmra.mrb[0].mxu0 %v5980
  %v7227 = vpop.f32.mrb[0].mxu0
  %v7228 = vadd.f32 %v5989, %v7227
  %v7229 = vpop.f32.mrb[0].mxu0
  %v7230 = vadd.f32 %v5989, %v7229
  %7231 = vmatprep.mubr.f32.mxu0 %v6928
  %7232 = vmatmul.mubr.f32.gmra.mrb[0].mxu0 %v5982
  %v7233 = vpop.f32.mrb[0].mxu0
  %v7234 = vadd.f32 %v5994, %v7233
  %v7235 = vpop.f32.mrb[0].mxu0
  %v7236 = vadd.f32 %v5994, %v7235
  %7237 = vdwg.mxu0
  %v7238 = vmax.f32 %v6997, 0.0
  %v7239 = vmax.f32 %v6999, 0.0
  %v7240 = vmax.f32 %v7074, 0.0
  %v7241 = vmax.f32 %v7076, 0.0
  %v7242 = vmax.f32 %v7151, 0.0
  %v7243 = vmax.f32 %v7153, 0.0
  %v7244 = vmax.f32 %v7228, 0.0
  %v7245 = vmax.f32 %v7230, 0.0
  %v7246 = vmax.f32 %v7003, 0.0
  %v7247 = vmax.f32 %v7005, 0.0
  %v7248 = vmax.f32 %v7080, 0.0
  %v7249 = vmax.f32 %v7082, 0.0
  %v7250 = vmax.f32 %v7157, 0.0
  %v7251 = vmax.f32 %v7159, 0.0
  %v7252 = vmax.f32 %v7234, 0.0
  %v7253 = vmax.f32 %v7236, 0.0
  %v7254 = vld [vmem:[%s2] sm:$0xff]
  %v7255 = vld [vmem:[%s2 + $0x8] sm:$0xff]
  %v7256 = vld [vmem:[%s2 + $0x10] sm:$0xff]
  %v7257 = vld [vmem:[%s2 + $0x18] sm:$0xff]
  %v7258 = vld [vmem:[%s2 + $0x20] sm:$0xff]
  %v7259 = vld [vmem:[%s2 + $0x28] sm:$0xff]
  %v7260 = vld [vmem:[%s2 + $0x30] sm:$0xff]
  %v7261 = vld [vmem:[%s2 + $0x38] sm:$0xff]
  %v7262 = vld [vmem:[%s2 + $0x40] sm:$0xff]
  %v7263 = vld [vmem:[%s2 + $0x48] sm:$0xff]
  %v7264 = vld [vmem:[%s2 + $0x50] sm:$0xff]
  %v7265 = vld [vmem:[%s2 + $0x58] sm:$0xff]
  %v7266 = vld [vmem:[%s2 + $0x60] sm:$0xff]
  %v7267 = vld [vmem:[%s2 + $0x68] sm:$0xff]
  %v7268 = vld [vmem:[%s2 + $0x70] sm:$0xff]
  %v7269 = vld [vmem:[%s2 + $0x78] sm:$0xff]
  %v7270 = vld [vmem:[%s2 + $0x80] sm:$0xff]
  %v7271 = vld [vmem:[%s2 + $0x88] sm:$0xff]
  %v7272 = vld [vmem:[%s2 + $0x90] sm:$0xff]
  %v7273 = vld [vmem:[%s2 + $0x98] sm:$0xff]
  %v7274 = vld [vmem:[%s2 + $0xa0] sm:$0xff]
  %v7275 = vld [vmem:[%s2 + $0xa8] sm:$0xff]
  %v7276 = vld [vmem:[%s2 + $0xb0] sm:$0xff]
  %v7277 = vld [vmem:[%s2 + $0xb8] sm:$0xff]
  %v7278 = vld [vmem:[%s2 + $0xc0] sm:$0xff]
  %v7279 = vld [vmem:[%s2 + $0xc8] sm:$0xff]
  %v7280 = vld [vmem:[%s2 + $0xd0] sm:$0xff]
  %v7281 = vld [vmem:[%s2 + $0xd8] sm:$0xff]
  %v7282 = vld [vmem:[%s2 + $0xe0] sm:$0xff]
  %v7283 = vld [vmem:[%s2 + $0xe8] sm:$0xff]
  %v7284 = vld [vmem:[%s2 + $0xf0] sm:$0xff]
  %v7285 = vld [vmem:[%s2 + $0xf8] sm:$0xff]
  %v7286 = vld [vmem:[%s2 + $0x100] sm:$0xff]
  %v7287 = vld [vmem:[%s2 + $0x108] sm:$0xff]
  %v7288 = vld [vmem:[%s2 + $0x110] sm:$0xff]
  %v7289 = vld [vmem:[%s2 + $0x118] sm:$0xff]
  %v7290 = vld [vmem:[%s2 + $0x120] sm:$0xff]
  %v7291 = vld [vmem:[%s2 + $0x128] sm:$0xff]
  %v7292 = vld [vmem:[%s2 + $0x130] sm:$0xff]
  %v7293 = vld [vmem:[%s2 + $0x138] sm:$0xff]
  %v7294 = vld [vmem:[%s2 + $0x140] sm:$0xff]
  %v7295 = vld [vmem:[%s2 + $0x148] sm:$0xff]
  %v7296 = vld [vmem:[%s2 + $0x150] sm:$0xff]
  %v7297 = vld [vmem:[%s2 + $0x158] sm:$0xff]
  %v7298 = vld [vmem:[%s2 + $0x160] sm:$0xff]
  %v7299 = vld [vmem:[%s2 + $0x168] sm:$0xff]
  %v7300 = vld [vmem:[%s2 + $0x170] sm:$0xff]
  %v7301 = vld [vmem:[%s2 + $0x178] sm:$0xff]
  %v7302 = vld [vmem:[%s2 + $0x180] sm:$0xff]
  %v7303 = vld [vmem:[%s2 + $0x188] sm:$0xff]
  %v7304 = vld [vmem:[%s2 + $0x190] sm:$0xff]
  %v7305 = vld [vmem:[%s2 + $0x198] sm:$0xff]
  %v7306 = vld [vmem:[%s2 + $0x1a0] sm:$0xff]
  %v7307 = vld [vmem:[%s2 + $0x1a8] sm:$0xff]
  %v7308 = vld [vmem:[%s2 + $0x1b0] sm:$0xff]
  %v7309 = vld [vmem:[%s2 + $0x1b8] sm:$0xff]
  %v7310 = vld [vmem:[%s2 + $0x1c0] sm:$0xff]
  %v7311 = vld [vmem:[%s2 + $0x1c8] sm:$0xff]
  %v7312 = vld [vmem:[%s2 + $0x1d0] sm:$0xff]
  %v7313 = vld [vmem:[%s2 + $0x1d8] sm:$0xff]
  %v7314 = vld [vmem:[%s2 + $0x1e0] sm:$0xff]
  %v7315 = vld [vmem:[%s2 + $0x1e8] sm:$0xff]
  %v7316 = vld [vmem:[%s2 + $0x1f0] sm:$0xff]
  %v7317 = vld [vmem:[%s2 + $0x1f8] sm:$0xff]
  %v7318 = vld [vmem:[%s2 + $0x200] sm:$0xff]
  %v7319 = vld [vmem:[%s2 + $0x208] sm:$0xff]
  %v7320 = vld [vmem:[%s2 + $0x210] sm:$0xff]
  %v7321 = vld [vmem:[%s2 + $0x218] sm:$0xff]
  %v7322 = vld [vmem:[%s2 + $0x220] sm:$0xff]
  %v7323 = vld [vmem:[%s2 + $0x228] sm:$0xff]
  %v7324 = vld [vmem:[%s2 + $0x230] sm:$0xff]
  %v7325 = vld [vmem:[%s2 + $0x238] sm:$0xff]
  %v7326 = vld [vmem:[%s2 + $0x240] sm:$0xff]
  %v7327 = vld [vmem:[%s2 + $0x248] sm:$0xff]
  %v7328 = vld [vmem:[%s2 + $0x250] sm:$0xff]
  %v7329 = vld [vmem:[%s2 + $0x258] sm:$0xff]
  %v7330 = vld [vmem:[%s2 + $0x260] sm:$0xff]
  %v7331 = vld [vmem:[%s2 + $0x268] sm:$0xff]
  %v7332 = vld [vmem:[%s2 + $0x270] sm:$0xff]
  %v7333 = vld [vmem:[%s2 + $0x278] sm:$0xff]
  %v7334 = vld [vmem:[%s2 + $0x280] sm:$0xff]
  %v7335 = vld [vmem:[%s2 + $0x288] sm:$0xff]
  %v7336 = vld [vmem:[%s2 + $0x290] sm:$0xff]
  %v7337 = vld [vmem:[%s2 + $0x298] sm:$0xff]
  %v7338 = vld [vmem:[%s2 + $0x2a0] sm:$0xff]
  %v7339 = vld [vmem:[%s2 + $0x2a8] sm:$0xff]
  %v7340 = vld [vmem:[%s2 + $0x2b0] sm:$0xff]
  %v7341 = vld [vmem:[%s2 + $0x2b8] sm:$0xff]
  %v7342 = vld [vmem:[%s2 + $0x2c0] sm:$0xff]
  %v7343 = vld [vmem:[%s2 + $0x2c8] sm:$0xff]
  %v7344 = vld [vmem:[%s2 + $0x2d0] sm:$0xff]
  %v7345 = vld [vmem:[%s2 + $0x2d8] sm:$0xff]
  %v7346 = vld [vmem:[%s2 + $0x2e0] sm:$0xff]
  %v7347 = vld [vmem:[%s2 + $0x2e8] sm:$0xff]
  %v7348 = vld [vmem:[%s2 + $0x2f0] sm:$0xff]
  %v7349 = vld [vmem:[%s2 + $0x2f8] sm:$0xff]
  %v7350 = vld [vmem:[%s2 + $0x300] sm:$0xff]
  %v7351 = vld [vmem:[%s2 + $0x308] sm:$0xff]
  %v7352 = vld [vmem:[%s2 + $0x310] sm:$0xff]
  %v7353 = vld [vmem:[%s2 + $0x318] sm:$0xff]
  %v7354 = vld [vmem:[%s2 + $0x320] sm:$0xff]
  %v7355 = vld [vmem:[%s2 + $0x328] sm:$0xff]
  %v7356 = vld [vmem:[%s2 + $0x330] sm:$0xff]
  %v7357 = vld [vmem:[%s2 + $0x338] sm:$0xff]
  %v7358 = vld [vmem:[%s2 + $0x340] sm:$0xff]
  %v7359 = vld [vmem:[%s2 + $0x348] sm:$0xff]
  %v7360 = vld [vmem:[%s2 + $0x350] sm:$0xff]
  %v7361 = vld [vmem:[%s2 + $0x358] sm:$0xff]
  %v7362 = vld [vmem:[%s2 + $0x360] sm:$0xff]
  %v7363 = vld [vmem:[%s2 + $0x368] sm:$0xff]
  %v7364 = vld [vmem:[%s2 + $0x370] sm:$0xff]
  %v7365 = vld [vmem:[%s2 + $0x378] sm:$0xff]
  %v7366 = vld [vmem:[%s2 + $0x380] sm:$0xff]
  %v7367 = vld [vmem:[%s2 + $0x388] sm:$0xff]
  %v7368 = vld [vmem:[%s2 + $0x390] sm:$0xff]
  %v7369 = vld [vmem:[%s2 + $0x398] sm:$0xff]
  %v7370 = vld [vmem:[%s2 + $0x3a0] sm:$0xff]
  %v7371 = vld [vmem:[%s2 + $0x3a8] sm:$0xff]
  %v7372 = vld [vmem:[%s2 + $0x3b0] sm:$0xff]
  %v7373 = vld [vmem:[%s2 + $0x3b8] sm:$0xff]
  %v7374 = vld [vmem:[%s2 + $0x3c0] sm:$0xff]
  %v7375 = vld [vmem:[%s2 + $0x3c8] sm:$0xff]
  %v7376 = vld [vmem:[%s2 + $0x3d0] sm:$0xff]
  %v7377 = vld [vmem:[%s2 + $0x3d8] sm:$0xff]
  %v7378 = vld [vmem:[%s2 + $0x3e0] sm:$0xff]
  %v7379 = vld [vmem:[%s2 + $0x3e8] sm:$0xff]
  %v7380 = vld [vmem:[%s2 + $0x3f0] sm:$0xff]
  %v7381 = vld [vmem:[%s2 + $0x3f8] sm:$0xff]
  %7382 = vmatprep.subr.mxu0 0.0
  %7383 = vmatpush1.msra.mxu0 %v7254
  %7384 = vmatprep.subr.mxu0 0.0
  %7385 = vmatpush1.msra.mxu0 %v7255
  %7386 = vmatprep.subr.mxu0 0.0
  %7387 = vmatpush1.msra.mxu0 %v7256
  %7388 = vmatprep.subr.mxu0 0.0
  %7389 = vmatpush1.msra.mxu0 %v7257
  %7390 = vmatprep.subr.mxu0 0.0
  %7391 = vmatpush1.msra.mxu0 %v7258
  %7392 = vmatprep.subr.mxu0 0.0
  %7393 = vmatpush1.msra.mxu0 %v7259
  %7394 = vmatprep.subr.mxu0 0.0
  %7395 = vmatpush1.msra.mxu0 %v7260
  %7396 = vmatprep.subr.mxu0 0.0
  %7397 = vmatpush1.msra.mxu0 %v7261
  %7398 = vmatprep.subr.mxu0 0.0
  %7399 = vmatpush1.msra.mxu0 %v7262
  %7400 = vmatprep.subr.mxu0 0.0
  %7401 = vmatpush1.msra.mxu0 %v7263
  %7402 = vmatprep.subr.mxu0 0.0
  %7403 = vmatpush1.msra.mxu0 %v7264
  %7404 = vmatprep.subr.mxu0 0.0
  %7405 = vmatpush1.msra.mxu0 %v7265
  %7406 = vmatprep.subr.mxu0 0.0
  %7407 = vmatpush1.msra.mxu0 %v7266
  %7408 = vmatprep.subr.mxu0 0.0
  %7409 = vmatpush1.msra.mxu0 %v7267
  %7410 = vmatprep.subr.mxu0 0.0
  %7411 = vmatpush1.msra.mxu0 %v7268
  %7412 = vmatprep.subr.mxu0 0.0
  %7413 = vmatpush1.msra.mxu0 %v7269
  %7414 = vmatprep.subr.mxu0 0.0
  %7415 = vmatpush1.msra.mxu0 %v7270
  %7416 = vmatprep.subr.mxu0 0.0
  %7417 = vmatpush1.msra.mxu0 %v7271
  %7418 = vmatprep.subr.mxu0 0.0
  %7419 = vmatpush1.msra.mxu0 %v7272
  %7420 = vmatprep.subr.mxu0 0.0
  %7421 = vmatpush1.msra.mxu0 %v7273
  %7422 = vmatprep.subr.mxu0 0.0
  %7423 = vmatpush1.msra.mxu0 %v7274
  %7424 = vmatprep.subr.mxu0 0.0
  %7425 = vmatpush1.msra.mxu0 %v7275
  %7426 = vmatprep.subr.mxu0 0.0
  %7427 = vmatpush1.msra.mxu0 %v7276
  %7428 = vmatprep.subr.mxu0 0.0
  %7429 = vmatpush1.msra.mxu0 %v7277
  %7430 = vmatprep.subr.mxu0 0.0
  %7431 = vmatpush1.msra.mxu0 %v7278
  %7432 = vmatprep.subr.mxu0 0.0
  %7433 = vmatpush1.msra.mxu0 %v7279
  %7434 = vmatprep.subr.mxu0 0.0
  %7435 = vmatpush1.msra.mxu0 %v7280
  %7436 = vmatprep.subr.mxu0 0.0
  %7437 = vmatpush1.msra.mxu0 %v7281
  %7438 = vmatprep.subr.mxu0 0.0
  %7439 = vmatpush1.msra.mxu0 %v7282
  %7440 = vmatprep.subr.mxu0 0.0
  %7441 = vmatpush1.msra.mxu0 %v7283
  %7442 = vmatprep.subr.mxu0 0.0
  %7443 = vmatpush1.msra.mxu0 %v7284
  %7444 = vmatprep.subr.mxu0 0.0
  %7445 = vmatpush1.msra.mxu0 %v7285
  %7446 = vmatprep.mubr.f32.mxu0 %v7239
  %7447 = vmatmul.mubr.f32.gmra.mrb[0].mxu0 %v7238
  %v7448 = vpop.f32.mrb[0].mxu0
  %v7449 = vadd.f32 0.0, %v7448
  %v7450 = vpop.f32.mrb[0].mxu0
  %7451 = vmatprep.mubr.f32.mxu0 %v7247
  %7452 = vmatmul.mubr.f32.gmra.mrb[0].mxu0 %v7246
  %v7453 = vpop.f32.mrb[0].mxu0
  %v7454 = vadd.f32 0.0, %v7453
  %v7455 = vpop.f32.mrb[0].mxu0
  %7456 = vdwg.mxu0
  %7457 = vmatprep.subr.mxu0 0.0
  %7458 = vmatpush1.msra.mxu0 %v7286
  %7459 = vmatprep.subr.mxu0 0.0
  %7460 = vmatpush1.msra.mxu0 %v7287
  %7461 = vmatprep.subr.mxu0 0.0
  %7462 = vmatpush1.msra.mxu0 %v7288
  %7463 = vmatprep.subr.mxu0 0.0
  %7464 = vmatpush1.msra.mxu0 %v7289
  %7465 = vmatprep.subr.mxu0 0.0
  %7466 = vmatpush1.msra.mxu0 %v7290
  %7467 = vmatprep.subr.mxu0 0.0
  %7468 = vmatpush1.msra.mxu0 %v7291
  %7469 = vmatprep.subr.mxu0 0.0
  %7470 = vmatpush1.msra.mxu0 %v7292
  %7471 = vmatprep.subr.mxu0 0.0
  %7472 = vmatpush1.msra.mxu0 %v7293
  %7473 = vmatprep.subr.mxu0 0.0
  %7474 = vmatpush1.msra.mxu0 %v7294
  %7475 = vmatprep.subr.mxu0 0.0
  %7476 = vmatpush1.msra.mxu0 %v7295
  %7477 = vmatprep.subr.mxu0 0.0
  %7478 = vmatpush1.msra.mxu0 %v7296
  %7479 = vmatprep.subr.mxu0 0.0
  %7480 = vmatpush1.msra.mxu0 %v7297
  %7481 = vmatprep.subr.mxu0 0.0
  %7482 = vmatpush1.msra.mxu0 %v7298
  %7483 = vmatprep.subr.mxu0 0.0
  %7484 = vmatpush1.msra.mxu0 %v7299
  %7485 = vmatprep.subr.mxu0 0.0
  %7486 = vmatpush1.msra.mxu0 %v7300
  %7487 = vmatprep.subr.mxu0 0.0
  %7488 = vmatpush1.msra.mxu0 %v7301
  %7489 = vmatprep.subr.mxu0 0.0
  %7490 = vmatpush1.msra.mxu0 %v7302
  %7491 = vmatprep.subr.mxu0 0.0
  %7492 = vmatpush1.msra.mxu0 %v7303
  %7493 = vmatprep.subr.mxu0 0.0
  %7494 = vmatpush1.msra.mxu0 %v7304
  %7495 = vmatprep.subr.mxu0 0.0
  %7496 = vmatpush1.msra.mxu0 %v7305
  %7497 = vmatprep.subr.mxu0 0.0
  %7498 = vmatpush1.msra.mxu0 %v7306
  %7499 = vmatprep.subr.mxu0 0.0
  %7500 = vmatpush1.msra.mxu0 %v7307
  %7501 = vmatprep.subr.mxu0 0.0
  %7502 = vmatpush1.msra.mxu0 %v7308
  %7503 = vmatprep.subr.mxu0 0.0
  %7504 = vmatpush1.msra.mxu0 %v7309
  %7505 = vmatprep.subr.mxu0 0.0
  %7506 = vmatpush1.msra.mxu0 %v7310
  %7507 = vmatprep.subr.mxu0 0.0
  %7508 = vmatpush1.msra.mxu0 %v7311
  %7509 = vmatprep.subr.mxu0 0.0
  %7510 = vmatpush1.msra.mxu0 %v7312
  %7511 = vmatprep.subr.mxu0 0.0
  %7512 = vmatpush1.msra.mxu0 %v7313
  %7513 = vmatprep.subr.mxu0 0.0
  %7514 = vmatpush1.msra.mxu0 %v7314
  %7515 = vmatprep.subr.mxu0 0.0
  %7516 = vmatpush1.msra.mxu0 %v7315
  %7517 = vmatprep.subr.mxu0 0.0
  %7518 = vmatpush1.msra.mxu0 %v7316
  %7519 = vmatprep.subr.mxu0 0.0
  %7520 = vmatpush1.msra.mxu0 %v7317
  %7521 = vmatprep.mubr.f32.mxu0 %v7241
  %7522 = vmatmul.mubr.f32.gmra.mrb[0].mxu0 %v7240
  %v7523 = vpop.f32.mrb[0].mxu0
  %v7524 = vadd.f32 %v7449, %v7523
  %v7525 = vpop.f32.mrb[0].mxu0
  %7526 = vmatprep.mubr.f32.mxu0 %v7249
  %7527 = vmatmul.mubr.f32.gmra.mrb[0].mxu0 %v7248
  %v7528 = vpop.f32.mrb[0].mxu0
  %v7529 = vadd.f32 %v7454, %v7528
  %v7530 = vpop.f32.mrb[0].mxu0
  %7531 = vdwg.mxu0
  %7532 = vmatprep.subr.mxu0 0.0
  %7533 = vmatpush1.msra.mxu0 %v7318
  %7534 = vmatprep.subr.mxu0 0.0
  %7535 = vmatpush1.msra.mxu0 %v7319
  %7536 = vmatprep.subr.mxu0 0.0
  %7537 = vmatpush1.msra.mxu0 %v7320
  %7538 = vmatprep.subr.mxu0 0.0
  %7539 = vmatpush1.msra.mxu0 %v7321
  %7540 = vmatprep.subr.mxu0 0.0
  %7541 = vmatpush1.msra.mxu0 %v7322
  %7542 = vmatprep.subr.mxu0 0.0
  %7543 = vmatpush1.msra.mxu0 %v7323
  %7544 = vmatprep.subr.mxu0 0.0
  %7545 = vmatpush1.msra.mxu0 %v7324
  %7546 = vmatprep.subr.mxu0 0.0
  %7547 = vmatpush1.msra.mxu0 %v7325
  %7548 = vmatprep.subr.mxu0 0.0
  %7549 = vmatpush1.msra.mxu0 %v7326
  %7550 = vmatprep.subr.mxu0 0.0
  %7551 = vmatpush1.msra.mxu0 %v7327
  %7552 = vmatprep.subr.mxu0 0.0
  %7553 = vmatpush1.msra.mxu0 %v7328
  %7554 = vmatprep.subr.mxu0 0.0
  %7555 = vmatpush1.msra.mxu0 %v7329
  %7556 = vmatprep.subr.mxu0 0.0
  %7557 = vmatpush1.msra.mxu0 %v7330
  %7558 = vmatprep.subr.mxu0 0.0
  %7559 = vmatpush1.msra.mxu0 %v7331
  %7560 = vmatprep.subr.mxu0 0.0
  %7561 = vmatpush1.msra.mxu0 %v7332
  %7562 = vmatprep.subr.mxu0 0.0
  %7563 = vmatpush1.msra.mxu0 %v7333
  %7564 = vmatprep.subr.mxu0 0.0
  %7565 = vmatpush1.msra.mxu0 %v7334
  %7566 = vmatprep.subr.mxu0 0.0
  %7567 = vmatpush1.msra.mxu0 %v7335
  %7568 = vmatprep.subr.mxu0 0.0
  %7569 = vmatpush1.msra.mxu0 %v7336
  %7570 = vmatprep.subr.mxu0 0.0
  %7571 = vmatpush1.msra.mxu0 %v7337
  %7572 = vmatprep.subr.mxu0 0.0
  %7573 = vmatpush1.msra.mxu0 %v7338
  %7574 = vmatprep.subr.mxu0 0.0
  %7575 = vmatpush1.msra.mxu0 %v7339
  %7576 = vmatprep.subr.mxu0 0.0
  %7577 = vmatpush1.msra.mxu0 %v7340
  %7578 = vmatprep.subr.mxu0 0.0
  %7579 = vmatpush1.msra.mxu0 %v7341
  %7580 = vmatprep.subr.mxu0 0.0
  %7581 = vmatpush1.msra.mxu0 %v7342
  %7582 = vmatprep.subr.mxu0 0.0
  %7583 = vmatpush1.msra.mxu0 %v7343
  %7584 = vmatprep.subr.mxu0 0.0
  %7585 = vmatpush1.msra.mxu0 %v7344
  %7586 = vmatprep.subr.mxu0 0.0
  %7587 = vmatpush1.msra.mxu0 %v7345
  %7588 = vmatprep.subr.mxu0 0.0
  %7589 = vmatpush1.msra.mxu0 %v7346
  %7590 = vmatprep.subr.mxu0 0.0
  %7591 = vmatpush1.msra.mxu0 %v7347
  %7592 = vmatprep.subr.mxu0 0.0
  %7593 = vmatpush1.msra.mxu0 %v7348
  %7594 = vmatprep.subr.mxu0 0.0
  %7595 = vmatpush1.msra.mxu0 %v7349
  %7596 = vmatprep.mubr.f32.mxu0 %v7243
  %7597 = vmatmul.mubr.f32.gmra.mrb[0].mxu0 %v7242
  %v7598 = vpop.f32.mrb[0].mxu0
  %v7599 = vadd.f32 %v7524, %v7598
  %v7600 = vpop.f32.mrb[0].mxu0
  %7601 = vmatprep.mubr.f32.mxu0 %v7251
  %7602 = vmatmul.mubr.f32.gmra.mrb[0].mxu0 %v7250
  %v7603 = vpop.f32.mrb[0].mxu0
  %v7604 = vadd.f32 %v7529, %v7603
  %v7605 = vpop.f32.mrb[0].mxu0
  %7606 = vdwg.mxu0
  %7607 = vmatprep.subr.mxu0 0.0
  %7608 = vmatpush1.msra.mxu0 %v7350
  %7609 = vmatprep.subr.mxu0 0.0
  %7610 = vmatpush1.msra.mxu0 %v7351
  %7611 = vmatprep.subr.mxu0 0.0
  %7612 = vmatpush1.msra.mxu0 %v7352
  %7613 = vmatprep.subr.mxu0 0.0
  %7614 = vmatpush1.msra.mxu0 %v7353
  %7615 = vmatprep.subr.mxu0 0.0
  %7616 = vmatpush1.msra.mxu0 %v7354
  %7617 = vmatprep.subr.mxu0 0.0
  %7618 = vmatpush1.msra.mxu0 %v7355
  %7619 = vmatprep.subr.mxu0 0.0
  %7620 = vmatpush1.msra.mxu0 %v7356
  %7621 = vmatprep.subr.mxu0 0.0
  %7622 = vmatpush1.msra.mxu0 %v7357
  %7623 = vmatprep.subr.mxu0 0.0
  %7624 = vmatpush1.msra.mxu0 %v7358
  %7625 = vmatprep.subr.mxu0 0.0
  %7626 = vmatpush1.msra.mxu0 %v7359
  %7627 = vmatprep.subr.mxu0 0.0
  %7628 = vmatpush1.msra.mxu0 %v7360
  %7629 = vmatprep.subr.mxu0 0.0
  %7630 = vmatpush1.msra.mxu0 %v7361
  %7631 = vmatprep.subr.mxu0 0.0
  %7632 = vmatpush1.msra.mxu0 %v7362
  %7633 = vmatprep.subr.mxu0 0.0
  %7634 = vmatpush1.msra.mxu0 %v7363
  %7635 = vmatprep.subr.mxu0 0.0
  %7636 = vmatpush1.msra.mxu0 %v7364
  %7637 = vmatprep.subr.mxu0 0.0
  %7638 = vmatpush1.msra.mxu0 %v7365
  %7639 = vmatprep.subr.mxu0 0.0
  %7640 = vmatpush1.msra.mxu0 %v7366
  %7641 = vmatprep.subr.mxu0 0.0
  %7642 = vmatpush1.msra.mxu0 %v7367
  %7643 = vmatprep.subr.mxu0 0.0
  %7644 = vmatpush1.msra.mxu0 %v7368
  %7645 = vmatprep.subr.mxu0 0.0
  %7646 = vmatpush1.msra.mxu0 %v7369
  %7647 = vmatprep.subr.mxu0 0.0
  %7648 = vmatpush1.msra.mxu0 %v7370
  %7649 = vmatprep.subr.mxu0 0.0
  %7650 = vmatpush1.msra.mxu0 %v7371
  %7651 = vmatprep.subr.mxu0 0.0
  %7652 = vmatpush1.msra.mxu0 %v7372
  %7653 = vmatprep.subr.mxu0 0.0
  %7654 = vmatpush1.msra.mxu0 %v7373
  %7655 = vmatprep.subr.mxu0 0.0
  %7656 = vmatpush1.msra.mxu0 %v7374
  %7657 = vmatprep.subr.mxu0 0.0
  %7658 = vmatpush1.msra.mxu0 %v7375
  %7659 = vmatprep.subr.mxu0 0.0
  %7660 = vmatpush1.msra.mxu0 %v7376
  %7661 = vmatprep.subr.mxu0 0.0
  %7662 = vmatpush1.msra.mxu0 %v7377
  %7663 = vmatprep.subr.mxu0 0.0
  %7664 = vmatpush1.msra.mxu0 %v7378
  %7665 = vmatprep.subr.mxu0 0.0
  %7666 = vmatpush1.msra.mxu0 %v7379
  %7667 = vmatprep.subr.mxu0 0.0
  %7668 = vmatpush1.msra.mxu0 %v7380
  %7669 = vmatprep.subr.mxu0 0.0
  %7670 = vmatpush1.msra.mxu0 %v7381
  %7671 = vmatprep.mubr.f32.mxu0 %v7245
  %7672 = vmatmul.mubr.f32.gmra.mrb[0].mxu0 %v7244
  %v7673 = vpop.f32.mrb[0].mxu0
  %v7674 = vadd.f32 %v7599, %v7673
  %v7675 = vpop.f32.mrb[0].mxu0
  %7676 = vmatprep.mubr.f32.mxu0 %v7253
  %7677 = vmatmul.mubr.f32.gmra.mrb[0].mxu0 %v7252
  %v7678 = vpop.f32.mrb[0].mxu0
  %v7679 = vadd.f32 %v7604, %v7678
  %v7680 = vpop.f32.mrb[0].mxu0
  %7681 = vdwg.mxu0
  %vm7682 = vcmask 15360
  %v7683 = vsel %vm7682, %v7674, 0.0
  %v7684 = vsel %vm7682, %v7679, 0.0
  %v7685 = vadd.f32 %v7683, %v7684
  %v7686 = vrot.slane %v7685, 4
  %v7687 = vadd.f32 %v7685, %v7686
  %v7688 = vrot.slane %v7687, 2
  %v7689 = vadd.f32 %v7687, %v7688
  %v7690 = vrot.slane %v7689, 1
  %v7691 = vadd.f32 %v7689, %v7690
  %v7692 = vrcp.pop 16.0
  %v7693 = vmul.f32 %v7691, %v7692
  %v7694 = vsub.f32 %v7674, %v7693
  %v7695 = vsub.f32 %v7679, %v7693
  %v7696 = vmul.f32 %v7694, %v7694
  %v7697 = vmul.f32 %v7695, %v7695
  %v7698 = vsel %vm7682, %v7696, 0.0
  %v7699 = vsel %vm7682, %v7697, 0.0
  %v7700 = vadd.f32 %v7698, %v7699
  %v7701 = vrot.slane %v7700, 4
  %v7702 = vadd.f32 %v7700, %v7701
  %v7703 = vrot.slane %v7702, 2
  %v7704 = vadd.f32 %v7702, %v7703
  %v7705 = vrot.slane %v7704, 1
  %v7706 = vadd.f32 %v7704, %v7705
  %v7707 = vmul.f32 %v7706, %v7692
  %v7708 = vadd.f32 %v7707, 1e-05
  %v7709 = vrsqrt.pop %v7708
  %v7710 = vmul.f32 %v7694, %v7709
  %v7711 = vmul.f32 %v7695, %v7709
  %v7712 = vld [vmem:[%s7] sm:$0xff]
  %v7713 = vld [vmem:[%s7 + $0x8] sm:$0xff]
  %7715 = vset.pattern.permute.xlu0 0
  %7716 = vperm.xlu0 %7715, %v7712
  %v7717 = vpop.permute.xlu0 %7716
  %7720 = vset.pattern.permute.xlu0 0
  %7721 = vperm.xlu0 %7720, %v7713
  %v7722 = vpop.permute.xlu0 %7721
  %v7724 = vmul.f32 %v7710, %v7717
  %v7725 = vmul.f32 %v7711, %v7722
  %v7726 = vld [vmem:[%s8] sm:$0xff]
  %v7727 = vld [vmem:[%s8 + $0x8] sm:$0xff]
  %7729 = vset.pattern.permute.xlu0 0
  %7730 = vperm.xlu0 %7729, %v7726
  %v7731 = vpop.permute.xlu0 %7730
  %7734 = vset.pattern.permute.xlu0 0
  %7735 = vperm.xlu0 %7734, %v7727
  %v7736 = vpop.permute.xlu0 %7735
  %v7738 = vadd.f32 %v7724, %v7731
  %v7739 = vadd.f32 %v7725, %v7736
  %v7740 = vld [vmem:[%s9] sm:$0xff]
  %v7741 = vld [vmem:[%s9 + $0x8] sm:$0xff]
  %v7742 = vld [vmem:[%s9 + $0x10] sm:$0xff]
  %v7743 = vld [vmem:[%s9 + $0x18] sm:$0xff]
  %v7744 = vld [vmem:[%s10] sm:$0xff]
  %v7745 = vld [vmem:[%s10 + $0x8] sm:$0xff]
  %v7746 = vld [vmem:[%s10 + $0x10] sm:$0xff]
  %v7747 = vld [vmem:[%s10 + $0x18] sm:$0xff]
  %7749 = vset.pattern.permute.xlu0 0
  %7750 = vperm.xlu0 %7749, %v7744
  %v7751 = vpop.permute.xlu0 %7750
  %7754 = vset.pattern.permute.xlu0 0
  %7755 = vperm.xlu0 %7754, %v7745
  %v7756 = vpop.permute.xlu0 %7755
  %7759 = vset.pattern.permute.xlu0 0
  %7760 = vperm.xlu0 %7759, %v7746
  %v7761 = vpop.permute.xlu0 %7760
  %7764 = vset.pattern.permute.xlu0 0
  %7765 = vperm.xlu0 %7764, %v7747
  %v7766 = vpop.permute.xlu0 %7765
  %vm7768 = vcmask 130048
  %v7770 = vsel %vm7768, %v7740, 0
  %v7773 = vsel %vm7768, %v7741, 0
  %v7776 = vsel %vm7768, %v7742, 0
  %v7779 = vsel %vm7768, %v7743, 0
  %7781 = vmatprep.subr.mxu0 0.0
  %7782 = vmatpush1.msra.mxu0 %v7738
  %7783 = vmatprep.subr.mxu0 0.0
  %7784 = vmatpush1.msra.mxu0 %v7739
  %7785 = vmatprep.subr.mxu0 0.0
  %7786 = vmatpush1.msra.mxu0 0.0
  %7787 = vmatprep.subr.mxu0 0.0
  %7788 = vmatpush1.msra.mxu0 0.0
  %7789 = vmatprep.subr.mxu0 0.0
  %7790 = vmatpush1.msra.mxu0 0.0
  %7791 = vmatprep.subr.mxu0 0.0
  %7792 = vmatpush1.msra.mxu0 0.0
  %7793 = vmatprep.subr.mxu0 0.0
  %7794 = vmatpush1.msra.mxu0 0.0
  %7795 = vmatprep.subr.mxu0 0.0
  %7796 = vmatpush1.msra.mxu0 0.0
  %7797 = vmatprep.subr.mxu0 0.0
  %7798 = vmatpush1.msra.mxu0 0.0
  %7799 = vmatprep.subr.mxu0 0.0
  %7800 = vmatpush1.msra.mxu0 0.0
  %7801 = vmatprep.subr.mxu0 0.0
  %7802 = vmatpush1.msra.mxu0 0.0
  %7803 = vmatprep.subr.mxu0 0.0
  %7804 = vmatpush1.msra.mxu0 0.0
  %7805 = vmatprep.subr.mxu0 0.0
  %7806 = vmatpush1.msra.mxu0 0.0
  %7807 = vmatprep.subr.mxu0 0.0
  %7808 = vmatpush1.msra.mxu0 0.0
  %7809 = vmatprep.subr.mxu0 0.0
  %7810 = vmatpush1.msra.mxu0 0.0
  %7811 = vmatprep.subr.mxu0 0.0
  %7812 = vmatpush1.msra.mxu0 0.0
  %7813 = vmatprep.subr.mxu0 0.0
  %7814 = vmatpush1.msra.mxu0 0.0
  %7815 = vmatprep.subr.mxu0 0.0
  %7816 = vmatpush1.msra.mxu0 0.0
  %7817 = vmatprep.subr.mxu0 0.0
  %7818 = vmatpush1.msra.mxu0 0.0
  %7819 = vmatprep.subr.mxu0 0.0
  %7820 = vmatpush1.msra.mxu0 0.0
  %7821 = vmatprep.subr.mxu0 0.0
  %7822 = vmatpush1.msra.mxu0 0.0
  %7823 = vmatprep.subr.mxu0 0.0
  %7824 = vmatpush1.msra.mxu0 0.0
  %7825 = vmatprep.subr.mxu0 0.0
  %7826 = vmatpush1.msra.mxu0 0.0
  %7827 = vmatprep.subr.mxu0 0.0
  %7828 = vmatpush1.msra.mxu0 0.0
  %7829 = vmatprep.subr.mxu0 0.0
  %7830 = vmatpush1.msra.mxu0 0.0
  %7831 = vmatprep.subr.mxu0 0.0
  %7832 = vmatpush1.msra.mxu0 0.0
  %7833 = vmatprep.subr.mxu0 0.0
  %7834 = vmatpush1.msra.mxu0 0.0
  %7835 = vmatprep.subr.mxu0 0.0
  %7836 = vmatpush1.msra.mxu0 0.0
  %7837 = vmatprep.subr.mxu0 0.0
  %7838 = vmatpush1.msra.mxu0 0.0
  %7839 = vmatprep.subr.mxu0 0.0
  %7840 = vmatpush1.msra.mxu0 0.0
  %7841 = vmatprep.subr.mxu0 0.0
  %7842 = vmatpush1.msra.mxu0 0.0
  %7843 = vmatprep.subr.mxu0 0.0
  %7844 = vmatpush1.msra.mxu0 0.0
  %7845 = vmatprep.mubr.f32.mxu0 0.0
  %7846 = vmatmul.mubr.f32.gmra.mrb[0].mxu0 %v7770
  %v7847 = vpop.f32.mrb[0].mxu0
  %v7848 = vadd.f32 %v7751, %v7847
  %v7849 = vpop.f32.mrb[0].mxu0
  %7850 = vmatprep.mubr.f32.mxu0 0.0
  %7851 = vmatmul.mubr.f32.gmra.mrb[0].mxu0 %v7773
  %v7852 = vpop.f32.mrb[0].mxu0
  %v7853 = vadd.f32 %v7756, %v7852
  %v7854 = vpop.f32.mrb[0].mxu0
  %7855 = vmatprep.mubr.f32.mxu0 0.0
  %7856 = vmatmul.mubr.f32.gmra.mrb[0].mxu0 %v7776
  %v7857 = vpop.f32.mrb[0].mxu0
  %v7858 = vadd.f32 %v7761, %v7857
  %v7859 = vpop.f32.mrb[0].mxu0
  %7860 = vmatprep.mubr.f32.mxu0 0.0
  %7861 = vmatmul.mubr.f32.gmra.mrb[0].mxu0 %v7779
  %v7862 = vpop.f32.mrb[0].mxu0
  %v7863 = vadd.f32 %v7766, %v7862
  %v7864 = vpop.f32.mrb[0].mxu0
  %7865 = vdwg.mxu0
  %v7866 = vmax.f32 %v7848, 0.0
  %v7867 = vmax.f32 %v7853, 0.0
  %v7868 = vmax.f32 %v7858, 0.0
  %v7869 = vmax.f32 %v7863, 0.0
  %v7870 = vld [vmem:[%s11] sm:$0xff]
  %v7871 = vld [vmem:[%s12] sm:$0xff]
  %7873 = vset.pattern.permute.xlu0 0
  %7874 = vperm.xlu0 %7873, %v7871
  %v7875 = vpop.permute.xlu0 %7874
  %vm7877 = vcmask 261120
  %v7879 = vsel %vm7877, %v7870, 0
  %7881 = vmatprep.subr.mxu0 0.0
  %7882 = vmatpush1.msra.mxu0 %v7866
  %7883 = vmatprep.subr.mxu0 0.0
  %7884 = vmatpush1.msra.mxu0 %v7867
  %7885 = vmatprep.subr.mxu0 0.0
  %7886 = vmatpush1.msra.mxu0 %v7868
  %7887 = vmatprep.subr.mxu0 0.0
  %7888 = vmatpush1.msra.mxu0 %v7869
  %7889 = vmatprep.subr.mxu0 0.0
  %7890 = vmatpush1.msra.mxu0 0.0
  %7891 = vmatprep.subr.mxu0 0.0
  %7892 = vmatpush1.msra.mxu0 0.0
  %7893 = vmatprep.subr.mxu0 0.0
  %7894 = vmatpush1.msra.mxu0 0.0
  %7895 = vmatprep.subr.mxu0 0.0
  %7896 = vmatpush1.msra.mxu0 0.0
  %7897 = vmatprep.subr.mxu0 0.0
  %7898 = vmatpush1.msra.mxu0 0.0
  %7899 = vmatprep.subr.mxu0 0.0
  %7900 = vmatpush1.msra.mxu0 0.0
  %7901 = vmatprep.subr.mxu0 0.0
  %7902 = vmatpush1.msra.mxu0 0.0
  %7903 = vmatprep.subr.mxu0 0.0
  %7904 = vmatpush1.msra.mxu0 0.0
  %7905 = vmatprep.subr.mxu0 0.0
  %7906 = vmatpush1.msra.mxu0 0.0
  %7907 = vmatprep.subr.mxu0 0.0
  %7908 = vmatpush1.msra.mxu0 0.0
  %7909 = vmatprep.subr.mxu0 0.0
  %7910 = vmatpush1.msra.mxu0 0.0
  %7911 = vmatprep.subr.mxu0 0.0
  %7912 = vmatpush1.msra.mxu0 0.0
  %7913 = vmatprep.subr.mxu0 0.0
  %7914 = vmatpush1.msra.mxu0 0.0
  %7915 = vmatprep.subr.mxu0 0.0
  %7916 = vmatpush1.msra.mxu0 0.0
  %7917 = vmatprep.subr.mxu0 0.0
  %7918 = vmatpush1.msra.mxu0 0.0
  %7919 = vmatprep.subr.mxu0 0.0
  %7920 = vmatpush1.msra.mxu0 0.0
  %7921 = vmatprep.subr.mxu0 0.0
  %7922 = vmatpush1.msra.mxu0 0.0
  %7923 = vmatprep.subr.mxu0 0.0
  %7924 = vmatpush1.msra.mxu0 0.0
  %7925 = vmatprep.subr.mxu0 0.0
  %7926 = vmatpush1.msra.mxu0 0.0
  %7927 = vmatprep.subr.mxu0 0.0
  %7928 = vmatpush1.msra.mxu0 0.0
  %7929 = vmatprep.subr.mxu0 0.0
  %7930 = vmatpush1.msra.mxu0 0.0
  %7931 = vmatprep.subr.mxu0 0.0
  %7932 = vmatpush1.msra.mxu0 0.0
  %7933 = vmatprep.subr.mxu0 0.0
  %7934 = vmatpush1.msra.mxu0 0.0
  %7935 = vmatprep.subr.mxu0 0.0
  %7936 = vmatpush1.msra.mxu0 0.0
  %7937 = vmatprep.subr.mxu0 0.0
  %7938 = vmatpush1.msra.mxu0 0.0
  %7939 = vmatprep.subr.mxu0 0.0
  %7940 = vmatpush1.msra.mxu0 0.0
  %7941 = vmatprep.subr.mxu0 0.0
  %7942 = vmatpush1.msra.mxu0 0.0
  %7943 = vmatprep.subr.mxu0 0.0
  %7944 = vmatpush1.msra.mxu0 0.0
  %7945 = vmatprep.mubr.f32.mxu0 0.0
  %7946 = vmatmul.mubr.f32.gmra.mrb[0].mxu0 %v7879
  %v7947 = vpop.f32.mrb[0].mxu0
  %v7948 = vadd.f32 %v7875, %v7947
  %v7949 = vpop.f32.mrb[0].mxu0
  %7950 = vdwg.mxu0
  %7951 = vst.msk [vmem:[%s13] sm:$0xff] %vm7682, %v7948
  // Predicated region
  $region54: #{cnn_forward.1} parent=0 // pred_check
    _
  $region55: #{cnn_forward.1} parent=0 // pred_check_branch
    %7953 = sbr.rel (0) target = $region57
  $region56: #{cnn_forward.1} parent=0 // pred_region
    _
  $region57: #{cnn_forward.1} parent=0 // pred_fallthru
    _
  // Predicated region
  $region58: #{cnn_forward.1} parent=0 // pred_check
    _
  $region59: #{cnn_forward.1} parent=0 // pred_check_branch
    %7955 = sbr.rel (0) target = $region61
  $region60: #{cnn_forward.1} parent=0 // pred_region
    _
  $region61: #{cnn_forward.1} parent=0 // pred_fallthru
    _

</llo_original>
